<compile_context>
chip_gen: v6e
topology: v6e:2x2x1
jax: 0.10.0
libtpu: 0.0.40
codegen_flags: <defaults>
</compile_context>

<pallas_src>
import jax
import jax.numpy as jnp
from jax.experimental import pallas as pl
from jax.experimental.pallas import tpu as pltpu

LEAKY_SLOPE = 0.2
_CHANNELS = (3, 64, 128, 256, 512, 512)   # conv stack: 3->64->128->256->512->512
_CIN0_PAD = 8                             # pad the 3 input channels to 8 -> K0 = 128
_MAX_TK = 2048                            # bf16 B tile <= 2 MiB
_MAX_TM = 1024                            # ~1K-row tiles: ~85% HBM roofline, v5e-safe


def _round_up(x, m):
    return (x + m - 1) // m * m


def _leaky(z):
    # mul + max: one fewer VPU op per element than compare + select.
    return jnp.maximum(z, LEAKY_SLOPE * z)


# ---------------------------------------------------------------------------
# Conv block kernels: LeakyReLU(A @ B + shift) -> bf16.
# BN scale is pre-folded into B's columns, conv bias into shift.
# Grid = (M tiles, N tiles, K steps); K is last ("arbitrary").
# ---------------------------------------------------------------------------
def _conv_block_1k_kernel(a_ref, b_ref, shift_ref, o_ref):
    # Single K step: no zero-fill, no output read-modify-write.
    z = jnp.dot(a_ref[...], b_ref[...], preferred_element_type=jnp.float32)
    z = z + shift_ref[...]                          # folded BN shift + bias
    o_ref[...] = _leaky(z).astype(o_ref.dtype)


def _conv_block_multik_kernel(a_ref, b_ref, shift_ref, o_ref, acc_ref):
    k = pl.program_id(2)

    @pl.when(k == 0)
    def _():
        acc_ref[...] = jnp.zeros_like(acc_ref)

    acc_ref[...] += jnp.dot(a_ref[...], b_ref[...],
                            preferred_element_type=jnp.float32)

    @pl.when(k == pl.num_programs(2) - 1)
    def _():
        z = acc_ref[...] + shift_ref[...]           # folded BN shift + bias
        o_ref[...] = _leaky(z).astype(o_ref.dtype)


def conv_block(a, w_mat, shift):
    """LeakyReLU(a @ w_mat + shift) -> bf16. a: (M,K) bf16, w_mat: (K,Np) bf16."""
    M, K = a.shape
    _, Np = w_mat.shape
    Mp = _round_up(M, 8)
    if Mp != M:
        a = jnp.pad(a, ((0, Mp - M), (0, 0)))

    tk = K if K <= _MAX_TK else _MAX_TK
    if Mp <= _MAX_TM:
        tm = Mp                                     # don't split small M: avoids B re-DMA
    else:
        tm = _MAX_TM
        while Mp % tm:                              # fallback: Mp is a multiple of 8
            tm //= 2
    tn = 256 if (Np > 256 and Np % 256 == 0) else Np   # 256-wide N for 256x256 MXUs
    assert K % tk == 0 and Mp % tm == 0 and Np % tn == 0, (M, K, Np, tm, tn, tk)
    nk = K // tk
    grid = (Mp // tm, Np // tn, nk)

    in_specs = [
        pl.BlockSpec((tm, tk), lambda mi, ni, ki: (mi, ki)),
        pl.BlockSpec((tk, tn), lambda mi, ni, ki: (ki, ni)),
        pl.BlockSpec((1, tn), lambda mi, ni, ki: (0, ni)),
    ]
    out_spec = pl.BlockSpec((tm, tn), lambda mi, ni, ki: (mi, ni))
    kernel = _conv_block_1k_kernel if nk == 1 else _conv_block_multik_kernel
    scratch = [] if nk == 1 else [pltpu.VMEM((tm, tn), jnp.float32)]

    out = pl.pallas_call(
        kernel,
        out_shape=jax.ShapeDtypeStruct((Mp, Np), jnp.bfloat16),
        grid_spec=pltpu.PrefetchScalarGridSpec(
            num_scalar_prefetch=0,
            grid=grid,
            in_specs=in_specs,
            out_specs=out_spec,
            scratch_shapes=scratch,
        ),
        compiler_params=pltpu.CompilerParams(
            dimension_semantics=("parallel", "parallel", "arbitrary")),
    )(a, w_mat, shift)
    return out[:M]


# ---------------------------------------------------------------------------
# Block 5 + head: LeakyReLU(A @ B + shift), then fused 1x1 conv (512 -> 1,
# replicated into a 128-lane output tile) + sigmoid.  M is small (<=512 at the
# real spec), so a single (M, N) tile with a K-step grid is used.
# ---------------------------------------------------------------------------
def _final_block_kernel(a_ref, b_ref, shift_ref, wh_ref, bh_ref, o_ref, acc_ref):
    k = pl.program_id(0)

    @pl.when(k == 0)
    def _():
        acc_ref[...] = jnp.zeros_like(acc_ref)

    acc_ref[...] += jnp.dot(a_ref[...], b_ref[...],
                            preferred_element_type=jnp.float32)

    @pl.when(k == pl.num_programs(0) - 1)
    def _():
        z = _leaky(acc_ref[...] + shift_ref[...])        # folded BN + bias + LeakyReLU
        h = jnp.dot(z.astype(jnp.bfloat16), wh_ref[...],  # bf16 1x1 head conv (1 MXU pass)
                    preferred_element_type=jnp.float32)
        h = h + bh_ref[...]
        o_ref[...] = 1.0 / (1.0 + jnp.exp(-h))            # sigmoid


def final_block(a, w_mat, shift, wh, bh):
    M, K = a.shape
    _, Np = w_mat.shape            # 512
    Nh = wh.shape[1]               # 128 (head column padded to one lane tile)
    Mp = _round_up(M, 8)
    if Mp != M:
        a = jnp.pad(a, ((0, Mp - M), (0, 0)))
    tk = K if K <= _MAX_TK else _MAX_TK
    assert K % tk == 0, (K, tk)

    out = pl.pallas_call(
        _final_block_kernel,
        out_shape=jax.ShapeDtypeStruct((Mp, Nh), jnp.float32),
        grid_spec=pltpu.PrefetchScalarGridSpec(
            num_scalar_prefetch=0,
            grid=(K // tk,),
            in_specs=[
                pl.BlockSpec((Mp, tk), lambda ki: (0, ki)),
                pl.BlockSpec((tk, Np), lambda ki: (ki, 0)),
                pl.BlockSpec((1, Np), lambda ki: (0, 0)),
                pl.BlockSpec((Np, Nh), lambda ki: (0, 0)),
                pl.BlockSpec((1, Nh), lambda ki: (0, 0)),
            ],
            out_specs=pl.BlockSpec((Mp, Nh), lambda ki: (0, 0)),
            scratch_shapes=[pltpu.VMEM((Mp, Np), jnp.float32)],
        ),
        compiler_params=pltpu.CompilerParams(
            dimension_semantics=("arbitrary",)),
    )(a, w_mat, shift, wh, bh)
    return out[:M]


# ---------------------------------------------------------------------------
# JAX glue: NHWC im2col for k=4, s=2, p=1 (features ordered kh, kw, Cin-major,
# matching the init-time weight flattening).  Runs in bf16.
# ---------------------------------------------------------------------------
def im2col_k4s2p1_nhwc(x):
    n, h, w, c = x.shape
    ho, wo = h // 2, w // 2
    xp = jnp.pad(x, ((0, 0), (1, 1), (1, 1), (0, 0)))
    cols = []
    for i in range(4):
        for j in range(4):
            cols.append(xp[:, i:i + 2 * ho:2, j:j + 2 * wo:2, :])
    p = jnp.concatenate(cols, axis=-1)               # (n, ho, wo, 16*c)
    return p.reshape(n * ho * wo, 16 * c), (n, ho, wo)


# ---------------------------------------------------------------------------
# Deterministic parameter construction (DCGAN-style N(0, 0.02) init).
# All folding / flattening / padding / bf16 casting happens here, once.
# ---------------------------------------------------------------------------
def init_params(key):
    blocks = []
    for li in range(5):
        cin, cout = _CHANNELS[li], _CHANNELS[li + 1]
        key, kw, kg = jax.random.split(key, 3)
        w = 0.02 * jax.random.normal(kw, (cout, cin, 4, 4), jnp.float32)
        b = jnp.zeros((cout,), jnp.float32)
        if li == 0:
            # first block: no BN -> identity scale/shift; pad Cin 3 -> 8.
            scale = jnp.ones((cout,), jnp.float32)
            shift = jnp.zeros((cout,), jnp.float32)
            cin_p = _CIN0_PAD
            w = jnp.zeros((cout, cin_p, 4, 4), jnp.float32).at[:, :cin].set(w)
        else:
            gamma = 1.0 + 0.02 * jax.random.normal(kg, (cout,), jnp.float32)
            beta = jnp.zeros((cout,), jnp.float32)
            running_mean = jnp.zeros((cout,), jnp.float32)
            running_var = jnp.ones((cout,), jnp.float32)
            inv = gamma / jnp.sqrt(running_var + 1e-5)
            scale = inv
            shift = beta - running_mean * inv
            cin_p = cin

        k_dim = cin_p * 16
        np_dim = max(_round_up(cout, 128), 128)
        # (Cout,Cin,kh,kw) -> (kh,kw,Cin,Cout) -> (16*Cin, Cout); fold BN scale.
        w_mat = jnp.transpose(w, (2, 3, 1, 0)).reshape(k_dim, cout) * scale[None, :]
        shift_f = scale * b + shift                   # fold conv bias into shift
        w_pad = jnp.zeros((k_dim, np_dim), jnp.float32).at[:, :cout].set(w_mat)
        s_pad = jnp.zeros((1, np_dim), jnp.float32).at[0, :cout].set(shift_f)
        blocks.append((w_pad.astype(jnp.bfloat16), s_pad))

    key, kh = jax.random.split(key)
    w_head = 0.02 * jax.random.normal(kh, (1, 512, 1, 1), jnp.float32)
    b_head = jnp.zeros((1,), jnp.float32)
    wh = jnp.zeros((512, 128), jnp.float32).at[:, 0].set(w_head.reshape(512))
    bh = jnp.zeros((1, 128), jnp.float32).at[0, 0].set(b_head[0])
    return blocks, (wh.astype(jnp.bfloat16), bh)


# ---------------------------------------------------------------------------
# Forward pass: NCHW in -> NCHW patch-score map out.
# ---------------------------------------------------------------------------
@jax.jit
def net_discriminator(x_nchw, blocks, head):
    x = jnp.transpose(x_nchw, (0, 2, 3, 1)).astype(jnp.bfloat16)   # NHWC + bf16, once
    x = jnp.pad(x, ((0, 0), (0, 0), (0, 0), (0, _CIN0_PAD - _CHANNELS[0])))
    for li in range(4):                                            # blocks 1-4
        w_mat, shift = blocks[li]
        cout = _CHANNELS[li + 1]
        a, (n, ho, wo) = im2col_k4s2p1_nhwc(x)
        y = conv_block(a, w_mat, shift)                            # bf16 out
        x = y[:, :cout].reshape(n, ho, wo, cout)
    w_mat, shift = blocks[4]                                       # block 5 + head
    wh, bh = head
    a, (n, ho, wo) = im2col_k4s2p1_nhwc(x)
    h = final_block(a, w_mat, shift, wh, bh)
    h = h[:, :1].reshape(n, ho, wo, 1)
    return jnp.transpose(h, (0, 3, 1, 2))                          # back to NCHW


if __name__ == "__main__":
    key = jax.random.PRNGKey(0)
    kx, kp = jax.random.split(key)

    # Spec input is (N, 3, 256, 256) with nstride=32 (8x8 patch map); use a
    # small 3x32x32 input here -> a single 1x1 patch score, to keep it light.
    x = jax.random.normal(kx, (2, 3, 32, 32), jnp.float32)         # NCHW

    blocks, head = init_params(kp)
    out = net_discriminator(x, blocks, head)
    out = jax.block_until_ready(out)

    assert out.shape == (2, 1, 1, 1), out.shape
    assert bool(jnp.all((out >= 0.0) & (out <= 1.0)))
    print("KERNEL_OK")
</pallas_src>

<mosaic_0001>
module attributes {stable_mosaic.version = 11 : i64} {
  func.func @_conv_block_1k_kernel(%arg0: i32, %arg1: i32, %arg2: i32, %arg3: memref<512x128xbf16, #tpu.memory_space<vmem>>, %arg4: memref<128x128xbf16, #tpu.memory_space<vmem>>, %arg5: memref<1x128xf32, #tpu.memory_space<vmem>>, %arg6: memref<512x128xbf16, #tpu.memory_space<vmem>>) attributes {dimension_semantics = [#tpu.dimension_semantics<parallel>, #tpu.dimension_semantics<parallel>, #tpu.dimension_semantics<arbitrary>], iteration_bounds = array<i64: 1, 1, 1>, scalar_prefetch = 0 : i64, scratch_operands = 0 : i64, tpu.core_type = #tpu.core_type<tc>, window_params = [{transform_indices = @transform_0, window_bounds = array<i64: 512, 128>}, {transform_indices = @transform_1, window_bounds = array<i64: 128, 128>}, {transform_indices = @transform_2, window_bounds = array<i64: 1, 128>}, {transform_indices = @transform_3, window_bounds = array<i64: 512, 128>}]} {
    %c0 = arith.constant 0 : index
    %c0_0 = arith.constant 0 : index
    %0 = vector.load %arg3[%c0, %c0_0] : memref<512x128xbf16, #tpu.memory_space<vmem>>, vector<512x128xbf16>
    %c0_1 = arith.constant 0 : index
    %c0_2 = arith.constant 0 : index
    %1 = vector.load %arg4[%c0_1, %c0_2] : memref<128x128xbf16, #tpu.memory_space<vmem>>, vector<128x128xbf16>
    %cst = arith.constant dense<0.000000e+00> : vector<512x128xf32>
    %2 = tpu.matmul %0, %1, %cst {dimension_numbers = #tpu.dot_dimension_numbers<[1], [0], [0], [1], [0, 0, 1, 1], [], []>} : vector<512x128xbf16>, vector<128x128xbf16>, vector<512x128xf32> -> vector<512x128xf32>
    %c0_3 = arith.constant 0 : index
    %c0_4 = arith.constant 0 : index
    %3 = vector.load %arg5[%c0_3, %c0_4] : memref<1x128xf32, #tpu.memory_space<vmem>>, vector<1x128xf32>
    %4 = vector.broadcast %3 : vector<1x128xf32> to vector<512x128xf32>
    %5 = arith.addf %2, %4 : vector<512x128xf32>
    %cst_5 = arith.constant 2.000000e-01 : f32
    %6 = vector.broadcast %cst_5 : f32 to vector<512x128xf32>
    %7 = arith.mulf %6, %5 : vector<512x128xf32>
    %8 = arith.maximumf %5, %7 : vector<512x128xf32>
    %9 = arith.truncf %8 : vector<512x128xf32> to vector<512x128xbf16>
    %c0_6 = arith.constant 0 : index
    %c0_7 = arith.constant 0 : index
    %10 = vector.load %arg6[%c0_6, %c0_7] : memref<512x128xbf16, #tpu.memory_space<vmem>>, vector<512x128xbf16>
    tpu.vector_store %arg6[%c0_6, %c0_7], %9 {strides = array<i32>} : memref<512x128xbf16, #tpu.memory_space<vmem>>, vector<512x128xbf16>,
    return
  }
  func.func @transform_0(%arg0: i32, %arg1: i32, %arg2: i32) -> (i32, i32) {
    %c0_i32 = arith.constant 0 : i32
    return %arg0, %arg2 : i32, i32
  }
  func.func @transform_1(%arg0: i32, %arg1: i32, %arg2: i32) -> (i32, i32) {
    %c0_i32 = arith.constant 0 : i32
    return %arg2, %arg1 : i32, i32
  }
  func.func @transform_2(%arg0: i32, %arg1: i32, %arg2: i32) -> (i32, i32) {
    %c0_i32 = arith.constant 0 : i32
    %c0_i32_0 = arith.constant 0 : i32
    return %c0_i32, %arg1 : i32, i32
  }
  func.func @transform_3(%arg0: i32, %arg1: i32, %arg2: i32) -> (i32, i32) {
    %c0_i32 = arith.constant 0 : i32
    return %arg0, %arg1 : i32, i32
  }
}

module attributes {stable_mosaic.version = 11 : i64} {
  func.func @_conv_block_1k_kernel(%arg0: i32, %arg1: i32, %arg2: i32, %arg3: memref<128x1024xbf16, #tpu.memory_space<vmem>>, %arg4: memref<1024x128xbf16, #tpu.memory_space<vmem>>, %arg5: memref<1x128xf32, #tpu.memory_space<vmem>>, %arg6: memref<128x128xbf16, #tpu.memory_space<vmem>>) attributes {dimension_semantics = [#tpu.dimension_semantics<parallel>, #tpu.dimension_semantics<parallel>, #tpu.dimension_semantics<arbitrary>], iteration_bounds = array<i64: 1, 1, 1>, scalar_prefetch = 0 : i64, scratch_operands = 0 : i64, tpu.core_type = #tpu.core_type<tc>, window_params = [{transform_indices = @transform_0, window_bounds = array<i64: 128, 1024>}, {transform_indices = @transform_1, window_bounds = array<i64: 1024, 128>}, {transform_indices = @transform_2, window_bounds = array<i64: 1, 128>}, {transform_indices = @transform_3, window_bounds = array<i64: 128, 128>}]} {
    %c0 = arith.constant 0 : index
    %c0_0 = arith.constant 0 : index
    %0 = vector.load %arg3[%c0, %c0_0] : memref<128x1024xbf16, #tpu.memory_space<vmem>>, vector<128x1024xbf16>
    %c0_1 = arith.constant 0 : index
    %c0_2 = arith.constant 0 : index
    %1 = vector.load %arg4[%c0_1, %c0_2] : memref<1024x128xbf16, #tpu.memory_space<vmem>>, vector<1024x128xbf16>
    %cst = arith.constant dense<0.000000e+00> : vector<128x128xf32>
    %2 = tpu.matmul %0, %1, %cst {dimension_numbers = #tpu.dot_dimension_numbers<[1], [0], [0], [1], [0, 0, 1, 1], [], []>} : vector<128x1024xbf16>, vector<1024x128xbf16>, vector<128x128xf32> -> vector<128x128xf32>
    %c0_3 = arith.constant 0 : index
    %c0_4 = arith.constant 0 : index
    %3 = vector.load %arg5[%c0_3, %c0_4] : memref<1x128xf32, #tpu.memory_space<vmem>>, vector<1x128xf32>
    %4 = vector.broadcast %3 : vector<1x128xf32> to vector<128x128xf32>
    %5 = arith.addf %2, %4 : vector<128x128xf32>
    %cst_5 = arith.constant 2.000000e-01 : f32
    %6 = vector.broadcast %cst_5 : f32 to vector<128x128xf32>
    %7 = arith.mulf %6, %5 : vector<128x128xf32>
    %8 = arith.maximumf %5, %7 : vector<128x128xf32>
    %9 = arith.truncf %8 : vector<128x128xf32> to vector<128x128xbf16>
    %c0_6 = arith.constant 0 : index
    %c0_7 = arith.constant 0 : index
    %10 = vector.load %arg6[%c0_6, %c0_7] : memref<128x128xbf16, #tpu.memory_space<vmem>>, vector<128x128xbf16>
    tpu.vector_store %arg6[%c0_6, %c0_7], %9 {strides = array<i32>} : memref<128x128xbf16, #tpu.memory_space<vmem>>, vector<128x128xbf16>,
    return
  }
  func.func @transform_0(%arg0: i32, %arg1: i32, %arg2: i32) -> (i32, i32) {
    %c0_i32 = arith.constant 0 : i32
    return %arg0, %arg2 : i32, i32
  }
  func.func @transform_1(%arg0: i32, %arg1: i32, %arg2: i32) -> (i32, i32) {
    %c0_i32 = arith.constant 0 : i32
    return %arg2, %arg1 : i32, i32
  }
  func.func @transform_2(%arg0: i32, %arg1: i32, %arg2: i32) -> (i32, i32) {
    %c0_i32 = arith.constant 0 : i32
    %c0_i32_0 = arith.constant 0 : i32
    return %c0_i32, %arg1 : i32, i32
  }
  func.func @transform_3(%arg0: i32, %arg1: i32, %arg2: i32) -> (i32, i32) {
    %c0_i32 = arith.constant 0 : i32
    return %arg0, %arg1 : i32, i32
  }
}

module attributes {stable_mosaic.version = 11 : i64} {
  func.func @_conv_block_1k_kernel(%arg0: i32, %arg1: i32, %arg2: i32, %arg3: memref<32x2048xbf16, #tpu.memory_space<vmem>>, %arg4: memref<2048x256xbf16, #tpu.memory_space<vmem>>, %arg5: memref<1x256xf32, #tpu.memory_space<vmem>>, %arg6: memref<32x256xbf16, #tpu.memory_space<vmem>>) attributes {dimension_semantics = [#tpu.dimension_semantics<parallel>, #tpu.dimension_semantics<parallel>, #tpu.dimension_semantics<arbitrary>], iteration_bounds = array<i64: 1, 1, 1>, scalar_prefetch = 0 : i64, scratch_operands = 0 : i64, tpu.core_type = #tpu.core_type<tc>, window_params = [{transform_indices = @transform_0, window_bounds = array<i64: 32, 2048>}, {transform_indices = @transform_1, window_bounds = array<i64: 2048, 256>}, {transform_indices = @transform_2, window_bounds = array<i64: 1, 256>}, {transform_indices = @transform_3, window_bounds = array<i64: 32, 256>}]} {
    %c0 = arith.constant 0 : index
    %c0_0 = arith.constant 0 : index
    %0 = vector.load %arg3[%c0, %c0_0] : memref<32x2048xbf16, #tpu.memory_space<vmem>>, vector<32x2048xbf16>
    %c0_1 = arith.constant 0 : index
    %c0_2 = arith.constant 0 : index
    %1 = vector.load %arg4[%c0_1, %c0_2] : memref<2048x256xbf16, #tpu.memory_space<vmem>>, vector<2048x256xbf16>
    %cst = arith.constant dense<0.000000e+00> : vector<32x256xf32>
    %2 = tpu.matmul %0, %1, %cst {dimension_numbers = #tpu.dot_dimension_numbers<[1], [0], [0], [1], [0, 0, 1, 1], [], []>} : vector<32x2048xbf16>, vector<2048x256xbf16>, vector<32x256xf32> -> vector<32x256xf32>
    %c0_3 = arith.constant 0 : index
    %c0_4 = arith.constant 0 : index
    %3 = vector.load %arg5[%c0_3, %c0_4] : memref<1x256xf32, #tpu.memory_space<vmem>>, vector<1x256xf32>
    %4 = vector.broadcast %3 : vector<1x256xf32> to vector<32x256xf32>
    %5 = arith.addf %2, %4 : vector<32x256xf32>
    %cst_5 = arith.constant 2.000000e-01 : f32
    %6 = vector.broadcast %cst_5 : f32 to vector<32x256xf32>
    %7 = arith.mulf %6, %5 : vector<32x256xf32>
    %8 = arith.maximumf %5, %7 : vector<32x256xf32>
    %9 = arith.truncf %8 : vector<32x256xf32> to vector<32x256xbf16>
    %c0_6 = arith.constant 0 : index
    %c0_7 = arith.constant 0 : index
    %10 = vector.load %arg6[%c0_6, %c0_7] : memref<32x256xbf16, #tpu.memory_space<vmem>>, vector<32x256xbf16>
    tpu.vector_store %arg6[%c0_6, %c0_7], %9 {strides = array<i32>} : memref<32x256xbf16, #tpu.memory_space<vmem>>, vector<32x256xbf16>,
    return
  }
  func.func @transform_0(%arg0: i32, %arg1: i32, %arg2: i32) -> (i32, i32) {
    %c0_i32 = arith.constant 0 : i32
    return %arg0, %arg2 : i32, i32
  }
  func.func @transform_1(%arg0: i32, %arg1: i32, %arg2: i32) -> (i32, i32) {
    %c0_i32 = arith.constant 0 : i32
    return %arg2, %arg1 : i32, i32
  }
  func.func @transform_2(%arg0: i32, %arg1: i32, %arg2: i32) -> (i32, i32) {
    %c0_i32 = arith.constant 0 : i32
    %c0_i32_0 = arith.constant 0 : i32
    return %c0_i32, %arg1 : i32, i32
  }
  func.func @transform_3(%arg0: i32, %arg1: i32, %arg2: i32) -> (i32, i32) {
    %c0_i32 = arith.constant 0 : i32
    return %arg0, %arg1 : i32, i32
  }
}

module attributes {stable_mosaic.version = 11 : i64} {
  func.func @_conv_block_multik_kernel(%arg0: i32, %arg1: i32, %arg2: i32, %arg3: memref<8x2048xbf16, #tpu.memory_space<vmem>>, %arg4: memref<2048x256xbf16, #tpu.memory_space<vmem>>, %arg5: memref<1x256xf32, #tpu.memory_space<vmem>>, %arg6: memref<8x256xbf16, #tpu.memory_space<vmem>>, %arg7: memref<8x256xf32, #tpu.memory_space<vmem>>) attributes {dimension_semantics = [#tpu.dimension_semantics<parallel>, #tpu.dimension_semantics<parallel>, #tpu.dimension_semantics<arbitrary>], iteration_bounds = array<i64: 1, 2, 2>, scalar_prefetch = 0 : i64, scratch_operands = 1 : i64, tpu.core_type = #tpu.core_type<tc>, window_params = [{transform_indices = @transform_0, window_bounds = array<i64: 8, 2048>}, {transform_indices = @transform_1, window_bounds = array<i64: 2048, 256>}, {transform_indices = @transform_2, window_bounds = array<i64: 1, 256>}, {transform_indices = @transform_3, window_bounds = array<i64: 8, 256>}]} {
    %c0_i32 = arith.constant 0 : i32
    %0 = arith.cmpi eq, %arg2, %c0_i32 : i32
    %1 = arith.extui %0 : i1 to i32
    %c0_i32_0 = arith.constant 0 : i32
    %2 = arith.cmpi ne, %1, %c0_i32_0 : i32
    scf.if %2 {
      %cst_9 = arith.constant 0.000000e+00 : f32
      %12 = vector.broadcast %cst_9 : f32 to vector<8x256xf32>
      %c0_10 = arith.constant 0 : index
      %c0_11 = arith.constant 0 : index
      %13 = vector.load %arg7[%c0_10, %c0_11] : memref<8x256xf32, #tpu.memory_space<vmem>>, vector<8x256xf32>
      tpu.vector_store %arg7[%c0_10, %c0_11], %12 {strides = array<i32>} : memref<8x256xf32, #tpu.memory_space<vmem>>, vector<8x256xf32>,
    } else {
    }
    %c0 = arith.constant 0 : index
    %c0_1 = arith.constant 0 : index
    %3 = vector.load %arg7[%c0, %c0_1] : memref<8x256xf32, #tpu.memory_space<vmem>>, vector<8x256xf32>
    %c0_2 = arith.constant 0 : index
    %c0_3 = arith.constant 0 : index
    %4 = vector.load %arg3[%c0_2, %c0_3] : memref<8x2048xbf16, #tpu.memory_space<vmem>>, vector<8x2048xbf16>
    %c0_4 = arith.constant 0 : index
    %c0_5 = arith.constant 0 : index
    %5 = vector.load %arg4[%c0_4, %c0_5] : memref<2048x256xbf16, #tpu.memory_space<vmem>>, vector<2048x256xbf16>
    %cst = arith.constant dense<0.000000e+00> : vector<8x256xf32>
    %6 = tpu.matmul %4, %5, %cst {dimension_numbers = #tpu.dot_dimension_numbers<[1], [0], [0], [1], [0, 0, 1, 1], [], []>} : vector<8x2048xbf16>, vector<2048x256xbf16>, vector<8x256xf32> -> vector<8x256xf32>
    %7 = arith.addf %3, %6 : vector<8x256xf32>
    %c0_6 = arith.constant 0 : index
    %c0_7 = arith.constant 0 : index
    %8 = vector.load %arg7[%c0_6, %c0_7] : memref<8x256xf32, #tpu.memory_space<vmem>>, vector<8x256xf32>
    tpu.vector_store %arg7[%c0_6, %c0_7], %7 {strides = array<i32>} : memref<8x256xf32, #tpu.memory_space<vmem>>, vector<8x256xf32>,
    %c1_i32 = arith.constant 1 : i32
    %9 = arith.cmpi eq, %arg2, %c1_i32 : i32
    %10 = arith.extui %9 : i1 to i32
    %c0_i32_8 = arith.constant 0 : i32
    %11 = arith.cmpi ne, %10, %c0_i32_8 : i32
    scf.if %11 {
      %c0_9 = arith.constant 0 : index
      %c0_10 = arith.constant 0 : index
      %12 = vector.load %arg7[%c0_9, %c0_10] : memref<8x256xf32, #tpu.memory_space<vmem>>, vector<8x256xf32>
      %c0_11 = arith.constant 0 : index
      %c0_12 = arith.constant 0 : index
      %13 = vector.load %arg5[%c0_11, %c0_12] : memref<1x256xf32, #tpu.memory_space<vmem>>, vector<1x256xf32>
      %14 = vector.broadcast %13 : vector<1x256xf32> to vector<8x256xf32>
      %15 = arith.addf %12, %14 : vector<8x256xf32>
      %cst_13 = arith.constant 2.000000e-01 : f32
      %16 = vector.broadcast %cst_13 : f32 to vector<8x256xf32>
      %17 = arith.mulf %16, %15 : vector<8x256xf32>
      %18 = arith.maximumf %15, %17 : vector<8x256xf32>
      %19 = arith.truncf %18 : vector<8x256xf32> to vector<8x256xbf16>
      %c0_14 = arith.constant 0 : index
      %c0_15 = arith.constant 0 : index
      %20 = vector.load %arg6[%c0_14, %c0_15] : memref<8x256xbf16, #tpu.memory_space<vmem>>, vector<8x256xbf16>
      tpu.vector_store %arg6[%c0_14, %c0_15], %19 {strides = array<i32>} : memref<8x256xbf16, #tpu.memory_space<vmem>>, vector<8x256xbf16>,
    } else {
    }
    return
  }
  func.func @transform_0(%arg0: i32, %arg1: i32, %arg2: i32) -> (i32, i32) {
    %c0_i32 = arith.constant 0 : i32
    return %arg0, %arg2 : i32, i32
  }
  func.func @transform_1(%arg0: i32, %arg1: i32, %arg2: i32) -> (i32, i32) {
    %c0_i32 = arith.constant 0 : i32
    return %arg2, %arg1 : i32, i32
  }
  func.func @transform_2(%arg0: i32, %arg1: i32, %arg2: i32) -> (i32, i32) {
    %c0_i32 = arith.constant 0 : i32
    %c0_i32_0 = arith.constant 0 : i32
    return %c0_i32, %arg1 : i32, i32
  }
  func.func @transform_3(%arg0: i32, %arg1: i32, %arg2: i32) -> (i32, i32) {
    %c0_i32 = arith.constant 0 : i32
    return %arg0, %arg1 : i32, i32
  }
}

module attributes {stable_mosaic.version = 11 : i64} {
  func.func @_final_block_kernel(%arg0: i32, %arg1: memref<8x2048xbf16, #tpu.memory_space<vmem>>, %arg2: memref<2048x512xbf16, #tpu.memory_space<vmem>>, %arg3: memref<1x512xf32, #tpu.memory_space<vmem>>, %arg4: memref<512x128xbf16, #tpu.memory_space<vmem>>, %arg5: memref<1x128xf32, #tpu.memory_space<vmem>>, %arg6: memref<8x128xf32, #tpu.memory_space<vmem>>, %arg7: memref<8x512xf32, #tpu.memory_space<vmem>>) attributes {dimension_semantics = [#tpu.dimension_semantics<arbitrary>], iteration_bounds = array<i64: 4>, scalar_prefetch = 0 : i64, scratch_operands = 1 : i64, tpu.core_type = #tpu.core_type<tc>, window_params = [{transform_indices = @transform_0, window_bounds = array<i64: 8, 2048>}, {transform_indices = @transform_1, window_bounds = array<i64: 2048, 512>}, {pipeline_mode = #tpu.pipeline_mode<synchronous>, transform_indices = @transform_2, window_bounds = array<i64: 1, 512>}, {pipeline_mode = #tpu.pipeline_mode<synchronous>, transform_indices = @transform_3, window_bounds = array<i64: 512, 128>}, {pipeline_mode = #tpu.pipeline_mode<synchronous>, transform_indices = @transform_4, window_bounds = array<i64: 1, 128>}, {pipeline_mode = #tpu.pipeline_mode<synchronous>, transform_indices = @transform_5, window_bounds = array<i64: 8, 128>}]} {
    %c0_i32 = arith.constant 0 : i32
    %0 = arith.cmpi eq, %arg0, %c0_i32 : i32
    %1 = arith.extui %0 : i1 to i32
    %c0_i32_0 = arith.constant 0 : i32
    %2 = arith.cmpi ne, %1, %c0_i32_0 : i32
    scf.if %2 {
      %cst_9 = arith.constant 0.000000e+00 : f32
      %12 = vector.broadcast %cst_9 : f32 to vector<8x512xf32>
      %c0_10 = arith.constant 0 : index
      %c0_11 = arith.constant 0 : index
      %13 = vector.load %arg7[%c0_10, %c0_11] : memref<8x512xf32, #tpu.memory_space<vmem>>, vector<8x512xf32>
      tpu.vector_store %arg7[%c0_10, %c0_11], %12 {strides = array<i32>} : memref<8x512xf32, #tpu.memory_space<vmem>>, vector<8x512xf32>,
    } else {
    }
    %c0 = arith.constant 0 : index
    %c0_1 = arith.constant 0 : index
    %3 = vector.load %arg7[%c0, %c0_1] : memref<8x512xf32, #tpu.memory_space<vmem>>, vector<8x512xf32>
    %c0_2 = arith.constant 0 : index
    %c0_3 = arith.constant 0 : index
    %4 = vector.load %arg1[%c0_2, %c0_3] : memref<8x2048xbf16, #tpu.memory_space<vmem>>, vector<8x2048xbf16>
    %c0_4 = arith.constant 0 : index
    %c0_5 = arith.constant 0 : index
    %5 = vector.load %arg2[%c0_4, %c0_5] : memref<2048x512xbf16, #tpu.memory_space<vmem>>, vector<2048x512xbf16>
    %cst = arith.constant dense<0.000000e+00> : vector<8x512xf32>
    %6 = tpu.matmul %4, %5, %cst {dimension_numbers = #tpu.dot_dimension_numbers<[1], [0], [0], [1], [0, 0, 1, 1], [], []>} : vector<8x2048xbf16>, vector<2048x512xbf16>, vector<8x512xf32> -> vector<8x512xf32>
    %7 = arith.addf %3, %6 : vector<8x512xf32>
    %c0_6 = arith.constant 0 : index
    %c0_7 = arith.constant 0 : index
    %8 = vector.load %arg7[%c0_6, %c0_7] : memref<8x512xf32, #tpu.memory_space<vmem>>, vector<8x512xf32>
    tpu.vector_store %arg7[%c0_6, %c0_7], %7 {strides = array<i32>} : memref<8x512xf32, #tpu.memory_space<vmem>>, vector<8x512xf32>,
    %c3_i32 = arith.constant 3 : i32
    %9 = arith.cmpi eq, %arg0, %c3_i32 : i32
    %10 = arith.extui %9 : i1 to i32
    %c0_i32_8 = arith.constant 0 : i32
    %11 = arith.cmpi ne, %10, %c0_i32_8 : i32
    scf.if %11 {
      %c0_9 = arith.constant 0 : index
      %c0_10 = arith.constant 0 : index
      %12 = vector.load %arg7[%c0_9, %c0_10] : memref<8x512xf32, #tpu.memory_space<vmem>>, vector<8x512xf32>
      %c0_11 = arith.constant 0 : index
      %c0_12 = arith.constant 0 : index
      %13 = vector.load %arg3[%c0_11, %c0_12] : memref<1x512xf32, #tpu.memory_space<vmem>>, vector<1x512xf32>
      %14 = vector.broadcast %13 : vector<1x512xf32> to vector<8x512xf32>
      %15 = arith.addf %12, %14 : vector<8x512xf32>
      %cst_13 = arith.constant 2.000000e-01 : f32
      %16 = vector.broadcast %cst_13 : f32 to vector<8x512xf32>
      %17 = arith.mulf %16, %15 : vector<8x512xf32>
      %18 = arith.maximumf %15, %17 : vector<8x512xf32>
      %19 = arith.truncf %18 : vector<8x512xf32> to vector<8x512xbf16>
      %c0_14 = arith.constant 0 : index
      %c0_15 = arith.constant 0 : index
      %20 = vector.load %arg4[%c0_14, %c0_15] : memref<512x128xbf16, #tpu.memory_space<vmem>>, vector<512x128xbf16>
      %cst_16 = arith.constant dense<0.000000e+00> : vector<8x128xf32>
      %21 = tpu.matmul %19, %20, %cst_16 {dimension_numbers = #tpu.dot_dimension_numbers<[1], [0], [0], [1], [0, 0, 1, 1], [], []>} : vector<8x512xbf16>, vector<512x128xbf16>, vector<8x128xf32> -> vector<8x128xf32>
      %c0_17 = arith.constant 0 : index
      %c0_18 = arith.constant 0 : index
      %22 = vector.load %arg5[%c0_17, %c0_18] : memref<1x128xf32, #tpu.memory_space<vmem>>, vector<1x128xf32>
      %23 = vector.broadcast %22 : vector<1x128xf32> to vector<8x128xf32>
      %24 = arith.addf %21, %23 : vector<8x128xf32>
      %cst_19 = arith.constant 0.000000e+00 : f32
      %25 = vector.broadcast %cst_19 : f32 to vector<8x128xf32>
      %26 = arith.subf %25, %24 : vector<8x128xf32>
      %27 = math.exp %26 : vector<8x128xf32>
      %cst_20 = arith.constant 1.000000e+00 : f32
      %28 = vector.broadcast %cst_20 : f32 to vector<8x128xf32>
      %29 = arith.addf %28, %27 : vector<8x128xf32>
      %cst_21 = arith.constant 1.000000e+00 : f32
      %30 = vector.broadcast %cst_21 : f32 to vector<8x128xf32>
      %31 = arith.divf %30, %29 : vector<8x128xf32>
      %c0_22 = arith.constant 0 : index
      %c0_23 = arith.constant 0 : index
      %32 = vector.load %arg6[%c0_22, %c0_23] : memref<8x128xf32, #tpu.memory_space<vmem>>, vector<8x128xf32>
      tpu.vector_store %arg6[%c0_22, %c0_23], %31 {strides = array<i32>} : memref<8x128xf32, #tpu.memory_space<vmem>>, vector<8x128xf32>,
    } else {
    }
    return
  }
  func.func @transform_0(%arg0: i32) -> (i32, i32) {
    %c0_i32 = arith.constant 0 : i32
    %c0_i32_0 = arith.constant 0 : i32
    return %c0_i32, %arg0 : i32, i32
  }
  func.func @transform_1(%arg0: i32) -> (i32, i32) {
    %c0_i32 = arith.constant 0 : i32
    %c0_i32_0 = arith.constant 0 : i32
    return %arg0, %c0_i32 : i32, i32
  }
  func.func @transform_2(%arg0: i32) -> (i32, i32) {
    %c0_i32 = arith.constant 0 : i32
    %c0_i32_0 = arith.constant 0 : i32
    %c0_i32_1 = arith.constant 0 : i32
    return %c0_i32, %c0_i32_0 : i32, i32
  }
  func.func @transform_3(%arg0: i32) -> (i32, i32) {
    %c0_i32 = arith.constant 0 : i32
    %c0_i32_0 = arith.constant 0 : i32
    %c0_i32_1 = arith.constant 0 : i32
    return %c0_i32, %c0_i32_0 : i32, i32
  }
  func.func @transform_4(%arg0: i32) -> (i32, i32) {
    %c0_i32 = arith.constant 0 : i32
    %c0_i32_0 = arith.constant 0 : i32
    %c0_i32_1 = arith.constant 0 : i32
    return %c0_i32, %c0_i32_0 : i32, i32
  }
  func.func @transform_5(%arg0: i32) -> (i32, i32) {
    %c0_i32 = arith.constant 0 : i32
    %c0_i32_0 = arith.constant 0 : i32
    %c0_i32_1 = arith.constant 0 : i32
    return %c0_i32, %c0_i32_0 : i32, i32
  }
}

</mosaic_0001>

<llo_original>
// kernel: net_discriminator.5
$region0: #{net_discriminator.5}
  #allocation0 [shape = 'u32[]', space=smem, size = 0x4, offset = 0x4, fixed_abs, tag = 'smem constant byte address 0x4 - core index']
  #allocation1 [shape = 'u32[144,128]{1,0:T(1,128)}', space=vmem, size = 0x12000, scoped, tag = 'internal scratch']
  %s0 = inlined_call_operand.vmem [shape: bf16[512,128], index: 0, kind: input, shape index: {}]
  %s1 = inlined_call_operand.vmem [shape: bf16[128,128], index: 1, kind: input, shape index: {}]
  %s2 = inlined_call_operand.hbm [shape: f32[1,128], index: 2, kind: input, shape index: {}]
  %s3 = inlined_call_operand.vmem [shape: bf16[512,128], index: 3, kind: output, shape index: {}]
  %s4 = sld [smem:[#allocation0]]
  $region26: #{net_discriminator.5} parent=0
    _
  %s6 = ssub.s32 1, %s4
  %s7 = scalar_select 0, %s6, %s4
  $region1: #{net_discriminator.5} parent=0
    #allocation2 [shape = 'u8[512]{0}', space=vmem, size = 0x400, scoped, tag = 'input window, operand 2, single buffered']
    #allocation3 [shape = 's32[1]{0}', space=sflag, size = 0x4, scoped, tag = 'scoped memory for net_discriminator.5']
    %8 = vsyncpa [#allocation3], 0
    // Predicated region
    $region2: #{net_discriminator.5} parent=1 // pred_check
      _
    $region3: #{net_discriminator.5} parent=1 // pred_check_branch
      %10 = sbr.rel (0) target = $region5
    $region4: #{net_discriminator.5} parent=1 // pred_region
      _
    $region5: #{net_discriminator.5} parent=1 // pred_fallthru
      _
    // Predicated region
    $region6: #{net_discriminator.5} parent=1 // pred_check
      _
    $region7: #{net_discriminator.5} parent=1 // pred_check_branch
      %12 = sbr.rel (0) target = $region9
    $region8: #{net_discriminator.5} parent=1 // pred_region
      _
    $region9: #{net_discriminator.5} parent=1 // pred_fallthru
      _
    // Predicated region
    $region10: #{net_discriminator.5} parent=1 // pred_check
      _
    $region11: #{net_discriminator.5} parent=1 // pred_check_branch
      %14 = sbr.rel (0) target = $region13
    $region12: #{net_discriminator.5} parent=1 // pred_region
      %s16 = ssub.s32 16, 16
      %17 = vsyncadd [#allocation3], %s16
      %s19 = sshll.u32 [#allocation2], 4
      %s20 = int_to_ptr.vmem [resolvable:$true] %s19
      %22 = dma.hbm_to_vmem [thread:$0]  %s2, 16, %s20, [#allocation3]
    $region13: #{net_discriminator.5} parent=1 // pred_fallthru
      _
    // Predicated region
    $region14: #{net_discriminator.5} parent=1 // pred_check
      _
    $region15: #{net_discriminator.5} parent=1 // pred_check_branch
      %24 = sbr.rel (0) target = $region17
    $region16: #{net_discriminator.5} parent=1 // pred_region
      %25 = dma.done [#allocation3], 16
    $region17: #{net_discriminator.5} parent=1 // pred_fallthru
      _
    %v27 = vld [vmem:[%s0] sm:$0xf]
    %v28 = vld [vmem:[%s0 + $0x4] sm:$0xf]
    %v29 = vld [vmem:[%s0 + $0x8] sm:$0xf]
    %v30 = vld [vmem:[%s0 + $0xc] sm:$0xf]
    %v31 = vld [vmem:[%s0 + $0x10] sm:$0xf]
    %v32 = vld [vmem:[%s0 + $0x14] sm:$0xf]
    %v33 = vld [vmem:[%s0 + $0x18] sm:$0xf]
    %v34 = vld [vmem:[%s0 + $0x1c] sm:$0xf]
    %v35 = vld [vmem:[%s0 + $0x20] sm:$0xf]
    %v36 = vld [vmem:[%s0 + $0x24] sm:$0xf]
    %v37 = vld [vmem:[%s0 + $0x28] sm:$0xf]
    %v38 = vld [vmem:[%s0 + $0x2c] sm:$0xf]
    %v39 = vld [vmem:[%s0 + $0x30] sm:$0xf]
    %v40 = vld [vmem:[%s0 + $0x34] sm:$0xf]
    %v41 = vld [vmem:[%s0 + $0x38] sm:$0xf]
    %v42 = vld [vmem:[%s0 + $0x3c] sm:$0xf]
    %v43 = vld [vmem:[%s0 + $0x40] sm:$0xf]
    %v44 = vld [vmem:[%s0 + $0x44] sm:$0xf]
    %v45 = vld [vmem:[%s0 + $0x48] sm:$0xf]
    %v46 = vld [vmem:[%s0 + $0x4c] sm:$0xf]
    %v47 = vld [vmem:[%s0 + $0x50] sm:$0xf]
    %v48 = vld [vmem:[%s0 + $0x54] sm:$0xf]
    %v49 = vld [vmem:[%s0 + $0x58] sm:$0xf]
    %v50 = vld [vmem:[%s0 + $0x5c] sm:$0xf]
    %v51 = vld [vmem:[%s0 + $0x60] sm:$0xf]
    %v52 = vld [vmem:[%s0 + $0x64] sm:$0xf]
    %v53 = vld [vmem:[%s0 + $0x68] sm:$0xf]
    %v54 = vld [vmem:[%s0 + $0x6c] sm:$0xf]
    %v55 = vld [vmem:[%s0 + $0x70] sm:$0xf]
    %v56 = vld [vmem:[%s0 + $0x74] sm:$0xf]
    %v57 = vld [vmem:[%s0 + $0x78] sm:$0xf]
    %v58 = vld [vmem:[%s0 + $0x7c] sm:$0xf]
    %v59 = vld [vmem:[%s0 + $0x80] sm:$0xf]
    %v60 = vld [vmem:[%s0 + $0x84] sm:$0xf]
    %v61 = vld [vmem:[%s0 + $0x88] sm:$0xf]
    %v62 = vld [vmem:[%s0 + $0x8c] sm:$0xf]
    %v63 = vld [vmem:[%s0 + $0x90] sm:$0xf]
    %v64 = vld [vmem:[%s0 + $0x94] sm:$0xf]
    %v65 = vld [vmem:[%s0 + $0x98] sm:$0xf]
    %v66 = vld [vmem:[%s0 + $0x9c] sm:$0xf]
    %v67 = vld [vmem:[%s0 + $0xa0] sm:$0xf]
    %v68 = vld [vmem:[%s0 + $0xa4] sm:$0xf]
    %v69 = vld [vmem:[%s0 + $0xa8] sm:$0xf]
    %v70 = vld [vmem:[%s0 + $0xac] sm:$0xf]
    %v71 = vld [vmem:[%s0 + $0xb0] sm:$0xf]
    %v72 = vld [vmem:[%s0 + $0xb4] sm:$0xf]
    %v73 = vld [vmem:[%s0 + $0xb8] sm:$0xf]
    %v74 = vld [vmem:[%s0 + $0xbc] sm:$0xf]
    %v75 = vld [vmem:[%s0 + $0xc0] sm:$0xf]
    %v76 = vld [vmem:[%s0 + $0xc4] sm:$0xf]
    %v77 = vld [vmem:[%s0 + $0xc8] sm:$0xf]
    %v78 = vld [vmem:[%s0 + $0xcc] sm:$0xf]
    %v79 = vld [vmem:[%s0 + $0xd0] sm:$0xf]
    %v80 = vld [vmem:[%s0 + $0xd4] sm:$0xf]
    %v81 = vld [vmem:[%s0 + $0xd8] sm:$0xf]
    %v82 = vld [vmem:[%s0 + $0xdc] sm:$0xf]
    %v83 = vld [vmem:[%s0 + $0xe0] sm:$0xf]
    %v84 = vld [vmem:[%s0 + $0xe4] sm:$0xf]
    %v85 = vld [vmem:[%s0 + $0xe8] sm:$0xf]
    %v86 = vld [vmem:[%s0 + $0xec] sm:$0xf]
    %v87 = vld [vmem:[%s0 + $0xf0] sm:$0xf]
    %v88 = vld [vmem:[%s0 + $0xf4] sm:$0xf]
    %v89 = vld [vmem:[%s0 + $0xf8] sm:$0xf]
    %v90 = vld [vmem:[%s0 + $0xfc] sm:$0xf]
    %v91 = vld [vmem:[%s1] sm:$0xf]
    %v92 = vld [vmem:[%s1 + $0x4] sm:$0xf]
    %v93 = vld [vmem:[%s1 + $0x8] sm:$0xf]
    %v94 = vld [vmem:[%s1 + $0xc] sm:$0xf]
    %v95 = vld [vmem:[%s1 + $0x10] sm:$0xf]
    %v96 = vld [vmem:[%s1 + $0x14] sm:$0xf]
    %v97 = vld [vmem:[%s1 + $0x18] sm:$0xf]
    %v98 = vld [vmem:[%s1 + $0x1c] sm:$0xf]
    %v99 = vld [vmem:[%s1 + $0x20] sm:$0xf]
    %v100 = vld [vmem:[%s1 + $0x24] sm:$0xf]
    %v101 = vld [vmem:[%s1 + $0x28] sm:$0xf]
    %v102 = vld [vmem:[%s1 + $0x2c] sm:$0xf]
    %v103 = vld [vmem:[%s1 + $0x30] sm:$0xf]
    %v104 = vld [vmem:[%s1 + $0x34] sm:$0xf]
    %v105 = vld [vmem:[%s1 + $0x38] sm:$0xf]
    %v106 = vld [vmem:[%s1 + $0x3c] sm:$0xf]
    %v107 = vld [vmem:[#allocation2] sm:$0x1]
    %v109 = vlaneseq
    %v110 = vshrl.u32 %v109, 7
    %v111 = vsub.s32 0, %v110
    %v112 = vrot.slane %v107, %v111
    %v178 = vunpack.c.l.b16 %v27
    %v179 = vunpack.c.l.b16 %v28
    %v180 = vunpack.c.l.b16 %v29
    %v181 = vunpack.c.l.b16 %v30
    %v182 = vunpack.c.l.b16 %v31
    %v183 = vunpack.c.l.b16 %v32
    %v184 = vunpack.c.l.b16 %v33
    %v185 = vunpack.c.l.b16 %v34
    %v186 = vunpack.c.l.b16 %v35
    %v187 = vunpack.c.l.b16 %v36
    %v188 = vunpack.c.l.b16 %v37
    %v189 = vunpack.c.l.b16 %v38
    %v190 = vunpack.c.l.b16 %v39
    %v191 = vunpack.c.l.b16 %v40
    %v192 = vunpack.c.l.b16 %v41
    %v193 = vunpack.c.l.b16 %v42
    %v194 = vunpack.c.l.b16 %v43
    %v195 = vunpack.c.l.b16 %v44
    %v196 = vunpack.c.l.b16 %v45
    %v197 = vunpack.c.l.b16 %v46
    %v198 = vunpack.c.l.b16 %v47
    %v199 = vunpack.c.l.b16 %v48
    %v200 = vunpack.c.l.b16 %v49
    %v201 = vunpack.c.l.b16 %v50
    %v202 = vunpack.c.l.b16 %v51
    %v203 = vunpack.c.l.b16 %v52
    %v204 = vunpack.c.l.b16 %v53
    %v205 = vunpack.c.l.b16 %v54
    %v206 = vunpack.c.l.b16 %v55
    %v207 = vunpack.c.l.b16 %v56
    %v208 = vunpack.c.l.b16 %v57
    %v209 = vunpack.c.l.b16 %v58
    %v210 = vunpack.c.l.b16 %v59
    %v211 = vunpack.c.l.b16 %v60
    %v212 = vunpack.c.l.b16 %v61
    %v213 = vunpack.c.l.b16 %v62
    %v214 = vunpack.c.l.b16 %v63
    %v215 = vunpack.c.l.b16 %v64
    %v216 = vunpack.c.l.b16 %v65
    %v217 = vunpack.c.l.b16 %v66
    %v218 = vunpack.c.l.b16 %v67
    %v219 = vunpack.c.l.b16 %v68
    %v220 = vunpack.c.l.b16 %v69
    %v221 = vunpack.c.l.b16 %v70
    %v222 = vunpack.c.l.b16 %v71
    %v223 = vunpack.c.l.b16 %v72
    %v224 = vunpack.c.l.b16 %v73
    %v225 = vunpack.c.l.b16 %v74
    %v226 = vunpack.c.l.b16 %v75
    %v227 = vunpack.c.l.b16 %v76
    %v228 = vunpack.c.l.b16 %v77
    %v229 = vunpack.c.l.b16 %v78
    %v230 = vunpack.c.l.b16 %v79
    %v231 = vunpack.c.l.b16 %v80
    %v232 = vunpack.c.l.b16 %v81
    %v233 = vunpack.c.l.b16 %v82
    %v234 = vunpack.c.l.b16 %v83
    %v235 = vunpack.c.l.b16 %v84
    %v236 = vunpack.c.l.b16 %v85
    %v237 = vunpack.c.l.b16 %v86
    %v238 = vunpack.c.l.b16 %v87
    %v239 = vunpack.c.l.b16 %v88
    %v240 = vunpack.c.l.b16 %v89
    %v241 = vunpack.c.l.b16 %v90
    %v242 = vpack.c.b16 %v179, %v178
    %v243 = vpack.c.b16 %v181, %v180
    %v244 = vpack.c.b16 %v183, %v182
    %v245 = vpack.c.b16 %v185, %v184
    %v246 = vpack.c.b16 %v187, %v186
    %v247 = vpack.c.b16 %v189, %v188
    %v248 = vpack.c.b16 %v191, %v190
    %v249 = vpack.c.b16 %v193, %v192
    %v250 = vpack.c.b16 %v195, %v194
    %v251 = vpack.c.b16 %v197, %v196
    %v252 = vpack.c.b16 %v199, %v198
    %v253 = vpack.c.b16 %v201, %v200
    %v254 = vpack.c.b16 %v203, %v202
    %v255 = vpack.c.b16 %v205, %v204
    %v256 = vpack.c.b16 %v207, %v206
    %v257 = vpack.c.b16 %v209, %v208
    %v258 = vpack.c.b16 %v211, %v210
    %v259 = vpack.c.b16 %v213, %v212
    %v260 = vpack.c.b16 %v215, %v214
    %v261 = vpack.c.b16 %v217, %v216
    %v262 = vpack.c.b16 %v219, %v218
    %v263 = vpack.c.b16 %v221, %v220
    %v264 = vpack.c.b16 %v223, %v222
    %v265 = vpack.c.b16 %v225, %v224
    %v266 = vpack.c.b16 %v227, %v226
    %v267 = vpack.c.b16 %v229, %v228
    %v268 = vpack.c.b16 %v231, %v230
    %v269 = vpack.c.b16 %v233, %v232
    %v270 = vpack.c.b16 %v235, %v234
    %v271 = vpack.c.b16 %v237, %v236
    %v272 = vpack.c.b16 %v239, %v238
    %v273 = vpack.c.b16 %v241, %v240
    %v322 = vunpack.c.l.b16 %v91
    %v323 = vunpack.c.l.b16 %v92
    %v324 = vunpack.c.l.b16 %v93
    %v325 = vunpack.c.l.b16 %v94
    %v326 = vunpack.c.l.b16 %v95
    %v327 = vunpack.c.l.b16 %v96
    %v328 = vunpack.c.l.b16 %v97
    %v329 = vunpack.c.l.b16 %v98
    %v330 = vunpack.c.l.b16 %v99
    %v331 = vunpack.c.l.b16 %v100
    %v332 = vunpack.c.l.b16 %v101
    %v333 = vunpack.c.l.b16 %v102
    %v334 = vunpack.c.l.b16 %v103
    %v335 = vunpack.c.l.b16 %v104
    %v336 = vunpack.c.l.b16 %v105
    %v337 = vunpack.c.l.b16 %v106
    %v338 = vpack.c.b16 %v323, %v322
    %v339 = vpack.c.b16 %v325, %v324
    %v340 = vpack.c.b16 %v327, %v326
    %v341 = vpack.c.b16 %v329, %v328
    %v342 = vpack.c.b16 %v331, %v330
    %v343 = vpack.c.b16 %v333, %v332
    %v344 = vpack.c.b16 %v335, %v334
    %v345 = vpack.c.b16 %v337, %v336
    %354 = vmatprep.subr.bf16.mxu0 0
    %355 = vmatpush1.bf16.msra.mxu0 %v345
    %356 = vmatprep.subr.bf16.mxu0 0
    %357 = vmatpush1.bf16.msra.mxu0 %v344
    %358 = vmatprep.subr.bf16.mxu0 0
    %359 = vmatpush1.bf16.msra.mxu0 %v343
    %360 = vmatprep.subr.bf16.mxu0 0
    %361 = vmatpush1.bf16.msra.mxu0 %v342
    %362 = vmatprep.subr.bf16.mxu0 0
    %363 = vmatpush1.bf16.msra.mxu0 %v341
    %364 = vmatprep.subr.bf16.mxu0 0
    %365 = vmatpush1.bf16.msra.mxu0 %v340
    %366 = vmatprep.subr.bf16.mxu0 0
    %367 = vmatpush1.bf16.msra.mxu0 %v339
    %368 = vmatprep.subr.bf16.mxu0 0
    %369 = vmatpush1.bf16.msra.mxu0 %v338
    %370 = vmatprep.subr.bf16.mxu0 0
    %371 = vmatpush2.bf16.msra.mxu0 0
    %372 = vmatprep.subr.bf16.mxu0 0
    %373 = vmatpush2.bf16.msra.mxu0 0
    %374 = vmatprep.subr.bf16.mxu0 0
    %375 = vmatpush2.bf16.msra.mxu0 0
    %376 = vmatprep.subr.bf16.mxu0 0
    %377 = vmatpush2.bf16.msra.mxu0 0
    %378 = vmatprep.subr.bf16.mxu0 0
    %379 = vmatpush2.bf16.msra.mxu0 0
    %380 = vmatprep.subr.bf16.mxu0 0
    %381 = vmatpush2.bf16.msra.mxu0 0
    %382 = vmatprep.subr.bf16.mxu0 0
    %383 = vmatpush2.bf16.msra.mxu0 0
    %384 = vmatprep.subr.bf16.mxu0 0
    %385 = vmatpush2.bf16.msra.mxu0 0
    %386 = vmatprep.mubr.bf16.mxu0 0
    %387 = vmatmul.mubr.bf16.gmra.mxu0 %v242
    %v388 = vpop.f32.mrf.mxu0
    %v389 = vadd.f32 %v112, %v388
    %v390 = vpop.f32.mrf.mxu0
    %v391 = vpop.f32.mrf.mxu0
    %v392 = vadd.f32 %v112, %v391
    %v393 = vpop.f32.mrf.mxu0
    %394 = vmatprep.mubr.bf16.mxu0 0
    %395 = vmatmul.mubr.bf16.gmra.mxu0 %v243
    %v396 = vpop.f32.mrf.mxu0
    %v397 = vadd.f32 %v112, %v396
    %v398 = vpop.f32.mrf.mxu0
    %v399 = vpop.f32.mrf.mxu0
    %v400 = vadd.f32 %v112, %v399
    %v401 = vpop.f32.mrf.mxu0
    %402 = vmatprep.mubr.bf16.mxu0 0
    %403 = vmatmul.mubr.bf16.gmra.mxu0 %v244
    %v404 = vpop.f32.mrf.mxu0
    %v405 = vadd.f32 %v112, %v404
    %v406 = vpop.f32.mrf.mxu0
    %v407 = vpop.f32.mrf.mxu0
    %v408 = vadd.f32 %v112, %v407
    %v409 = vpop.f32.mrf.mxu0
    %410 = vmatprep.mubr.bf16.mxu0 0
    %411 = vmatmul.mubr.bf16.gmra.mxu0 %v245
    %v412 = vpop.f32.mrf.mxu0
    %v413 = vadd.f32 %v112, %v412
    %v414 = vpop.f32.mrf.mxu0
    %v415 = vpop.f32.mrf.mxu0
    %v416 = vadd.f32 %v112, %v415
    %v417 = vpop.f32.mrf.mxu0
    %418 = vmatprep.mubr.bf16.mxu0 0
    %419 = vmatmul.mubr.bf16.gmra.mxu0 %v246
    %v420 = vpop.f32.mrf.mxu0
    %v421 = vadd.f32 %v112, %v420
    %v422 = vpop.f32.mrf.mxu0
    %v423 = vpop.f32.mrf.mxu0
    %v424 = vadd.f32 %v112, %v423
    %v425 = vpop.f32.mrf.mxu0
    %426 = vmatprep.mubr.bf16.mxu0 0
    %427 = vmatmul.mubr.bf16.gmra.mxu0 %v247
    %v428 = vpop.f32.mrf.mxu0
    %v429 = vadd.f32 %v112, %v428
    %v430 = vpop.f32.mrf.mxu0
    %v431 = vpop.f32.mrf.mxu0
    %v432 = vadd.f32 %v112, %v431
    %v433 = vpop.f32.mrf.mxu0
    %434 = vmatprep.mubr.bf16.mxu0 0
    %435 = vmatmul.mubr.bf16.gmra.mxu0 %v248
    %v436 = vpop.f32.mrf.mxu0
    %v437 = vadd.f32 %v112, %v436
    %v438 = vpop.f32.mrf.mxu0
    %v439 = vpop.f32.mrf.mxu0
    %v440 = vadd.f32 %v112, %v439
    %v441 = vpop.f32.mrf.mxu0
    %442 = vmatprep.mubr.bf16.mxu0 0
    %443 = vmatmul.mubr.bf16.gmra.mxu0 %v249
    %v444 = vpop.f32.mrf.mxu0
    %v445 = vadd.f32 %v112, %v444
    %v446 = vpop.f32.mrf.mxu0
    %v447 = vpop.f32.mrf.mxu0
    %v448 = vadd.f32 %v112, %v447
    %v449 = vpop.f32.mrf.mxu0
    %450 = vmatprep.mubr.bf16.mxu0 0
    %451 = vmatmul.mubr.bf16.gmra.mxu0 %v250
    %v452 = vpop.f32.mrf.mxu0
    %v453 = vadd.f32 %v112, %v452
    %v454 = vpop.f32.mrf.mxu0
    %v455 = vpop.f32.mrf.mxu0
    %v456 = vadd.f32 %v112, %v455
    %v457 = vpop.f32.mrf.mxu0
    %458 = vmatprep.mubr.bf16.mxu0 0
    %459 = vmatmul.mubr.bf16.gmra.mxu0 %v251
    %v460 = vpop.f32.mrf.mxu0
    %v461 = vadd.f32 %v112, %v460
    %v462 = vpop.f32.mrf.mxu0
    %v463 = vpop.f32.mrf.mxu0
    %v464 = vadd.f32 %v112, %v463
    %v465 = vpop.f32.mrf.mxu0
    %466 = vmatprep.mubr.bf16.mxu0 0
    %467 = vmatmul.mubr.bf16.gmra.mxu0 %v252
    %v468 = vpop.f32.mrf.mxu0
    %v469 = vadd.f32 %v112, %v468
    %v470 = vpop.f32.mrf.mxu0
    %v471 = vpop.f32.mrf.mxu0
    %v472 = vadd.f32 %v112, %v471
    %v473 = vpop.f32.mrf.mxu0
    %474 = vmatprep.mubr.bf16.mxu0 0
    %475 = vmatmul.mubr.bf16.gmra.mxu0 %v253
    %v476 = vpop.f32.mrf.mxu0
    %v477 = vadd.f32 %v112, %v476
    %v478 = vpop.f32.mrf.mxu0
    %v479 = vpop.f32.mrf.mxu0
    %v480 = vadd.f32 %v112, %v479
    %v481 = vpop.f32.mrf.mxu0
    %482 = vmatprep.mubr.bf16.mxu0 0
    %483 = vmatmul.mubr.bf16.gmra.mxu0 %v254
    %v484 = vpop.f32.mrf.mxu0
    %v485 = vadd.f32 %v112, %v484
    %v486 = vpop.f32.mrf.mxu0
    %v487 = vpop.f32.mrf.mxu0
    %v488 = vadd.f32 %v112, %v487
    %v489 = vpop.f32.mrf.mxu0
    %490 = vmatprep.mubr.bf16.mxu0 0
    %491 = vmatmul.mubr.bf16.gmra.mxu0 %v255
    %v492 = vpop.f32.mrf.mxu0
    %v493 = vadd.f32 %v112, %v492
    %v494 = vpop.f32.mrf.mxu0
    %v495 = vpop.f32.mrf.mxu0
    %v496 = vadd.f32 %v112, %v495
    %v497 = vpop.f32.mrf.mxu0
    %498 = vmatprep.mubr.bf16.mxu0 0
    %499 = vmatmul.mubr.bf16.gmra.mxu0 %v256
    %v500 = vpop.f32.mrf.mxu0
    %v501 = vadd.f32 %v112, %v500
    %v502 = vpop.f32.mrf.mxu0
    %v503 = vpop.f32.mrf.mxu0
    %v504 = vadd.f32 %v112, %v503
    %v505 = vpop.f32.mrf.mxu0
    %506 = vmatprep.mubr.bf16.mxu0 0
    %507 = vmatmul.mubr.bf16.gmra.mxu0 %v257
    %v508 = vpop.f32.mrf.mxu0
    %v509 = vadd.f32 %v112, %v508
    %v510 = vpop.f32.mrf.mxu0
    %v511 = vpop.f32.mrf.mxu0
    %v512 = vadd.f32 %v112, %v511
    %v513 = vpop.f32.mrf.mxu0
    %514 = vmatprep.mubr.bf16.mxu0 0
    %515 = vmatmul.mubr.bf16.gmra.mxu0 %v258
    %v516 = vpop.f32.mrf.mxu0
    %v517 = vadd.f32 %v112, %v516
    %v518 = vpop.f32.mrf.mxu0
    %v519 = vpop.f32.mrf.mxu0
    %v520 = vadd.f32 %v112, %v519
    %v521 = vpop.f32.mrf.mxu0
    %522 = vmatprep.mubr.bf16.mxu0 0
    %523 = vmatmul.mubr.bf16.gmra.mxu0 %v259
    %v524 = vpop.f32.mrf.mxu0
    %v525 = vadd.f32 %v112, %v524
    %v526 = vpop.f32.mrf.mxu0
    %v527 = vpop.f32.mrf.mxu0
    %v528 = vadd.f32 %v112, %v527
    %v529 = vpop.f32.mrf.mxu0
    %530 = vmatprep.mubr.bf16.mxu0 0
    %531 = vmatmul.mubr.bf16.gmra.mxu0 %v260
    %v532 = vpop.f32.mrf.mxu0
    %v533 = vadd.f32 %v112, %v532
    %v534 = vpop.f32.mrf.mxu0
    %v535 = vpop.f32.mrf.mxu0
    %v536 = vadd.f32 %v112, %v535
    %v537 = vpop.f32.mrf.mxu0
    %538 = vmatprep.mubr.bf16.mxu0 0
    %539 = vmatmul.mubr.bf16.gmra.mxu0 %v261
    %v540 = vpop.f32.mrf.mxu0
    %v541 = vadd.f32 %v112, %v540
    %v542 = vpop.f32.mrf.mxu0
    %v543 = vpop.f32.mrf.mxu0
    %v544 = vadd.f32 %v112, %v543
    %v545 = vpop.f32.mrf.mxu0
    %546 = vmatprep.mubr.bf16.mxu0 0
    %547 = vmatmul.mubr.bf16.gmra.mxu0 %v262
    %v548 = vpop.f32.mrf.mxu0
    %v549 = vadd.f32 %v112, %v548
    %v550 = vpop.f32.mrf.mxu0
    %v551 = vpop.f32.mrf.mxu0
    %v552 = vadd.f32 %v112, %v551
    %v553 = vpop.f32.mrf.mxu0
    %554 = vmatprep.mubr.bf16.mxu0 0
    %555 = vmatmul.mubr.bf16.gmra.mxu0 %v263
    %v556 = vpop.f32.mrf.mxu0
    %v557 = vadd.f32 %v112, %v556
    %v558 = vpop.f32.mrf.mxu0
    %v559 = vpop.f32.mrf.mxu0
    %v560 = vadd.f32 %v112, %v559
    %v561 = vpop.f32.mrf.mxu0
    %562 = vmatprep.mubr.bf16.mxu0 0
    %563 = vmatmul.mubr.bf16.gmra.mxu0 %v264
    %v564 = vpop.f32.mrf.mxu0
    %v565 = vadd.f32 %v112, %v564
    %v566 = vpop.f32.mrf.mxu0
    %v567 = vpop.f32.mrf.mxu0
    %v568 = vadd.f32 %v112, %v567
    %v569 = vpop.f32.mrf.mxu0
    %570 = vmatprep.mubr.bf16.mxu0 0
    %571 = vmatmul.mubr.bf16.gmra.mxu0 %v265
    %v572 = vpop.f32.mrf.mxu0
    %v573 = vadd.f32 %v112, %v572
    %v574 = vpop.f32.mrf.mxu0
    %v575 = vpop.f32.mrf.mxu0
    %v576 = vadd.f32 %v112, %v575
    %v577 = vpop.f32.mrf.mxu0
    %578 = vmatprep.mubr.bf16.mxu0 0
    %579 = vmatmul.mubr.bf16.gmra.mxu0 %v266
    %v580 = vpop.f32.mrf.mxu0
    %v581 = vadd.f32 %v112, %v580
    %v582 = vpop.f32.mrf.mxu0
    %v583 = vpop.f32.mrf.mxu0
    %v584 = vadd.f32 %v112, %v583
    %v585 = vpop.f32.mrf.mxu0
    %586 = vmatprep.mubr.bf16.mxu0 0
    %587 = vmatmul.mubr.bf16.gmra.mxu0 %v267
    %v588 = vpop.f32.mrf.mxu0
    %v589 = vadd.f32 %v112, %v588
    %v590 = vpop.f32.mrf.mxu0
    %v591 = vpop.f32.mrf.mxu0
    %v592 = vadd.f32 %v112, %v591
    %v593 = vpop.f32.mrf.mxu0
    %594 = vmatprep.mubr.bf16.mxu0 0
    %595 = vmatmul.mubr.bf16.gmra.mxu0 %v268
    %v596 = vpop.f32.mrf.mxu0
    %v597 = vadd.f32 %v112, %v596
    %v598 = vpop.f32.mrf.mxu0
    %v599 = vpop.f32.mrf.mxu0
    %v600 = vadd.f32 %v112, %v599
    %v601 = vpop.f32.mrf.mxu0
    %602 = vmatprep.mubr.bf16.mxu0 0
    %603 = vmatmul.mubr.bf16.gmra.mxu0 %v269
    %v604 = vpop.f32.mrf.mxu0
    %v605 = vadd.f32 %v112, %v604
    %v606 = vpop.f32.mrf.mxu0
    %v607 = vpop.f32.mrf.mxu0
    %v608 = vadd.f32 %v112, %v607
    %v609 = vpop.f32.mrf.mxu0
    %610 = vmatprep.mubr.bf16.mxu0 0
    %611 = vmatmul.mubr.bf16.gmra.mxu0 %v270
    %v612 = vpop.f32.mrf.mxu0
    %v613 = vadd.f32 %v112, %v612
    %v614 = vpop.f32.mrf.mxu0
    %v615 = vpop.f32.mrf.mxu0
    %v616 = vadd.f32 %v112, %v615
    %v617 = vpop.f32.mrf.mxu0
    %618 = vmatprep.mubr.bf16.mxu0 0
    %619 = vmatmul.mubr.bf16.gmra.mxu0 %v271
    %v620 = vpop.f32.mrf.mxu0
    %v621 = vadd.f32 %v112, %v620
    %v622 = vpop.f32.mrf.mxu0
    %v623 = vpop.f32.mrf.mxu0
    %v624 = vadd.f32 %v112, %v623
    %v625 = vpop.f32.mrf.mxu0
    %626 = vmatprep.mubr.bf16.mxu0 0
    %627 = vmatmul.mubr.bf16.gmra.mxu0 %v272
    %v628 = vpop.f32.mrf.mxu0
    %v629 = vadd.f32 %v112, %v628
    %v630 = vpop.f32.mrf.mxu0
    %v631 = vpop.f32.mrf.mxu0
    %v632 = vadd.f32 %v112, %v631
    %v633 = vpop.f32.mrf.mxu0
    %634 = vmatprep.mubr.bf16.mxu0 0
    %635 = vmatmul.mubr.bf16.gmra.mxu0 %v273
    %v636 = vpop.f32.mrf.mxu0
    %v637 = vadd.f32 %v112, %v636
    %v638 = vpop.f32.mrf.mxu0
    %v639 = vpop.f32.mrf.mxu0
    %v640 = vadd.f32 %v112, %v639
    %v641 = vpop.f32.mrf.mxu0
    %642 = vdwg.mxu0
    %v643 = vmul.f32 %v389, 0.2
    %v644 = vmul.f32 %v392, 0.2
    %v645 = vmul.f32 %v397, 0.2
    %v646 = vmul.f32 %v400, 0.2
    %v647 = vmul.f32 %v405, 0.2
    %v648 = vmul.f32 %v408, 0.2
    %v649 = vmul.f32 %v413, 0.2
    %v650 = vmul.f32 %v416, 0.2
    %v651 = vmul.f32 %v421, 0.2
    %v652 = vmul.f32 %v424, 0.2
    %v653 = vmul.f32 %v429, 0.2
    %v654 = vmul.f32 %v432, 0.2
    %v655 = vmul.f32 %v437, 0.2
    %v656 = vmul.f32 %v440, 0.2
    %v657 = vmul.f32 %v445, 0.2
    %v658 = vmul.f32 %v448, 0.2
    %v659 = vmul.f32 %v453, 0.2
    %v660 = vmul.f32 %v456, 0.2
    %v661 = vmul.f32 %v461, 0.2
    %v662 = vmul.f32 %v464, 0.2
    %v663 = vmul.f32 %v469, 0.2
    %v664 = vmul.f32 %v472, 0.2
    %v665 = vmul.f32 %v477, 0.2
    %v666 = vmul.f32 %v480, 0.2
    %v667 = vmul.f32 %v485, 0.2
    %v668 = vmul.f32 %v488, 0.2
    %v669 = vmul.f32 %v493, 0.2
    %v670 = vmul.f32 %v496, 0.2
    %v671 = vmul.f32 %v501, 0.2
    %v672 = vmul.f32 %v504, 0.2
    %v673 = vmul.f32 %v509, 0.2
    %v674 = vmul.f32 %v512, 0.2
    %v675 = vmul.f32 %v517, 0.2
    %v676 = vmul.f32 %v520, 0.2
    %v677 = vmul.f32 %v525, 0.2
    %v678 = vmul.f32 %v528, 0.2
    %v679 = vmul.f32 %v533, 0.2
    %v680 = vmul.f32 %v536, 0.2
    %v681 = vmul.f32 %v541, 0.2
    %v682 = vmul.f32 %v544, 0.2
    %v683 = vmul.f32 %v549, 0.2
    %v684 = vmul.f32 %v552, 0.2
    %v685 = vmul.f32 %v557, 0.2
    %v686 = vmul.f32 %v560, 0.2
    %v687 = vmul.f32 %v565, 0.2
    %v688 = vmul.f32 %v568, 0.2
    %v689 = vmul.f32 %v573, 0.2
    %v690 = vmul.f32 %v576, 0.2
    %v691 = vmul.f32 %v581, 0.2
    %v692 = vmul.f32 %v584, 0.2
    %v693 = vmul.f32 %v589, 0.2
    %v694 = vmul.f32 %v592, 0.2
    %v695 = vmul.f32 %v597, 0.2
    %v696 = vmul.f32 %v600, 0.2
    %v697 = vmul.f32 %v605, 0.2
    %v698 = vmul.f32 %v608, 0.2
    %v699 = vmul.f32 %v613, 0.2
    %v700 = vmul.f32 %v616, 0.2
    %v701 = vmul.f32 %v621, 0.2
    %v702 = vmul.f32 %v624, 0.2
    %v703 = vmul.f32 %v629, 0.2
    %v704 = vmul.f32 %v632, 0.2
    %v705 = vmul.f32 %v637, 0.2
    %v706 = vmul.f32 %v640, 0.2
    %v707 = vmax.f32 %v389, %v643
    %v708 = vmax.f32 %v392, %v644
    %v709 = vmax.f32 %v397, %v645
    %v710 = vmax.f32 %v400, %v646
    %v711 = vmax.f32 %v405, %v647
    %v712 = vmax.f32 %v408, %v648
    %v713 = vmax.f32 %v413, %v649
    %v714 = vmax.f32 %v416, %v650
    %v715 = vmax.f32 %v421, %v651
    %v716 = vmax.f32 %v424, %v652
    %v717 = vmax.f32 %v429, %v653
    %v718 = vmax.f32 %v432, %v654
    %v719 = vmax.f32 %v437, %v655
    %v720 = vmax.f32 %v440, %v656
    %v721 = vmax.f32 %v445, %v657
    %v722 = vmax.f32 %v448, %v658
    %v723 = vmax.f32 %v453, %v659
    %v724 = vmax.f32 %v456, %v660
    %v725 = vmax.f32 %v461, %v661
    %v726 = vmax.f32 %v464, %v662
    %v727 = vmax.f32 %v469, %v663
    %v728 = vmax.f32 %v472, %v664
    %v729 = vmax.f32 %v477, %v665
    %v730 = vmax.f32 %v480, %v666
    %v731 = vmax.f32 %v485, %v667
    %v732 = vmax.f32 %v488, %v668
    %v733 = vmax.f32 %v493, %v669
    %v734 = vmax.f32 %v496, %v670
    %v735 = vmax.f32 %v501, %v671
    %v736 = vmax.f32 %v504, %v672
    %v737 = vmax.f32 %v509, %v673
    %v738 = vmax.f32 %v512, %v674
    %v739 = vmax.f32 %v517, %v675
    %v740 = vmax.f32 %v520, %v676
    %v741 = vmax.f32 %v525, %v677
    %v742 = vmax.f32 %v528, %v678
    %v743 = vmax.f32 %v533, %v679
    %v744 = vmax.f32 %v536, %v680
    %v745 = vmax.f32 %v541, %v681
    %v746 = vmax.f32 %v544, %v682
    %v747 = vmax.f32 %v549, %v683
    %v748 = vmax.f32 %v552, %v684
    %v749 = vmax.f32 %v557, %v685
    %v750 = vmax.f32 %v560, %v686
    %v751 = vmax.f32 %v565, %v687
    %v752 = vmax.f32 %v568, %v688
    %v753 = vmax.f32 %v573, %v689
    %v754 = vmax.f32 %v576, %v690
    %v755 = vmax.f32 %v581, %v691
    %v756 = vmax.f32 %v584, %v692
    %v757 = vmax.f32 %v589, %v693
    %v758 = vmax.f32 %v592, %v694
    %v759 = vmax.f32 %v597, %v695
    %v760 = vmax.f32 %v600, %v696
    %v761 = vmax.f32 %v605, %v697
    %v762 = vmax.f32 %v608, %v698
    %v763 = vmax.f32 %v613, %v699
    %v764 = vmax.f32 %v616, %v700
    %v765 = vmax.f32 %v621, %v701
    %v766 = vmax.f32 %v624, %v702
    %v767 = vmax.f32 %v629, %v703
    %v768 = vmax.f32 %v632, %v704
    %v769 = vmax.f32 %v637, %v705
    %v770 = vmax.f32 %v640, %v706
    %v771 = vpack.c.bf16 %v708, %v707
    %v772 = vpack.c.bf16 %v710, %v709
    %v773 = vpack.c.bf16 %v712, %v711
    %v774 = vpack.c.bf16 %v714, %v713
    %v775 = vpack.c.bf16 %v716, %v715
    %v776 = vpack.c.bf16 %v718, %v717
    %v777 = vpack.c.bf16 %v720, %v719
    %v778 = vpack.c.bf16 %v722, %v721
    %v779 = vpack.c.bf16 %v724, %v723
    %v780 = vpack.c.bf16 %v726, %v725
    %v781 = vpack.c.bf16 %v728, %v727
    %v782 = vpack.c.bf16 %v730, %v729
    %v783 = vpack.c.bf16 %v732, %v731
    %v784 = vpack.c.bf16 %v734, %v733
    %v785 = vpack.c.bf16 %v736, %v735
    %v786 = vpack.c.bf16 %v738, %v737
    %v787 = vpack.c.bf16 %v740, %v739
    %v788 = vpack.c.bf16 %v742, %v741
    %v789 = vpack.c.bf16 %v744, %v743
    %v790 = vpack.c.bf16 %v746, %v745
    %v791 = vpack.c.bf16 %v748, %v747
    %v792 = vpack.c.bf16 %v750, %v749
    %v793 = vpack.c.bf16 %v752, %v751
    %v794 = vpack.c.bf16 %v754, %v753
    %v795 = vpack.c.bf16 %v756, %v755
    %v796 = vpack.c.bf16 %v758, %v757
    %v797 = vpack.c.bf16 %v760, %v759
    %v798 = vpack.c.bf16 %v762, %v761
    %v799 = vpack.c.bf16 %v764, %v763
    %v800 = vpack.c.bf16 %v766, %v765
    %v801 = vpack.c.bf16 %v768, %v767
    %v802 = vpack.c.bf16 %v770, %v769
    %v835 = vunpack.c.l.b16 %v771
    %v836 = vunpack.c.h.b16 %v771
    %v837 = vunpack.c.l.b16 %v772
    %v838 = vunpack.c.h.b16 %v772
    %v839 = vunpack.c.l.b16 %v773
    %v840 = vunpack.c.h.b16 %v773
    %v841 = vunpack.c.l.b16 %v774
    %v842 = vunpack.c.h.b16 %v774
    %v843 = vunpack.c.l.b16 %v775
    %v844 = vunpack.c.h.b16 %v775
    %v845 = vunpack.c.l.b16 %v776
    %v846 = vunpack.c.h.b16 %v776
    %v847 = vunpack.c.l.b16 %v777
    %v848 = vunpack.c.h.b16 %v777
    %v849 = vunpack.c.l.b16 %v778
    %v850 = vunpack.c.h.b16 %v778
    %v851 = vunpack.c.l.b16 %v779
    %v852 = vunpack.c.h.b16 %v779
    %v853 = vunpack.c.l.b16 %v780
    %v854 = vunpack.c.h.b16 %v780
    %v855 = vunpack.c.l.b16 %v781
    %v856 = vunpack.c.h.b16 %v781
    %v857 = vunpack.c.l.b16 %v782
    %v858 = vunpack.c.h.b16 %v782
    %v859 = vunpack.c.l.b16 %v783
    %v860 = vunpack.c.h.b16 %v783
    %v861 = vunpack.c.l.b16 %v784
    %v862 = vunpack.c.h.b16 %v784
    %v863 = vunpack.c.l.b16 %v785
    %v864 = vunpack.c.h.b16 %v785
    %v865 = vunpack.c.l.b16 %v786
    %v866 = vunpack.c.h.b16 %v786
    %v867 = vunpack.c.l.b16 %v787
    %v868 = vunpack.c.h.b16 %v787
    %v869 = vunpack.c.l.b16 %v788
    %v870 = vunpack.c.h.b16 %v788
    %v871 = vunpack.c.l.b16 %v789
    %v872 = vunpack.c.h.b16 %v789
    %v873 = vunpack.c.l.b16 %v790
    %v874 = vunpack.c.h.b16 %v790
    %v875 = vunpack.c.l.b16 %v791
    %v876 = vunpack.c.h.b16 %v791
    %v877 = vunpack.c.l.b16 %v792
    %v878 = vunpack.c.h.b16 %v792
    %v879 = vunpack.c.l.b16 %v793
    %v880 = vunpack.c.h.b16 %v793
    %v881 = vunpack.c.l.b16 %v794
    %v882 = vunpack.c.h.b16 %v794
    %v883 = vunpack.c.l.b16 %v795
    %v884 = vunpack.c.h.b16 %v795
    %v885 = vunpack.c.l.b16 %v796
    %v886 = vunpack.c.h.b16 %v796
    %v887 = vunpack.c.l.b16 %v797
    %v888 = vunpack.c.h.b16 %v797
    %v889 = vunpack.c.l.b16 %v798
    %v890 = vunpack.c.h.b16 %v798
    %v891 = vunpack.c.l.b16 %v799
    %v892 = vunpack.c.h.b16 %v799
    %v893 = vunpack.c.l.b16 %v800
    %v894 = vunpack.c.h.b16 %v800
    %v895 = vunpack.c.l.b16 %v801
    %v896 = vunpack.c.h.b16 %v801
    %v897 = vunpack.c.l.b16 %v802
    %v898 = vunpack.c.h.b16 %v802
    %v899 = vpack.c.b16 %v835, %v835
    %v900 = vpack.c.b16 %v836, %v836
    %v901 = vpack.c.b16 %v837, %v837
    %v902 = vpack.c.b16 %v838, %v838
    %v903 = vpack.c.b16 %v839, %v839
    %v904 = vpack.c.b16 %v840, %v840
    %v905 = vpack.c.b16 %v841, %v841
    %v906 = vpack.c.b16 %v842, %v842
    %v907 = vpack.c.b16 %v843, %v843
    %v908 = vpack.c.b16 %v844, %v844
    %v909 = vpack.c.b16 %v845, %v845
    %v910 = vpack.c.b16 %v846, %v846
    %v911 = vpack.c.b16 %v847, %v847
    %v912 = vpack.c.b16 %v848, %v848
    %v913 = vpack.c.b16 %v849, %v849
    %v914 = vpack.c.b16 %v850, %v850
    %v915 = vpack.c.b16 %v851, %v851
    %v916 = vpack.c.b16 %v852, %v852
    %v917 = vpack.c.b16 %v853, %v853
    %v918 = vpack.c.b16 %v854, %v854
    %v919 = vpack.c.b16 %v855, %v855
    %v920 = vpack.c.b16 %v856, %v856
    %v921 = vpack.c.b16 %v857, %v857
    %v922 = vpack.c.b16 %v858, %v858
    %v923 = vpack.c.b16 %v859, %v859
    %v924 = vpack.c.b16 %v860, %v860
    %v925 = vpack.c.b16 %v861, %v861
    %v926 = vpack.c.b16 %v862, %v862
    %v927 = vpack.c.b16 %v863, %v863
    %v928 = vpack.c.b16 %v864, %v864
    %v929 = vpack.c.b16 %v865, %v865
    %v930 = vpack.c.b16 %v866, %v866
    %v931 = vpack.c.b16 %v867, %v867
    %v932 = vpack.c.b16 %v868, %v868
    %v933 = vpack.c.b16 %v869, %v869
    %v934 = vpack.c.b16 %v870, %v870
    %v935 = vpack.c.b16 %v871, %v871
    %v936 = vpack.c.b16 %v872, %v872
    %v937 = vpack.c.b16 %v873, %v873
    %v938 = vpack.c.b16 %v874, %v874
    %v939 = vpack.c.b16 %v875, %v875
    %v940 = vpack.c.b16 %v876, %v876
    %v941 = vpack.c.b16 %v877, %v877
    %v942 = vpack.c.b16 %v878, %v878
    %v943 = vpack.c.b16 %v879, %v879
    %v944 = vpack.c.b16 %v880, %v880
    %v945 = vpack.c.b16 %v881, %v881
    %v946 = vpack.c.b16 %v882, %v882
    %v947 = vpack.c.b16 %v883, %v883
    %v948 = vpack.c.b16 %v884, %v884
    %v949 = vpack.c.b16 %v885, %v885
    %v950 = vpack.c.b16 %v886, %v886
    %v951 = vpack.c.b16 %v887, %v887
    %v952 = vpack.c.b16 %v888, %v888
    %v953 = vpack.c.b16 %v889, %v889
    %v954 = vpack.c.b16 %v890, %v890
    %v955 = vpack.c.b16 %v891, %v891
    %v956 = vpack.c.b16 %v892, %v892
    %v957 = vpack.c.b16 %v893, %v893
    %v958 = vpack.c.b16 %v894, %v894
    %v959 = vpack.c.b16 %v895, %v895
    %v960 = vpack.c.b16 %v896, %v896
    %v961 = vpack.c.b16 %v897, %v897
    %v962 = vpack.c.b16 %v898, %v898
    %1027 = vst [vmem:[%s3] sm:$0xf] %v899
    %1028 = vst [vmem:[%s3 + $0x4] sm:$0xf] %v900
    %1029 = vst [vmem:[%s3 + $0x8] sm:$0xf] %v901
    %1030 = vst [vmem:[%s3 + $0xc] sm:$0xf] %v902
    %1031 = vst [vmem:[%s3 + $0x10] sm:$0xf] %v903
    %1032 = vst [vmem:[%s3 + $0x14] sm:$0xf] %v904
    %1033 = vst [vmem:[%s3 + $0x18] sm:$0xf] %v905
    %1034 = vst [vmem:[%s3 + $0x1c] sm:$0xf] %v906
    %1035 = vst [vmem:[%s3 + $0x20] sm:$0xf] %v907
    %1036 = vst [vmem:[%s3 + $0x24] sm:$0xf] %v908
    %1037 = vst [vmem:[%s3 + $0x28] sm:$0xf] %v909
    %1038 = vst [vmem:[%s3 + $0x2c] sm:$0xf] %v910
    %1039 = vst [vmem:[%s3 + $0x30] sm:$0xf] %v911
    %1040 = vst [vmem:[%s3 + $0x34] sm:$0xf] %v912
    %1041 = vst [vmem:[%s3 + $0x38] sm:$0xf] %v913
    %1042 = vst [vmem:[%s3 + $0x3c] sm:$0xf] %v914
    %1043 = vst [vmem:[%s3 + $0x40] sm:$0xf] %v915
    %1044 = vst [vmem:[%s3 + $0x44] sm:$0xf] %v916
    %1045 = vst [vmem:[%s3 + $0x48] sm:$0xf] %v917
    %1046 = vst [vmem:[%s3 + $0x4c] sm:$0xf] %v918
    %1047 = vst [vmem:[%s3 + $0x50] sm:$0xf] %v919
    %1048 = vst [vmem:[%s3 + $0x54] sm:$0xf] %v920
    %1049 = vst [vmem:[%s3 + $0x58] sm:$0xf] %v921
    %1050 = vst [vmem:[%s3 + $0x5c] sm:$0xf] %v922
    %1051 = vst [vmem:[%s3 + $0x60] sm:$0xf] %v923
    %1052 = vst [vmem:[%s3 + $0x64] sm:$0xf] %v924
    %1053 = vst [vmem:[%s3 + $0x68] sm:$0xf] %v925
    %1054 = vst [vmem:[%s3 + $0x6c] sm:$0xf] %v926
    %1055 = vst [vmem:[%s3 + $0x70] sm:$0xf] %v927
    %1056 = vst [vmem:[%s3 + $0x74] sm:$0xf] %v928
    %1057 = vst [vmem:[%s3 + $0x78] sm:$0xf] %v929
    %1058 = vst [vmem:[%s3 + $0x7c] sm:$0xf] %v930
    %1059 = vst [vmem:[%s3 + $0x80] sm:$0xf] %v931
    %1060 = vst [vmem:[%s3 + $0x84] sm:$0xf] %v932
    %1061 = vst [vmem:[%s3 + $0x88] sm:$0xf] %v933
    %1062 = vst [vmem:[%s3 + $0x8c] sm:$0xf] %v934
    %1063 = vst [vmem:[%s3 + $0x90] sm:$0xf] %v935
    %1064 = vst [vmem:[%s3 + $0x94] sm:$0xf] %v936
    %1065 = vst [vmem:[%s3 + $0x98] sm:$0xf] %v937
    %1066 = vst [vmem:[%s3 + $0x9c] sm:$0xf] %v938
    %1067 = vst [vmem:[%s3 + $0xa0] sm:$0xf] %v939
    %1068 = vst [vmem:[%s3 + $0xa4] sm:$0xf] %v940
    %1069 = vst [vmem:[%s3 + $0xa8] sm:$0xf] %v941
    %1070 = vst [vmem:[%s3 + $0xac] sm:$0xf] %v942
    %1071 = vst [vmem:[%s3 + $0xb0] sm:$0xf] %v943
    %1072 = vst [vmem:[%s3 + $0xb4] sm:$0xf] %v944
    %1073 = vst [vmem:[%s3 + $0xb8] sm:$0xf] %v945
    %1074 = vst [vmem:[%s3 + $0xbc] sm:$0xf] %v946
    %1075 = vst [vmem:[%s3 + $0xc0] sm:$0xf] %v947
    %1076 = vst [vmem:[%s3 + $0xc4] sm:$0xf] %v948
    %1077 = vst [vmem:[%s3 + $0xc8] sm:$0xf] %v949
    %1078 = vst [vmem:[%s3 + $0xcc] sm:$0xf] %v950
    %1079 = vst [vmem:[%s3 + $0xd0] sm:$0xf] %v951
    %1080 = vst [vmem:[%s3 + $0xd4] sm:$0xf] %v952
    %1081 = vst [vmem:[%s3 + $0xd8] sm:$0xf] %v953
    %1082 = vst [vmem:[%s3 + $0xdc] sm:$0xf] %v954
    %1083 = vst [vmem:[%s3 + $0xe0] sm:$0xf] %v955
    %1084 = vst [vmem:[%s3 + $0xe4] sm:$0xf] %v956
    %1085 = vst [vmem:[%s3 + $0xe8] sm:$0xf] %v957
    %1086 = vst [vmem:[%s3 + $0xec] sm:$0xf] %v958
    %1087 = vst [vmem:[%s3 + $0xf0] sm:$0xf] %v959
    %1088 = vst [vmem:[%s3 + $0xf4] sm:$0xf] %v960
    %1089 = vst [vmem:[%s3 + $0xf8] sm:$0xf] %v961
    %1090 = vst [vmem:[%s3 + $0xfc] sm:$0xf] %v962
    // Predicated region
    $region18: #{net_discriminator.5} parent=1 // pred_check
      _
    $region19: #{net_discriminator.5} parent=1 // pred_check_branch
      %1092 = sbr.rel (0) target = $region21
    $region20: #{net_discriminator.5} parent=1 // pred_region
      _
    $region21: #{net_discriminator.5} parent=1 // pred_fallthru
      _
    // Predicated region
    $region22: #{net_discriminator.5} parent=1 // pred_check
      _
    $region23: #{net_discriminator.5} parent=1 // pred_check_branch
      %1094 = sbr.rel (0) target = $region25
    $region24: #{net_discriminator.5} parent=1 // pred_region
      _
    $region25: #{net_discriminator.5} parent=1 // pred_fallthru
      _
    %1095 = vsyncpa [#allocation3], 1

// kernel: net_discriminator.6
$region0: #{net_discriminator.6}
  #allocation0 [shape = 'u32[]', space=smem, size = 0x4, offset = 0x4, fixed_abs, tag = 'smem constant byte address 0x4 - core index']
  #allocation1 [shape = 'u32[144,128]{1,0:T(1,128)}', space=vmem, size = 0x12000, scoped, tag = 'internal scratch']
  %s0 = inlined_call_operand.vmem [shape: bf16[128,1024], index: 0, kind: input, shape index: {}]
  %s1 = inlined_call_operand.vmem [shape: bf16[1024,128], index: 1, kind: input, shape index: {}]
  %s2 = inlined_call_operand.vmem [shape: f32[1,128], index: 2, kind: input, shape index: {}]
  %s3 = inlined_call_operand.vmem [shape: bf16[128,128], index: 3, kind: output, shape index: {}]
  %s4 = sld [smem:[#allocation0]]
  $region22: #{net_discriminator.6} parent=0
    _
  %s6 = ssub.s32 1, %s4
  %s7 = scalar_select 0, %s6, %s4
  // Predicated region
  $region2: #{net_discriminator.6} parent=0 // pred_check
    _
  $region3: #{net_discriminator.6} parent=0 // pred_check_branch
    %9 = sbr.rel (0) target = $region5
  $region4: #{net_discriminator.6} parent=0 // pred_region
    _
  $region5: #{net_discriminator.6} parent=0 // pred_fallthru
    _
  // Predicated region
  $region6: #{net_discriminator.6} parent=0 // pred_check
    _
  $region7: #{net_discriminator.6} parent=0 // pred_check_branch
    %11 = sbr.rel (0) target = $region9
  $region8: #{net_discriminator.6} parent=0 // pred_region
    _
  $region9: #{net_discriminator.6} parent=0 // pred_fallthru
    _
  // Predicated region
  $region10: #{net_discriminator.6} parent=0 // pred_check
    _
  $region11: #{net_discriminator.6} parent=0 // pred_check_branch
    %13 = sbr.rel (0) target = $region13
  $region12: #{net_discriminator.6} parent=0 // pred_region
    _
  $region13: #{net_discriminator.6} parent=0 // pred_fallthru
    _
  %v15 = vld [vmem:[%s0] sm:$0xff]
  %v16 = vld [vmem:[%s0 + $0x8] sm:$0xff]
  %v17 = vld [vmem:[%s0 + $0x10] sm:$0xff]
  %v18 = vld [vmem:[%s0 + $0x18] sm:$0xff]
  %v19 = vld [vmem:[%s0 + $0x20] sm:$0xff]
  %v20 = vld [vmem:[%s0 + $0x28] sm:$0xff]
  %v21 = vld [vmem:[%s0 + $0x30] sm:$0xff]
  %v22 = vld [vmem:[%s0 + $0x38] sm:$0xff]
  %v23 = vld [vmem:[%s0 + $0x40] sm:$0xff]
  %v24 = vld [vmem:[%s0 + $0x48] sm:$0xff]
  %v25 = vld [vmem:[%s0 + $0x50] sm:$0xff]
  %v26 = vld [vmem:[%s0 + $0x58] sm:$0xff]
  %v27 = vld [vmem:[%s0 + $0x60] sm:$0xff]
  %v28 = vld [vmem:[%s0 + $0x68] sm:$0xff]
  %v29 = vld [vmem:[%s0 + $0x70] sm:$0xff]
  %v30 = vld [vmem:[%s0 + $0x78] sm:$0xff]
  %v31 = vld [vmem:[%s0 + $0x80] sm:$0xff]
  %v32 = vld [vmem:[%s0 + $0x88] sm:$0xff]
  %v33 = vld [vmem:[%s0 + $0x90] sm:$0xff]
  %v34 = vld [vmem:[%s0 + $0x98] sm:$0xff]
  %v35 = vld [vmem:[%s0 + $0xa0] sm:$0xff]
  %v36 = vld [vmem:[%s0 + $0xa8] sm:$0xff]
  %v37 = vld [vmem:[%s0 + $0xb0] sm:$0xff]
  %v38 = vld [vmem:[%s0 + $0xb8] sm:$0xff]
  %v39 = vld [vmem:[%s0 + $0xc0] sm:$0xff]
  %v40 = vld [vmem:[%s0 + $0xc8] sm:$0xff]
  %v41 = vld [vmem:[%s0 + $0xd0] sm:$0xff]
  %v42 = vld [vmem:[%s0 + $0xd8] sm:$0xff]
  %v43 = vld [vmem:[%s0 + $0xe0] sm:$0xff]
  %v44 = vld [vmem:[%s0 + $0xe8] sm:$0xff]
  %v45 = vld [vmem:[%s0 + $0xf0] sm:$0xff]
  %v46 = vld [vmem:[%s0 + $0xf8] sm:$0xff]
  %v47 = vld [vmem:[%s0 + $0x100] sm:$0xff]
  %v48 = vld [vmem:[%s0 + $0x108] sm:$0xff]
  %v49 = vld [vmem:[%s0 + $0x110] sm:$0xff]
  %v50 = vld [vmem:[%s0 + $0x118] sm:$0xff]
  %v51 = vld [vmem:[%s0 + $0x120] sm:$0xff]
  %v52 = vld [vmem:[%s0 + $0x128] sm:$0xff]
  %v53 = vld [vmem:[%s0 + $0x130] sm:$0xff]
  %v54 = vld [vmem:[%s0 + $0x138] sm:$0xff]
  %v55 = vld [vmem:[%s0 + $0x140] sm:$0xff]
  %v56 = vld [vmem:[%s0 + $0x148] sm:$0xff]
  %v57 = vld [vmem:[%s0 + $0x150] sm:$0xff]
  %v58 = vld [vmem:[%s0 + $0x158] sm:$0xff]
  %v59 = vld [vmem:[%s0 + $0x160] sm:$0xff]
  %v60 = vld [vmem:[%s0 + $0x168] sm:$0xff]
  %v61 = vld [vmem:[%s0 + $0x170] sm:$0xff]
  %v62 = vld [vmem:[%s0 + $0x178] sm:$0xff]
  %v63 = vld [vmem:[%s0 + $0x180] sm:$0xff]
  %v64 = vld [vmem:[%s0 + $0x188] sm:$0xff]
  %v65 = vld [vmem:[%s0 + $0x190] sm:$0xff]
  %v66 = vld [vmem:[%s0 + $0x198] sm:$0xff]
  %v67 = vld [vmem:[%s0 + $0x1a0] sm:$0xff]
  %v68 = vld [vmem:[%s0 + $0x1a8] sm:$0xff]
  %v69 = vld [vmem:[%s0 + $0x1b0] sm:$0xff]
  %v70 = vld [vmem:[%s0 + $0x1b8] sm:$0xff]
  %v71 = vld [vmem:[%s0 + $0x1c0] sm:$0xff]
  %v72 = vld [vmem:[%s0 + $0x1c8] sm:$0xff]
  %v73 = vld [vmem:[%s0 + $0x1d0] sm:$0xff]
  %v74 = vld [vmem:[%s0 + $0x1d8] sm:$0xff]
  %v75 = vld [vmem:[%s0 + $0x1e0] sm:$0xff]
  %v76 = vld [vmem:[%s0 + $0x1e8] sm:$0xff]
  %v77 = vld [vmem:[%s0 + $0x1f0] sm:$0xff]
  %v78 = vld [vmem:[%s0 + $0x1f8] sm:$0xff]
  %v79 = vld [vmem:[%s1] sm:$0xf]
  %v80 = vld [vmem:[%s1 + $0x4] sm:$0xf]
  %v81 = vld [vmem:[%s1 + $0x8] sm:$0xf]
  %v82 = vld [vmem:[%s1 + $0xc] sm:$0xf]
  %v83 = vld [vmem:[%s1 + $0x10] sm:$0xf]
  %v84 = vld [vmem:[%s1 + $0x14] sm:$0xf]
  %v85 = vld [vmem:[%s1 + $0x18] sm:$0xf]
  %v86 = vld [vmem:[%s1 + $0x1c] sm:$0xf]
  %v87 = vld [vmem:[%s1 + $0x20] sm:$0xf]
  %v88 = vld [vmem:[%s1 + $0x24] sm:$0xf]
  %v89 = vld [vmem:[%s1 + $0x28] sm:$0xf]
  %v90 = vld [vmem:[%s1 + $0x2c] sm:$0xf]
  %v91 = vld [vmem:[%s1 + $0x30] sm:$0xf]
  %v92 = vld [vmem:[%s1 + $0x34] sm:$0xf]
  %v93 = vld [vmem:[%s1 + $0x38] sm:$0xf]
  %v94 = vld [vmem:[%s1 + $0x3c] sm:$0xf]
  %v95 = vld [vmem:[%s1 + $0x40] sm:$0xf]
  %v96 = vld [vmem:[%s1 + $0x44] sm:$0xf]
  %v97 = vld [vmem:[%s1 + $0x48] sm:$0xf]
  %v98 = vld [vmem:[%s1 + $0x4c] sm:$0xf]
  %v99 = vld [vmem:[%s1 + $0x50] sm:$0xf]
  %v100 = vld [vmem:[%s1 + $0x54] sm:$0xf]
  %v101 = vld [vmem:[%s1 + $0x58] sm:$0xf]
  %v102 = vld [vmem:[%s1 + $0x5c] sm:$0xf]
  %v103 = vld [vmem:[%s1 + $0x60] sm:$0xf]
  %v104 = vld [vmem:[%s1 + $0x64] sm:$0xf]
  %v105 = vld [vmem:[%s1 + $0x68] sm:$0xf]
  %v106 = vld [vmem:[%s1 + $0x6c] sm:$0xf]
  %v107 = vld [vmem:[%s1 + $0x70] sm:$0xf]
  %v108 = vld [vmem:[%s1 + $0x74] sm:$0xf]
  %v109 = vld [vmem:[%s1 + $0x78] sm:$0xf]
  %v110 = vld [vmem:[%s1 + $0x7c] sm:$0xf]
  %v111 = vld [vmem:[%s1 + $0x80] sm:$0xf]
  %v112 = vld [vmem:[%s1 + $0x84] sm:$0xf]
  %v113 = vld [vmem:[%s1 + $0x88] sm:$0xf]
  %v114 = vld [vmem:[%s1 + $0x8c] sm:$0xf]
  %v115 = vld [vmem:[%s1 + $0x90] sm:$0xf]
  %v116 = vld [vmem:[%s1 + $0x94] sm:$0xf]
  %v117 = vld [vmem:[%s1 + $0x98] sm:$0xf]
  %v118 = vld [vmem:[%s1 + $0x9c] sm:$0xf]
  %v119 = vld [vmem:[%s1 + $0xa0] sm:$0xf]
  %v120 = vld [vmem:[%s1 + $0xa4] sm:$0xf]
  %v121 = vld [vmem:[%s1 + $0xa8] sm:$0xf]
  %v122 = vld [vmem:[%s1 + $0xac] sm:$0xf]
  %v123 = vld [vmem:[%s1 + $0xb0] sm:$0xf]
  %v124 = vld [vmem:[%s1 + $0xb4] sm:$0xf]
  %v125 = vld [vmem:[%s1 + $0xb8] sm:$0xf]
  %v126 = vld [vmem:[%s1 + $0xbc] sm:$0xf]
  %v127 = vld [vmem:[%s1 + $0xc0] sm:$0xf]
  %v128 = vld [vmem:[%s1 + $0xc4] sm:$0xf]
  %v129 = vld [vmem:[%s1 + $0xc8] sm:$0xf]
  %v130 = vld [vmem:[%s1 + $0xcc] sm:$0xf]
  %v131 = vld [vmem:[%s1 + $0xd0] sm:$0xf]
  %v132 = vld [vmem:[%s1 + $0xd4] sm:$0xf]
  %v133 = vld [vmem:[%s1 + $0xd8] sm:$0xf]
  %v134 = vld [vmem:[%s1 + $0xdc] sm:$0xf]
  %v135 = vld [vmem:[%s1 + $0xe0] sm:$0xf]
  %v136 = vld [vmem:[%s1 + $0xe4] sm:$0xf]
  %v137 = vld [vmem:[%s1 + $0xe8] sm:$0xf]
  %v138 = vld [vmem:[%s1 + $0xec] sm:$0xf]
  %v139 = vld [vmem:[%s1 + $0xf0] sm:$0xf]
  %v140 = vld [vmem:[%s1 + $0xf4] sm:$0xf]
  %v141 = vld [vmem:[%s1 + $0xf8] sm:$0xf]
  %v142 = vld [vmem:[%s1 + $0xfc] sm:$0xf]
  %v143 = vld [vmem:[%s1 + $0x100] sm:$0xf]
  %v144 = vld [vmem:[%s1 + $0x104] sm:$0xf]
  %v145 = vld [vmem:[%s1 + $0x108] sm:$0xf]
  %v146 = vld [vmem:[%s1 + $0x10c] sm:$0xf]
  %v147 = vld [vmem:[%s1 + $0x110] sm:$0xf]
  %v148 = vld [vmem:[%s1 + $0x114] sm:$0xf]
  %v149 = vld [vmem:[%s1 + $0x118] sm:$0xf]
  %v150 = vld [vmem:[%s1 + $0x11c] sm:$0xf]
  %v151 = vld [vmem:[%s1 + $0x120] sm:$0xf]
  %v152 = vld [vmem:[%s1 + $0x124] sm:$0xf]
  %v153 = vld [vmem:[%s1 + $0x128] sm:$0xf]
  %v154 = vld [vmem:[%s1 + $0x12c] sm:$0xf]
  %v155 = vld [vmem:[%s1 + $0x130] sm:$0xf]
  %v156 = vld [vmem:[%s1 + $0x134] sm:$0xf]
  %v157 = vld [vmem:[%s1 + $0x138] sm:$0xf]
  %v158 = vld [vmem:[%s1 + $0x13c] sm:$0xf]
  %v159 = vld [vmem:[%s1 + $0x140] sm:$0xf]
  %v160 = vld [vmem:[%s1 + $0x144] sm:$0xf]
  %v161 = vld [vmem:[%s1 + $0x148] sm:$0xf]
  %v162 = vld [vmem:[%s1 + $0x14c] sm:$0xf]
  %v163 = vld [vmem:[%s1 + $0x150] sm:$0xf]
  %v164 = vld [vmem:[%s1 + $0x154] sm:$0xf]
  %v165 = vld [vmem:[%s1 + $0x158] sm:$0xf]
  %v166 = vld [vmem:[%s1 + $0x15c] sm:$0xf]
  %v167 = vld [vmem:[%s1 + $0x160] sm:$0xf]
  %v168 = vld [vmem:[%s1 + $0x164] sm:$0xf]
  %v169 = vld [vmem:[%s1 + $0x168] sm:$0xf]
  %v170 = vld [vmem:[%s1 + $0x16c] sm:$0xf]
  %v171 = vld [vmem:[%s1 + $0x170] sm:$0xf]
  %v172 = vld [vmem:[%s1 + $0x174] sm:$0xf]
  %v173 = vld [vmem:[%s1 + $0x178] sm:$0xf]
  %v174 = vld [vmem:[%s1 + $0x17c] sm:$0xf]
  %v175 = vld [vmem:[%s1 + $0x180] sm:$0xf]
  %v176 = vld [vmem:[%s1 + $0x184] sm:$0xf]
  %v177 = vld [vmem:[%s1 + $0x188] sm:$0xf]
  %v178 = vld [vmem:[%s1 + $0x18c] sm:$0xf]
  %v179 = vld [vmem:[%s1 + $0x190] sm:$0xf]
  %v180 = vld [vmem:[%s1 + $0x194] sm:$0xf]
  %v181 = vld [vmem:[%s1 + $0x198] sm:$0xf]
  %v182 = vld [vmem:[%s1 + $0x19c] sm:$0xf]
  %v183 = vld [vmem:[%s1 + $0x1a0] sm:$0xf]
  %v184 = vld [vmem:[%s1 + $0x1a4] sm:$0xf]
  %v185 = vld [vmem:[%s1 + $0x1a8] sm:$0xf]
  %v186 = vld [vmem:[%s1 + $0x1ac] sm:$0xf]
  %v187 = vld [vmem:[%s1 + $0x1b0] sm:$0xf]
  %v188 = vld [vmem:[%s1 + $0x1b4] sm:$0xf]
  %v189 = vld [vmem:[%s1 + $0x1b8] sm:$0xf]
  %v190 = vld [vmem:[%s1 + $0x1bc] sm:$0xf]
  %v191 = vld [vmem:[%s1 + $0x1c0] sm:$0xf]
  %v192 = vld [vmem:[%s1 + $0x1c4] sm:$0xf]
  %v193 = vld [vmem:[%s1 + $0x1c8] sm:$0xf]
  %v194 = vld [vmem:[%s1 + $0x1cc] sm:$0xf]
  %v195 = vld [vmem:[%s1 + $0x1d0] sm:$0xf]
  %v196 = vld [vmem:[%s1 + $0x1d4] sm:$0xf]
  %v197 = vld [vmem:[%s1 + $0x1d8] sm:$0xf]
  %v198 = vld [vmem:[%s1 + $0x1dc] sm:$0xf]
  %v199 = vld [vmem:[%s1 + $0x1e0] sm:$0xf]
  %v200 = vld [vmem:[%s1 + $0x1e4] sm:$0xf]
  %v201 = vld [vmem:[%s1 + $0x1e8] sm:$0xf]
  %v202 = vld [vmem:[%s1 + $0x1ec] sm:$0xf]
  %v203 = vld [vmem:[%s1 + $0x1f0] sm:$0xf]
  %v204 = vld [vmem:[%s1 + $0x1f4] sm:$0xf]
  %v205 = vld [vmem:[%s1 + $0x1f8] sm:$0xf]
  %v206 = vld [vmem:[%s1 + $0x1fc] sm:$0xf]
  %v207 = vld [vmem:[%s2] sm:$0x1]
  %v209 = vlaneseq
  %v210 = vshrl.u32 %v209, 7
  %v211 = vsub.s32 0, %v210
  %v212 = vrot.slane %v207, %v211
  %v278 = vunpack.c.l.b16 %v15
  %v279 = vunpack.c.h.b16 %v15
  %v280 = vunpack.c.l.b16 %v16
  %v281 = vunpack.c.h.b16 %v16
  %v282 = vunpack.c.l.b16 %v17
  %v283 = vunpack.c.h.b16 %v17
  %v284 = vunpack.c.l.b16 %v18
  %v285 = vunpack.c.h.b16 %v18
  %v286 = vunpack.c.l.b16 %v19
  %v287 = vunpack.c.h.b16 %v19
  %v288 = vunpack.c.l.b16 %v20
  %v289 = vunpack.c.h.b16 %v20
  %v290 = vunpack.c.l.b16 %v21
  %v291 = vunpack.c.h.b16 %v21
  %v292 = vunpack.c.l.b16 %v22
  %v293 = vunpack.c.h.b16 %v22
  %v294 = vunpack.c.l.b16 %v23
  %v295 = vunpack.c.h.b16 %v23
  %v296 = vunpack.c.l.b16 %v24
  %v297 = vunpack.c.h.b16 %v24
  %v298 = vunpack.c.l.b16 %v25
  %v299 = vunpack.c.h.b16 %v25
  %v300 = vunpack.c.l.b16 %v26
  %v301 = vunpack.c.h.b16 %v26
  %v302 = vunpack.c.l.b16 %v27
  %v303 = vunpack.c.h.b16 %v27
  %v304 = vunpack.c.l.b16 %v28
  %v305 = vunpack.c.h.b16 %v28
  %v306 = vunpack.c.l.b16 %v29
  %v307 = vunpack.c.h.b16 %v29
  %v308 = vunpack.c.l.b16 %v30
  %v309 = vunpack.c.h.b16 %v30
  %v310 = vunpack.c.l.b16 %v31
  %v311 = vunpack.c.h.b16 %v31
  %v312 = vunpack.c.l.b16 %v32
  %v313 = vunpack.c.h.b16 %v32
  %v314 = vunpack.c.l.b16 %v33
  %v315 = vunpack.c.h.b16 %v33
  %v316 = vunpack.c.l.b16 %v34
  %v317 = vunpack.c.h.b16 %v34
  %v318 = vunpack.c.l.b16 %v35
  %v319 = vunpack.c.h.b16 %v35
  %v320 = vunpack.c.l.b16 %v36
  %v321 = vunpack.c.h.b16 %v36
  %v322 = vunpack.c.l.b16 %v37
  %v323 = vunpack.c.h.b16 %v37
  %v324 = vunpack.c.l.b16 %v38
  %v325 = vunpack.c.h.b16 %v38
  %v326 = vunpack.c.l.b16 %v39
  %v327 = vunpack.c.h.b16 %v39
  %v328 = vunpack.c.l.b16 %v40
  %v329 = vunpack.c.h.b16 %v40
  %v330 = vunpack.c.l.b16 %v41
  %v331 = vunpack.c.h.b16 %v41
  %v332 = vunpack.c.l.b16 %v42
  %v333 = vunpack.c.h.b16 %v42
  %v334 = vunpack.c.l.b16 %v43
  %v335 = vunpack.c.h.b16 %v43
  %v336 = vunpack.c.l.b16 %v44
  %v337 = vunpack.c.h.b16 %v44
  %v338 = vunpack.c.l.b16 %v45
  %v339 = vunpack.c.h.b16 %v45
  %v340 = vunpack.c.l.b16 %v46
  %v341 = vunpack.c.h.b16 %v46
  %v342 = vunpack.c.l.b16 %v47
  %v343 = vunpack.c.h.b16 %v47
  %v344 = vunpack.c.l.b16 %v48
  %v345 = vunpack.c.h.b16 %v48
  %v346 = vunpack.c.l.b16 %v49
  %v347 = vunpack.c.h.b16 %v49
  %v348 = vunpack.c.l.b16 %v50
  %v349 = vunpack.c.h.b16 %v50
  %v350 = vunpack.c.l.b16 %v51
  %v351 = vunpack.c.h.b16 %v51
  %v352 = vunpack.c.l.b16 %v52
  %v353 = vunpack.c.h.b16 %v52
  %v354 = vunpack.c.l.b16 %v53
  %v355 = vunpack.c.h.b16 %v53
  %v356 = vunpack.c.l.b16 %v54
  %v357 = vunpack.c.h.b16 %v54
  %v358 = vunpack.c.l.b16 %v55
  %v359 = vunpack.c.h.b16 %v55
  %v360 = vunpack.c.l.b16 %v56
  %v361 = vunpack.c.h.b16 %v56
  %v362 = vunpack.c.l.b16 %v57
  %v363 = vunpack.c.h.b16 %v57
  %v364 = vunpack.c.l.b16 %v58
  %v365 = vunpack.c.h.b16 %v58
  %v366 = vunpack.c.l.b16 %v59
  %v367 = vunpack.c.h.b16 %v59
  %v368 = vunpack.c.l.b16 %v60
  %v369 = vunpack.c.h.b16 %v60
  %v370 = vunpack.c.l.b16 %v61
  %v371 = vunpack.c.h.b16 %v61
  %v372 = vunpack.c.l.b16 %v62
  %v373 = vunpack.c.h.b16 %v62
  %v374 = vunpack.c.l.b16 %v63
  %v375 = vunpack.c.h.b16 %v63
  %v376 = vunpack.c.l.b16 %v64
  %v377 = vunpack.c.h.b16 %v64
  %v378 = vunpack.c.l.b16 %v65
  %v379 = vunpack.c.h.b16 %v65
  %v380 = vunpack.c.l.b16 %v66
  %v381 = vunpack.c.h.b16 %v66
  %v382 = vunpack.c.l.b16 %v67
  %v383 = vunpack.c.h.b16 %v67
  %v384 = vunpack.c.l.b16 %v68
  %v385 = vunpack.c.h.b16 %v68
  %v386 = vunpack.c.l.b16 %v69
  %v387 = vunpack.c.h.b16 %v69
  %v388 = vunpack.c.l.b16 %v70
  %v389 = vunpack.c.h.b16 %v70
  %v390 = vunpack.c.l.b16 %v71
  %v391 = vunpack.c.h.b16 %v71
  %v392 = vunpack.c.l.b16 %v72
  %v393 = vunpack.c.h.b16 %v72
  %v394 = vunpack.c.l.b16 %v73
  %v395 = vunpack.c.h.b16 %v73
  %v396 = vunpack.c.l.b16 %v74
  %v397 = vunpack.c.h.b16 %v74
  %v398 = vunpack.c.l.b16 %v75
  %v399 = vunpack.c.h.b16 %v75
  %v400 = vunpack.c.l.b16 %v76
  %v401 = vunpack.c.h.b16 %v76
  %v402 = vunpack.c.l.b16 %v77
  %v403 = vunpack.c.h.b16 %v77
  %v404 = vunpack.c.l.b16 %v78
  %v405 = vunpack.c.h.b16 %v78
  %v406 = vpack.c.b16 %v286, %v278
  %v407 = vpack.c.b16 %v287, %v279
  %v408 = vpack.c.b16 %v288, %v280
  %v409 = vpack.c.b16 %v289, %v281
  %v410 = vpack.c.b16 %v290, %v282
  %v411 = vpack.c.b16 %v291, %v283
  %v412 = vpack.c.b16 %v292, %v284
  %v413 = vpack.c.b16 %v293, %v285
  %v414 = vpack.c.b16 %v302, %v294
  %v415 = vpack.c.b16 %v303, %v295
  %v416 = vpack.c.b16 %v304, %v296
  %v417 = vpack.c.b16 %v305, %v297
  %v418 = vpack.c.b16 %v306, %v298
  %v419 = vpack.c.b16 %v307, %v299
  %v420 = vpack.c.b16 %v308, %v300
  %v421 = vpack.c.b16 %v309, %v301
  %v422 = vpack.c.b16 %v318, %v310
  %v423 = vpack.c.b16 %v319, %v311
  %v424 = vpack.c.b16 %v320, %v312
  %v425 = vpack.c.b16 %v321, %v313
  %v426 = vpack.c.b16 %v322, %v314
  %v427 = vpack.c.b16 %v323, %v315
  %v428 = vpack.c.b16 %v324, %v316
  %v429 = vpack.c.b16 %v325, %v317
  %v430 = vpack.c.b16 %v334, %v326
  %v431 = vpack.c.b16 %v335, %v327
  %v432 = vpack.c.b16 %v336, %v328
  %v433 = vpack.c.b16 %v337, %v329
  %v434 = vpack.c.b16 %v338, %v330
  %v435 = vpack.c.b16 %v339, %v331
  %v436 = vpack.c.b16 %v340, %v332
  %v437 = vpack.c.b16 %v341, %v333
  %v438 = vpack.c.b16 %v350, %v342
  %v439 = vpack.c.b16 %v351, %v343
  %v440 = vpack.c.b16 %v352, %v344
  %v441 = vpack.c.b16 %v353, %v345
  %v442 = vpack.c.b16 %v354, %v346
  %v443 = vpack.c.b16 %v355, %v347
  %v444 = vpack.c.b16 %v356, %v348
  %v445 = vpack.c.b16 %v357, %v349
  %v446 = vpack.c.b16 %v366, %v358
  %v447 = vpack.c.b16 %v367, %v359
  %v448 = vpack.c.b16 %v368, %v360
  %v449 = vpack.c.b16 %v369, %v361
  %v450 = vpack.c.b16 %v370, %v362
  %v451 = vpack.c.b16 %v371, %v363
  %v452 = vpack.c.b16 %v372, %v364
  %v453 = vpack.c.b16 %v373, %v365
  %v454 = vpack.c.b16 %v382, %v374
  %v455 = vpack.c.b16 %v383, %v375
  %v456 = vpack.c.b16 %v384, %v376
  %v457 = vpack.c.b16 %v385, %v377
  %v458 = vpack.c.b16 %v386, %v378
  %v459 = vpack.c.b16 %v387, %v379
  %v460 = vpack.c.b16 %v388, %v380
  %v461 = vpack.c.b16 %v389, %v381
  %v462 = vpack.c.b16 %v398, %v390
  %v463 = vpack.c.b16 %v399, %v391
  %v464 = vpack.c.b16 %v400, %v392
  %v465 = vpack.c.b16 %v401, %v393
  %v466 = vpack.c.b16 %v402, %v394
  %v467 = vpack.c.b16 %v403, %v395
  %v468 = vpack.c.b16 %v404, %v396
  %v469 = vpack.c.b16 %v405, %v397
  %v662 = vunpack.c.l.b16 %v79
  %v663 = vunpack.c.l.b16 %v80
  %v664 = vunpack.c.l.b16 %v81
  %v665 = vunpack.c.l.b16 %v82
  %v666 = vunpack.c.l.b16 %v83
  %v667 = vunpack.c.l.b16 %v84
  %v668 = vunpack.c.l.b16 %v85
  %v669 = vunpack.c.l.b16 %v86
  %v670 = vunpack.c.l.b16 %v87
  %v671 = vunpack.c.l.b16 %v88
  %v672 = vunpack.c.l.b16 %v89
  %v673 = vunpack.c.l.b16 %v90
  %v674 = vunpack.c.l.b16 %v91
  %v675 = vunpack.c.l.b16 %v92
  %v676 = vunpack.c.l.b16 %v93
  %v677 = vunpack.c.l.b16 %v94
  %v678 = vunpack.c.l.b16 %v95
  %v679 = vunpack.c.l.b16 %v96
  %v680 = vunpack.c.l.b16 %v97
  %v681 = vunpack.c.l.b16 %v98
  %v682 = vunpack.c.l.b16 %v99
  %v683 = vunpack.c.l.b16 %v100
  %v684 = vunpack.c.l.b16 %v101
  %v685 = vunpack.c.l.b16 %v102
  %v686 = vunpack.c.l.b16 %v103
  %v687 = vunpack.c.l.b16 %v104
  %v688 = vunpack.c.l.b16 %v105
  %v689 = vunpack.c.l.b16 %v106
  %v690 = vunpack.c.l.b16 %v107
  %v691 = vunpack.c.l.b16 %v108
  %v692 = vunpack.c.l.b16 %v109
  %v693 = vunpack.c.l.b16 %v110
  %v694 = vunpack.c.l.b16 %v111
  %v695 = vunpack.c.l.b16 %v112
  %v696 = vunpack.c.l.b16 %v113
  %v697 = vunpack.c.l.b16 %v114
  %v698 = vunpack.c.l.b16 %v115
  %v699 = vunpack.c.l.b16 %v116
  %v700 = vunpack.c.l.b16 %v117
  %v701 = vunpack.c.l.b16 %v118
  %v702 = vunpack.c.l.b16 %v119
  %v703 = vunpack.c.l.b16 %v120
  %v704 = vunpack.c.l.b16 %v121
  %v705 = vunpack.c.l.b16 %v122
  %v706 = vunpack.c.l.b16 %v123
  %v707 = vunpack.c.l.b16 %v124
  %v708 = vunpack.c.l.b16 %v125
  %v709 = vunpack.c.l.b16 %v126
  %v710 = vunpack.c.l.b16 %v127
  %v711 = vunpack.c.l.b16 %v128
  %v712 = vunpack.c.l.b16 %v129
  %v713 = vunpack.c.l.b16 %v130
  %v714 = vunpack.c.l.b16 %v131
  %v715 = vunpack.c.l.b16 %v132
  %v716 = vunpack.c.l.b16 %v133
  %v717 = vunpack.c.l.b16 %v134
  %v718 = vunpack.c.l.b16 %v135
  %v719 = vunpack.c.l.b16 %v136
  %v720 = vunpack.c.l.b16 %v137
  %v721 = vunpack.c.l.b16 %v138
  %v722 = vunpack.c.l.b16 %v139
  %v723 = vunpack.c.l.b16 %v140
  %v724 = vunpack.c.l.b16 %v141
  %v725 = vunpack.c.l.b16 %v142
  %v726 = vunpack.c.l.b16 %v143
  %v727 = vunpack.c.l.b16 %v144
  %v728 = vunpack.c.l.b16 %v145
  %v729 = vunpack.c.l.b16 %v146
  %v730 = vunpack.c.l.b16 %v147
  %v731 = vunpack.c.l.b16 %v148
  %v732 = vunpack.c.l.b16 %v149
  %v733 = vunpack.c.l.b16 %v150
  %v734 = vunpack.c.l.b16 %v151
  %v735 = vunpack.c.l.b16 %v152
  %v736 = vunpack.c.l.b16 %v153
  %v737 = vunpack.c.l.b16 %v154
  %v738 = vunpack.c.l.b16 %v155
  %v739 = vunpack.c.l.b16 %v156
  %v740 = vunpack.c.l.b16 %v157
  %v741 = vunpack.c.l.b16 %v158
  %v742 = vunpack.c.l.b16 %v159
  %v743 = vunpack.c.l.b16 %v160
  %v744 = vunpack.c.l.b16 %v161
  %v745 = vunpack.c.l.b16 %v162
  %v746 = vunpack.c.l.b16 %v163
  %v747 = vunpack.c.l.b16 %v164
  %v748 = vunpack.c.l.b16 %v165
  %v749 = vunpack.c.l.b16 %v166
  %v750 = vunpack.c.l.b16 %v167
  %v751 = vunpack.c.l.b16 %v168
  %v752 = vunpack.c.l.b16 %v169
  %v753 = vunpack.c.l.b16 %v170
  %v754 = vunpack.c.l.b16 %v171
  %v755 = vunpack.c.l.b16 %v172
  %v756 = vunpack.c.l.b16 %v173
  %v757 = vunpack.c.l.b16 %v174
  %v758 = vunpack.c.l.b16 %v175
  %v759 = vunpack.c.l.b16 %v176
  %v760 = vunpack.c.l.b16 %v177
  %v761 = vunpack.c.l.b16 %v178
  %v762 = vunpack.c.l.b16 %v179
  %v763 = vunpack.c.l.b16 %v180
  %v764 = vunpack.c.l.b16 %v181
  %v765 = vunpack.c.l.b16 %v182
  %v766 = vunpack.c.l.b16 %v183
  %v767 = vunpack.c.l.b16 %v184
  %v768 = vunpack.c.l.b16 %v185
  %v769 = vunpack.c.l.b16 %v186
  %v770 = vunpack.c.l.b16 %v187
  %v771 = vunpack.c.l.b16 %v188
  %v772 = vunpack.c.l.b16 %v189
  %v773 = vunpack.c.l.b16 %v190
  %v774 = vunpack.c.l.b16 %v191
  %v775 = vunpack.c.l.b16 %v192
  %v776 = vunpack.c.l.b16 %v193
  %v777 = vunpack.c.l.b16 %v194
  %v778 = vunpack.c.l.b16 %v195
  %v779 = vunpack.c.l.b16 %v196
  %v780 = vunpack.c.l.b16 %v197
  %v781 = vunpack.c.l.b16 %v198
  %v782 = vunpack.c.l.b16 %v199
  %v783 = vunpack.c.l.b16 %v200
  %v784 = vunpack.c.l.b16 %v201
  %v785 = vunpack.c.l.b16 %v202
  %v786 = vunpack.c.l.b16 %v203
  %v787 = vunpack.c.l.b16 %v204
  %v788 = vunpack.c.l.b16 %v205
  %v789 = vunpack.c.l.b16 %v206
  %v790 = vpack.c.b16 %v663, %v662
  %v791 = vpack.c.b16 %v665, %v664
  %v792 = vpack.c.b16 %v667, %v666
  %v793 = vpack.c.b16 %v669, %v668
  %v794 = vpack.c.b16 %v671, %v670
  %v795 = vpack.c.b16 %v673, %v672
  %v796 = vpack.c.b16 %v675, %v674
  %v797 = vpack.c.b16 %v677, %v676
  %v798 = vpack.c.b16 %v679, %v678
  %v799 = vpack.c.b16 %v681, %v680
  %v800 = vpack.c.b16 %v683, %v682
  %v801 = vpack.c.b16 %v685, %v684
  %v802 = vpack.c.b16 %v687, %v686
  %v803 = vpack.c.b16 %v689, %v688
  %v804 = vpack.c.b16 %v691, %v690
  %v805 = vpack.c.b16 %v693, %v692
  %v806 = vpack.c.b16 %v695, %v694
  %v807 = vpack.c.b16 %v697, %v696
  %v808 = vpack.c.b16 %v699, %v698
  %v809 = vpack.c.b16 %v701, %v700
  %v810 = vpack.c.b16 %v703, %v702
  %v811 = vpack.c.b16 %v705, %v704
  %v812 = vpack.c.b16 %v707, %v706
  %v813 = vpack.c.b16 %v709, %v708
  %v814 = vpack.c.b16 %v711, %v710
  %v815 = vpack.c.b16 %v713, %v712
  %v816 = vpack.c.b16 %v715, %v714
  %v817 = vpack.c.b16 %v717, %v716
  %v818 = vpack.c.b16 %v719, %v718
  %v819 = vpack.c.b16 %v721, %v720
  %v820 = vpack.c.b16 %v723, %v722
  %v821 = vpack.c.b16 %v725, %v724
  %v822 = vpack.c.b16 %v727, %v726
  %v823 = vpack.c.b16 %v729, %v728
  %v824 = vpack.c.b16 %v731, %v730
  %v825 = vpack.c.b16 %v733, %v732
  %v826 = vpack.c.b16 %v735, %v734
  %v827 = vpack.c.b16 %v737, %v736
  %v828 = vpack.c.b16 %v739, %v738
  %v829 = vpack.c.b16 %v741, %v740
  %v830 = vpack.c.b16 %v743, %v742
  %v831 = vpack.c.b16 %v745, %v744
  %v832 = vpack.c.b16 %v747, %v746
  %v833 = vpack.c.b16 %v749, %v748
  %v834 = vpack.c.b16 %v751, %v750
  %v835 = vpack.c.b16 %v753, %v752
  %v836 = vpack.c.b16 %v755, %v754
  %v837 = vpack.c.b16 %v757, %v756
  %v838 = vpack.c.b16 %v759, %v758
  %v839 = vpack.c.b16 %v761, %v760
  %v840 = vpack.c.b16 %v763, %v762
  %v841 = vpack.c.b16 %v765, %v764
  %v842 = vpack.c.b16 %v767, %v766
  %v843 = vpack.c.b16 %v769, %v768
  %v844 = vpack.c.b16 %v771, %v770
  %v845 = vpack.c.b16 %v773, %v772
  %v846 = vpack.c.b16 %v775, %v774
  %v847 = vpack.c.b16 %v777, %v776
  %v848 = vpack.c.b16 %v779, %v778
  %v849 = vpack.c.b16 %v781, %v780
  %v850 = vpack.c.b16 %v783, %v782
  %v851 = vpack.c.b16 %v785, %v784
  %v852 = vpack.c.b16 %v787, %v786
  %v853 = vpack.c.b16 %v789, %v788
  %918 = vmatprep.subr.bf16.mxu0 0
  %919 = vmatpush1.bf16.msra.mxu0 %v797
  %920 = vmatprep.subr.bf16.mxu0 0
  %921 = vmatpush1.bf16.msra.mxu0 %v796
  %922 = vmatprep.subr.bf16.mxu0 0
  %923 = vmatpush1.bf16.msra.mxu0 %v795
  %924 = vmatprep.subr.bf16.mxu0 0
  %925 = vmatpush1.bf16.msra.mxu0 %v794
  %926 = vmatprep.subr.bf16.mxu0 0
  %927 = vmatpush1.bf16.msra.mxu0 %v793
  %928 = vmatprep.subr.bf16.mxu0 0
  %929 = vmatpush1.bf16.msra.mxu0 %v792
  %930 = vmatprep.subr.bf16.mxu0 0
  %931 = vmatpush1.bf16.msra.mxu0 %v791
  %932 = vmatprep.subr.bf16.mxu0 0
  %933 = vmatpush1.bf16.msra.mxu0 %v790
  %934 = vmatprep.subr.bf16.mxu0 0
  %935 = vmatpush2.bf16.msra.mxu0 %v805
  %936 = vmatprep.subr.bf16.mxu0 0
  %937 = vmatpush2.bf16.msra.mxu0 %v804
  %938 = vmatprep.subr.bf16.mxu0 0
  %939 = vmatpush2.bf16.msra.mxu0 %v803
  %940 = vmatprep.subr.bf16.mxu0 0
  %941 = vmatpush2.bf16.msra.mxu0 %v802
  %942 = vmatprep.subr.bf16.mxu0 0
  %943 = vmatpush2.bf16.msra.mxu0 %v801
  %944 = vmatprep.subr.bf16.mxu0 0
  %945 = vmatpush2.bf16.msra.mxu0 %v800
  %946 = vmatprep.subr.bf16.mxu0 0
  %947 = vmatpush2.bf16.msra.mxu0 %v799
  %948 = vmatprep.subr.bf16.mxu0 0
  %949 = vmatpush2.bf16.msra.mxu0 %v798
  %950 = vmatprep.mubr.bf16.mxu0 %v407
  %951 = vmatmul.mubr.bf16.gmra.mxu0 %v406
  %v952 = vpop.f32.mrf.mxu0
  %v953 = vadd.f32 %v212, %v952
  %v954 = vpop.f32.mrf.mxu0
  %v955 = vpop.f32.mrf.mxu0
  %v956 = vadd.f32 %v212, %v955
  %v957 = vpop.f32.mrf.mxu0
  %958 = vmatprep.mubr.bf16.mxu0 %v415
  %959 = vmatmul.mubr.bf16.gmra.mxu0 %v414
  %v960 = vpop.f32.mrf.mxu0
  %v961 = vadd.f32 %v212, %v960
  %v962 = vpop.f32.mrf.mxu0
  %v963 = vpop.f32.mrf.mxu0
  %v964 = vadd.f32 %v212, %v963
  %v965 = vpop.f32.mrf.mxu0
  %966 = vmatprep.mubr.bf16.mxu0 %v423
  %967 = vmatmul.mubr.bf16.gmra.mxu0 %v422
  %v968 = vpop.f32.mrf.mxu0
  %v969 = vadd.f32 %v212, %v968
  %v970 = vpop.f32.mrf.mxu0
  %v971 = vpop.f32.mrf.mxu0
  %v972 = vadd.f32 %v212, %v971
  %v973 = vpop.f32.mrf.mxu0
  %974 = vmatprep.mubr.bf16.mxu0 %v431
  %975 = vmatmul.mubr.bf16.gmra.mxu0 %v430
  %v976 = vpop.f32.mrf.mxu0
  %v977 = vadd.f32 %v212, %v976
  %v978 = vpop.f32.mrf.mxu0
  %v979 = vpop.f32.mrf.mxu0
  %v980 = vadd.f32 %v212, %v979
  %v981 = vpop.f32.mrf.mxu0
  %982 = vmatprep.mubr.bf16.mxu0 %v439
  %983 = vmatmul.mubr.bf16.gmra.mxu0 %v438
  %v984 = vpop.f32.mrf.mxu0
  %v985 = vadd.f32 %v212, %v984
  %v986 = vpop.f32.mrf.mxu0
  %v987 = vpop.f32.mrf.mxu0
  %v988 = vadd.f32 %v212, %v987
  %v989 = vpop.f32.mrf.mxu0
  %990 = vmatprep.mubr.bf16.mxu0 %v447
  %991 = vmatmul.mubr.bf16.gmra.mxu0 %v446
  %v992 = vpop.f32.mrf.mxu0
  %v993 = vadd.f32 %v212, %v992
  %v994 = vpop.f32.mrf.mxu0
  %v995 = vpop.f32.mrf.mxu0
  %v996 = vadd.f32 %v212, %v995
  %v997 = vpop.f32.mrf.mxu0
  %998 = vmatprep.mubr.bf16.mxu0 %v455
  %999 = vmatmul.mubr.bf16.gmra.mxu0 %v454
  %v1000 = vpop.f32.mrf.mxu0
  %v1001 = vadd.f32 %v212, %v1000
  %v1002 = vpop.f32.mrf.mxu0
  %v1003 = vpop.f32.mrf.mxu0
  %v1004 = vadd.f32 %v212, %v1003
  %v1005 = vpop.f32.mrf.mxu0
  %1006 = vmatprep.mubr.bf16.mxu0 %v463
  %1007 = vmatmul.mubr.bf16.gmra.mxu0 %v462
  %v1008 = vpop.f32.mrf.mxu0
  %v1009 = vadd.f32 %v212, %v1008
  %v1010 = vpop.f32.mrf.mxu0
  %v1011 = vpop.f32.mrf.mxu0
  %v1012 = vadd.f32 %v212, %v1011
  %v1013 = vpop.f32.mrf.mxu0
  %1014 = vdwg.mxu0
  %1015 = vmatprep.subr.bf16.mxu0 0
  %1016 = vmatpush1.bf16.msra.mxu0 %v813
  %1017 = vmatprep.subr.bf16.mxu0 0
  %1018 = vmatpush1.bf16.msra.mxu0 %v812
  %1019 = vmatprep.subr.bf16.mxu0 0
  %1020 = vmatpush1.bf16.msra.mxu0 %v811
  %1021 = vmatprep.subr.bf16.mxu0 0
  %1022 = vmatpush1.bf16.msra.mxu0 %v810
  %1023 = vmatprep.subr.bf16.mxu0 0
  %1024 = vmatpush1.bf16.msra.mxu0 %v809
  %1025 = vmatprep.subr.bf16.mxu0 0
  %1026 = vmatpush1.bf16.msra.mxu0 %v808
  %1027 = vmatprep.subr.bf16.mxu0 0
  %1028 = vmatpush1.bf16.msra.mxu0 %v807
  %1029 = vmatprep.subr.bf16.mxu0 0
  %1030 = vmatpush1.bf16.msra.mxu0 %v806
  %1031 = vmatprep.subr.bf16.mxu0 0
  %1032 = vmatpush2.bf16.msra.mxu0 %v821
  %1033 = vmatprep.subr.bf16.mxu0 0
  %1034 = vmatpush2.bf16.msra.mxu0 %v820
  %1035 = vmatprep.subr.bf16.mxu0 0
  %1036 = vmatpush2.bf16.msra.mxu0 %v819
  %1037 = vmatprep.subr.bf16.mxu0 0
  %1038 = vmatpush2.bf16.msra.mxu0 %v818
  %1039 = vmatprep.subr.bf16.mxu0 0
  %1040 = vmatpush2.bf16.msra.mxu0 %v817
  %1041 = vmatprep.subr.bf16.mxu0 0
  %1042 = vmatpush2.bf16.msra.mxu0 %v816
  %1043 = vmatprep.subr.bf16.mxu0 0
  %1044 = vmatpush2.bf16.msra.mxu0 %v815
  %1045 = vmatprep.subr.bf16.mxu0 0
  %1046 = vmatpush2.bf16.msra.mxu0 %v814
  %1047 = vmatprep.mubr.bf16.mxu0 %v409
  %1048 = vmatmul.mubr.bf16.gmra.mxu0 %v408
  %v1049 = vpop.f32.mrf.mxu0
  %v1050 = vadd.f32 %v953, %v1049
  %v1051 = vpop.f32.mrf.mxu0
  %v1052 = vpop.f32.mrf.mxu0
  %v1053 = vadd.f32 %v956, %v1052
  %v1054 = vpop.f32.mrf.mxu0
  %1055 = vmatprep.mubr.bf16.mxu0 %v417
  %1056 = vmatmul.mubr.bf16.gmra.mxu0 %v416
  %v1057 = vpop.f32.mrf.mxu0
  %v1058 = vadd.f32 %v961, %v1057
  %v1059 = vpop.f32.mrf.mxu0
  %v1060 = vpop.f32.mrf.mxu0
  %v1061 = vadd.f32 %v964, %v1060
  %v1062 = vpop.f32.mrf.mxu0
  %1063 = vmatprep.mubr.bf16.mxu0 %v425
  %1064 = vmatmul.mubr.bf16.gmra.mxu0 %v424
  %v1065 = vpop.f32.mrf.mxu0
  %v1066 = vadd.f32 %v969, %v1065
  %v1067 = vpop.f32.mrf.mxu0
  %v1068 = vpop.f32.mrf.mxu0
  %v1069 = vadd.f32 %v972, %v1068
  %v1070 = vpop.f32.mrf.mxu0
  %1071 = vmatprep.mubr.bf16.mxu0 %v433
  %1072 = vmatmul.mubr.bf16.gmra.mxu0 %v432
  %v1073 = vpop.f32.mrf.mxu0
  %v1074 = vadd.f32 %v977, %v1073
  %v1075 = vpop.f32.mrf.mxu0
  %v1076 = vpop.f32.mrf.mxu0
  %v1077 = vadd.f32 %v980, %v1076
  %v1078 = vpop.f32.mrf.mxu0
  %1079 = vmatprep.mubr.bf16.mxu0 %v441
  %1080 = vmatmul.mubr.bf16.gmra.mxu0 %v440
  %v1081 = vpop.f32.mrf.mxu0
  %v1082 = vadd.f32 %v985, %v1081
  %v1083 = vpop.f32.mrf.mxu0
  %v1084 = vpop.f32.mrf.mxu0
  %v1085 = vadd.f32 %v988, %v1084
  %v1086 = vpop.f32.mrf.mxu0
  %1087 = vmatprep.mubr.bf16.mxu0 %v449
  %1088 = vmatmul.mubr.bf16.gmra.mxu0 %v448
  %v1089 = vpop.f32.mrf.mxu0
  %v1090 = vadd.f32 %v993, %v1089
  %v1091 = vpop.f32.mrf.mxu0
  %v1092 = vpop.f32.mrf.mxu0
  %v1093 = vadd.f32 %v996, %v1092
  %v1094 = vpop.f32.mrf.mxu0
  %1095 = vmatprep.mubr.bf16.mxu0 %v457
  %1096 = vmatmul.mubr.bf16.gmra.mxu0 %v456
  %v1097 = vpop.f32.mrf.mxu0
  %v1098 = vadd.f32 %v1001, %v1097
  %v1099 = vpop.f32.mrf.mxu0
  %v1100 = vpop.f32.mrf.mxu0
  %v1101 = vadd.f32 %v1004, %v1100
  %v1102 = vpop.f32.mrf.mxu0
  %1103 = vmatprep.mubr.bf16.mxu0 %v465
  %1104 = vmatmul.mubr.bf16.gmra.mxu0 %v464
  %v1105 = vpop.f32.mrf.mxu0
  %v1106 = vadd.f32 %v1009, %v1105
  %v1107 = vpop.f32.mrf.mxu0
  %v1108 = vpop.f32.mrf.mxu0
  %v1109 = vadd.f32 %v1012, %v1108
  %v1110 = vpop.f32.mrf.mxu0
  %1111 = vdwg.mxu0
  %1112 = vmatprep.subr.bf16.mxu0 0
  %1113 = vmatpush1.bf16.msra.mxu0 %v829
  %1114 = vmatprep.subr.bf16.mxu0 0
  %1115 = vmatpush1.bf16.msra.mxu0 %v828
  %1116 = vmatprep.subr.bf16.mxu0 0
  %1117 = vmatpush1.bf16.msra.mxu0 %v827
  %1118 = vmatprep.subr.bf16.mxu0 0
  %1119 = vmatpush1.bf16.msra.mxu0 %v826
  %1120 = vmatprep.subr.bf16.mxu0 0
  %1121 = vmatpush1.bf16.msra.mxu0 %v825
  %1122 = vmatprep.subr.bf16.mxu0 0
  %1123 = vmatpush1.bf16.msra.mxu0 %v824
  %1124 = vmatprep.subr.bf16.mxu0 0
  %1125 = vmatpush1.bf16.msra.mxu0 %v823
  %1126 = vmatprep.subr.bf16.mxu0 0
  %1127 = vmatpush1.bf16.msra.mxu0 %v822
  %1128 = vmatprep.subr.bf16.mxu0 0
  %1129 = vmatpush2.bf16.msra.mxu0 %v837
  %1130 = vmatprep.subr.bf16.mxu0 0
  %1131 = vmatpush2.bf16.msra.mxu0 %v836
  %1132 = vmatprep.subr.bf16.mxu0 0
  %1133 = vmatpush2.bf16.msra.mxu0 %v835
  %1134 = vmatprep.subr.bf16.mxu0 0
  %1135 = vmatpush2.bf16.msra.mxu0 %v834
  %1136 = vmatprep.subr.bf16.mxu0 0
  %1137 = vmatpush2.bf16.msra.mxu0 %v833
  %1138 = vmatprep.subr.bf16.mxu0 0
  %1139 = vmatpush2.bf16.msra.mxu0 %v832
  %1140 = vmatprep.subr.bf16.mxu0 0
  %1141 = vmatpush2.bf16.msra.mxu0 %v831
  %1142 = vmatprep.subr.bf16.mxu0 0
  %1143 = vmatpush2.bf16.msra.mxu0 %v830
  %1144 = vmatprep.mubr.bf16.mxu0 %v411
  %1145 = vmatmul.mubr.bf16.gmra.mxu0 %v410
  %v1146 = vpop.f32.mrf.mxu0
  %v1147 = vadd.f32 %v1050, %v1146
  %v1148 = vpop.f32.mrf.mxu0
  %v1149 = vpop.f32.mrf.mxu0
  %v1150 = vadd.f32 %v1053, %v1149
  %v1151 = vpop.f32.mrf.mxu0
  %1152 = vmatprep.mubr.bf16.mxu0 %v419
  %1153 = vmatmul.mubr.bf16.gmra.mxu0 %v418
  %v1154 = vpop.f32.mrf.mxu0
  %v1155 = vadd.f32 %v1058, %v1154
  %v1156 = vpop.f32.mrf.mxu0
  %v1157 = vpop.f32.mrf.mxu0
  %v1158 = vadd.f32 %v1061, %v1157
  %v1159 = vpop.f32.mrf.mxu0
  %1160 = vmatprep.mubr.bf16.mxu0 %v427
  %1161 = vmatmul.mubr.bf16.gmra.mxu0 %v426
  %v1162 = vpop.f32.mrf.mxu0
  %v1163 = vadd.f32 %v1066, %v1162
  %v1164 = vpop.f32.mrf.mxu0
  %v1165 = vpop.f32.mrf.mxu0
  %v1166 = vadd.f32 %v1069, %v1165
  %v1167 = vpop.f32.mrf.mxu0
  %1168 = vmatprep.mubr.bf16.mxu0 %v435
  %1169 = vmatmul.mubr.bf16.gmra.mxu0 %v434
  %v1170 = vpop.f32.mrf.mxu0
  %v1171 = vadd.f32 %v1074, %v1170
  %v1172 = vpop.f32.mrf.mxu0
  %v1173 = vpop.f32.mrf.mxu0
  %v1174 = vadd.f32 %v1077, %v1173
  %v1175 = vpop.f32.mrf.mxu0
  %1176 = vmatprep.mubr.bf16.mxu0 %v443
  %1177 = vmatmul.mubr.bf16.gmra.mxu0 %v442
  %v1178 = vpop.f32.mrf.mxu0
  %v1179 = vadd.f32 %v1082, %v1178
  %v1180 = vpop.f32.mrf.mxu0
  %v1181 = vpop.f32.mrf.mxu0
  %v1182 = vadd.f32 %v1085, %v1181
  %v1183 = vpop.f32.mrf.mxu0
  %1184 = vmatprep.mubr.bf16.mxu0 %v451
  %1185 = vmatmul.mubr.bf16.gmra.mxu0 %v450
  %v1186 = vpop.f32.mrf.mxu0
  %v1187 = vadd.f32 %v1090, %v1186
  %v1188 = vpop.f32.mrf.mxu0
  %v1189 = vpop.f32.mrf.mxu0
  %v1190 = vadd.f32 %v1093, %v1189
  %v1191 = vpop.f32.mrf.mxu0
  %1192 = vmatprep.mubr.bf16.mxu0 %v459
  %1193 = vmatmul.mubr.bf16.gmra.mxu0 %v458
  %v1194 = vpop.f32.mrf.mxu0
  %v1195 = vadd.f32 %v1098, %v1194
  %v1196 = vpop.f32.mrf.mxu0
  %v1197 = vpop.f32.mrf.mxu0
  %v1198 = vadd.f32 %v1101, %v1197
  %v1199 = vpop.f32.mrf.mxu0
  %1200 = vmatprep.mubr.bf16.mxu0 %v467
  %1201 = vmatmul.mubr.bf16.gmra.mxu0 %v466
  %v1202 = vpop.f32.mrf.mxu0
  %v1203 = vadd.f32 %v1106, %v1202
  %v1204 = vpop.f32.mrf.mxu0
  %v1205 = vpop.f32.mrf.mxu0
  %v1206 = vadd.f32 %v1109, %v1205
  %v1207 = vpop.f32.mrf.mxu0
  %1208 = vdwg.mxu0
  %1209 = vmatprep.subr.bf16.mxu0 0
  %1210 = vmatpush1.bf16.msra.mxu0 %v845
  %1211 = vmatprep.subr.bf16.mxu0 0
  %1212 = vmatpush1.bf16.msra.mxu0 %v844
  %1213 = vmatprep.subr.bf16.mxu0 0
  %1214 = vmatpush1.bf16.msra.mxu0 %v843
  %1215 = vmatprep.subr.bf16.mxu0 0
  %1216 = vmatpush1.bf16.msra.mxu0 %v842
  %1217 = vmatprep.subr.bf16.mxu0 0
  %1218 = vmatpush1.bf16.msra.mxu0 %v841
  %1219 = vmatprep.subr.bf16.mxu0 0
  %1220 = vmatpush1.bf16.msra.mxu0 %v840
  %1221 = vmatprep.subr.bf16.mxu0 0
  %1222 = vmatpush1.bf16.msra.mxu0 %v839
  %1223 = vmatprep.subr.bf16.mxu0 0
  %1224 = vmatpush1.bf16.msra.mxu0 %v838
  %1225 = vmatprep.subr.bf16.mxu0 0
  %1226 = vmatpush2.bf16.msra.mxu0 %v853
  %1227 = vmatprep.subr.bf16.mxu0 0
  %1228 = vmatpush2.bf16.msra.mxu0 %v852
  %1229 = vmatprep.subr.bf16.mxu0 0
  %1230 = vmatpush2.bf16.msra.mxu0 %v851
  %1231 = vmatprep.subr.bf16.mxu0 0
  %1232 = vmatpush2.bf16.msra.mxu0 %v850
  %1233 = vmatprep.subr.bf16.mxu0 0
  %1234 = vmatpush2.bf16.msra.mxu0 %v849
  %1235 = vmatprep.subr.bf16.mxu0 0
  %1236 = vmatpush2.bf16.msra.mxu0 %v848
  %1237 = vmatprep.subr.bf16.mxu0 0
  %1238 = vmatpush2.bf16.msra.mxu0 %v847
  %1239 = vmatprep.subr.bf16.mxu0 0
  %1240 = vmatpush2.bf16.msra.mxu0 %v846
  %1241 = vmatprep.mubr.bf16.mxu0 %v413
  %1242 = vmatmul.mubr.bf16.gmra.mxu0 %v412
  %v1243 = vpop.f32.mrf.mxu0
  %v1244 = vadd.f32 %v1147, %v1243
  %v1245 = vpop.f32.mrf.mxu0
  %v1246 = vpop.f32.mrf.mxu0
  %v1247 = vadd.f32 %v1150, %v1246
  %v1248 = vpop.f32.mrf.mxu0
  %1249 = vmatprep.mubr.bf16.mxu0 %v421
  %1250 = vmatmul.mubr.bf16.gmra.mxu0 %v420
  %v1251 = vpop.f32.mrf.mxu0
  %v1252 = vadd.f32 %v1155, %v1251
  %v1253 = vpop.f32.mrf.mxu0
  %v1254 = vpop.f32.mrf.mxu0
  %v1255 = vadd.f32 %v1158, %v1254
  %v1256 = vpop.f32.mrf.mxu0
  %1257 = vmatprep.mubr.bf16.mxu0 %v429
  %1258 = vmatmul.mubr.bf16.gmra.mxu0 %v428
  %v1259 = vpop.f32.mrf.mxu0
  %v1260 = vadd.f32 %v1163, %v1259
  %v1261 = vpop.f32.mrf.mxu0
  %v1262 = vpop.f32.mrf.mxu0
  %v1263 = vadd.f32 %v1166, %v1262
  %v1264 = vpop.f32.mrf.mxu0
  %1265 = vmatprep.mubr.bf16.mxu0 %v437
  %1266 = vmatmul.mubr.bf16.gmra.mxu0 %v436
  %v1267 = vpop.f32.mrf.mxu0
  %v1268 = vadd.f32 %v1171, %v1267
  %v1269 = vpop.f32.mrf.mxu0
  %v1270 = vpop.f32.mrf.mxu0
  %v1271 = vadd.f32 %v1174, %v1270
  %v1272 = vpop.f32.mrf.mxu0
  %1273 = vmatprep.mubr.bf16.mxu0 %v445
  %1274 = vmatmul.mubr.bf16.gmra.mxu0 %v444
  %v1275 = vpop.f32.mrf.mxu0
  %v1276 = vadd.f32 %v1179, %v1275
  %v1277 = vpop.f32.mrf.mxu0
  %v1278 = vpop.f32.mrf.mxu0
  %v1279 = vadd.f32 %v1182, %v1278
  %v1280 = vpop.f32.mrf.mxu0
  %1281 = vmatprep.mubr.bf16.mxu0 %v453
  %1282 = vmatmul.mubr.bf16.gmra.mxu0 %v452
  %v1283 = vpop.f32.mrf.mxu0
  %v1284 = vadd.f32 %v1187, %v1283
  %v1285 = vpop.f32.mrf.mxu0
  %v1286 = vpop.f32.mrf.mxu0
  %v1287 = vadd.f32 %v1190, %v1286
  %v1288 = vpop.f32.mrf.mxu0
  %1289 = vmatprep.mubr.bf16.mxu0 %v461
  %1290 = vmatmul.mubr.bf16.gmra.mxu0 %v460
  %v1291 = vpop.f32.mrf.mxu0
  %v1292 = vadd.f32 %v1195, %v1291
  %v1293 = vpop.f32.mrf.mxu0
  %v1294 = vpop.f32.mrf.mxu0
  %v1295 = vadd.f32 %v1198, %v1294
  %v1296 = vpop.f32.mrf.mxu0
  %1297 = vmatprep.mubr.bf16.mxu0 %v469
  %1298 = vmatmul.mubr.bf16.gmra.mxu0 %v468
  %v1299 = vpop.f32.mrf.mxu0
  %v1300 = vadd.f32 %v1203, %v1299
  %v1301 = vpop.f32.mrf.mxu0
  %v1302 = vpop.f32.mrf.mxu0
  %v1303 = vadd.f32 %v1206, %v1302
  %v1304 = vpop.f32.mrf.mxu0
  %1305 = vdwg.mxu0
  %v1306 = vmul.f32 %v1244, 0.2
  %v1307 = vmul.f32 %v1247, 0.2
  %v1308 = vmul.f32 %v1252, 0.2
  %v1309 = vmul.f32 %v1255, 0.2
  %v1310 = vmul.f32 %v1260, 0.2
  %v1311 = vmul.f32 %v1263, 0.2
  %v1312 = vmul.f32 %v1268, 0.2
  %v1313 = vmul.f32 %v1271, 0.2
  %v1314 = vmul.f32 %v1276, 0.2
  %v1315 = vmul.f32 %v1279, 0.2
  %v1316 = vmul.f32 %v1284, 0.2
  %v1317 = vmul.f32 %v1287, 0.2
  %v1318 = vmul.f32 %v1292, 0.2
  %v1319 = vmul.f32 %v1295, 0.2
  %v1320 = vmul.f32 %v1300, 0.2
  %v1321 = vmul.f32 %v1303, 0.2
  %v1322 = vmax.f32 %v1244, %v1306
  %v1323 = vmax.f32 %v1247, %v1307
  %v1324 = vmax.f32 %v1252, %v1308
  %v1325 = vmax.f32 %v1255, %v1309
  %v1326 = vmax.f32 %v1260, %v1310
  %v1327 = vmax.f32 %v1263, %v1311
  %v1328 = vmax.f32 %v1268, %v1312
  %v1329 = vmax.f32 %v1271, %v1313
  %v1330 = vmax.f32 %v1276, %v1314
  %v1331 = vmax.f32 %v1279, %v1315
  %v1332 = vmax.f32 %v1284, %v1316
  %v1333 = vmax.f32 %v1287, %v1317
  %v1334 = vmax.f32 %v1292, %v1318
  %v1335 = vmax.f32 %v1295, %v1319
  %v1336 = vmax.f32 %v1300, %v1320
  %v1337 = vmax.f32 %v1303, %v1321
  %v1338 = vpack.c.bf16 %v1323, %v1322
  %v1339 = vpack.c.bf16 %v1325, %v1324
  %v1340 = vpack.c.bf16 %v1327, %v1326
  %v1341 = vpack.c.bf16 %v1329, %v1328
  %v1342 = vpack.c.bf16 %v1331, %v1330
  %v1343 = vpack.c.bf16 %v1333, %v1332
  %v1344 = vpack.c.bf16 %v1335, %v1334
  %v1345 = vpack.c.bf16 %v1337, %v1336
  %v1354 = vunpack.c.l.b16 %v1338
  %v1355 = vunpack.c.h.b16 %v1338
  %v1356 = vunpack.c.l.b16 %v1339
  %v1357 = vunpack.c.h.b16 %v1339
  %v1358 = vunpack.c.l.b16 %v1340
  %v1359 = vunpack.c.h.b16 %v1340
  %v1360 = vunpack.c.l.b16 %v1341
  %v1361 = vunpack.c.h.b16 %v1341
  %v1362 = vunpack.c.l.b16 %v1342
  %v1363 = vunpack.c.h.b16 %v1342
  %v1364 = vunpack.c.l.b16 %v1343
  %v1365 = vunpack.c.h.b16 %v1343
  %v1366 = vunpack.c.l.b16 %v1344
  %v1367 = vunpack.c.h.b16 %v1344
  %v1368 = vunpack.c.l.b16 %v1345
  %v1369 = vunpack.c.h.b16 %v1345
  %v1370 = vpack.c.b16 %v1354, %v1354
  %v1371 = vpack.c.b16 %v1355, %v1355
  %v1372 = vpack.c.b16 %v1356, %v1356
  %v1373 = vpack.c.b16 %v1357, %v1357
  %v1374 = vpack.c.b16 %v1358, %v1358
  %v1375 = vpack.c.b16 %v1359, %v1359
  %v1376 = vpack.c.b16 %v1360, %v1360
  %v1377 = vpack.c.b16 %v1361, %v1361
  %v1378 = vpack.c.b16 %v1362, %v1362
  %v1379 = vpack.c.b16 %v1363, %v1363
  %v1380 = vpack.c.b16 %v1364, %v1364
  %v1381 = vpack.c.b16 %v1365, %v1365
  %v1382 = vpack.c.b16 %v1366, %v1366
  %v1383 = vpack.c.b16 %v1367, %v1367
  %v1384 = vpack.c.b16 %v1368, %v1368
  %v1385 = vpack.c.b16 %v1369, %v1369
  %1402 = vst [vmem:[%s3] sm:$0xf] %v1370
  %1403 = vst [vmem:[%s3 + $0x4] sm:$0xf] %v1371
  %1404 = vst [vmem:[%s3 + $0x8] sm:$0xf] %v1372
  %1405 = vst [vmem:[%s3 + $0xc] sm:$0xf] %v1373
  %1406 = vst [vmem:[%s3 + $0x10] sm:$0xf] %v1374
  %1407 = vst [vmem:[%s3 + $0x14] sm:$0xf] %v1375
  %1408 = vst [vmem:[%s3 + $0x18] sm:$0xf] %v1376
  %1409 = vst [vmem:[%s3 + $0x1c] sm:$0xf] %v1377
  %1410 = vst [vmem:[%s3 + $0x20] sm:$0xf] %v1378
  %1411 = vst [vmem:[%s3 + $0x24] sm:$0xf] %v1379
  %1412 = vst [vmem:[%s3 + $0x28] sm:$0xf] %v1380
  %1413 = vst [vmem:[%s3 + $0x2c] sm:$0xf] %v1381
  %1414 = vst [vmem:[%s3 + $0x30] sm:$0xf] %v1382
  %1415 = vst [vmem:[%s3 + $0x34] sm:$0xf] %v1383
  %1416 = vst [vmem:[%s3 + $0x38] sm:$0xf] %v1384
  %1417 = vst [vmem:[%s3 + $0x3c] sm:$0xf] %v1385
  // Predicated region
  $region14: #{net_discriminator.6} parent=0 // pred_check
    _
  $region15: #{net_discriminator.6} parent=0 // pred_check_branch
    %1419 = sbr.rel (0) target = $region17
  $region16: #{net_discriminator.6} parent=0 // pred_region
    _
  $region17: #{net_discriminator.6} parent=0 // pred_fallthru
    _
  // Predicated region
  $region18: #{net_discriminator.6} parent=0 // pred_check
    _
  $region19: #{net_discriminator.6} parent=0 // pred_check_branch
    %1421 = sbr.rel (0) target = $region21
  $region20: #{net_discriminator.6} parent=0 // pred_region
    _
  $region21: #{net_discriminator.6} parent=0 // pred_fallthru
    _

// kernel: net_discriminator.7
$region0: #{net_discriminator.7}
  #allocation0 [shape = 'u32[]', space=smem, size = 0x4, offset = 0x4, fixed_abs, tag = 'smem constant byte address 0x4 - core index']
  #allocation1 [shape = 'u32[144,128]{1,0:T(1,128)}', space=vmem, size = 0x12000, scoped, tag = 'internal scratch']
  %s0 = inlined_call_operand.vmem [shape: bf16[32,2048], index: 0, kind: input, shape index: {}]
  %s1 = inlined_call_operand.vmem [shape: bf16[2048,256], index: 1, kind: input, shape index: {}]
  %s2 = inlined_call_operand.vmem [shape: f32[1,256], index: 2, kind: input, shape index: {}]
  %s3 = inlined_call_operand.vmem [shape: bf16[32,256], index: 3, kind: output, shape index: {}]
  %s4 = sld [smem:[#allocation0]]
  $region22: #{net_discriminator.7} parent=0
    _
  %s6 = ssub.s32 1, %s4
  %s7 = scalar_select 0, %s6, %s4
  // Predicated region
  $region2: #{net_discriminator.7} parent=0 // pred_check
    _
  $region3: #{net_discriminator.7} parent=0 // pred_check_branch
    %9 = sbr.rel (0) target = $region5
  $region4: #{net_discriminator.7} parent=0 // pred_region
    _
  $region5: #{net_discriminator.7} parent=0 // pred_fallthru
    _
  // Predicated region
  $region6: #{net_discriminator.7} parent=0 // pred_check
    _
  $region7: #{net_discriminator.7} parent=0 // pred_check_branch
    %11 = sbr.rel (0) target = $region9
  $region8: #{net_discriminator.7} parent=0 // pred_region
    _
  $region9: #{net_discriminator.7} parent=0 // pred_fallthru
    _
  // Predicated region
  $region10: #{net_discriminator.7} parent=0 // pred_check
    _
  $region11: #{net_discriminator.7} parent=0 // pred_check_branch
    %13 = sbr.rel (0) target = $region13
  $region12: #{net_discriminator.7} parent=0 // pred_region
    _
  $region13: #{net_discriminator.7} parent=0 // pred_fallthru
    _
  %v14 = vld [vmem:[%s0] sm:$0xff]
  %v15 = vld [vmem:[%s0 + $0x8] sm:$0xff]
  %v16 = vld [vmem:[%s0 + $0x10] sm:$0xff]
  %v17 = vld [vmem:[%s0 + $0x18] sm:$0xff]
  %v18 = vld [vmem:[%s0 + $0x20] sm:$0xff]
  %v19 = vld [vmem:[%s0 + $0x28] sm:$0xff]
  %v20 = vld [vmem:[%s0 + $0x30] sm:$0xff]
  %v21 = vld [vmem:[%s0 + $0x38] sm:$0xff]
  %v22 = vld [vmem:[%s0 + $0x40] sm:$0xff]
  %v23 = vld [vmem:[%s0 + $0x48] sm:$0xff]
  %v24 = vld [vmem:[%s0 + $0x50] sm:$0xff]
  %v25 = vld [vmem:[%s0 + $0x58] sm:$0xff]
  %v26 = vld [vmem:[%s0 + $0x60] sm:$0xff]
  %v27 = vld [vmem:[%s0 + $0x68] sm:$0xff]
  %v28 = vld [vmem:[%s0 + $0x70] sm:$0xff]
  %v29 = vld [vmem:[%s0 + $0x78] sm:$0xff]
  %v30 = vld [vmem:[%s0 + $0x80] sm:$0xff]
  %v31 = vld [vmem:[%s0 + $0x88] sm:$0xff]
  %v32 = vld [vmem:[%s0 + $0x90] sm:$0xff]
  %v33 = vld [vmem:[%s0 + $0x98] sm:$0xff]
  %v34 = vld [vmem:[%s0 + $0xa0] sm:$0xff]
  %v35 = vld [vmem:[%s0 + $0xa8] sm:$0xff]
  %v36 = vld [vmem:[%s0 + $0xb0] sm:$0xff]
  %v37 = vld [vmem:[%s0 + $0xb8] sm:$0xff]
  %v38 = vld [vmem:[%s0 + $0xc0] sm:$0xff]
  %v39 = vld [vmem:[%s0 + $0xc8] sm:$0xff]
  %v40 = vld [vmem:[%s0 + $0xd0] sm:$0xff]
  %v41 = vld [vmem:[%s0 + $0xd8] sm:$0xff]
  %v42 = vld [vmem:[%s0 + $0xe0] sm:$0xff]
  %v43 = vld [vmem:[%s0 + $0xe8] sm:$0xff]
  %v44 = vld [vmem:[%s0 + $0xf0] sm:$0xff]
  %v45 = vld [vmem:[%s0 + $0xf8] sm:$0xff]
  %v46 = vld [vmem:[%s1] sm:$0xff]
  %v47 = vld [vmem:[%s1 + $0x8] sm:$0xff]
  %v48 = vld [vmem:[%s1 + $0x10] sm:$0xff]
  %v49 = vld [vmem:[%s1 + $0x18] sm:$0xff]
  %v50 = vld [vmem:[%s1 + $0x20] sm:$0xff]
  %v51 = vld [vmem:[%s1 + $0x28] sm:$0xff]
  %v52 = vld [vmem:[%s1 + $0x30] sm:$0xff]
  %v53 = vld [vmem:[%s1 + $0x38] sm:$0xff]
  %v54 = vld [vmem:[%s1 + $0x40] sm:$0xff]
  %v55 = vld [vmem:[%s1 + $0x48] sm:$0xff]
  %v56 = vld [vmem:[%s1 + $0x50] sm:$0xff]
  %v57 = vld [vmem:[%s1 + $0x58] sm:$0xff]
  %v58 = vld [vmem:[%s1 + $0x60] sm:$0xff]
  %v59 = vld [vmem:[%s1 + $0x68] sm:$0xff]
  %v60 = vld [vmem:[%s1 + $0x70] sm:$0xff]
  %v61 = vld [vmem:[%s1 + $0x78] sm:$0xff]
  %v62 = vld [vmem:[%s1 + $0x80] sm:$0xff]
  %v63 = vld [vmem:[%s1 + $0x88] sm:$0xff]
  %v64 = vld [vmem:[%s1 + $0x90] sm:$0xff]
  %v65 = vld [vmem:[%s1 + $0x98] sm:$0xff]
  %v66 = vld [vmem:[%s1 + $0xa0] sm:$0xff]
  %v67 = vld [vmem:[%s1 + $0xa8] sm:$0xff]
  %v68 = vld [vmem:[%s1 + $0xb0] sm:$0xff]
  %v69 = vld [vmem:[%s1 + $0xb8] sm:$0xff]
  %v70 = vld [vmem:[%s1 + $0xc0] sm:$0xff]
  %v71 = vld [vmem:[%s1 + $0xc8] sm:$0xff]
  %v72 = vld [vmem:[%s1 + $0xd0] sm:$0xff]
  %v73 = vld [vmem:[%s1 + $0xd8] sm:$0xff]
  %v74 = vld [vmem:[%s1 + $0xe0] sm:$0xff]
  %v75 = vld [vmem:[%s1 + $0xe8] sm:$0xff]
  %v76 = vld [vmem:[%s1 + $0xf0] sm:$0xff]
  %v77 = vld [vmem:[%s1 + $0xf8] sm:$0xff]
  %v78 = vld [vmem:[%s1 + $0x100] sm:$0xff]
  %v79 = vld [vmem:[%s1 + $0x108] sm:$0xff]
  %v80 = vld [vmem:[%s1 + $0x110] sm:$0xff]
  %v81 = vld [vmem:[%s1 + $0x118] sm:$0xff]
  %v82 = vld [vmem:[%s1 + $0x120] sm:$0xff]
  %v83 = vld [vmem:[%s1 + $0x128] sm:$0xff]
  %v84 = vld [vmem:[%s1 + $0x130] sm:$0xff]
  %v85 = vld [vmem:[%s1 + $0x138] sm:$0xff]
  %v86 = vld [vmem:[%s1 + $0x140] sm:$0xff]
  %v87 = vld [vmem:[%s1 + $0x148] sm:$0xff]
  %v88 = vld [vmem:[%s1 + $0x150] sm:$0xff]
  %v89 = vld [vmem:[%s1 + $0x158] sm:$0xff]
  %v90 = vld [vmem:[%s1 + $0x160] sm:$0xff]
  %v91 = vld [vmem:[%s1 + $0x168] sm:$0xff]
  %v92 = vld [vmem:[%s1 + $0x170] sm:$0xff]
  %v93 = vld [vmem:[%s1 + $0x178] sm:$0xff]
  %v94 = vld [vmem:[%s1 + $0x180] sm:$0xff]
  %v95 = vld [vmem:[%s1 + $0x188] sm:$0xff]
  %v96 = vld [vmem:[%s1 + $0x190] sm:$0xff]
  %v97 = vld [vmem:[%s1 + $0x198] sm:$0xff]
  %v98 = vld [vmem:[%s1 + $0x1a0] sm:$0xff]
  %v99 = vld [vmem:[%s1 + $0x1a8] sm:$0xff]
  %v100 = vld [vmem:[%s1 + $0x1b0] sm:$0xff]
  %v101 = vld [vmem:[%s1 + $0x1b8] sm:$0xff]
  %v102 = vld [vmem:[%s1 + $0x1c0] sm:$0xff]
  %v103 = vld [vmem:[%s1 + $0x1c8] sm:$0xff]
  %v104 = vld [vmem:[%s1 + $0x1d0] sm:$0xff]
  %v105 = vld [vmem:[%s1 + $0x1d8] sm:$0xff]
  %v106 = vld [vmem:[%s1 + $0x1e0] sm:$0xff]
  %v107 = vld [vmem:[%s1 + $0x1e8] sm:$0xff]
  %v108 = vld [vmem:[%s1 + $0x1f0] sm:$0xff]
  %v109 = vld [vmem:[%s1 + $0x1f8] sm:$0xff]
  %v110 = vld [vmem:[%s1 + $0x200] sm:$0xff]
  %v111 = vld [vmem:[%s1 + $0x208] sm:$0xff]
  %v112 = vld [vmem:[%s1 + $0x210] sm:$0xff]
  %v113 = vld [vmem:[%s1 + $0x218] sm:$0xff]
  %v114 = vld [vmem:[%s1 + $0x220] sm:$0xff]
  %v115 = vld [vmem:[%s1 + $0x228] sm:$0xff]
  %v116 = vld [vmem:[%s1 + $0x230] sm:$0xff]
  %v117 = vld [vmem:[%s1 + $0x238] sm:$0xff]
  %v118 = vld [vmem:[%s1 + $0x240] sm:$0xff]
  %v119 = vld [vmem:[%s1 + $0x248] sm:$0xff]
  %v120 = vld [vmem:[%s1 + $0x250] sm:$0xff]
  %v121 = vld [vmem:[%s1 + $0x258] sm:$0xff]
  %v122 = vld [vmem:[%s1 + $0x260] sm:$0xff]
  %v123 = vld [vmem:[%s1 + $0x268] sm:$0xff]
  %v124 = vld [vmem:[%s1 + $0x270] sm:$0xff]
  %v125 = vld [vmem:[%s1 + $0x278] sm:$0xff]
  %v126 = vld [vmem:[%s1 + $0x280] sm:$0xff]
  %v127 = vld [vmem:[%s1 + $0x288] sm:$0xff]
  %v128 = vld [vmem:[%s1 + $0x290] sm:$0xff]
  %v129 = vld [vmem:[%s1 + $0x298] sm:$0xff]
  %v130 = vld [vmem:[%s1 + $0x2a0] sm:$0xff]
  %v131 = vld [vmem:[%s1 + $0x2a8] sm:$0xff]
  %v132 = vld [vmem:[%s1 + $0x2b0] sm:$0xff]
  %v133 = vld [vmem:[%s1 + $0x2b8] sm:$0xff]
  %v134 = vld [vmem:[%s1 + $0x2c0] sm:$0xff]
  %v135 = vld [vmem:[%s1 + $0x2c8] sm:$0xff]
  %v136 = vld [vmem:[%s1 + $0x2d0] sm:$0xff]
  %v137 = vld [vmem:[%s1 + $0x2d8] sm:$0xff]
  %v138 = vld [vmem:[%s1 + $0x2e0] sm:$0xff]
  %v139 = vld [vmem:[%s1 + $0x2e8] sm:$0xff]
  %v140 = vld [vmem:[%s1 + $0x2f0] sm:$0xff]
  %v141 = vld [vmem:[%s1 + $0x2f8] sm:$0xff]
  %v142 = vld [vmem:[%s1 + $0x300] sm:$0xff]
  %v143 = vld [vmem:[%s1 + $0x308] sm:$0xff]
  %v144 = vld [vmem:[%s1 + $0x310] sm:$0xff]
  %v145 = vld [vmem:[%s1 + $0x318] sm:$0xff]
  %v146 = vld [vmem:[%s1 + $0x320] sm:$0xff]
  %v147 = vld [vmem:[%s1 + $0x328] sm:$0xff]
  %v148 = vld [vmem:[%s1 + $0x330] sm:$0xff]
  %v149 = vld [vmem:[%s1 + $0x338] sm:$0xff]
  %v150 = vld [vmem:[%s1 + $0x340] sm:$0xff]
  %v151 = vld [vmem:[%s1 + $0x348] sm:$0xff]
  %v152 = vld [vmem:[%s1 + $0x350] sm:$0xff]
  %v153 = vld [vmem:[%s1 + $0x358] sm:$0xff]
  %v154 = vld [vmem:[%s1 + $0x360] sm:$0xff]
  %v155 = vld [vmem:[%s1 + $0x368] sm:$0xff]
  %v156 = vld [vmem:[%s1 + $0x370] sm:$0xff]
  %v157 = vld [vmem:[%s1 + $0x378] sm:$0xff]
  %v158 = vld [vmem:[%s1 + $0x380] sm:$0xff]
  %v159 = vld [vmem:[%s1 + $0x388] sm:$0xff]
  %v160 = vld [vmem:[%s1 + $0x390] sm:$0xff]
  %v161 = vld [vmem:[%s1 + $0x398] sm:$0xff]
  %v162 = vld [vmem:[%s1 + $0x3a0] sm:$0xff]
  %v163 = vld [vmem:[%s1 + $0x3a8] sm:$0xff]
  %v164 = vld [vmem:[%s1 + $0x3b0] sm:$0xff]
  %v165 = vld [vmem:[%s1 + $0x3b8] sm:$0xff]
  %v166 = vld [vmem:[%s1 + $0x3c0] sm:$0xff]
  %v167 = vld [vmem:[%s1 + $0x3c8] sm:$0xff]
  %v168 = vld [vmem:[%s1 + $0x3d0] sm:$0xff]
  %v169 = vld [vmem:[%s1 + $0x3d8] sm:$0xff]
  %v170 = vld [vmem:[%s1 + $0x3e0] sm:$0xff]
  %v171 = vld [vmem:[%s1 + $0x3e8] sm:$0xff]
  %v172 = vld [vmem:[%s1 + $0x3f0] sm:$0xff]
  %v173 = vld [vmem:[%s1 + $0x3f8] sm:$0xff]
  %v174 = vld [vmem:[%s1 + $0x400] sm:$0xff]
  %v175 = vld [vmem:[%s1 + $0x408] sm:$0xff]
  %v176 = vld [vmem:[%s1 + $0x410] sm:$0xff]
  %v177 = vld [vmem:[%s1 + $0x418] sm:$0xff]
  %v178 = vld [vmem:[%s1 + $0x420] sm:$0xff]
  %v179 = vld [vmem:[%s1 + $0x428] sm:$0xff]
  %v180 = vld [vmem:[%s1 + $0x430] sm:$0xff]
  %v181 = vld [vmem:[%s1 + $0x438] sm:$0xff]
  %v182 = vld [vmem:[%s1 + $0x440] sm:$0xff]
  %v183 = vld [vmem:[%s1 + $0x448] sm:$0xff]
  %v184 = vld [vmem:[%s1 + $0x450] sm:$0xff]
  %v185 = vld [vmem:[%s1 + $0x458] sm:$0xff]
  %v186 = vld [vmem:[%s1 + $0x460] sm:$0xff]
  %v187 = vld [vmem:[%s1 + $0x468] sm:$0xff]
  %v188 = vld [vmem:[%s1 + $0x470] sm:$0xff]
  %v189 = vld [vmem:[%s1 + $0x478] sm:$0xff]
  %v190 = vld [vmem:[%s1 + $0x480] sm:$0xff]
  %v191 = vld [vmem:[%s1 + $0x488] sm:$0xff]
  %v192 = vld [vmem:[%s1 + $0x490] sm:$0xff]
  %v193 = vld [vmem:[%s1 + $0x498] sm:$0xff]
  %v194 = vld [vmem:[%s1 + $0x4a0] sm:$0xff]
  %v195 = vld [vmem:[%s1 + $0x4a8] sm:$0xff]
  %v196 = vld [vmem:[%s1 + $0x4b0] sm:$0xff]
  %v197 = vld [vmem:[%s1 + $0x4b8] sm:$0xff]
  %v198 = vld [vmem:[%s1 + $0x4c0] sm:$0xff]
  %v199 = vld [vmem:[%s1 + $0x4c8] sm:$0xff]
  %v200 = vld [vmem:[%s1 + $0x4d0] sm:$0xff]
  %v201 = vld [vmem:[%s1 + $0x4d8] sm:$0xff]
  %v202 = vld [vmem:[%s1 + $0x4e0] sm:$0xff]
  %v203 = vld [vmem:[%s1 + $0x4e8] sm:$0xff]
  %v204 = vld [vmem:[%s1 + $0x4f0] sm:$0xff]
  %v205 = vld [vmem:[%s1 + $0x4f8] sm:$0xff]
  %v206 = vld [vmem:[%s1 + $0x500] sm:$0xff]
  %v207 = vld [vmem:[%s1 + $0x508] sm:$0xff]
  %v208 = vld [vmem:[%s1 + $0x510] sm:$0xff]
  %v209 = vld [vmem:[%s1 + $0x518] sm:$0xff]
  %v210 = vld [vmem:[%s1 + $0x520] sm:$0xff]
  %v211 = vld [vmem:[%s1 + $0x528] sm:$0xff]
  %v212 = vld [vmem:[%s1 + $0x530] sm:$0xff]
  %v213 = vld [vmem:[%s1 + $0x538] sm:$0xff]
  %v214 = vld [vmem:[%s1 + $0x540] sm:$0xff]
  %v215 = vld [vmem:[%s1 + $0x548] sm:$0xff]
  %v216 = vld [vmem:[%s1 + $0x550] sm:$0xff]
  %v217 = vld [vmem:[%s1 + $0x558] sm:$0xff]
  %v218 = vld [vmem:[%s1 + $0x560] sm:$0xff]
  %v219 = vld [vmem:[%s1 + $0x568] sm:$0xff]
  %v220 = vld [vmem:[%s1 + $0x570] sm:$0xff]
  %v221 = vld [vmem:[%s1 + $0x578] sm:$0xff]
  %v222 = vld [vmem:[%s1 + $0x580] sm:$0xff]
  %v223 = vld [vmem:[%s1 + $0x588] sm:$0xff]
  %v224 = vld [vmem:[%s1 + $0x590] sm:$0xff]
  %v225 = vld [vmem:[%s1 + $0x598] sm:$0xff]
  %v226 = vld [vmem:[%s1 + $0x5a0] sm:$0xff]
  %v227 = vld [vmem:[%s1 + $0x5a8] sm:$0xff]
  %v228 = vld [vmem:[%s1 + $0x5b0] sm:$0xff]
  %v229 = vld [vmem:[%s1 + $0x5b8] sm:$0xff]
  %v230 = vld [vmem:[%s1 + $0x5c0] sm:$0xff]
  %v231 = vld [vmem:[%s1 + $0x5c8] sm:$0xff]
  %v232 = vld [vmem:[%s1 + $0x5d0] sm:$0xff]
  %v233 = vld [vmem:[%s1 + $0x5d8] sm:$0xff]
  %v234 = vld [vmem:[%s1 + $0x5e0] sm:$0xff]
  %v235 = vld [vmem:[%s1 + $0x5e8] sm:$0xff]
  %v236 = vld [vmem:[%s1 + $0x5f0] sm:$0xff]
  %v237 = vld [vmem:[%s1 + $0x5f8] sm:$0xff]
  %v238 = vld [vmem:[%s1 + $0x600] sm:$0xff]
  %v239 = vld [vmem:[%s1 + $0x608] sm:$0xff]
  %v240 = vld [vmem:[%s1 + $0x610] sm:$0xff]
  %v241 = vld [vmem:[%s1 + $0x618] sm:$0xff]
  %v242 = vld [vmem:[%s1 + $0x620] sm:$0xff]
  %v243 = vld [vmem:[%s1 + $0x628] sm:$0xff]
  %v244 = vld [vmem:[%s1 + $0x630] sm:$0xff]
  %v245 = vld [vmem:[%s1 + $0x638] sm:$0xff]
  %v246 = vld [vmem:[%s1 + $0x640] sm:$0xff]
  %v247 = vld [vmem:[%s1 + $0x648] sm:$0xff]
  %v248 = vld [vmem:[%s1 + $0x650] sm:$0xff]
  %v249 = vld [vmem:[%s1 + $0x658] sm:$0xff]
  %v250 = vld [vmem:[%s1 + $0x660] sm:$0xff]
  %v251 = vld [vmem:[%s1 + $0x668] sm:$0xff]
  %v252 = vld [vmem:[%s1 + $0x670] sm:$0xff]
  %v253 = vld [vmem:[%s1 + $0x678] sm:$0xff]
  %v254 = vld [vmem:[%s1 + $0x680] sm:$0xff]
  %v255 = vld [vmem:[%s1 + $0x688] sm:$0xff]
  %v256 = vld [vmem:[%s1 + $0x690] sm:$0xff]
  %v257 = vld [vmem:[%s1 + $0x698] sm:$0xff]
  %v258 = vld [vmem:[%s1 + $0x6a0] sm:$0xff]
  %v259 = vld [vmem:[%s1 + $0x6a8] sm:$0xff]
  %v260 = vld [vmem:[%s1 + $0x6b0] sm:$0xff]
  %v261 = vld [vmem:[%s1 + $0x6b8] sm:$0xff]
  %v262 = vld [vmem:[%s1 + $0x6c0] sm:$0xff]
  %v263 = vld [vmem:[%s1 + $0x6c8] sm:$0xff]
  %v264 = vld [vmem:[%s1 + $0x6d0] sm:$0xff]
  %v265 = vld [vmem:[%s1 + $0x6d8] sm:$0xff]
  %v266 = vld [vmem:[%s1 + $0x6e0] sm:$0xff]
  %v267 = vld [vmem:[%s1 + $0x6e8] sm:$0xff]
  %v268 = vld [vmem:[%s1 + $0x6f0] sm:$0xff]
  %v269 = vld [vmem:[%s1 + $0x6f8] sm:$0xff]
  %v270 = vld [vmem:[%s1 + $0x700] sm:$0xff]
  %v271 = vld [vmem:[%s1 + $0x708] sm:$0xff]
  %v272 = vld [vmem:[%s1 + $0x710] sm:$0xff]
  %v273 = vld [vmem:[%s1 + $0x718] sm:$0xff]
  %v274 = vld [vmem:[%s1 + $0x720] sm:$0xff]
  %v275 = vld [vmem:[%s1 + $0x728] sm:$0xff]
  %v276 = vld [vmem:[%s1 + $0x730] sm:$0xff]
  %v277 = vld [vmem:[%s1 + $0x738] sm:$0xff]
  %v278 = vld [vmem:[%s1 + $0x740] sm:$0xff]
  %v279 = vld [vmem:[%s1 + $0x748] sm:$0xff]
  %v280 = vld [vmem:[%s1 + $0x750] sm:$0xff]
  %v281 = vld [vmem:[%s1 + $0x758] sm:$0xff]
  %v282 = vld [vmem:[%s1 + $0x760] sm:$0xff]
  %v283 = vld [vmem:[%s1 + $0x768] sm:$0xff]
  %v284 = vld [vmem:[%s1 + $0x770] sm:$0xff]
  %v285 = vld [vmem:[%s1 + $0x778] sm:$0xff]
  %v286 = vld [vmem:[%s1 + $0x780] sm:$0xff]
  %v287 = vld [vmem:[%s1 + $0x788] sm:$0xff]
  %v288 = vld [vmem:[%s1 + $0x790] sm:$0xff]
  %v289 = vld [vmem:[%s1 + $0x798] sm:$0xff]
  %v290 = vld [vmem:[%s1 + $0x7a0] sm:$0xff]
  %v291 = vld [vmem:[%s1 + $0x7a8] sm:$0xff]
  %v292 = vld [vmem:[%s1 + $0x7b0] sm:$0xff]
  %v293 = vld [vmem:[%s1 + $0x7b8] sm:$0xff]
  %v294 = vld [vmem:[%s1 + $0x7c0] sm:$0xff]
  %v295 = vld [vmem:[%s1 + $0x7c8] sm:$0xff]
  %v296 = vld [vmem:[%s1 + $0x7d0] sm:$0xff]
  %v297 = vld [vmem:[%s1 + $0x7d8] sm:$0xff]
  %v298 = vld [vmem:[%s1 + $0x7e0] sm:$0xff]
  %v299 = vld [vmem:[%s1 + $0x7e8] sm:$0xff]
  %v300 = vld [vmem:[%s1 + $0x7f0] sm:$0xff]
  %v301 = vld [vmem:[%s1 + $0x7f8] sm:$0xff]
  %v302 = vld [vmem:[%s2] sm:$0x3]
  %v304 = vlaneseq
  %v305 = vshrl.u32 %v304, 7
  %v306 = vsub.s32 0, %v305
  %v307 = vrot.slane %v302, %v306
  %v308 = vlaneseq
  %v309 = vshrl.u32 %v308, 7
  %v310 = vsub.s32 1, %v309
  %v311 = vrot.slane %v302, %v310
  %v346 = vunpack.c.l.b16 %v14
  %v347 = vunpack.c.h.b16 %v14
  %v348 = vunpack.c.l.b16 %v15
  %v349 = vunpack.c.h.b16 %v15
  %v350 = vunpack.c.l.b16 %v16
  %v351 = vunpack.c.h.b16 %v16
  %v352 = vunpack.c.l.b16 %v17
  %v353 = vunpack.c.h.b16 %v17
  %v354 = vunpack.c.l.b16 %v18
  %v355 = vunpack.c.h.b16 %v18
  %v356 = vunpack.c.l.b16 %v19
  %v357 = vunpack.c.h.b16 %v19
  %v358 = vunpack.c.l.b16 %v20
  %v359 = vunpack.c.h.b16 %v20
  %v360 = vunpack.c.l.b16 %v21
  %v361 = vunpack.c.h.b16 %v21
  %v362 = vunpack.c.l.b16 %v22
  %v363 = vunpack.c.h.b16 %v22
  %v364 = vunpack.c.l.b16 %v23
  %v365 = vunpack.c.h.b16 %v23
  %v366 = vunpack.c.l.b16 %v24
  %v367 = vunpack.c.h.b16 %v24
  %v368 = vunpack.c.l.b16 %v25
  %v369 = vunpack.c.h.b16 %v25
  %v370 = vunpack.c.l.b16 %v26
  %v371 = vunpack.c.h.b16 %v26
  %v372 = vunpack.c.l.b16 %v27
  %v373 = vunpack.c.h.b16 %v27
  %v374 = vunpack.c.l.b16 %v28
  %v375 = vunpack.c.h.b16 %v28
  %v376 = vunpack.c.l.b16 %v29
  %v377 = vunpack.c.h.b16 %v29
  %v378 = vunpack.c.l.b16 %v30
  %v379 = vunpack.c.h.b16 %v30
  %v380 = vunpack.c.l.b16 %v31
  %v381 = vunpack.c.h.b16 %v31
  %v382 = vunpack.c.l.b16 %v32
  %v383 = vunpack.c.h.b16 %v32
  %v384 = vunpack.c.l.b16 %v33
  %v385 = vunpack.c.h.b16 %v33
  %v386 = vunpack.c.l.b16 %v34
  %v387 = vunpack.c.h.b16 %v34
  %v388 = vunpack.c.l.b16 %v35
  %v389 = vunpack.c.h.b16 %v35
  %v390 = vunpack.c.l.b16 %v36
  %v391 = vunpack.c.h.b16 %v36
  %v392 = vunpack.c.l.b16 %v37
  %v393 = vunpack.c.h.b16 %v37
  %v394 = vunpack.c.l.b16 %v38
  %v395 = vunpack.c.h.b16 %v38
  %v396 = vunpack.c.l.b16 %v39
  %v397 = vunpack.c.h.b16 %v39
  %v398 = vunpack.c.l.b16 %v40
  %v399 = vunpack.c.h.b16 %v40
  %v400 = vunpack.c.l.b16 %v41
  %v401 = vunpack.c.h.b16 %v41
  %v402 = vunpack.c.l.b16 %v42
  %v403 = vunpack.c.h.b16 %v42
  %v404 = vunpack.c.l.b16 %v43
  %v405 = vunpack.c.h.b16 %v43
  %v406 = vunpack.c.l.b16 %v44
  %v407 = vunpack.c.h.b16 %v44
  %v408 = vunpack.c.l.b16 %v45
  %v409 = vunpack.c.h.b16 %v45
  %v410 = vpack.c.b16 %v362, %v346
  %v411 = vpack.c.b16 %v363, %v347
  %v412 = vpack.c.b16 %v364, %v348
  %v413 = vpack.c.b16 %v365, %v349
  %v414 = vpack.c.b16 %v366, %v350
  %v415 = vpack.c.b16 %v367, %v351
  %v416 = vpack.c.b16 %v368, %v352
  %v417 = vpack.c.b16 %v369, %v353
  %v418 = vpack.c.b16 %v370, %v354
  %v419 = vpack.c.b16 %v371, %v355
  %v420 = vpack.c.b16 %v372, %v356
  %v421 = vpack.c.b16 %v373, %v357
  %v422 = vpack.c.b16 %v374, %v358
  %v423 = vpack.c.b16 %v375, %v359
  %v424 = vpack.c.b16 %v376, %v360
  %v425 = vpack.c.b16 %v377, %v361
  %v426 = vpack.c.b16 %v394, %v378
  %v427 = vpack.c.b16 %v395, %v379
  %v428 = vpack.c.b16 %v396, %v380
  %v429 = vpack.c.b16 %v397, %v381
  %v430 = vpack.c.b16 %v398, %v382
  %v431 = vpack.c.b16 %v399, %v383
  %v432 = vpack.c.b16 %v400, %v384
  %v433 = vpack.c.b16 %v401, %v385
  %v434 = vpack.c.b16 %v402, %v386
  %v435 = vpack.c.b16 %v403, %v387
  %v436 = vpack.c.b16 %v404, %v388
  %v437 = vpack.c.b16 %v405, %v389
  %v438 = vpack.c.b16 %v406, %v390
  %v439 = vpack.c.b16 %v407, %v391
  %v440 = vpack.c.b16 %v408, %v392
  %v441 = vpack.c.b16 %v409, %v393
  %v730 = vunpack.c.l.b16 %v46
  %v731 = vunpack.c.h.b16 %v46
  %v732 = vunpack.c.l.b16 %v47
  %v733 = vunpack.c.h.b16 %v47
  %v734 = vunpack.c.l.b16 %v48
  %v735 = vunpack.c.h.b16 %v48
  %v736 = vunpack.c.l.b16 %v49
  %v737 = vunpack.c.h.b16 %v49
  %v738 = vunpack.c.l.b16 %v50
  %v739 = vunpack.c.h.b16 %v50
  %v740 = vunpack.c.l.b16 %v51
  %v741 = vunpack.c.h.b16 %v51
  %v742 = vunpack.c.l.b16 %v52
  %v743 = vunpack.c.h.b16 %v52
  %v744 = vunpack.c.l.b16 %v53
  %v745 = vunpack.c.h.b16 %v53
  %v746 = vunpack.c.l.b16 %v54
  %v747 = vunpack.c.h.b16 %v54
  %v748 = vunpack.c.l.b16 %v55
  %v749 = vunpack.c.h.b16 %v55
  %v750 = vunpack.c.l.b16 %v56
  %v751 = vunpack.c.h.b16 %v56
  %v752 = vunpack.c.l.b16 %v57
  %v753 = vunpack.c.h.b16 %v57
  %v754 = vunpack.c.l.b16 %v58
  %v755 = vunpack.c.h.b16 %v58
  %v756 = vunpack.c.l.b16 %v59
  %v757 = vunpack.c.h.b16 %v59
  %v758 = vunpack.c.l.b16 %v60
  %v759 = vunpack.c.h.b16 %v60
  %v760 = vunpack.c.l.b16 %v61
  %v761 = vunpack.c.h.b16 %v61
  %v762 = vunpack.c.l.b16 %v62
  %v763 = vunpack.c.h.b16 %v62
  %v764 = vunpack.c.l.b16 %v63
  %v765 = vunpack.c.h.b16 %v63
  %v766 = vunpack.c.l.b16 %v64
  %v767 = vunpack.c.h.b16 %v64
  %v768 = vunpack.c.l.b16 %v65
  %v769 = vunpack.c.h.b16 %v65
  %v770 = vunpack.c.l.b16 %v66
  %v771 = vunpack.c.h.b16 %v66
  %v772 = vunpack.c.l.b16 %v67
  %v773 = vunpack.c.h.b16 %v67
  %v774 = vunpack.c.l.b16 %v68
  %v775 = vunpack.c.h.b16 %v68
  %v776 = vunpack.c.l.b16 %v69
  %v777 = vunpack.c.h.b16 %v69
  %v778 = vunpack.c.l.b16 %v70
  %v779 = vunpack.c.h.b16 %v70
  %v780 = vunpack.c.l.b16 %v71
  %v781 = vunpack.c.h.b16 %v71
  %v782 = vunpack.c.l.b16 %v72
  %v783 = vunpack.c.h.b16 %v72
  %v784 = vunpack.c.l.b16 %v73
  %v785 = vunpack.c.h.b16 %v73
  %v786 = vunpack.c.l.b16 %v74
  %v787 = vunpack.c.h.b16 %v74
  %v788 = vunpack.c.l.b16 %v75
  %v789 = vunpack.c.h.b16 %v75
  %v790 = vunpack.c.l.b16 %v76
  %v791 = vunpack.c.h.b16 %v76
  %v792 = vunpack.c.l.b16 %v77
  %v793 = vunpack.c.h.b16 %v77
  %v794 = vunpack.c.l.b16 %v78
  %v795 = vunpack.c.h.b16 %v78
  %v796 = vunpack.c.l.b16 %v79
  %v797 = vunpack.c.h.b16 %v79
  %v798 = vunpack.c.l.b16 %v80
  %v799 = vunpack.c.h.b16 %v80
  %v800 = vunpack.c.l.b16 %v81
  %v801 = vunpack.c.h.b16 %v81
  %v802 = vunpack.c.l.b16 %v82
  %v803 = vunpack.c.h.b16 %v82
  %v804 = vunpack.c.l.b16 %v83
  %v805 = vunpack.c.h.b16 %v83
  %v806 = vunpack.c.l.b16 %v84
  %v807 = vunpack.c.h.b16 %v84
  %v808 = vunpack.c.l.b16 %v85
  %v809 = vunpack.c.h.b16 %v85
  %v810 = vunpack.c.l.b16 %v86
  %v811 = vunpack.c.h.b16 %v86
  %v812 = vunpack.c.l.b16 %v87
  %v813 = vunpack.c.h.b16 %v87
  %v814 = vunpack.c.l.b16 %v88
  %v815 = vunpack.c.h.b16 %v88
  %v816 = vunpack.c.l.b16 %v89
  %v817 = vunpack.c.h.b16 %v89
  %v818 = vunpack.c.l.b16 %v90
  %v819 = vunpack.c.h.b16 %v90
  %v820 = vunpack.c.l.b16 %v91
  %v821 = vunpack.c.h.b16 %v91
  %v822 = vunpack.c.l.b16 %v92
  %v823 = vunpack.c.h.b16 %v92
  %v824 = vunpack.c.l.b16 %v93
  %v825 = vunpack.c.h.b16 %v93
  %v826 = vunpack.c.l.b16 %v94
  %v827 = vunpack.c.h.b16 %v94
  %v828 = vunpack.c.l.b16 %v95
  %v829 = vunpack.c.h.b16 %v95
  %v830 = vunpack.c.l.b16 %v96
  %v831 = vunpack.c.h.b16 %v96
  %v832 = vunpack.c.l.b16 %v97
  %v833 = vunpack.c.h.b16 %v97
  %v834 = vunpack.c.l.b16 %v98
  %v835 = vunpack.c.h.b16 %v98
  %v836 = vunpack.c.l.b16 %v99
  %v837 = vunpack.c.h.b16 %v99
  %v838 = vunpack.c.l.b16 %v100
  %v839 = vunpack.c.h.b16 %v100
  %v840 = vunpack.c.l.b16 %v101
  %v841 = vunpack.c.h.b16 %v101
  %v842 = vunpack.c.l.b16 %v102
  %v843 = vunpack.c.h.b16 %v102
  %v844 = vunpack.c.l.b16 %v103
  %v845 = vunpack.c.h.b16 %v103
  %v846 = vunpack.c.l.b16 %v104
  %v847 = vunpack.c.h.b16 %v104
  %v848 = vunpack.c.l.b16 %v105
  %v849 = vunpack.c.h.b16 %v105
  %v850 = vunpack.c.l.b16 %v106
  %v851 = vunpack.c.h.b16 %v106
  %v852 = vunpack.c.l.b16 %v107
  %v853 = vunpack.c.h.b16 %v107
  %v854 = vunpack.c.l.b16 %v108
  %v855 = vunpack.c.h.b16 %v108
  %v856 = vunpack.c.l.b16 %v109
  %v857 = vunpack.c.h.b16 %v109
  %v858 = vunpack.c.l.b16 %v110
  %v859 = vunpack.c.h.b16 %v110
  %v860 = vunpack.c.l.b16 %v111
  %v861 = vunpack.c.h.b16 %v111
  %v862 = vunpack.c.l.b16 %v112
  %v863 = vunpack.c.h.b16 %v112
  %v864 = vunpack.c.l.b16 %v113
  %v865 = vunpack.c.h.b16 %v113
  %v866 = vunpack.c.l.b16 %v114
  %v867 = vunpack.c.h.b16 %v114
  %v868 = vunpack.c.l.b16 %v115
  %v869 = vunpack.c.h.b16 %v115
  %v870 = vunpack.c.l.b16 %v116
  %v871 = vunpack.c.h.b16 %v116
  %v872 = vunpack.c.l.b16 %v117
  %v873 = vunpack.c.h.b16 %v117
  %v874 = vunpack.c.l.b16 %v118
  %v875 = vunpack.c.h.b16 %v118
  %v876 = vunpack.c.l.b16 %v119
  %v877 = vunpack.c.h.b16 %v119
  %v878 = vunpack.c.l.b16 %v120
  %v879 = vunpack.c.h.b16 %v120
  %v880 = vunpack.c.l.b16 %v121
  %v881 = vunpack.c.h.b16 %v121
  %v882 = vunpack.c.l.b16 %v122
  %v883 = vunpack.c.h.b16 %v122
  %v884 = vunpack.c.l.b16 %v123
  %v885 = vunpack.c.h.b16 %v123
  %v886 = vunpack.c.l.b16 %v124
  %v887 = vunpack.c.h.b16 %v124
  %v888 = vunpack.c.l.b16 %v125
  %v889 = vunpack.c.h.b16 %v125
  %v890 = vunpack.c.l.b16 %v126
  %v891 = vunpack.c.h.b16 %v126
  %v892 = vunpack.c.l.b16 %v127
  %v893 = vunpack.c.h.b16 %v127
  %v894 = vunpack.c.l.b16 %v128
  %v895 = vunpack.c.h.b16 %v128
  %v896 = vunpack.c.l.b16 %v129
  %v897 = vunpack.c.h.b16 %v129
  %v898 = vunpack.c.l.b16 %v130
  %v899 = vunpack.c.h.b16 %v130
  %v900 = vunpack.c.l.b16 %v131
  %v901 = vunpack.c.h.b16 %v131
  %v902 = vunpack.c.l.b16 %v132
  %v903 = vunpack.c.h.b16 %v132
  %v904 = vunpack.c.l.b16 %v133
  %v905 = vunpack.c.h.b16 %v133
  %v906 = vunpack.c.l.b16 %v134
  %v907 = vunpack.c.h.b16 %v134
  %v908 = vunpack.c.l.b16 %v135
  %v909 = vunpack.c.h.b16 %v135
  %v910 = vunpack.c.l.b16 %v136
  %v911 = vunpack.c.h.b16 %v136
  %v912 = vunpack.c.l.b16 %v137
  %v913 = vunpack.c.h.b16 %v137
  %v914 = vunpack.c.l.b16 %v138
  %v915 = vunpack.c.h.b16 %v138
  %v916 = vunpack.c.l.b16 %v139
  %v917 = vunpack.c.h.b16 %v139
  %v918 = vunpack.c.l.b16 %v140
  %v919 = vunpack.c.h.b16 %v140
  %v920 = vunpack.c.l.b16 %v141
  %v921 = vunpack.c.h.b16 %v141
  %v922 = vunpack.c.l.b16 %v142
  %v923 = vunpack.c.h.b16 %v142
  %v924 = vunpack.c.l.b16 %v143
  %v925 = vunpack.c.h.b16 %v143
  %v926 = vunpack.c.l.b16 %v144
  %v927 = vunpack.c.h.b16 %v144
  %v928 = vunpack.c.l.b16 %v145
  %v929 = vunpack.c.h.b16 %v145
  %v930 = vunpack.c.l.b16 %v146
  %v931 = vunpack.c.h.b16 %v146
  %v932 = vunpack.c.l.b16 %v147
  %v933 = vunpack.c.h.b16 %v147
  %v934 = vunpack.c.l.b16 %v148
  %v935 = vunpack.c.h.b16 %v148
  %v936 = vunpack.c.l.b16 %v149
  %v937 = vunpack.c.h.b16 %v149
  %v938 = vunpack.c.l.b16 %v150
  %v939 = vunpack.c.h.b16 %v150
  %v940 = vunpack.c.l.b16 %v151
  %v941 = vunpack.c.h.b16 %v151
  %v942 = vunpack.c.l.b16 %v152
  %v943 = vunpack.c.h.b16 %v152
  %v944 = vunpack.c.l.b16 %v153
  %v945 = vunpack.c.h.b16 %v153
  %v946 = vunpack.c.l.b16 %v154
  %v947 = vunpack.c.h.b16 %v154
  %v948 = vunpack.c.l.b16 %v155
  %v949 = vunpack.c.h.b16 %v155
  %v950 = vunpack.c.l.b16 %v156
  %v951 = vunpack.c.h.b16 %v156
  %v952 = vunpack.c.l.b16 %v157
  %v953 = vunpack.c.h.b16 %v157
  %v954 = vunpack.c.l.b16 %v158
  %v955 = vunpack.c.h.b16 %v158
  %v956 = vunpack.c.l.b16 %v159
  %v957 = vunpack.c.h.b16 %v159
  %v958 = vunpack.c.l.b16 %v160
  %v959 = vunpack.c.h.b16 %v160
  %v960 = vunpack.c.l.b16 %v161
  %v961 = vunpack.c.h.b16 %v161
  %v962 = vunpack.c.l.b16 %v162
  %v963 = vunpack.c.h.b16 %v162
  %v964 = vunpack.c.l.b16 %v163
  %v965 = vunpack.c.h.b16 %v163
  %v966 = vunpack.c.l.b16 %v164
  %v967 = vunpack.c.h.b16 %v164
  %v968 = vunpack.c.l.b16 %v165
  %v969 = vunpack.c.h.b16 %v165
  %v970 = vunpack.c.l.b16 %v166
  %v971 = vunpack.c.h.b16 %v166
  %v972 = vunpack.c.l.b16 %v167
  %v973 = vunpack.c.h.b16 %v167
  %v974 = vunpack.c.l.b16 %v168
  %v975 = vunpack.c.h.b16 %v168
  %v976 = vunpack.c.l.b16 %v169
  %v977 = vunpack.c.h.b16 %v169
  %v978 = vunpack.c.l.b16 %v170
  %v979 = vunpack.c.h.b16 %v170
  %v980 = vunpack.c.l.b16 %v171
  %v981 = vunpack.c.h.b16 %v171
  %v982 = vunpack.c.l.b16 %v172
  %v983 = vunpack.c.h.b16 %v172
  %v984 = vunpack.c.l.b16 %v173
  %v985 = vunpack.c.h.b16 %v173
  %v986 = vunpack.c.l.b16 %v174
  %v987 = vunpack.c.h.b16 %v174
  %v988 = vunpack.c.l.b16 %v175
  %v989 = vunpack.c.h.b16 %v175
  %v990 = vunpack.c.l.b16 %v176
  %v991 = vunpack.c.h.b16 %v176
  %v992 = vunpack.c.l.b16 %v177
  %v993 = vunpack.c.h.b16 %v177
  %v994 = vunpack.c.l.b16 %v178
  %v995 = vunpack.c.h.b16 %v178
  %v996 = vunpack.c.l.b16 %v179
  %v997 = vunpack.c.h.b16 %v179
  %v998 = vunpack.c.l.b16 %v180
  %v999 = vunpack.c.h.b16 %v180
  %v1000 = vunpack.c.l.b16 %v181
  %v1001 = vunpack.c.h.b16 %v181
  %v1002 = vunpack.c.l.b16 %v182
  %v1003 = vunpack.c.h.b16 %v182
  %v1004 = vunpack.c.l.b16 %v183
  %v1005 = vunpack.c.h.b16 %v183
  %v1006 = vunpack.c.l.b16 %v184
  %v1007 = vunpack.c.h.b16 %v184
  %v1008 = vunpack.c.l.b16 %v185
  %v1009 = vunpack.c.h.b16 %v185
  %v1010 = vunpack.c.l.b16 %v186
  %v1011 = vunpack.c.h.b16 %v186
  %v1012 = vunpack.c.l.b16 %v187
  %v1013 = vunpack.c.h.b16 %v187
  %v1014 = vunpack.c.l.b16 %v188
  %v1015 = vunpack.c.h.b16 %v188
  %v1016 = vunpack.c.l.b16 %v189
  %v1017 = vunpack.c.h.b16 %v189
  %v1018 = vunpack.c.l.b16 %v190
  %v1019 = vunpack.c.h.b16 %v190
  %v1020 = vunpack.c.l.b16 %v191
  %v1021 = vunpack.c.h.b16 %v191
  %v1022 = vunpack.c.l.b16 %v192
  %v1023 = vunpack.c.h.b16 %v192
  %v1024 = vunpack.c.l.b16 %v193
  %v1025 = vunpack.c.h.b16 %v193
  %v1026 = vunpack.c.l.b16 %v194
  %v1027 = vunpack.c.h.b16 %v194
  %v1028 = vunpack.c.l.b16 %v195
  %v1029 = vunpack.c.h.b16 %v195
  %v1030 = vunpack.c.l.b16 %v196
  %v1031 = vunpack.c.h.b16 %v196
  %v1032 = vunpack.c.l.b16 %v197
  %v1033 = vunpack.c.h.b16 %v197
  %v1034 = vunpack.c.l.b16 %v198
  %v1035 = vunpack.c.h.b16 %v198
  %v1036 = vunpack.c.l.b16 %v199
  %v1037 = vunpack.c.h.b16 %v199
  %v1038 = vunpack.c.l.b16 %v200
  %v1039 = vunpack.c.h.b16 %v200
  %v1040 = vunpack.c.l.b16 %v201
  %v1041 = vunpack.c.h.b16 %v201
  %v1042 = vunpack.c.l.b16 %v202
  %v1043 = vunpack.c.h.b16 %v202
  %v1044 = vunpack.c.l.b16 %v203
  %v1045 = vunpack.c.h.b16 %v203
  %v1046 = vunpack.c.l.b16 %v204
  %v1047 = vunpack.c.h.b16 %v204
  %v1048 = vunpack.c.l.b16 %v205
  %v1049 = vunpack.c.h.b16 %v205
  %v1050 = vunpack.c.l.b16 %v206
  %v1051 = vunpack.c.h.b16 %v206
  %v1052 = vunpack.c.l.b16 %v207
  %v1053 = vunpack.c.h.b16 %v207
  %v1054 = vunpack.c.l.b16 %v208
  %v1055 = vunpack.c.h.b16 %v208
  %v1056 = vunpack.c.l.b16 %v209
  %v1057 = vunpack.c.h.b16 %v209
  %v1058 = vunpack.c.l.b16 %v210
  %v1059 = vunpack.c.h.b16 %v210
  %v1060 = vunpack.c.l.b16 %v211
  %v1061 = vunpack.c.h.b16 %v211
  %v1062 = vunpack.c.l.b16 %v212
  %v1063 = vunpack.c.h.b16 %v212
  %v1064 = vunpack.c.l.b16 %v213
  %v1065 = vunpack.c.h.b16 %v213
  %v1066 = vunpack.c.l.b16 %v214
  %v1067 = vunpack.c.h.b16 %v214
  %v1068 = vunpack.c.l.b16 %v215
  %v1069 = vunpack.c.h.b16 %v215
  %v1070 = vunpack.c.l.b16 %v216
  %v1071 = vunpack.c.h.b16 %v216
  %v1072 = vunpack.c.l.b16 %v217
  %v1073 = vunpack.c.h.b16 %v217
  %v1074 = vunpack.c.l.b16 %v218
  %v1075 = vunpack.c.h.b16 %v218
  %v1076 = vunpack.c.l.b16 %v219
  %v1077 = vunpack.c.h.b16 %v219
  %v1078 = vunpack.c.l.b16 %v220
  %v1079 = vunpack.c.h.b16 %v220
  %v1080 = vunpack.c.l.b16 %v221
  %v1081 = vunpack.c.h.b16 %v221
  %v1082 = vunpack.c.l.b16 %v222
  %v1083 = vunpack.c.h.b16 %v222
  %v1084 = vunpack.c.l.b16 %v223
  %v1085 = vunpack.c.h.b16 %v223
  %v1086 = vunpack.c.l.b16 %v224
  %v1087 = vunpack.c.h.b16 %v224
  %v1088 = vunpack.c.l.b16 %v225
  %v1089 = vunpack.c.h.b16 %v225
  %v1090 = vunpack.c.l.b16 %v226
  %v1091 = vunpack.c.h.b16 %v226
  %v1092 = vunpack.c.l.b16 %v227
  %v1093 = vunpack.c.h.b16 %v227
  %v1094 = vunpack.c.l.b16 %v228
  %v1095 = vunpack.c.h.b16 %v228
  %v1096 = vunpack.c.l.b16 %v229
  %v1097 = vunpack.c.h.b16 %v229
  %v1098 = vunpack.c.l.b16 %v230
  %v1099 = vunpack.c.h.b16 %v230
  %v1100 = vunpack.c.l.b16 %v231
  %v1101 = vunpack.c.h.b16 %v231
  %v1102 = vunpack.c.l.b16 %v232
  %v1103 = vunpack.c.h.b16 %v232
  %v1104 = vunpack.c.l.b16 %v233
  %v1105 = vunpack.c.h.b16 %v233
  %v1106 = vunpack.c.l.b16 %v234
  %v1107 = vunpack.c.h.b16 %v234
  %v1108 = vunpack.c.l.b16 %v235
  %v1109 = vunpack.c.h.b16 %v235
  %v1110 = vunpack.c.l.b16 %v236
  %v1111 = vunpack.c.h.b16 %v236
  %v1112 = vunpack.c.l.b16 %v237
  %v1113 = vunpack.c.h.b16 %v237
  %v1114 = vunpack.c.l.b16 %v238
  %v1115 = vunpack.c.h.b16 %v238
  %v1116 = vunpack.c.l.b16 %v239
  %v1117 = vunpack.c.h.b16 %v239
  %v1118 = vunpack.c.l.b16 %v240
  %v1119 = vunpack.c.h.b16 %v240
  %v1120 = vunpack.c.l.b16 %v241
  %v1121 = vunpack.c.h.b16 %v241
  %v1122 = vunpack.c.l.b16 %v242
  %v1123 = vunpack.c.h.b16 %v242
  %v1124 = vunpack.c.l.b16 %v243
  %v1125 = vunpack.c.h.b16 %v243
  %v1126 = vunpack.c.l.b16 %v244
  %v1127 = vunpack.c.h.b16 %v244
  %v1128 = vunpack.c.l.b16 %v245
  %v1129 = vunpack.c.h.b16 %v245
  %v1130 = vunpack.c.l.b16 %v246
  %v1131 = vunpack.c.h.b16 %v246
  %v1132 = vunpack.c.l.b16 %v247
  %v1133 = vunpack.c.h.b16 %v247
  %v1134 = vunpack.c.l.b16 %v248
  %v1135 = vunpack.c.h.b16 %v248
  %v1136 = vunpack.c.l.b16 %v249
  %v1137 = vunpack.c.h.b16 %v249
  %v1138 = vunpack.c.l.b16 %v250
  %v1139 = vunpack.c.h.b16 %v250
  %v1140 = vunpack.c.l.b16 %v251
  %v1141 = vunpack.c.h.b16 %v251
  %v1142 = vunpack.c.l.b16 %v252
  %v1143 = vunpack.c.h.b16 %v252
  %v1144 = vunpack.c.l.b16 %v253
  %v1145 = vunpack.c.h.b16 %v253
  %v1146 = vunpack.c.l.b16 %v254
  %v1147 = vunpack.c.h.b16 %v254
  %v1148 = vunpack.c.l.b16 %v255
  %v1149 = vunpack.c.h.b16 %v255
  %v1150 = vunpack.c.l.b16 %v256
  %v1151 = vunpack.c.h.b16 %v256
  %v1152 = vunpack.c.l.b16 %v257
  %v1153 = vunpack.c.h.b16 %v257
  %v1154 = vunpack.c.l.b16 %v258
  %v1155 = vunpack.c.h.b16 %v258
  %v1156 = vunpack.c.l.b16 %v259
  %v1157 = vunpack.c.h.b16 %v259
  %v1158 = vunpack.c.l.b16 %v260
  %v1159 = vunpack.c.h.b16 %v260
  %v1160 = vunpack.c.l.b16 %v261
  %v1161 = vunpack.c.h.b16 %v261
  %v1162 = vunpack.c.l.b16 %v262
  %v1163 = vunpack.c.h.b16 %v262
  %v1164 = vunpack.c.l.b16 %v263
  %v1165 = vunpack.c.h.b16 %v263
  %v1166 = vunpack.c.l.b16 %v264
  %v1167 = vunpack.c.h.b16 %v264
  %v1168 = vunpack.c.l.b16 %v265
  %v1169 = vunpack.c.h.b16 %v265
  %v1170 = vunpack.c.l.b16 %v266
  %v1171 = vunpack.c.h.b16 %v266
  %v1172 = vunpack.c.l.b16 %v267
  %v1173 = vunpack.c.h.b16 %v267
  %v1174 = vunpack.c.l.b16 %v268
  %v1175 = vunpack.c.h.b16 %v268
  %v1176 = vunpack.c.l.b16 %v269
  %v1177 = vunpack.c.h.b16 %v269
  %v1178 = vunpack.c.l.b16 %v270
  %v1179 = vunpack.c.h.b16 %v270
  %v1180 = vunpack.c.l.b16 %v271
  %v1181 = vunpack.c.h.b16 %v271
  %v1182 = vunpack.c.l.b16 %v272
  %v1183 = vunpack.c.h.b16 %v272
  %v1184 = vunpack.c.l.b16 %v273
  %v1185 = vunpack.c.h.b16 %v273
  %v1186 = vunpack.c.l.b16 %v274
  %v1187 = vunpack.c.h.b16 %v274
  %v1188 = vunpack.c.l.b16 %v275
  %v1189 = vunpack.c.h.b16 %v275
  %v1190 = vunpack.c.l.b16 %v276
  %v1191 = vunpack.c.h.b16 %v276
  %v1192 = vunpack.c.l.b16 %v277
  %v1193 = vunpack.c.h.b16 %v277
  %v1194 = vunpack.c.l.b16 %v278
  %v1195 = vunpack.c.h.b16 %v278
  %v1196 = vunpack.c.l.b16 %v279
  %v1197 = vunpack.c.h.b16 %v279
  %v1198 = vunpack.c.l.b16 %v280
  %v1199 = vunpack.c.h.b16 %v280
  %v1200 = vunpack.c.l.b16 %v281
  %v1201 = vunpack.c.h.b16 %v281
  %v1202 = vunpack.c.l.b16 %v282
  %v1203 = vunpack.c.h.b16 %v282
  %v1204 = vunpack.c.l.b16 %v283
  %v1205 = vunpack.c.h.b16 %v283
  %v1206 = vunpack.c.l.b16 %v284
  %v1207 = vunpack.c.h.b16 %v284
  %v1208 = vunpack.c.l.b16 %v285
  %v1209 = vunpack.c.h.b16 %v285
  %v1210 = vunpack.c.l.b16 %v286
  %v1211 = vunpack.c.h.b16 %v286
  %v1212 = vunpack.c.l.b16 %v287
  %v1213 = vunpack.c.h.b16 %v287
  %v1214 = vunpack.c.l.b16 %v288
  %v1215 = vunpack.c.h.b16 %v288
  %v1216 = vunpack.c.l.b16 %v289
  %v1217 = vunpack.c.h.b16 %v289
  %v1218 = vunpack.c.l.b16 %v290
  %v1219 = vunpack.c.h.b16 %v290
  %v1220 = vunpack.c.l.b16 %v291
  %v1221 = vunpack.c.h.b16 %v291
  %v1222 = vunpack.c.l.b16 %v292
  %v1223 = vunpack.c.h.b16 %v292
  %v1224 = vunpack.c.l.b16 %v293
  %v1225 = vunpack.c.h.b16 %v293
  %v1226 = vunpack.c.l.b16 %v294
  %v1227 = vunpack.c.h.b16 %v294
  %v1228 = vunpack.c.l.b16 %v295
  %v1229 = vunpack.c.h.b16 %v295
  %v1230 = vunpack.c.l.b16 %v296
  %v1231 = vunpack.c.h.b16 %v296
  %v1232 = vunpack.c.l.b16 %v297
  %v1233 = vunpack.c.h.b16 %v297
  %v1234 = vunpack.c.l.b16 %v298
  %v1235 = vunpack.c.h.b16 %v298
  %v1236 = vunpack.c.l.b16 %v299
  %v1237 = vunpack.c.h.b16 %v299
  %v1238 = vunpack.c.l.b16 %v300
  %v1239 = vunpack.c.h.b16 %v300
  %v1240 = vunpack.c.l.b16 %v301
  %v1241 = vunpack.c.h.b16 %v301
  %v1242 = vpack.c.b16 %v732, %v730
  %v1243 = vpack.c.b16 %v733, %v731
  %v1244 = vpack.c.b16 %v736, %v734
  %v1245 = vpack.c.b16 %v737, %v735
  %v1246 = vpack.c.b16 %v740, %v738
  %v1247 = vpack.c.b16 %v741, %v739
  %v1248 = vpack.c.b16 %v744, %v742
  %v1249 = vpack.c.b16 %v745, %v743
  %v1250 = vpack.c.b16 %v748, %v746
  %v1251 = vpack.c.b16 %v749, %v747
  %v1252 = vpack.c.b16 %v752, %v750
  %v1253 = vpack.c.b16 %v753, %v751
  %v1254 = vpack.c.b16 %v756, %v754
  %v1255 = vpack.c.b16 %v757, %v755
  %v1256 = vpack.c.b16 %v760, %v758
  %v1257 = vpack.c.b16 %v761, %v759
  %v1258 = vpack.c.b16 %v764, %v762
  %v1259 = vpack.c.b16 %v765, %v763
  %v1260 = vpack.c.b16 %v768, %v766
  %v1261 = vpack.c.b16 %v769, %v767
  %v1262 = vpack.c.b16 %v772, %v770
  %v1263 = vpack.c.b16 %v773, %v771
  %v1264 = vpack.c.b16 %v776, %v774
  %v1265 = vpack.c.b16 %v777, %v775
  %v1266 = vpack.c.b16 %v780, %v778
  %v1267 = vpack.c.b16 %v781, %v779
  %v1268 = vpack.c.b16 %v784, %v782
  %v1269 = vpack.c.b16 %v785, %v783
  %v1270 = vpack.c.b16 %v788, %v786
  %v1271 = vpack.c.b16 %v789, %v787
  %v1272 = vpack.c.b16 %v792, %v790
  %v1273 = vpack.c.b16 %v793, %v791
  %v1274 = vpack.c.b16 %v796, %v794
  %v1275 = vpack.c.b16 %v797, %v795
  %v1276 = vpack.c.b16 %v800, %v798
  %v1277 = vpack.c.b16 %v801, %v799
  %v1278 = vpack.c.b16 %v804, %v802
  %v1279 = vpack.c.b16 %v805, %v803
  %v1280 = vpack.c.b16 %v808, %v806
  %v1281 = vpack.c.b16 %v809, %v807
  %v1282 = vpack.c.b16 %v812, %v810
  %v1283 = vpack.c.b16 %v813, %v811
  %v1284 = vpack.c.b16 %v816, %v814
  %v1285 = vpack.c.b16 %v817, %v815
  %v1286 = vpack.c.b16 %v820, %v818
  %v1287 = vpack.c.b16 %v821, %v819
  %v1288 = vpack.c.b16 %v824, %v822
  %v1289 = vpack.c.b16 %v825, %v823
  %v1290 = vpack.c.b16 %v828, %v826
  %v1291 = vpack.c.b16 %v829, %v827
  %v1292 = vpack.c.b16 %v832, %v830
  %v1293 = vpack.c.b16 %v833, %v831
  %v1294 = vpack.c.b16 %v836, %v834
  %v1295 = vpack.c.b16 %v837, %v835
  %v1296 = vpack.c.b16 %v840, %v838
  %v1297 = vpack.c.b16 %v841, %v839
  %v1298 = vpack.c.b16 %v844, %v842
  %v1299 = vpack.c.b16 %v845, %v843
  %v1300 = vpack.c.b16 %v848, %v846
  %v1301 = vpack.c.b16 %v849, %v847
  %v1302 = vpack.c.b16 %v852, %v850
  %v1303 = vpack.c.b16 %v853, %v851
  %v1304 = vpack.c.b16 %v856, %v854
  %v1305 = vpack.c.b16 %v857, %v855
  %v1306 = vpack.c.b16 %v860, %v858
  %v1307 = vpack.c.b16 %v861, %v859
  %v1308 = vpack.c.b16 %v864, %v862
  %v1309 = vpack.c.b16 %v865, %v863
  %v1310 = vpack.c.b16 %v868, %v866
  %v1311 = vpack.c.b16 %v869, %v867
  %v1312 = vpack.c.b16 %v872, %v870
  %v1313 = vpack.c.b16 %v873, %v871
  %v1314 = vpack.c.b16 %v876, %v874
  %v1315 = vpack.c.b16 %v877, %v875
  %v1316 = vpack.c.b16 %v880, %v878
  %v1317 = vpack.c.b16 %v881, %v879
  %v1318 = vpack.c.b16 %v884, %v882
  %v1319 = vpack.c.b16 %v885, %v883
  %v1320 = vpack.c.b16 %v888, %v886
  %v1321 = vpack.c.b16 %v889, %v887
  %v1322 = vpack.c.b16 %v892, %v890
  %v1323 = vpack.c.b16 %v893, %v891
  %v1324 = vpack.c.b16 %v896, %v894
  %v1325 = vpack.c.b16 %v897, %v895
  %v1326 = vpack.c.b16 %v900, %v898
  %v1327 = vpack.c.b16 %v901, %v899
  %v1328 = vpack.c.b16 %v904, %v902
  %v1329 = vpack.c.b16 %v905, %v903
  %v1330 = vpack.c.b16 %v908, %v906
  %v1331 = vpack.c.b16 %v909, %v907
  %v1332 = vpack.c.b16 %v912, %v910
  %v1333 = vpack.c.b16 %v913, %v911
  %v1334 = vpack.c.b16 %v916, %v914
  %v1335 = vpack.c.b16 %v917, %v915
  %v1336 = vpack.c.b16 %v920, %v918
  %v1337 = vpack.c.b16 %v921, %v919
  %v1338 = vpack.c.b16 %v924, %v922
  %v1339 = vpack.c.b16 %v925, %v923
  %v1340 = vpack.c.b16 %v928, %v926
  %v1341 = vpack.c.b16 %v929, %v927
  %v1342 = vpack.c.b16 %v932, %v930
  %v1343 = vpack.c.b16 %v933, %v931
  %v1344 = vpack.c.b16 %v936, %v934
  %v1345 = vpack.c.b16 %v937, %v935
  %v1346 = vpack.c.b16 %v940, %v938
  %v1347 = vpack.c.b16 %v941, %v939
  %v1348 = vpack.c.b16 %v944, %v942
  %v1349 = vpack.c.b16 %v945, %v943
  %v1350 = vpack.c.b16 %v948, %v946
  %v1351 = vpack.c.b16 %v949, %v947
  %v1352 = vpack.c.b16 %v952, %v950
  %v1353 = vpack.c.b16 %v953, %v951
  %v1354 = vpack.c.b16 %v956, %v954
  %v1355 = vpack.c.b16 %v957, %v955
  %v1356 = vpack.c.b16 %v960, %v958
  %v1357 = vpack.c.b16 %v961, %v959
  %v1358 = vpack.c.b16 %v964, %v962
  %v1359 = vpack.c.b16 %v965, %v963
  %v1360 = vpack.c.b16 %v968, %v966
  %v1361 = vpack.c.b16 %v969, %v967
  %v1362 = vpack.c.b16 %v972, %v970
  %v1363 = vpack.c.b16 %v973, %v971
  %v1364 = vpack.c.b16 %v976, %v974
  %v1365 = vpack.c.b16 %v977, %v975
  %v1366 = vpack.c.b16 %v980, %v978
  %v1367 = vpack.c.b16 %v981, %v979
  %v1368 = vpack.c.b16 %v984, %v982
  %v1369 = vpack.c.b16 %v985, %v983
  %v1370 = vpack.c.b16 %v988, %v986
  %v1371 = vpack.c.b16 %v989, %v987
  %v1372 = vpack.c.b16 %v992, %v990
  %v1373 = vpack.c.b16 %v993, %v991
  %v1374 = vpack.c.b16 %v996, %v994
  %v1375 = vpack.c.b16 %v997, %v995
  %v1376 = vpack.c.b16 %v1000, %v998
  %v1377 = vpack.c.b16 %v1001, %v999
  %v1378 = vpack.c.b16 %v1004, %v1002
  %v1379 = vpack.c.b16 %v1005, %v1003
  %v1380 = vpack.c.b16 %v1008, %v1006
  %v1381 = vpack.c.b16 %v1009, %v1007
  %v1382 = vpack.c.b16 %v1012, %v1010
  %v1383 = vpack.c.b16 %v1013, %v1011
  %v1384 = vpack.c.b16 %v1016, %v1014
  %v1385 = vpack.c.b16 %v1017, %v1015
  %v1386 = vpack.c.b16 %v1020, %v1018
  %v1387 = vpack.c.b16 %v1021, %v1019
  %v1388 = vpack.c.b16 %v1024, %v1022
  %v1389 = vpack.c.b16 %v1025, %v1023
  %v1390 = vpack.c.b16 %v1028, %v1026
  %v1391 = vpack.c.b16 %v1029, %v1027
  %v1392 = vpack.c.b16 %v1032, %v1030
  %v1393 = vpack.c.b16 %v1033, %v1031
  %v1394 = vpack.c.b16 %v1036, %v1034
  %v1395 = vpack.c.b16 %v1037, %v1035
  %v1396 = vpack.c.b16 %v1040, %v1038
  %v1397 = vpack.c.b16 %v1041, %v1039
  %v1398 = vpack.c.b16 %v1044, %v1042
  %v1399 = vpack.c.b16 %v1045, %v1043
  %v1400 = vpack.c.b16 %v1048, %v1046
  %v1401 = vpack.c.b16 %v1049, %v1047
  %v1402 = vpack.c.b16 %v1052, %v1050
  %v1403 = vpack.c.b16 %v1053, %v1051
  %v1404 = vpack.c.b16 %v1056, %v1054
  %v1405 = vpack.c.b16 %v1057, %v1055
  %v1406 = vpack.c.b16 %v1060, %v1058
  %v1407 = vpack.c.b16 %v1061, %v1059
  %v1408 = vpack.c.b16 %v1064, %v1062
  %v1409 = vpack.c.b16 %v1065, %v1063
  %v1410 = vpack.c.b16 %v1068, %v1066
  %v1411 = vpack.c.b16 %v1069, %v1067
  %v1412 = vpack.c.b16 %v1072, %v1070
  %v1413 = vpack.c.b16 %v1073, %v1071
  %v1414 = vpack.c.b16 %v1076, %v1074
  %v1415 = vpack.c.b16 %v1077, %v1075
  %v1416 = vpack.c.b16 %v1080, %v1078
  %v1417 = vpack.c.b16 %v1081, %v1079
  %v1418 = vpack.c.b16 %v1084, %v1082
  %v1419 = vpack.c.b16 %v1085, %v1083
  %v1420 = vpack.c.b16 %v1088, %v1086
  %v1421 = vpack.c.b16 %v1089, %v1087
  %v1422 = vpack.c.b16 %v1092, %v1090
  %v1423 = vpack.c.b16 %v1093, %v1091
  %v1424 = vpack.c.b16 %v1096, %v1094
  %v1425 = vpack.c.b16 %v1097, %v1095
  %v1426 = vpack.c.b16 %v1100, %v1098
  %v1427 = vpack.c.b16 %v1101, %v1099
  %v1428 = vpack.c.b16 %v1104, %v1102
  %v1429 = vpack.c.b16 %v1105, %v1103
  %v1430 = vpack.c.b16 %v1108, %v1106
  %v1431 = vpack.c.b16 %v1109, %v1107
  %v1432 = vpack.c.b16 %v1112, %v1110
  %v1433 = vpack.c.b16 %v1113, %v1111
  %v1434 = vpack.c.b16 %v1116, %v1114
  %v1435 = vpack.c.b16 %v1117, %v1115
  %v1436 = vpack.c.b16 %v1120, %v1118
  %v1437 = vpack.c.b16 %v1121, %v1119
  %v1438 = vpack.c.b16 %v1124, %v1122
  %v1439 = vpack.c.b16 %v1125, %v1123
  %v1440 = vpack.c.b16 %v1128, %v1126
  %v1441 = vpack.c.b16 %v1129, %v1127
  %v1442 = vpack.c.b16 %v1132, %v1130
  %v1443 = vpack.c.b16 %v1133, %v1131
  %v1444 = vpack.c.b16 %v1136, %v1134
  %v1445 = vpack.c.b16 %v1137, %v1135
  %v1446 = vpack.c.b16 %v1140, %v1138
  %v1447 = vpack.c.b16 %v1141, %v1139
  %v1448 = vpack.c.b16 %v1144, %v1142
  %v1449 = vpack.c.b16 %v1145, %v1143
  %v1450 = vpack.c.b16 %v1148, %v1146
  %v1451 = vpack.c.b16 %v1149, %v1147
  %v1452 = vpack.c.b16 %v1152, %v1150
  %v1453 = vpack.c.b16 %v1153, %v1151
  %v1454 = vpack.c.b16 %v1156, %v1154
  %v1455 = vpack.c.b16 %v1157, %v1155
  %v1456 = vpack.c.b16 %v1160, %v1158
  %v1457 = vpack.c.b16 %v1161, %v1159
  %v1458 = vpack.c.b16 %v1164, %v1162
  %v1459 = vpack.c.b16 %v1165, %v1163
  %v1460 = vpack.c.b16 %v1168, %v1166
  %v1461 = vpack.c.b16 %v1169, %v1167
  %v1462 = vpack.c.b16 %v1172, %v1170
  %v1463 = vpack.c.b16 %v1173, %v1171
  %v1464 = vpack.c.b16 %v1176, %v1174
  %v1465 = vpack.c.b16 %v1177, %v1175
  %v1466 = vpack.c.b16 %v1180, %v1178
  %v1467 = vpack.c.b16 %v1181, %v1179
  %v1468 = vpack.c.b16 %v1184, %v1182
  %v1469 = vpack.c.b16 %v1185, %v1183
  %v1470 = vpack.c.b16 %v1188, %v1186
  %v1471 = vpack.c.b16 %v1189, %v1187
  %v1472 = vpack.c.b16 %v1192, %v1190
  %v1473 = vpack.c.b16 %v1193, %v1191
  %v1474 = vpack.c.b16 %v1196, %v1194
  %v1475 = vpack.c.b16 %v1197, %v1195
  %v1476 = vpack.c.b16 %v1200, %v1198
  %v1477 = vpack.c.b16 %v1201, %v1199
  %v1478 = vpack.c.b16 %v1204, %v1202
  %v1479 = vpack.c.b16 %v1205, %v1203
  %v1480 = vpack.c.b16 %v1208, %v1206
  %v1481 = vpack.c.b16 %v1209, %v1207
  %v1482 = vpack.c.b16 %v1212, %v1210
  %v1483 = vpack.c.b16 %v1213, %v1211
  %v1484 = vpack.c.b16 %v1216, %v1214
  %v1485 = vpack.c.b16 %v1217, %v1215
  %v1486 = vpack.c.b16 %v1220, %v1218
  %v1487 = vpack.c.b16 %v1221, %v1219
  %v1488 = vpack.c.b16 %v1224, %v1222
  %v1489 = vpack.c.b16 %v1225, %v1223
  %v1490 = vpack.c.b16 %v1228, %v1226
  %v1491 = vpack.c.b16 %v1229, %v1227
  %v1492 = vpack.c.b16 %v1232, %v1230
  %v1493 = vpack.c.b16 %v1233, %v1231
  %v1494 = vpack.c.b16 %v1236, %v1234
  %v1495 = vpack.c.b16 %v1237, %v1235
  %v1496 = vpack.c.b16 %v1240, %v1238
  %v1497 = vpack.c.b16 %v1241, %v1239
  %1754 = vmatprep.subr.bf16.mxu0 %v1257
  %1755 = vmatpush1.bf16.msra.mxu0 %v1256
  %1756 = vmatprep.subr.bf16.mxu0 %v1255
  %1757 = vmatpush1.bf16.msra.mxu0 %v1254
  %1758 = vmatprep.subr.bf16.mxu0 %v1253
  %1759 = vmatpush1.bf16.msra.mxu0 %v1252
  %1760 = vmatprep.subr.bf16.mxu0 %v1251
  %1761 = vmatpush1.bf16.msra.mxu0 %v1250
  %1762 = vmatprep.subr.bf16.mxu0 %v1249
  %1763 = vmatpush1.bf16.msra.mxu0 %v1248
  %1764 = vmatprep.subr.bf16.mxu0 %v1247
  %1765 = vmatpush1.bf16.msra.mxu0 %v1246
  %1766 = vmatprep.subr.bf16.mxu0 %v1245
  %1767 = vmatpush1.bf16.msra.mxu0 %v1244
  %1768 = vmatprep.subr.bf16.mxu0 %v1243
  %1769 = vmatpush1.bf16.msra.mxu0 %v1242
  %1770 = vmatprep.subr.bf16.mxu0 %v1273
  %1771 = vmatpush2.bf16.msra.mxu0 %v1272
  %1772 = vmatprep.subr.bf16.mxu0 %v1271
  %1773 = vmatpush2.bf16.msra.mxu0 %v1270
  %1774 = vmatprep.subr.bf16.mxu0 %v1269
  %1775 = vmatpush2.bf16.msra.mxu0 %v1268
  %1776 = vmatprep.subr.bf16.mxu0 %v1267
  %1777 = vmatpush2.bf16.msra.mxu0 %v1266
  %1778 = vmatprep.subr.bf16.mxu0 %v1265
  %1779 = vmatpush2.bf16.msra.mxu0 %v1264
  %1780 = vmatprep.subr.bf16.mxu0 %v1263
  %1781 = vmatpush2.bf16.msra.mxu0 %v1262
  %1782 = vmatprep.subr.bf16.mxu0 %v1261
  %1783 = vmatpush2.bf16.msra.mxu0 %v1260
  %1784 = vmatprep.subr.bf16.mxu0 %v1259
  %1785 = vmatpush2.bf16.msra.mxu0 %v1258
  %1786 = vmatprep.mubr.bf16.mxu0 %v411
  %1787 = vmatmul.mubr.bf16.gmra.mxu0 %v410
  %v1788 = vpop.f32.mrf.mxu0
  %v1789 = vadd.f32 %v307, %v1788
  %v1790 = vpop.f32.mrf.mxu0
  %v1791 = vadd.f32 %v311, %v1790
  %v1792 = vpop.f32.mrf.mxu0
  %v1793 = vadd.f32 %v307, %v1792
  %v1794 = vpop.f32.mrf.mxu0
  %v1795 = vadd.f32 %v311, %v1794
  %1796 = vmatprep.mubr.bf16.mxu0 %v427
  %1797 = vmatmul.mubr.bf16.gmra.mxu0 %v426
  %v1798 = vpop.f32.mrf.mxu0
  %v1799 = vadd.f32 %v307, %v1798
  %v1800 = vpop.f32.mrf.mxu0
  %v1801 = vadd.f32 %v311, %v1800
  %v1802 = vpop.f32.mrf.mxu0
  %v1803 = vadd.f32 %v307, %v1802
  %v1804 = vpop.f32.mrf.mxu0
  %v1805 = vadd.f32 %v311, %v1804
  %1806 = vdwg.mxu0
  %1807 = vmatprep.subr.bf16.mxu0 %v1289
  %1808 = vmatpush1.bf16.msra.mxu0 %v1288
  %1809 = vmatprep.subr.bf16.mxu0 %v1287
  %1810 = vmatpush1.bf16.msra.mxu0 %v1286
  %1811 = vmatprep.subr.bf16.mxu0 %v1285
  %1812 = vmatpush1.bf16.msra.mxu0 %v1284
  %1813 = vmatprep.subr.bf16.mxu0 %v1283
  %1814 = vmatpush1.bf16.msra.mxu0 %v1282
  %1815 = vmatprep.subr.bf16.mxu0 %v1281
  %1816 = vmatpush1.bf16.msra.mxu0 %v1280
  %1817 = vmatprep.subr.bf16.mxu0 %v1279
  %1818 = vmatpush1.bf16.msra.mxu0 %v1278
  %1819 = vmatprep.subr.bf16.mxu0 %v1277
  %1820 = vmatpush1.bf16.msra.mxu0 %v1276
  %1821 = vmatprep.subr.bf16.mxu0 %v1275
  %1822 = vmatpush1.bf16.msra.mxu0 %v1274
  %1823 = vmatprep.subr.bf16.mxu0 %v1305
  %1824 = vmatpush2.bf16.msra.mxu0 %v1304
  %1825 = vmatprep.subr.bf16.mxu0 %v1303
  %1826 = vmatpush2.bf16.msra.mxu0 %v1302
  %1827 = vmatprep.subr.bf16.mxu0 %v1301
  %1828 = vmatpush2.bf16.msra.mxu0 %v1300
  %1829 = vmatprep.subr.bf16.mxu0 %v1299
  %1830 = vmatpush2.bf16.msra.mxu0 %v1298
  %1831 = vmatprep.subr.bf16.mxu0 %v1297
  %1832 = vmatpush2.bf16.msra.mxu0 %v1296
  %1833 = vmatprep.subr.bf16.mxu0 %v1295
  %1834 = vmatpush2.bf16.msra.mxu0 %v1294
  %1835 = vmatprep.subr.bf16.mxu0 %v1293
  %1836 = vmatpush2.bf16.msra.mxu0 %v1292
  %1837 = vmatprep.subr.bf16.mxu0 %v1291
  %1838 = vmatpush2.bf16.msra.mxu0 %v1290
  %1839 = vmatprep.mubr.bf16.mxu0 %v413
  %1840 = vmatmul.mubr.bf16.gmra.mxu0 %v412
  %v1841 = vpop.f32.mrf.mxu0
  %v1842 = vadd.f32 %v1789, %v1841
  %v1843 = vpop.f32.mrf.mxu0
  %v1844 = vadd.f32 %v1791, %v1843
  %v1845 = vpop.f32.mrf.mxu0
  %v1846 = vadd.f32 %v1793, %v1845
  %v1847 = vpop.f32.mrf.mxu0
  %v1848 = vadd.f32 %v1795, %v1847
  %1849 = vmatprep.mubr.bf16.mxu0 %v429
  %1850 = vmatmul.mubr.bf16.gmra.mxu0 %v428
  %v1851 = vpop.f32.mrf.mxu0
  %v1852 = vadd.f32 %v1799, %v1851
  %v1853 = vpop.f32.mrf.mxu0
  %v1854 = vadd.f32 %v1801, %v1853
  %v1855 = vpop.f32.mrf.mxu0
  %v1856 = vadd.f32 %v1803, %v1855
  %v1857 = vpop.f32.mrf.mxu0
  %v1858 = vadd.f32 %v1805, %v1857
  %1859 = vdwg.mxu0
  %1860 = vmatprep.subr.bf16.mxu0 %v1321
  %1861 = vmatpush1.bf16.msra.mxu0 %v1320
  %1862 = vmatprep.subr.bf16.mxu0 %v1319
  %1863 = vmatpush1.bf16.msra.mxu0 %v1318
  %1864 = vmatprep.subr.bf16.mxu0 %v1317
  %1865 = vmatpush1.bf16.msra.mxu0 %v1316
  %1866 = vmatprep.subr.bf16.mxu0 %v1315
  %1867 = vmatpush1.bf16.msra.mxu0 %v1314
  %1868 = vmatprep.subr.bf16.mxu0 %v1313
  %1869 = vmatpush1.bf16.msra.mxu0 %v1312
  %1870 = vmatprep.subr.bf16.mxu0 %v1311
  %1871 = vmatpush1.bf16.msra.mxu0 %v1310
  %1872 = vmatprep.subr.bf16.mxu0 %v1309
  %1873 = vmatpush1.bf16.msra.mxu0 %v1308
  %1874 = vmatprep.subr.bf16.mxu0 %v1307
  %1875 = vmatpush1.bf16.msra.mxu0 %v1306
  %1876 = vmatprep.subr.bf16.mxu0 %v1337
  %1877 = vmatpush2.bf16.msra.mxu0 %v1336
  %1878 = vmatprep.subr.bf16.mxu0 %v1335
  %1879 = vmatpush2.bf16.msra.mxu0 %v1334
  %1880 = vmatprep.subr.bf16.mxu0 %v1333
  %1881 = vmatpush2.bf16.msra.mxu0 %v1332
  %1882 = vmatprep.subr.bf16.mxu0 %v1331
  %1883 = vmatpush2.bf16.msra.mxu0 %v1330
  %1884 = vmatprep.subr.bf16.mxu0 %v1329
  %1885 = vmatpush2.bf16.msra.mxu0 %v1328
  %1886 = vmatprep.subr.bf16.mxu0 %v1327
  %1887 = vmatpush2.bf16.msra.mxu0 %v1326
  %1888 = vmatprep.subr.bf16.mxu0 %v1325
  %1889 = vmatpush2.bf16.msra.mxu0 %v1324
  %1890 = vmatprep.subr.bf16.mxu0 %v1323
  %1891 = vmatpush2.bf16.msra.mxu0 %v1322
  %1892 = vmatprep.mubr.bf16.mxu0 %v415
  %1893 = vmatmul.mubr.bf16.gmra.mxu0 %v414
  %v1894 = vpop.f32.mrf.mxu0
  %v1895 = vadd.f32 %v1842, %v1894
  %v1896 = vpop.f32.mrf.mxu0
  %v1897 = vadd.f32 %v1844, %v1896
  %v1898 = vpop.f32.mrf.mxu0
  %v1899 = vadd.f32 %v1846, %v1898
  %v1900 = vpop.f32.mrf.mxu0
  %v1901 = vadd.f32 %v1848, %v1900
  %1902 = vmatprep.mubr.bf16.mxu0 %v431
  %1903 = vmatmul.mubr.bf16.gmra.mxu0 %v430
  %v1904 = vpop.f32.mrf.mxu0
  %v1905 = vadd.f32 %v1852, %v1904
  %v1906 = vpop.f32.mrf.mxu0
  %v1907 = vadd.f32 %v1854, %v1906
  %v1908 = vpop.f32.mrf.mxu0
  %v1909 = vadd.f32 %v1856, %v1908
  %v1910 = vpop.f32.mrf.mxu0
  %v1911 = vadd.f32 %v1858, %v1910
  %1912 = vdwg.mxu0
  %1913 = vmatprep.subr.bf16.mxu0 %v1353
  %1914 = vmatpush1.bf16.msra.mxu0 %v1352
  %1915 = vmatprep.subr.bf16.mxu0 %v1351
  %1916 = vmatpush1.bf16.msra.mxu0 %v1350
  %1917 = vmatprep.subr.bf16.mxu0 %v1349
  %1918 = vmatpush1.bf16.msra.mxu0 %v1348
  %1919 = vmatprep.subr.bf16.mxu0 %v1347
  %1920 = vmatpush1.bf16.msra.mxu0 %v1346
  %1921 = vmatprep.subr.bf16.mxu0 %v1345
  %1922 = vmatpush1.bf16.msra.mxu0 %v1344
  %1923 = vmatprep.subr.bf16.mxu0 %v1343
  %1924 = vmatpush1.bf16.msra.mxu0 %v1342
  %1925 = vmatprep.subr.bf16.mxu0 %v1341
  %1926 = vmatpush1.bf16.msra.mxu0 %v1340
  %1927 = vmatprep.subr.bf16.mxu0 %v1339
  %1928 = vmatpush1.bf16.msra.mxu0 %v1338
  %1929 = vmatprep.subr.bf16.mxu0 %v1369
  %1930 = vmatpush2.bf16.msra.mxu0 %v1368
  %1931 = vmatprep.subr.bf16.mxu0 %v1367
  %1932 = vmatpush2.bf16.msra.mxu0 %v1366
  %1933 = vmatprep.subr.bf16.mxu0 %v1365
  %1934 = vmatpush2.bf16.msra.mxu0 %v1364
  %1935 = vmatprep.subr.bf16.mxu0 %v1363
  %1936 = vmatpush2.bf16.msra.mxu0 %v1362
  %1937 = vmatprep.subr.bf16.mxu0 %v1361
  %1938 = vmatpush2.bf16.msra.mxu0 %v1360
  %1939 = vmatprep.subr.bf16.mxu0 %v1359
  %1940 = vmatpush2.bf16.msra.mxu0 %v1358
  %1941 = vmatprep.subr.bf16.mxu0 %v1357
  %1942 = vmatpush2.bf16.msra.mxu0 %v1356
  %1943 = vmatprep.subr.bf16.mxu0 %v1355
  %1944 = vmatpush2.bf16.msra.mxu0 %v1354
  %1945 = vmatprep.mubr.bf16.mxu0 %v417
  %1946 = vmatmul.mubr.bf16.gmra.mxu0 %v416
  %v1947 = vpop.f32.mrf.mxu0
  %v1948 = vadd.f32 %v1895, %v1947
  %v1949 = vpop.f32.mrf.mxu0
  %v1950 = vadd.f32 %v1897, %v1949
  %v1951 = vpop.f32.mrf.mxu0
  %v1952 = vadd.f32 %v1899, %v1951
  %v1953 = vpop.f32.mrf.mxu0
  %v1954 = vadd.f32 %v1901, %v1953
  %1955 = vmatprep.mubr.bf16.mxu0 %v433
  %1956 = vmatmul.mubr.bf16.gmra.mxu0 %v432
  %v1957 = vpop.f32.mrf.mxu0
  %v1958 = vadd.f32 %v1905, %v1957
  %v1959 = vpop.f32.mrf.mxu0
  %v1960 = vadd.f32 %v1907, %v1959
  %v1961 = vpop.f32.mrf.mxu0
  %v1962 = vadd.f32 %v1909, %v1961
  %v1963 = vpop.f32.mrf.mxu0
  %v1964 = vadd.f32 %v1911, %v1963
  %1965 = vdwg.mxu0
  %1966 = vmatprep.subr.bf16.mxu0 %v1385
  %1967 = vmatpush1.bf16.msra.mxu0 %v1384
  %1968 = vmatprep.subr.bf16.mxu0 %v1383
  %1969 = vmatpush1.bf16.msra.mxu0 %v1382
  %1970 = vmatprep.subr.bf16.mxu0 %v1381
  %1971 = vmatpush1.bf16.msra.mxu0 %v1380
  %1972 = vmatprep.subr.bf16.mxu0 %v1379
  %1973 = vmatpush1.bf16.msra.mxu0 %v1378
  %1974 = vmatprep.subr.bf16.mxu0 %v1377
  %1975 = vmatpush1.bf16.msra.mxu0 %v1376
  %1976 = vmatprep.subr.bf16.mxu0 %v1375
  %1977 = vmatpush1.bf16.msra.mxu0 %v1374
  %1978 = vmatprep.subr.bf16.mxu0 %v1373
  %1979 = vmatpush1.bf16.msra.mxu0 %v1372
  %1980 = vmatprep.subr.bf16.mxu0 %v1371
  %1981 = vmatpush1.bf16.msra.mxu0 %v1370
  %1982 = vmatprep.subr.bf16.mxu0 %v1401
  %1983 = vmatpush2.bf16.msra.mxu0 %v1400
  %1984 = vmatprep.subr.bf16.mxu0 %v1399
  %1985 = vmatpush2.bf16.msra.mxu0 %v1398
  %1986 = vmatprep.subr.bf16.mxu0 %v1397
  %1987 = vmatpush2.bf16.msra.mxu0 %v1396
  %1988 = vmatprep.subr.bf16.mxu0 %v1395
  %1989 = vmatpush2.bf16.msra.mxu0 %v1394
  %1990 = vmatprep.subr.bf16.mxu0 %v1393
  %1991 = vmatpush2.bf16.msra.mxu0 %v1392
  %1992 = vmatprep.subr.bf16.mxu0 %v1391
  %1993 = vmatpush2.bf16.msra.mxu0 %v1390
  %1994 = vmatprep.subr.bf16.mxu0 %v1389
  %1995 = vmatpush2.bf16.msra.mxu0 %v1388
  %1996 = vmatprep.subr.bf16.mxu0 %v1387
  %1997 = vmatpush2.bf16.msra.mxu0 %v1386
  %1998 = vmatprep.mubr.bf16.mxu0 %v419
  %1999 = vmatmul.mubr.bf16.gmra.mxu0 %v418
  %v2000 = vpop.f32.mrf.mxu0
  %v2001 = vadd.f32 %v1948, %v2000
  %v2002 = vpop.f32.mrf.mxu0
  %v2003 = vadd.f32 %v1950, %v2002
  %v2004 = vpop.f32.mrf.mxu0
  %v2005 = vadd.f32 %v1952, %v2004
  %v2006 = vpop.f32.mrf.mxu0
  %v2007 = vadd.f32 %v1954, %v2006
  %2008 = vmatprep.mubr.bf16.mxu0 %v435
  %2009 = vmatmul.mubr.bf16.gmra.mxu0 %v434
  %v2010 = vpop.f32.mrf.mxu0
  %v2011 = vadd.f32 %v1958, %v2010
  %v2012 = vpop.f32.mrf.mxu0
  %v2013 = vadd.f32 %v1960, %v2012
  %v2014 = vpop.f32.mrf.mxu0
  %v2015 = vadd.f32 %v1962, %v2014
  %v2016 = vpop.f32.mrf.mxu0
  %v2017 = vadd.f32 %v1964, %v2016
  %2018 = vdwg.mxu0
  %2019 = vmatprep.subr.bf16.mxu0 %v1417
  %2020 = vmatpush1.bf16.msra.mxu0 %v1416
  %2021 = vmatprep.subr.bf16.mxu0 %v1415
  %2022 = vmatpush1.bf16.msra.mxu0 %v1414
  %2023 = vmatprep.subr.bf16.mxu0 %v1413
  %2024 = vmatpush1.bf16.msra.mxu0 %v1412
  %2025 = vmatprep.subr.bf16.mxu0 %v1411
  %2026 = vmatpush1.bf16.msra.mxu0 %v1410
  %2027 = vmatprep.subr.bf16.mxu0 %v1409
  %2028 = vmatpush1.bf16.msra.mxu0 %v1408
  %2029 = vmatprep.subr.bf16.mxu0 %v1407
  %2030 = vmatpush1.bf16.msra.mxu0 %v1406
  %2031 = vmatprep.subr.bf16.mxu0 %v1405
  %2032 = vmatpush1.bf16.msra.mxu0 %v1404
  %2033 = vmatprep.subr.bf16.mxu0 %v1403
  %2034 = vmatpush1.bf16.msra.mxu0 %v1402
  %2035 = vmatprep.subr.bf16.mxu0 %v1433
  %2036 = vmatpush2.bf16.msra.mxu0 %v1432
  %2037 = vmatprep.subr.bf16.mxu0 %v1431
  %2038 = vmatpush2.bf16.msra.mxu0 %v1430
  %2039 = vmatprep.subr.bf16.mxu0 %v1429
  %2040 = vmatpush2.bf16.msra.mxu0 %v1428
  %2041 = vmatprep.subr.bf16.mxu0 %v1427
  %2042 = vmatpush2.bf16.msra.mxu0 %v1426
  %2043 = vmatprep.subr.bf16.mxu0 %v1425
  %2044 = vmatpush2.bf16.msra.mxu0 %v1424
  %2045 = vmatprep.subr.bf16.mxu0 %v1423
  %2046 = vmatpush2.bf16.msra.mxu0 %v1422
  %2047 = vmatprep.subr.bf16.mxu0 %v1421
  %2048 = vmatpush2.bf16.msra.mxu0 %v1420
  %2049 = vmatprep.subr.bf16.mxu0 %v1419
  %2050 = vmatpush2.bf16.msra.mxu0 %v1418
  %2051 = vmatprep.mubr.bf16.mxu0 %v421
  %2052 = vmatmul.mubr.bf16.gmra.mxu0 %v420
  %v2053 = vpop.f32.mrf.mxu0
  %v2054 = vadd.f32 %v2001, %v2053
  %v2055 = vpop.f32.mrf.mxu0
  %v2056 = vadd.f32 %v2003, %v2055
  %v2057 = vpop.f32.mrf.mxu0
  %v2058 = vadd.f32 %v2005, %v2057
  %v2059 = vpop.f32.mrf.mxu0
  %v2060 = vadd.f32 %v2007, %v2059
  %2061 = vmatprep.mubr.bf16.mxu0 %v437
  %2062 = vmatmul.mubr.bf16.gmra.mxu0 %v436
  %v2063 = vpop.f32.mrf.mxu0
  %v2064 = vadd.f32 %v2011, %v2063
  %v2065 = vpop.f32.mrf.mxu0
  %v2066 = vadd.f32 %v2013, %v2065
  %v2067 = vpop.f32.mrf.mxu0
  %v2068 = vadd.f32 %v2015, %v2067
  %v2069 = vpop.f32.mrf.mxu0
  %v2070 = vadd.f32 %v2017, %v2069
  %2071 = vdwg.mxu0
  %2072 = vmatprep.subr.bf16.mxu0 %v1449
  %2073 = vmatpush1.bf16.msra.mxu0 %v1448
  %2074 = vmatprep.subr.bf16.mxu0 %v1447
  %2075 = vmatpush1.bf16.msra.mxu0 %v1446
  %2076 = vmatprep.subr.bf16.mxu0 %v1445
  %2077 = vmatpush1.bf16.msra.mxu0 %v1444
  %2078 = vmatprep.subr.bf16.mxu0 %v1443
  %2079 = vmatpush1.bf16.msra.mxu0 %v1442
  %2080 = vmatprep.subr.bf16.mxu0 %v1441
  %2081 = vmatpush1.bf16.msra.mxu0 %v1440
  %2082 = vmatprep.subr.bf16.mxu0 %v1439
  %2083 = vmatpush1.bf16.msra.mxu0 %v1438
  %2084 = vmatprep.subr.bf16.mxu0 %v1437
  %2085 = vmatpush1.bf16.msra.mxu0 %v1436
  %2086 = vmatprep.subr.bf16.mxu0 %v1435
  %2087 = vmatpush1.bf16.msra.mxu0 %v1434
  %2088 = vmatprep.subr.bf16.mxu0 %v1465
  %2089 = vmatpush2.bf16.msra.mxu0 %v1464
  %2090 = vmatprep.subr.bf16.mxu0 %v1463
  %2091 = vmatpush2.bf16.msra.mxu0 %v1462
  %2092 = vmatprep.subr.bf16.mxu0 %v1461
  %2093 = vmatpush2.bf16.msra.mxu0 %v1460
  %2094 = vmatprep.subr.bf16.mxu0 %v1459
  %2095 = vmatpush2.bf16.msra.mxu0 %v1458
  %2096 = vmatprep.subr.bf16.mxu0 %v1457
  %2097 = vmatpush2.bf16.msra.mxu0 %v1456
  %2098 = vmatprep.subr.bf16.mxu0 %v1455
  %2099 = vmatpush2.bf16.msra.mxu0 %v1454
  %2100 = vmatprep.subr.bf16.mxu0 %v1453
  %2101 = vmatpush2.bf16.msra.mxu0 %v1452
  %2102 = vmatprep.subr.bf16.mxu0 %v1451
  %2103 = vmatpush2.bf16.msra.mxu0 %v1450
  %2104 = vmatprep.mubr.bf16.mxu0 %v423
  %2105 = vmatmul.mubr.bf16.gmra.mxu0 %v422
  %v2106 = vpop.f32.mrf.mxu0
  %v2107 = vadd.f32 %v2054, %v2106
  %v2108 = vpop.f32.mrf.mxu0
  %v2109 = vadd.f32 %v2056, %v2108
  %v2110 = vpop.f32.mrf.mxu0
  %v2111 = vadd.f32 %v2058, %v2110
  %v2112 = vpop.f32.mrf.mxu0
  %v2113 = vadd.f32 %v2060, %v2112
  %2114 = vmatprep.mubr.bf16.mxu0 %v439
  %2115 = vmatmul.mubr.bf16.gmra.mxu0 %v438
  %v2116 = vpop.f32.mrf.mxu0
  %v2117 = vadd.f32 %v2064, %v2116
  %v2118 = vpop.f32.mrf.mxu0
  %v2119 = vadd.f32 %v2066, %v2118
  %v2120 = vpop.f32.mrf.mxu0
  %v2121 = vadd.f32 %v2068, %v2120
  %v2122 = vpop.f32.mrf.mxu0
  %v2123 = vadd.f32 %v2070, %v2122
  %2124 = vdwg.mxu0
  %2125 = vmatprep.subr.bf16.mxu0 %v1481
  %2126 = vmatpush1.bf16.msra.mxu0 %v1480
  %2127 = vmatprep.subr.bf16.mxu0 %v1479
  %2128 = vmatpush1.bf16.msra.mxu0 %v1478
  %2129 = vmatprep.subr.bf16.mxu0 %v1477
  %2130 = vmatpush1.bf16.msra.mxu0 %v1476
  %2131 = vmatprep.subr.bf16.mxu0 %v1475
  %2132 = vmatpush1.bf16.msra.mxu0 %v1474
  %2133 = vmatprep.subr.bf16.mxu0 %v1473
  %2134 = vmatpush1.bf16.msra.mxu0 %v1472
  %2135 = vmatprep.subr.bf16.mxu0 %v1471
  %2136 = vmatpush1.bf16.msra.mxu0 %v1470
  %2137 = vmatprep.subr.bf16.mxu0 %v1469
  %2138 = vmatpush1.bf16.msra.mxu0 %v1468
  %2139 = vmatprep.subr.bf16.mxu0 %v1467
  %2140 = vmatpush1.bf16.msra.mxu0 %v1466
  %2141 = vmatprep.subr.bf16.mxu0 %v1497
  %2142 = vmatpush2.bf16.msra.mxu0 %v1496
  %2143 = vmatprep.subr.bf16.mxu0 %v1495
  %2144 = vmatpush2.bf16.msra.mxu0 %v1494
  %2145 = vmatprep.subr.bf16.mxu0 %v1493
  %2146 = vmatpush2.bf16.msra.mxu0 %v1492
  %2147 = vmatprep.subr.bf16.mxu0 %v1491
  %2148 = vmatpush2.bf16.msra.mxu0 %v1490
  %2149 = vmatprep.subr.bf16.mxu0 %v1489
  %2150 = vmatpush2.bf16.msra.mxu0 %v1488
  %2151 = vmatprep.subr.bf16.mxu0 %v1487
  %2152 = vmatpush2.bf16.msra.mxu0 %v1486
  %2153 = vmatprep.subr.bf16.mxu0 %v1485
  %2154 = vmatpush2.bf16.msra.mxu0 %v1484
  %2155 = vmatprep.subr.bf16.mxu0 %v1483
  %2156 = vmatpush2.bf16.msra.mxu0 %v1482
  %2157 = vmatprep.mubr.bf16.mxu0 %v425
  %2158 = vmatmul.mubr.bf16.gmra.mxu0 %v424
  %v2159 = vpop.f32.mrf.mxu0
  %v2160 = vadd.f32 %v2107, %v2159
  %v2161 = vpop.f32.mrf.mxu0
  %v2162 = vadd.f32 %v2109, %v2161
  %v2163 = vpop.f32.mrf.mxu0
  %v2164 = vadd.f32 %v2111, %v2163
  %v2165 = vpop.f32.mrf.mxu0
  %v2166 = vadd.f32 %v2113, %v2165
  %2167 = vmatprep.mubr.bf16.mxu0 %v441
  %2168 = vmatmul.mubr.bf16.gmra.mxu0 %v440
  %v2169 = vpop.f32.mrf.mxu0
  %v2170 = vadd.f32 %v2117, %v2169
  %v2171 = vpop.f32.mrf.mxu0
  %v2172 = vadd.f32 %v2119, %v2171
  %v2173 = vpop.f32.mrf.mxu0
  %v2174 = vadd.f32 %v2121, %v2173
  %v2175 = vpop.f32.mrf.mxu0
  %v2176 = vadd.f32 %v2123, %v2175
  %2177 = vdwg.mxu0
  %v2178 = vmul.f32 %v2160, 0.2
  %v2179 = vmul.f32 %v2162, 0.2
  %v2180 = vmul.f32 %v2164, 0.2
  %v2181 = vmul.f32 %v2166, 0.2
  %v2182 = vmul.f32 %v2170, 0.2
  %v2183 = vmul.f32 %v2172, 0.2
  %v2184 = vmul.f32 %v2174, 0.2
  %v2185 = vmul.f32 %v2176, 0.2
  %v2186 = vmax.f32 %v2160, %v2178
  %v2187 = vmax.f32 %v2162, %v2179
  %v2188 = vmax.f32 %v2164, %v2180
  %v2189 = vmax.f32 %v2166, %v2181
  %v2190 = vmax.f32 %v2170, %v2182
  %v2191 = vmax.f32 %v2172, %v2183
  %v2192 = vmax.f32 %v2174, %v2184
  %v2193 = vmax.f32 %v2176, %v2185
  %v2194 = vpack.c.bf16 %v2188, %v2186
  %v2195 = vpack.c.bf16 %v2189, %v2187
  %v2196 = vpack.c.bf16 %v2192, %v2190
  %v2197 = vpack.c.bf16 %v2193, %v2191
  %v2202 = vunpack.c.l.b16 %v2194
  %v2203 = vunpack.c.l.b16 %v2195
  %v2204 = vunpack.c.h.b16 %v2194
  %v2205 = vunpack.c.h.b16 %v2195
  %v2206 = vunpack.c.l.b16 %v2196
  %v2207 = vunpack.c.l.b16 %v2197
  %v2208 = vunpack.c.h.b16 %v2196
  %v2209 = vunpack.c.h.b16 %v2197
  %v2210 = vpack.c.b16 %v2203, %v2202
  %v2211 = vpack.c.b16 %v2205, %v2204
  %v2212 = vpack.c.b16 %v2207, %v2206
  %v2213 = vpack.c.b16 %v2209, %v2208
  %2218 = vst [vmem:[%s3] sm:$0xff] %v2210
  %2219 = vst [vmem:[%s3 + $0x8] sm:$0xff] %v2211
  %2220 = vst [vmem:[%s3 + $0x10] sm:$0xff] %v2212
  %2221 = vst [vmem:[%s3 + $0x18] sm:$0xff] %v2213
  // Predicated region
  $region14: #{net_discriminator.7} parent=0 // pred_check
    _
  $region15: #{net_discriminator.7} parent=0 // pred_check_branch
    %2223 = sbr.rel (0) target = $region17
  $region16: #{net_discriminator.7} parent=0 // pred_region
    _
  $region17: #{net_discriminator.7} parent=0 // pred_fallthru
    _
  // Predicated region
  $region18: #{net_discriminator.7} parent=0 // pred_check
    _
  $region19: #{net_discriminator.7} parent=0 // pred_check_branch
    %2225 = sbr.rel (0) target = $region21
  $region20: #{net_discriminator.7} parent=0 // pred_region
    _
  $region21: #{net_discriminator.7} parent=0 // pred_fallthru
    _

// kernel: net_discriminator.8
$region0: #{net_discriminator.8}
  #allocation0 [shape = 'u32[]', space=smem, size = 0x4, offset = 0x4, fixed_abs, tag = 'smem constant byte address 0x4 - core index']
  #allocation1 [shape = 'u32[144,128]{1,0:T(1,128)}', space=vmem, size = 0x12000, scoped, tag = 'internal scratch']
  #allocation2 [shape = 'f32[8,256]{1,0:T(8,128)}', space=vmem, size = 0x2000, scoped, tag = 'scratch operand']
  %s0 = inlined_call_operand.vmem [shape: bf16[8,4096], index: 0, kind: input, shape index: {}]
  %s1 = inlined_call_operand.vmem [shape: bf16[4096,512], index: 1, kind: input, shape index: {}]
  %s2 = inlined_call_operand.vmem [shape: f32[1,512], index: 2, kind: input, shape index: {}]
  %s3 = inlined_call_operand.vmem [shape: bf16[8,512], index: 3, kind: output, shape index: {}]
  %s4 = sld [smem:[#allocation0]]
  $region91: #{net_discriminator.8} parent=0
    _
  %s6 = ssub.s32 1, %s4
  %s7 = scalar_select 0, %s6, %s4
  $region1: #{net_discriminator.8} parent=0
    #allocation3 [shape = 'u8[2097152]{0}', space=vmem, size = 0x200000, scoped, tag = 'input window, operand 1']
    loop: start=0, step=1, limit=6
    $region2: #{net_discriminator.8} parent=1 // loop_pre_header
      _
    $region3: #{net_discriminator.8} parent=1 // loop_header
      %s9 = sphi 0, %s13
      %p10 = scmp.ge.s32.totalorder %s9, 6
      %s16 = sphi 0, %s35
      %s17 = sphi 0, %s31
      %s18 = sphi 0, %s27
      %s19 = sphi 0, %s16
      %s20 = sphi 0, %s17
      %s21 = sphi 0, %s18
      %s22 = sphi 0, %s19
      %s23 = sphi 0, %s20
      %s24 = sphi 0, %s21
      %s40 = sphi 0, %s42
      %s43 = sphi 0, %s40
      %s44 = sphi 0, %s43
      %s60 = sphi 0, %s44
      %s68 = sphi 0, %s70
      %s71 = sphi 0, %s68
      %s72 = sphi 0, %s71
      %s88 = sphi 0, %s72
      %s94 = sphi 0, %s96
      %s97 = sphi 0, %s94
      %s98 = sphi 0, %s97
      %s114 = sphi 0, %s98
      %s122 = sphi 0, %s124
      %s125 = sphi 0, %s122
      %s126 = sphi 0, %s125
      %s142 = sphi 0, %s126
    $region4: #{net_discriminator.8} parent=1 // loop_header_branch
      %12 = sbr.rel (%p10) target = $region8
    $region5: #{net_discriminator.8} parent=1 // loop_body
      %s14 = ssub.s32 %s9, 1
      %s15 = ssub.s32 %s9, 2
      %s25 = sadd.s32 1, %s18
      %p26 = scmp.ge.s32.totalorder %s25, 2
      %s27 = scalar_select %p26, 0, %s25
      %s28 = sadd.s32 1, %s17
      %s29 = scalar_select %p26, %s28, %s17
      %p30 = scmp.ge.s32.totalorder %s29, 2
      %s31 = scalar_select %p30, 0, %s29
      %s32 = sadd.s32 1, %s16
      %s33 = scalar_select %p30, %s32, %s16
      %p34 = scmp.ge.s32.totalorder %s33, 1
      %s35 = scalar_select %p34, 0, %s33
      %s36 = ssub.s32 %s16, %s35
      %s37 = ssub.s32 %s18, %s27
      %s38 = sor.u32 %s36, %s37
      %p39 = scmp.eq.s32.totalorder %s38, 0
      %s41 = sadd.s32 %s40, 1
      %s42 = scalar_select %p39, %s40, %s41
      %p45 = pneg %p39
      %p46 = scmp.eq.s32.totalorder %s9, 3
      %p47 = por %p45, %p46
      %p48 = scmp.ne.s32.totalorder %s40, %s43
      %p49 = scmp.eq.s32.totalorder %s9, 0
      %p50 = por %p48, %p49
      %p51 = scmp.ne.s32.totalorder %s40, %s43
      %p52 = scmp.eq.s32.totalorder %s14, 3
      %p53 = por %p51, %p52
      %p54 = scmp.ne.s32.totalorder %s43, %s44
      %p55 = scmp.eq.s32.totalorder %s14, 0
      %p56 = por %p54, %p55
      %p57 = scmp.ne.s32.totalorder %s43, %s44
      %p58 = scmp.eq.s32.totalorder %s15, 3
      %p59 = por %p57, %p58
      %p61 = scmp.ne.s32.totalorder %s44, %s60
      %p62 = scmp.eq.s32.totalorder %s15, 0
      %p63 = por %p61, %p62
      %s64 = ssub.s32 %s18, %s27
      %s65 = ssub.s32 %s17, %s31
      %s66 = sor.u32 %s64, %s65
      %p67 = scmp.eq.s32.totalorder %s66, 0
      %s69 = sadd.s32 %s68, 1
      %s70 = scalar_select %p67, %s68, %s69
      %p73 = pneg %p67
      %p74 = scmp.eq.s32.totalorder %s9, 3
      %p75 = por %p73, %p74
      %p76 = scmp.ne.s32.totalorder %s68, %s71
      %p77 = scmp.eq.s32.totalorder %s9, 0
      %p78 = por %p76, %p77
      %p79 = scmp.ne.s32.totalorder %s68, %s71
      %p80 = scmp.eq.s32.totalorder %s14, 3
      %p81 = por %p79, %p80
      %p82 = scmp.ne.s32.totalorder %s71, %s72
      %p83 = scmp.eq.s32.totalorder %s14, 0
      %p84 = por %p82, %p83
      %p85 = scmp.ne.s32.totalorder %s71, %s72
      %p86 = scmp.eq.s32.totalorder %s15, 3
      %p87 = por %p85, %p86
      %p89 = scmp.ne.s32.totalorder %s72, %s88
      %p90 = scmp.eq.s32.totalorder %s15, 0
      %p91 = por %p89, %p90
      %s92 = ssub.s32 %s17, %s31
      %p93 = scmp.eq.s32.totalorder %s92, 0
      %s95 = sadd.s32 %s94, 1
      %s96 = scalar_select %p93, %s94, %s95
      %p99 = pneg %p93
      %p100 = scmp.eq.s32.totalorder %s9, 3
      %p101 = por %p99, %p100
      %p102 = scmp.ne.s32.totalorder %s94, %s97
      %p103 = scmp.eq.s32.totalorder %s9, 0
      %p104 = por %p102, %p103
      %p105 = scmp.ne.s32.totalorder %s94, %s97
      %p106 = scmp.eq.s32.totalorder %s14, 3
      %p107 = por %p105, %p106
      %p108 = scmp.ne.s32.totalorder %s97, %s98
      %p109 = scmp.eq.s32.totalorder %s14, 0
      %p110 = por %p108, %p109
      %p111 = scmp.ne.s32.totalorder %s97, %s98
      %p112 = scmp.eq.s32.totalorder %s15, 3
      %p113 = por %p111, %p112
      %p115 = scmp.ne.s32.totalorder %s98, %s114
      %p116 = scmp.eq.s32.totalorder %s15, 0
      %p117 = por %p115, %p116
      %s118 = ssub.s32 %s16, %s35
      %s119 = ssub.s32 %s17, %s31
      %s120 = sor.u32 %s118, %s119
      %p121 = scmp.eq.s32.totalorder %s120, 0
      %s123 = sadd.s32 %s122, 1
      %s124 = scalar_select %p121, %s122, %s123
      %p127 = pneg %p121
      %p128 = scmp.eq.s32.totalorder %s9, 3
      %p129 = por %p127, %p128
      %p130 = scmp.ne.s32.totalorder %s122, %s125
      %p131 = scmp.eq.s32.totalorder %s9, 0
      %p132 = por %p130, %p131
      %p133 = scmp.ne.s32.totalorder %s122, %s125
      %p134 = scmp.eq.s32.totalorder %s14, 3
      %p135 = por %p133, %p134
      %p136 = scmp.ne.s32.totalorder %s125, %s126
      %p137 = scmp.eq.s32.totalorder %s14, 0
      %p138 = por %p136, %p137
      %p139 = scmp.ne.s32.totalorder %s125, %s126
      %p140 = scmp.eq.s32.totalorder %s15, 3
      %p141 = por %p139, %p140
      %p143 = scmp.ne.s32.totalorder %s126, %s142
      %p144 = scmp.eq.s32.totalorder %s15, 0
      %p145 = por %p143, %p144
      %p146 = scmp.le.s32.totalorder 1, %s9
      %p147 = scmp.lt.s32.totalorder %s9, 5
      %p148 = pnand %p146, %p147
      %p149 = pneg %p148
      // Predicated region
      $region9: #{net_discriminator.8} parent=5 // pred_check
        _
      $region10: #{net_discriminator.8} parent=5 // pred_check_branch
        %151 = sbr.rel (%p148) target = $region12
      $region11: #{net_discriminator.8} parent=5 // pred_region
        %s152 = ssub.s32 %s9, 1
      $region12: #{net_discriminator.8} parent=5 // pred_fallthru
        _
      %p153 = scmp.lt.s32.totalorder %s9, 4
      // Predicated region
      $region13: #{net_discriminator.8} parent=5 // pred_check
        %p154 = pneg %p153
      $region14: #{net_discriminator.8} parent=5 // pred_check_branch
        %156 = sbr.rel (%p154) target = $region16
      $region15: #{net_discriminator.8} parent=5 // pred_region
        // Predicated region
        $region17: #{net_discriminator.8} parent=15 // pred_check
          %p157 = pneg %p50
        $region18: #{net_discriminator.8} parent=15 // pred_check_branch
          %159 = sbr.rel (%p157) target = $region20
        $region19: #{net_discriminator.8} parent=15 // pred_region
          %s160 = smul.u32 16, %s18
          %p161 = scmp.lt.s32.totalorder %s16, 0
          %s162 = scalar_select %p161, %s16, 0
          %p163 = scmp.lt.s32.totalorder %s160, 31
          %s164 = scalar_select %p163, %s160, 31
          %s165 = smul.addr %s162, 32
          %s166 = sadd.s32 %s164, %s165
          %s167 = smul.addr %s166, 4
          %s168 = scalar_lea.vmem %s0, %s167
          %s169 = smul.u32 16, %s18
        $region20: #{net_discriminator.8} parent=15 // pred_fallthru
          _
        // Predicated region
        $region21: #{net_discriminator.8} parent=15 // pred_check
          %p170 = pneg %p78
        $region22: #{net_discriminator.8} parent=15 // pred_check_branch
          %172 = sbr.rel (%p170) target = $region24
        $region23: #{net_discriminator.8} parent=15 // pred_region
          %s173 = sand.u32 %s68, 1
          %s174 = sand.u32 %s68, 1
          %s175 = smul.addr %s174, 2048
          %s176 = scalar_lea.vmem [#allocation3], %s175
          %s177 = smul.u32 256, %s18
          %s178 = smul.u32 2, %s17
          %s179 = smul.addr %s177, 4
          %s180 = sadd.s32 %s178, %s179
          %s181 = smul.addr %s180, 4
          %s182 = scalar_lea.vmem %s1, %s181
          // Predicated region
          $region25: #{net_discriminator.8} parent=23 // pred_check
            _
          $region26: #{net_discriminator.8} parent=23 // pred_check_branch
            %184 = sbr.rel (0) target = $region28
          $region27: #{net_discriminator.8} parent=23 // pred_region
            // Predicated region
            $region29: #{net_discriminator.8} parent=27 // pred_check
              _
            $region30: #{net_discriminator.8} parent=27 // pred_check_branch
              %186 = sbr.rel (0) target = $region32
            $region31: #{net_discriminator.8} parent=27 // pred_region
              // Predicated region
              $region44: #{net_discriminator.8} parent=31 // pred_check
                _
              $region45: #{net_discriminator.8} parent=31 // pred_check_branch
                %712 = sbr.rel (0) target = $region47
              $region46: #{net_discriminator.8} parent=31 // pred_region
                loop: start=0, step=1, limit=1
                $region48: #{net_discriminator.8} parent=46 // loop_pre_header
                  _
                $region49: #{net_discriminator.8} parent=46 // loop_header
                  %s714 = sphi 0, %s718
                  %p715 = scmp.ge.s32.totalorder %s714, 1
                  %s719 = sphi %s182, %s182
                  %s720 = sphi %s176, %s176
                $region50: #{net_discriminator.8} parent=46 // loop_header_branch
                  %717 = sbr.rel (%p715) target = $region54
                $region51: #{net_discriminator.8} parent=46 // loop_body
                  %v721 = vld [vmem:[%s719] sm:$0xff]
                  %722 = vst [vmem:[%s720] sm:$0xff] %v721
                  %v723 = vld [vmem:[%s719 + $0x10] sm:$0xff]
                  %724 = vst [vmem:[%s720 + $0x8] sm:$0xff] %v723
                  %v725 = vld [vmem:[%s719 + $0x20] sm:$0xff]
                  %726 = vst [vmem:[%s720 + $0x10] sm:$0xff] %v725
                  %v727 = vld [vmem:[%s719 + $0x30] sm:$0xff]
                  %728 = vst [vmem:[%s720 + $0x18] sm:$0xff] %v727
                  %v729 = vld [vmem:[%s719 + $0x40] sm:$0xff]
                  %730 = vst [vmem:[%s720 + $0x20] sm:$0xff] %v729
                  %v731 = vld [vmem:[%s719 + $0x50] sm:$0xff]
                  %732 = vst [vmem:[%s720 + $0x28] sm:$0xff] %v731
                  %v733 = vld [vmem:[%s719 + $0x60] sm:$0xff]
                  %734 = vst [vmem:[%s720 + $0x30] sm:$0xff] %v733
                  %v735 = vld [vmem:[%s719 + $0x70] sm:$0xff]
                  %736 = vst [vmem:[%s720 + $0x38] sm:$0xff] %v735
                  %v737 = vld [vmem:[%s719 + $0x80] sm:$0xff]
                  %738 = vst [vmem:[%s720 + $0x40] sm:$0xff] %v737
                  %v739 = vld [vmem:[%s719 + $0x90] sm:$0xff]
                  %740 = vst [vmem:[%s720 + $0x48] sm:$0xff] %v739
                  %v741 = vld [vmem:[%s719 + $0xa0] sm:$0xff]
                  %742 = vst [vmem:[%s720 + $0x50] sm:$0xff] %v741
                  %v743 = vld [vmem:[%s719 + $0xb0] sm:$0xff]
                  %744 = vst [vmem:[%s720 + $0x58] sm:$0xff] %v743
                  %v745 = vld [vmem:[%s719 + $0xc0] sm:$0xff]
                  %746 = vst [vmem:[%s720 + $0x60] sm:$0xff] %v745
                  %v747 = vld [vmem:[%s719 + $0xd0] sm:$0xff]
                  %748 = vst [vmem:[%s720 + $0x68] sm:$0xff] %v747
                  %v749 = vld [vmem:[%s719 + $0xe0] sm:$0xff]
                  %750 = vst [vmem:[%s720 + $0x70] sm:$0xff] %v749
                  %v751 = vld [vmem:[%s719 + $0xf0] sm:$0xff]
                  %752 = vst [vmem:[%s720 + $0x78] sm:$0xff] %v751
                  %v753 = vld [vmem:[%s719 + $0x100] sm:$0xff]
                  %754 = vst [vmem:[%s720 + $0x80] sm:$0xff] %v753
                  %v755 = vld [vmem:[%s719 + $0x110] sm:$0xff]
                  %756 = vst [vmem:[%s720 + $0x88] sm:$0xff] %v755
                  %v757 = vld [vmem:[%s719 + $0x120] sm:$0xff]
                  %758 = vst [vmem:[%s720 + $0x90] sm:$0xff] %v757
                  %v759 = vld [vmem:[%s719 + $0x130] sm:$0xff]
                  %760 = vst [vmem:[%s720 + $0x98] sm:$0xff] %v759
                  %v761 = vld [vmem:[%s719 + $0x140] sm:$0xff]
                  %762 = vst [vmem:[%s720 + $0xa0] sm:$0xff] %v761
                  %v763 = vld [vmem:[%s719 + $0x150] sm:$0xff]
                  %764 = vst [vmem:[%s720 + $0xa8] sm:$0xff] %v763
                  %v765 = vld [vmem:[%s719 + $0x160] sm:$0xff]
                  %766 = vst [vmem:[%s720 + $0xb0] sm:$0xff] %v765
                  %v767 = vld [vmem:[%s719 + $0x170] sm:$0xff]
                  %768 = vst [vmem:[%s720 + $0xb8] sm:$0xff] %v767
                  %v769 = vld [vmem:[%s719 + $0x180] sm:$0xff]
                  %770 = vst [vmem:[%s720 + $0xc0] sm:$0xff] %v769
                  %v771 = vld [vmem:[%s719 + $0x190] sm:$0xff]
                  %772 = vst [vmem:[%s720 + $0xc8] sm:$0xff] %v771
                  %v773 = vld [vmem:[%s719 + $0x1a0] sm:$0xff]
                  %774 = vst [vmem:[%s720 + $0xd0] sm:$0xff] %v773
                  %v775 = vld [vmem:[%s719 + $0x1b0] sm:$0xff]
                  %776 = vst [vmem:[%s720 + $0xd8] sm:$0xff] %v775
                  %v777 = vld [vmem:[%s719 + $0x1c0] sm:$0xff]
                  %778 = vst [vmem:[%s720 + $0xe0] sm:$0xff] %v777
                  %v779 = vld [vmem:[%s719 + $0x1d0] sm:$0xff]
                  %780 = vst [vmem:[%s720 + $0xe8] sm:$0xff] %v779
                  %v781 = vld [vmem:[%s719 + $0x1e0] sm:$0xff]
                  %782 = vst [vmem:[%s720 + $0xf0] sm:$0xff] %v781
                  %v783 = vld [vmem:[%s719 + $0x1f0] sm:$0xff]
                  %784 = vst [vmem:[%s720 + $0xf8] sm:$0xff] %v783
                  %v785 = vld [vmem:[%s719 + $0x200] sm:$0xff]
                  %786 = vst [vmem:[%s720 + $0x100] sm:$0xff] %v785
                  %v787 = vld [vmem:[%s719 + $0x210] sm:$0xff]
                  %788 = vst [vmem:[%s720 + $0x108] sm:$0xff] %v787
                  %v789 = vld [vmem:[%s719 + $0x220] sm:$0xff]
                  %790 = vst [vmem:[%s720 + $0x110] sm:$0xff] %v789
                  %v791 = vld [vmem:[%s719 + $0x230] sm:$0xff]
                  %792 = vst [vmem:[%s720 + $0x118] sm:$0xff] %v791
                  %v793 = vld [vmem:[%s719 + $0x240] sm:$0xff]
                  %794 = vst [vmem:[%s720 + $0x120] sm:$0xff] %v793
                  %v795 = vld [vmem:[%s719 + $0x250] sm:$0xff]
                  %796 = vst [vmem:[%s720 + $0x128] sm:$0xff] %v795
                  %v797 = vld [vmem:[%s719 + $0x260] sm:$0xff]
                  %798 = vst [vmem:[%s720 + $0x130] sm:$0xff] %v797
                  %v799 = vld [vmem:[%s719 + $0x270] sm:$0xff]
                  %800 = vst [vmem:[%s720 + $0x138] sm:$0xff] %v799
                  %v801 = vld [vmem:[%s719 + $0x280] sm:$0xff]
                  %802 = vst [vmem:[%s720 + $0x140] sm:$0xff] %v801
                  %v803 = vld [vmem:[%s719 + $0x290] sm:$0xff]
                  %804 = vst [vmem:[%s720 + $0x148] sm:$0xff] %v803
                  %v805 = vld [vmem:[%s719 + $0x2a0] sm:$0xff]
                  %806 = vst [vmem:[%s720 + $0x150] sm:$0xff] %v805
                  %v807 = vld [vmem:[%s719 + $0x2b0] sm:$0xff]
                  %808 = vst [vmem:[%s720 + $0x158] sm:$0xff] %v807
                  %v809 = vld [vmem:[%s719 + $0x2c0] sm:$0xff]
                  %810 = vst [vmem:[%s720 + $0x160] sm:$0xff] %v809
                  %v811 = vld [vmem:[%s719 + $0x2d0] sm:$0xff]
                  %812 = vst [vmem:[%s720 + $0x168] sm:$0xff] %v811
                  %v813 = vld [vmem:[%s719 + $0x2e0] sm:$0xff]
                  %814 = vst [vmem:[%s720 + $0x170] sm:$0xff] %v813
                  %v815 = vld [vmem:[%s719 + $0x2f0] sm:$0xff]
                  %816 = vst [vmem:[%s720 + $0x178] sm:$0xff] %v815
                  %v817 = vld [vmem:[%s719 + $0x300] sm:$0xff]
                  %818 = vst [vmem:[%s720 + $0x180] sm:$0xff] %v817
                  %v819 = vld [vmem:[%s719 + $0x310] sm:$0xff]
                  %820 = vst [vmem:[%s720 + $0x188] sm:$0xff] %v819
                  %v821 = vld [vmem:[%s719 + $0x320] sm:$0xff]
                  %822 = vst [vmem:[%s720 + $0x190] sm:$0xff] %v821
                  %v823 = vld [vmem:[%s719 + $0x330] sm:$0xff]
                  %824 = vst [vmem:[%s720 + $0x198] sm:$0xff] %v823
                  %v825 = vld [vmem:[%s719 + $0x340] sm:$0xff]
                  %826 = vst [vmem:[%s720 + $0x1a0] sm:$0xff] %v825
                  %v827 = vld [vmem:[%s719 + $0x350] sm:$0xff]
                  %828 = vst [vmem:[%s720 + $0x1a8] sm:$0xff] %v827
                  %v829 = vld [vmem:[%s719 + $0x360] sm:$0xff]
                  %830 = vst [vmem:[%s720 + $0x1b0] sm:$0xff] %v829
                  %v831 = vld [vmem:[%s719 + $0x370] sm:$0xff]
                  %832 = vst [vmem:[%s720 + $0x1b8] sm:$0xff] %v831
                  %v833 = vld [vmem:[%s719 + $0x380] sm:$0xff]
                  %834 = vst [vmem:[%s720 + $0x1c0] sm:$0xff] %v833
                  %v835 = vld [vmem:[%s719 + $0x390] sm:$0xff]
                  %836 = vst [vmem:[%s720 + $0x1c8] sm:$0xff] %v835
                  %v837 = vld [vmem:[%s719 + $0x3a0] sm:$0xff]
                  %838 = vst [vmem:[%s720 + $0x1d0] sm:$0xff] %v837
                  %v839 = vld [vmem:[%s719 + $0x3b0] sm:$0xff]
                  %840 = vst [vmem:[%s720 + $0x1d8] sm:$0xff] %v839
                  %v841 = vld [vmem:[%s719 + $0x3c0] sm:$0xff]
                  %842 = vst [vmem:[%s720 + $0x1e0] sm:$0xff] %v841
                  %v843 = vld [vmem:[%s719 + $0x3d0] sm:$0xff]
                  %844 = vst [vmem:[%s720 + $0x1e8] sm:$0xff] %v843
                  %v845 = vld [vmem:[%s719 + $0x3e0] sm:$0xff]
                  %846 = vst [vmem:[%s720 + $0x1f0] sm:$0xff] %v845
                  %v847 = vld [vmem:[%s719 + $0x3f0] sm:$0xff]
                  %848 = vst [vmem:[%s720 + $0x1f8] sm:$0xff] %v847
                  %v849 = vld [vmem:[%s719 + $0x400] sm:$0xff]
                  %850 = vst [vmem:[%s720 + $0x200] sm:$0xff] %v849
                  %v851 = vld [vmem:[%s719 + $0x410] sm:$0xff]
                  %852 = vst [vmem:[%s720 + $0x208] sm:$0xff] %v851
                  %v853 = vld [vmem:[%s719 + $0x420] sm:$0xff]
                  %854 = vst [vmem:[%s720 + $0x210] sm:$0xff] %v853
                  %v855 = vld [vmem:[%s719 + $0x430] sm:$0xff]
                  %856 = vst [vmem:[%s720 + $0x218] sm:$0xff] %v855
                  %v857 = vld [vmem:[%s719 + $0x440] sm:$0xff]
                  %858 = vst [vmem:[%s720 + $0x220] sm:$0xff] %v857
                  %v859 = vld [vmem:[%s719 + $0x450] sm:$0xff]
                  %860 = vst [vmem:[%s720 + $0x228] sm:$0xff] %v859
                  %v861 = vld [vmem:[%s719 + $0x460] sm:$0xff]
                  %862 = vst [vmem:[%s720 + $0x230] sm:$0xff] %v861
                  %v863 = vld [vmem:[%s719 + $0x470] sm:$0xff]
                  %864 = vst [vmem:[%s720 + $0x238] sm:$0xff] %v863
                  %v865 = vld [vmem:[%s719 + $0x480] sm:$0xff]
                  %866 = vst [vmem:[%s720 + $0x240] sm:$0xff] %v865
                  %v867 = vld [vmem:[%s719 + $0x490] sm:$0xff]
                  %868 = vst [vmem:[%s720 + $0x248] sm:$0xff] %v867
                  %v869 = vld [vmem:[%s719 + $0x4a0] sm:$0xff]
                  %870 = vst [vmem:[%s720 + $0x250] sm:$0xff] %v869
                  %v871 = vld [vmem:[%s719 + $0x4b0] sm:$0xff]
                  %872 = vst [vmem:[%s720 + $0x258] sm:$0xff] %v871
                  %v873 = vld [vmem:[%s719 + $0x4c0] sm:$0xff]
                  %874 = vst [vmem:[%s720 + $0x260] sm:$0xff] %v873
                  %v875 = vld [vmem:[%s719 + $0x4d0] sm:$0xff]
                  %876 = vst [vmem:[%s720 + $0x268] sm:$0xff] %v875
                  %v877 = vld [vmem:[%s719 + $0x4e0] sm:$0xff]
                  %878 = vst [vmem:[%s720 + $0x270] sm:$0xff] %v877
                  %v879 = vld [vmem:[%s719 + $0x4f0] sm:$0xff]
                  %880 = vst [vmem:[%s720 + $0x278] sm:$0xff] %v879
                  %v881 = vld [vmem:[%s719 + $0x500] sm:$0xff]
                  %882 = vst [vmem:[%s720 + $0x280] sm:$0xff] %v881
                  %v883 = vld [vmem:[%s719 + $0x510] sm:$0xff]
                  %884 = vst [vmem:[%s720 + $0x288] sm:$0xff] %v883
                  %v885 = vld [vmem:[%s719 + $0x520] sm:$0xff]
                  %886 = vst [vmem:[%s720 + $0x290] sm:$0xff] %v885
                  %v887 = vld [vmem:[%s719 + $0x530] sm:$0xff]
                  %888 = vst [vmem:[%s720 + $0x298] sm:$0xff] %v887
                  %v889 = vld [vmem:[%s719 + $0x540] sm:$0xff]
                  %890 = vst [vmem:[%s720 + $0x2a0] sm:$0xff] %v889
                  %v891 = vld [vmem:[%s719 + $0x550] sm:$0xff]
                  %892 = vst [vmem:[%s720 + $0x2a8] sm:$0xff] %v891
                  %v893 = vld [vmem:[%s719 + $0x560] sm:$0xff]
                  %894 = vst [vmem:[%s720 + $0x2b0] sm:$0xff] %v893
                  %v895 = vld [vmem:[%s719 + $0x570] sm:$0xff]
                  %896 = vst [vmem:[%s720 + $0x2b8] sm:$0xff] %v895
                  %v897 = vld [vmem:[%s719 + $0x580] sm:$0xff]
                  %898 = vst [vmem:[%s720 + $0x2c0] sm:$0xff] %v897
                  %v899 = vld [vmem:[%s719 + $0x590] sm:$0xff]
                  %900 = vst [vmem:[%s720 + $0x2c8] sm:$0xff] %v899
                  %v901 = vld [vmem:[%s719 + $0x5a0] sm:$0xff]
                  %902 = vst [vmem:[%s720 + $0x2d0] sm:$0xff] %v901
                  %v903 = vld [vmem:[%s719 + $0x5b0] sm:$0xff]
                  %904 = vst [vmem:[%s720 + $0x2d8] sm:$0xff] %v903
                  %v905 = vld [vmem:[%s719 + $0x5c0] sm:$0xff]
                  %906 = vst [vmem:[%s720 + $0x2e0] sm:$0xff] %v905
                  %v907 = vld [vmem:[%s719 + $0x5d0] sm:$0xff]
                  %908 = vst [vmem:[%s720 + $0x2e8] sm:$0xff] %v907
                  %v909 = vld [vmem:[%s719 + $0x5e0] sm:$0xff]
                  %910 = vst [vmem:[%s720 + $0x2f0] sm:$0xff] %v909
                  %v911 = vld [vmem:[%s719 + $0x5f0] sm:$0xff]
                  %912 = vst [vmem:[%s720 + $0x2f8] sm:$0xff] %v911
                  %v913 = vld [vmem:[%s719 + $0x600] sm:$0xff]
                  %914 = vst [vmem:[%s720 + $0x300] sm:$0xff] %v913
                  %v915 = vld [vmem:[%s719 + $0x610] sm:$0xff]
                  %916 = vst [vmem:[%s720 + $0x308] sm:$0xff] %v915
                  %v917 = vld [vmem:[%s719 + $0x620] sm:$0xff]
                  %918 = vst [vmem:[%s720 + $0x310] sm:$0xff] %v917
                  %v919 = vld [vmem:[%s719 + $0x630] sm:$0xff]
                  %920 = vst [vmem:[%s720 + $0x318] sm:$0xff] %v919
                  %v921 = vld [vmem:[%s719 + $0x640] sm:$0xff]
                  %922 = vst [vmem:[%s720 + $0x320] sm:$0xff] %v921
                  %v923 = vld [vmem:[%s719 + $0x650] sm:$0xff]
                  %924 = vst [vmem:[%s720 + $0x328] sm:$0xff] %v923
                  %v925 = vld [vmem:[%s719 + $0x660] sm:$0xff]
                  %926 = vst [vmem:[%s720 + $0x330] sm:$0xff] %v925
                  %v927 = vld [vmem:[%s719 + $0x670] sm:$0xff]
                  %928 = vst [vmem:[%s720 + $0x338] sm:$0xff] %v927
                  %v929 = vld [vmem:[%s719 + $0x680] sm:$0xff]
                  %930 = vst [vmem:[%s720 + $0x340] sm:$0xff] %v929
                  %v931 = vld [vmem:[%s719 + $0x690] sm:$0xff]
                  %932 = vst [vmem:[%s720 + $0x348] sm:$0xff] %v931
                  %v933 = vld [vmem:[%s719 + $0x6a0] sm:$0xff]
                  %934 = vst [vmem:[%s720 + $0x350] sm:$0xff] %v933
                  %v935 = vld [vmem:[%s719 + $0x6b0] sm:$0xff]
                  %936 = vst [vmem:[%s720 + $0x358] sm:$0xff] %v935
                  %v937 = vld [vmem:[%s719 + $0x6c0] sm:$0xff]
                  %938 = vst [vmem:[%s720 + $0x360] sm:$0xff] %v937
                  %v939 = vld [vmem:[%s719 + $0x6d0] sm:$0xff]
                  %940 = vst [vmem:[%s720 + $0x368] sm:$0xff] %v939
                  %v941 = vld [vmem:[%s719 + $0x6e0] sm:$0xff]
                  %942 = vst [vmem:[%s720 + $0x370] sm:$0xff] %v941
                  %v943 = vld [vmem:[%s719 + $0x6f0] sm:$0xff]
                  %944 = vst [vmem:[%s720 + $0x378] sm:$0xff] %v943
                  %v945 = vld [vmem:[%s719 + $0x700] sm:$0xff]
                  %946 = vst [vmem:[%s720 + $0x380] sm:$0xff] %v945
                  %v947 = vld [vmem:[%s719 + $0x710] sm:$0xff]
                  %948 = vst [vmem:[%s720 + $0x388] sm:$0xff] %v947
                  %v949 = vld [vmem:[%s719 + $0x720] sm:$0xff]
                  %950 = vst [vmem:[%s720 + $0x390] sm:$0xff] %v949
                  %v951 = vld [vmem:[%s719 + $0x730] sm:$0xff]
                  %952 = vst [vmem:[%s720 + $0x398] sm:$0xff] %v951
                  %v953 = vld [vmem:[%s719 + $0x740] sm:$0xff]
                  %954 = vst [vmem:[%s720 + $0x3a0] sm:$0xff] %v953
                  %v955 = vld [vmem:[%s719 + $0x750] sm:$0xff]
                  %956 = vst [vmem:[%s720 + $0x3a8] sm:$0xff] %v955
                  %v957 = vld [vmem:[%s719 + $0x760] sm:$0xff]
                  %958 = vst [vmem:[%s720 + $0x3b0] sm:$0xff] %v957
                  %v959 = vld [vmem:[%s719 + $0x770] sm:$0xff]
                  %960 = vst [vmem:[%s720 + $0x3b8] sm:$0xff] %v959
                  %v961 = vld [vmem:[%s719 + $0x780] sm:$0xff]
                  %962 = vst [vmem:[%s720 + $0x3c0] sm:$0xff] %v961
                  %v963 = vld [vmem:[%s719 + $0x790] sm:$0xff]
                  %964 = vst [vmem:[%s720 + $0x3c8] sm:$0xff] %v963
                  %v965 = vld [vmem:[%s719 + $0x7a0] sm:$0xff]
                  %966 = vst [vmem:[%s720 + $0x3d0] sm:$0xff] %v965
                  %v967 = vld [vmem:[%s719 + $0x7b0] sm:$0xff]
                  %968 = vst [vmem:[%s720 + $0x3d8] sm:$0xff] %v967
                  %v969 = vld [vmem:[%s719 + $0x7c0] sm:$0xff]
                  %970 = vst [vmem:[%s720 + $0x3e0] sm:$0xff] %v969
                  %v971 = vld [vmem:[%s719 + $0x7d0] sm:$0xff]
                  %972 = vst [vmem:[%s720 + $0x3e8] sm:$0xff] %v971
                  %v973 = vld [vmem:[%s719 + $0x7e0] sm:$0xff]
                  %974 = vst [vmem:[%s720 + $0x3f0] sm:$0xff] %v973
                  %v975 = vld [vmem:[%s719 + $0x7f0] sm:$0xff]
                  %976 = vst [vmem:[%s720 + $0x3f8] sm:$0xff] %v975
                  %v977 = vld [vmem:[%s719 + $0x800] sm:$0xff]
                  %978 = vst [vmem:[%s720 + $0x400] sm:$0xff] %v977
                  %v979 = vld [vmem:[%s719 + $0x810] sm:$0xff]
                  %980 = vst [vmem:[%s720 + $0x408] sm:$0xff] %v979
                  %v981 = vld [vmem:[%s719 + $0x820] sm:$0xff]
                  %982 = vst [vmem:[%s720 + $0x410] sm:$0xff] %v981
                  %v983 = vld [vmem:[%s719 + $0x830] sm:$0xff]
                  %984 = vst [vmem:[%s720 + $0x418] sm:$0xff] %v983
                  %v985 = vld [vmem:[%s719 + $0x840] sm:$0xff]
                  %986 = vst [vmem:[%s720 + $0x420] sm:$0xff] %v985
                  %v987 = vld [vmem:[%s719 + $0x850] sm:$0xff]
                  %988 = vst [vmem:[%s720 + $0x428] sm:$0xff] %v987
                  %v989 = vld [vmem:[%s719 + $0x860] sm:$0xff]
                  %990 = vst [vmem:[%s720 + $0x430] sm:$0xff] %v989
                  %v991 = vld [vmem:[%s719 + $0x870] sm:$0xff]
                  %992 = vst [vmem:[%s720 + $0x438] sm:$0xff] %v991
                  %v993 = vld [vmem:[%s719 + $0x880] sm:$0xff]
                  %994 = vst [vmem:[%s720 + $0x440] sm:$0xff] %v993
                  %v995 = vld [vmem:[%s719 + $0x890] sm:$0xff]
                  %996 = vst [vmem:[%s720 + $0x448] sm:$0xff] %v995
                  %v997 = vld [vmem:[%s719 + $0x8a0] sm:$0xff]
                  %998 = vst [vmem:[%s720 + $0x450] sm:$0xff] %v997
                  %v999 = vld [vmem:[%s719 + $0x8b0] sm:$0xff]
                  %1000 = vst [vmem:[%s720 + $0x458] sm:$0xff] %v999
                  %v1001 = vld [vmem:[%s719 + $0x8c0] sm:$0xff]
                  %1002 = vst [vmem:[%s720 + $0x460] sm:$0xff] %v1001
                  %v1003 = vld [vmem:[%s719 + $0x8d0] sm:$0xff]
                  %1004 = vst [vmem:[%s720 + $0x468] sm:$0xff] %v1003
                  %v1005 = vld [vmem:[%s719 + $0x8e0] sm:$0xff]
                  %1006 = vst [vmem:[%s720 + $0x470] sm:$0xff] %v1005
                  %v1007 = vld [vmem:[%s719 + $0x8f0] sm:$0xff]
                  %1008 = vst [vmem:[%s720 + $0x478] sm:$0xff] %v1007
                  %v1009 = vld [vmem:[%s719 + $0x900] sm:$0xff]
                  %1010 = vst [vmem:[%s720 + $0x480] sm:$0xff] %v1009
                  %v1011 = vld [vmem:[%s719 + $0x910] sm:$0xff]
                  %1012 = vst [vmem:[%s720 + $0x488] sm:$0xff] %v1011
                  %v1013 = vld [vmem:[%s719 + $0x920] sm:$0xff]
                  %1014 = vst [vmem:[%s720 + $0x490] sm:$0xff] %v1013
                  %v1015 = vld [vmem:[%s719 + $0x930] sm:$0xff]
                  %1016 = vst [vmem:[%s720 + $0x498] sm:$0xff] %v1015
                  %v1017 = vld [vmem:[%s719 + $0x940] sm:$0xff]
                  %1018 = vst [vmem:[%s720 + $0x4a0] sm:$0xff] %v1017
                  %v1019 = vld [vmem:[%s719 + $0x950] sm:$0xff]
                  %1020 = vst [vmem:[%s720 + $0x4a8] sm:$0xff] %v1019
                  %v1021 = vld [vmem:[%s719 + $0x960] sm:$0xff]
                  %1022 = vst [vmem:[%s720 + $0x4b0] sm:$0xff] %v1021
                  %v1023 = vld [vmem:[%s719 + $0x970] sm:$0xff]
                  %1024 = vst [vmem:[%s720 + $0x4b8] sm:$0xff] %v1023
                  %v1025 = vld [vmem:[%s719 + $0x980] sm:$0xff]
                  %1026 = vst [vmem:[%s720 + $0x4c0] sm:$0xff] %v1025
                  %v1027 = vld [vmem:[%s719 + $0x990] sm:$0xff]
                  %1028 = vst [vmem:[%s720 + $0x4c8] sm:$0xff] %v1027
                  %v1029 = vld [vmem:[%s719 + $0x9a0] sm:$0xff]
                  %1030 = vst [vmem:[%s720 + $0x4d0] sm:$0xff] %v1029
                  %v1031 = vld [vmem:[%s719 + $0x9b0] sm:$0xff]
                  %1032 = vst [vmem:[%s720 + $0x4d8] sm:$0xff] %v1031
                  %v1033 = vld [vmem:[%s719 + $0x9c0] sm:$0xff]
                  %1034 = vst [vmem:[%s720 + $0x4e0] sm:$0xff] %v1033
                  %v1035 = vld [vmem:[%s719 + $0x9d0] sm:$0xff]
                  %1036 = vst [vmem:[%s720 + $0x4e8] sm:$0xff] %v1035
                  %v1037 = vld [vmem:[%s719 + $0x9e0] sm:$0xff]
                  %1038 = vst [vmem:[%s720 + $0x4f0] sm:$0xff] %v1037
                  %v1039 = vld [vmem:[%s719 + $0x9f0] sm:$0xff]
                  %1040 = vst [vmem:[%s720 + $0x4f8] sm:$0xff] %v1039
                  %v1041 = vld [vmem:[%s719 + $0xa00] sm:$0xff]
                  %1042 = vst [vmem:[%s720 + $0x500] sm:$0xff] %v1041
                  %v1043 = vld [vmem:[%s719 + $0xa10] sm:$0xff]
                  %1044 = vst [vmem:[%s720 + $0x508] sm:$0xff] %v1043
                  %v1045 = vld [vmem:[%s719 + $0xa20] sm:$0xff]
                  %1046 = vst [vmem:[%s720 + $0x510] sm:$0xff] %v1045
                  %v1047 = vld [vmem:[%s719 + $0xa30] sm:$0xff]
                  %1048 = vst [vmem:[%s720 + $0x518] sm:$0xff] %v1047
                  %v1049 = vld [vmem:[%s719 + $0xa40] sm:$0xff]
                  %1050 = vst [vmem:[%s720 + $0x520] sm:$0xff] %v1049
                  %v1051 = vld [vmem:[%s719 + $0xa50] sm:$0xff]
                  %1052 = vst [vmem:[%s720 + $0x528] sm:$0xff] %v1051
                  %v1053 = vld [vmem:[%s719 + $0xa60] sm:$0xff]
                  %1054 = vst [vmem:[%s720 + $0x530] sm:$0xff] %v1053
                  %v1055 = vld [vmem:[%s719 + $0xa70] sm:$0xff]
                  %1056 = vst [vmem:[%s720 + $0x538] sm:$0xff] %v1055
                  %v1057 = vld [vmem:[%s719 + $0xa80] sm:$0xff]
                  %1058 = vst [vmem:[%s720 + $0x540] sm:$0xff] %v1057
                  %v1059 = vld [vmem:[%s719 + $0xa90] sm:$0xff]
                  %1060 = vst [vmem:[%s720 + $0x548] sm:$0xff] %v1059
                  %v1061 = vld [vmem:[%s719 + $0xaa0] sm:$0xff]
                  %1062 = vst [vmem:[%s720 + $0x550] sm:$0xff] %v1061
                  %v1063 = vld [vmem:[%s719 + $0xab0] sm:$0xff]
                  %1064 = vst [vmem:[%s720 + $0x558] sm:$0xff] %v1063
                  %v1065 = vld [vmem:[%s719 + $0xac0] sm:$0xff]
                  %1066 = vst [vmem:[%s720 + $0x560] sm:$0xff] %v1065
                  %v1067 = vld [vmem:[%s719 + $0xad0] sm:$0xff]
                  %1068 = vst [vmem:[%s720 + $0x568] sm:$0xff] %v1067
                  %v1069 = vld [vmem:[%s719 + $0xae0] sm:$0xff]
                  %1070 = vst [vmem:[%s720 + $0x570] sm:$0xff] %v1069
                  %v1071 = vld [vmem:[%s719 + $0xaf0] sm:$0xff]
                  %1072 = vst [vmem:[%s720 + $0x578] sm:$0xff] %v1071
                  %v1073 = vld [vmem:[%s719 + $0xb00] sm:$0xff]
                  %1074 = vst [vmem:[%s720 + $0x580] sm:$0xff] %v1073
                  %v1075 = vld [vmem:[%s719 + $0xb10] sm:$0xff]
                  %1076 = vst [vmem:[%s720 + $0x588] sm:$0xff] %v1075
                  %v1077 = vld [vmem:[%s719 + $0xb20] sm:$0xff]
                  %1078 = vst [vmem:[%s720 + $0x590] sm:$0xff] %v1077
                  %v1079 = vld [vmem:[%s719 + $0xb30] sm:$0xff]
                  %1080 = vst [vmem:[%s720 + $0x598] sm:$0xff] %v1079
                  %v1081 = vld [vmem:[%s719 + $0xb40] sm:$0xff]
                  %1082 = vst [vmem:[%s720 + $0x5a0] sm:$0xff] %v1081
                  %v1083 = vld [vmem:[%s719 + $0xb50] sm:$0xff]
                  %1084 = vst [vmem:[%s720 + $0x5a8] sm:$0xff] %v1083
                  %v1085 = vld [vmem:[%s719 + $0xb60] sm:$0xff]
                  %1086 = vst [vmem:[%s720 + $0x5b0] sm:$0xff] %v1085
                  %v1087 = vld [vmem:[%s719 + $0xb70] sm:$0xff]
                  %1088 = vst [vmem:[%s720 + $0x5b8] sm:$0xff] %v1087
                  %v1089 = vld [vmem:[%s719 + $0xb80] sm:$0xff]
                  %1090 = vst [vmem:[%s720 + $0x5c0] sm:$0xff] %v1089
                  %v1091 = vld [vmem:[%s719 + $0xb90] sm:$0xff]
                  %1092 = vst [vmem:[%s720 + $0x5c8] sm:$0xff] %v1091
                  %v1093 = vld [vmem:[%s719 + $0xba0] sm:$0xff]
                  %1094 = vst [vmem:[%s720 + $0x5d0] sm:$0xff] %v1093
                  %v1095 = vld [vmem:[%s719 + $0xbb0] sm:$0xff]
                  %1096 = vst [vmem:[%s720 + $0x5d8] sm:$0xff] %v1095
                  %v1097 = vld [vmem:[%s719 + $0xbc0] sm:$0xff]
                  %1098 = vst [vmem:[%s720 + $0x5e0] sm:$0xff] %v1097
                  %v1099 = vld [vmem:[%s719 + $0xbd0] sm:$0xff]
                  %1100 = vst [vmem:[%s720 + $0x5e8] sm:$0xff] %v1099
                  %v1101 = vld [vmem:[%s719 + $0xbe0] sm:$0xff]
                  %1102 = vst [vmem:[%s720 + $0x5f0] sm:$0xff] %v1101
                  %v1103 = vld [vmem:[%s719 + $0xbf0] sm:$0xff]
                  %1104 = vst [vmem:[%s720 + $0x5f8] sm:$0xff] %v1103
                  %v1105 = vld [vmem:[%s719 + $0xc00] sm:$0xff]
                  %1106 = vst [vmem:[%s720 + $0x600] sm:$0xff] %v1105
                  %v1107 = vld [vmem:[%s719 + $0xc10] sm:$0xff]
                  %1108 = vst [vmem:[%s720 + $0x608] sm:$0xff] %v1107
                  %v1109 = vld [vmem:[%s719 + $0xc20] sm:$0xff]
                  %1110 = vst [vmem:[%s720 + $0x610] sm:$0xff] %v1109
                  %v1111 = vld [vmem:[%s719 + $0xc30] sm:$0xff]
                  %1112 = vst [vmem:[%s720 + $0x618] sm:$0xff] %v1111
                  %v1113 = vld [vmem:[%s719 + $0xc40] sm:$0xff]
                  %1114 = vst [vmem:[%s720 + $0x620] sm:$0xff] %v1113
                  %v1115 = vld [vmem:[%s719 + $0xc50] sm:$0xff]
                  %1116 = vst [vmem:[%s720 + $0x628] sm:$0xff] %v1115
                  %v1117 = vld [vmem:[%s719 + $0xc60] sm:$0xff]
                  %1118 = vst [vmem:[%s720 + $0x630] sm:$0xff] %v1117
                  %v1119 = vld [vmem:[%s719 + $0xc70] sm:$0xff]
                  %1120 = vst [vmem:[%s720 + $0x638] sm:$0xff] %v1119
                  %v1121 = vld [vmem:[%s719 + $0xc80] sm:$0xff]
                  %1122 = vst [vmem:[%s720 + $0x640] sm:$0xff] %v1121
                  %v1123 = vld [vmem:[%s719 + $0xc90] sm:$0xff]
                  %1124 = vst [vmem:[%s720 + $0x648] sm:$0xff] %v1123
                  %v1125 = vld [vmem:[%s719 + $0xca0] sm:$0xff]
                  %1126 = vst [vmem:[%s720 + $0x650] sm:$0xff] %v1125
                  %v1127 = vld [vmem:[%s719 + $0xcb0] sm:$0xff]
                  %1128 = vst [vmem:[%s720 + $0x658] sm:$0xff] %v1127
                  %v1129 = vld [vmem:[%s719 + $0xcc0] sm:$0xff]
                  %1130 = vst [vmem:[%s720 + $0x660] sm:$0xff] %v1129
                  %v1131 = vld [vmem:[%s719 + $0xcd0] sm:$0xff]
                  %1132 = vst [vmem:[%s720 + $0x668] sm:$0xff] %v1131
                  %v1133 = vld [vmem:[%s719 + $0xce0] sm:$0xff]
                  %1134 = vst [vmem:[%s720 + $0x670] sm:$0xff] %v1133
                  %v1135 = vld [vmem:[%s719 + $0xcf0] sm:$0xff]
                  %1136 = vst [vmem:[%s720 + $0x678] sm:$0xff] %v1135
                  %v1137 = vld [vmem:[%s719 + $0xd00] sm:$0xff]
                  %1138 = vst [vmem:[%s720 + $0x680] sm:$0xff] %v1137
                  %v1139 = vld [vmem:[%s719 + $0xd10] sm:$0xff]
                  %1140 = vst [vmem:[%s720 + $0x688] sm:$0xff] %v1139
                  %v1141 = vld [vmem:[%s719 + $0xd20] sm:$0xff]
                  %1142 = vst [vmem:[%s720 + $0x690] sm:$0xff] %v1141
                  %v1143 = vld [vmem:[%s719 + $0xd30] sm:$0xff]
                  %1144 = vst [vmem:[%s720 + $0x698] sm:$0xff] %v1143
                  %v1145 = vld [vmem:[%s719 + $0xd40] sm:$0xff]
                  %1146 = vst [vmem:[%s720 + $0x6a0] sm:$0xff] %v1145
                  %v1147 = vld [vmem:[%s719 + $0xd50] sm:$0xff]
                  %1148 = vst [vmem:[%s720 + $0x6a8] sm:$0xff] %v1147
                  %v1149 = vld [vmem:[%s719 + $0xd60] sm:$0xff]
                  %1150 = vst [vmem:[%s720 + $0x6b0] sm:$0xff] %v1149
                  %v1151 = vld [vmem:[%s719 + $0xd70] sm:$0xff]
                  %1152 = vst [vmem:[%s720 + $0x6b8] sm:$0xff] %v1151
                  %v1153 = vld [vmem:[%s719 + $0xd80] sm:$0xff]
                  %1154 = vst [vmem:[%s720 + $0x6c0] sm:$0xff] %v1153
                  %v1155 = vld [vmem:[%s719 + $0xd90] sm:$0xff]
                  %1156 = vst [vmem:[%s720 + $0x6c8] sm:$0xff] %v1155
                  %v1157 = vld [vmem:[%s719 + $0xda0] sm:$0xff]
                  %1158 = vst [vmem:[%s720 + $0x6d0] sm:$0xff] %v1157
                  %v1159 = vld [vmem:[%s719 + $0xdb0] sm:$0xff]
                  %1160 = vst [vmem:[%s720 + $0x6d8] sm:$0xff] %v1159
                  %v1161 = vld [vmem:[%s719 + $0xdc0] sm:$0xff]
                  %1162 = vst [vmem:[%s720 + $0x6e0] sm:$0xff] %v1161
                  %v1163 = vld [vmem:[%s719 + $0xdd0] sm:$0xff]
                  %1164 = vst [vmem:[%s720 + $0x6e8] sm:$0xff] %v1163
                  %v1165 = vld [vmem:[%s719 + $0xde0] sm:$0xff]
                  %1166 = vst [vmem:[%s720 + $0x6f0] sm:$0xff] %v1165
                  %v1167 = vld [vmem:[%s719 + $0xdf0] sm:$0xff]
                  %1168 = vst [vmem:[%s720 + $0x6f8] sm:$0xff] %v1167
                  %v1169 = vld [vmem:[%s719 + $0xe00] sm:$0xff]
                  %1170 = vst [vmem:[%s720 + $0x700] sm:$0xff] %v1169
                  %v1171 = vld [vmem:[%s719 + $0xe10] sm:$0xff]
                  %1172 = vst [vmem:[%s720 + $0x708] sm:$0xff] %v1171
                  %v1173 = vld [vmem:[%s719 + $0xe20] sm:$0xff]
                  %1174 = vst [vmem:[%s720 + $0x710] sm:$0xff] %v1173
                  %v1175 = vld [vmem:[%s719 + $0xe30] sm:$0xff]
                  %1176 = vst [vmem:[%s720 + $0x718] sm:$0xff] %v1175
                  %v1177 = vld [vmem:[%s719 + $0xe40] sm:$0xff]
                  %1178 = vst [vmem:[%s720 + $0x720] sm:$0xff] %v1177
                  %v1179 = vld [vmem:[%s719 + $0xe50] sm:$0xff]
                  %1180 = vst [vmem:[%s720 + $0x728] sm:$0xff] %v1179
                  %v1181 = vld [vmem:[%s719 + $0xe60] sm:$0xff]
                  %1182 = vst [vmem:[%s720 + $0x730] sm:$0xff] %v1181
                  %v1183 = vld [vmem:[%s719 + $0xe70] sm:$0xff]
                  %1184 = vst [vmem:[%s720 + $0x738] sm:$0xff] %v1183
                  %v1185 = vld [vmem:[%s719 + $0xe80] sm:$0xff]
                  %1186 = vst [vmem:[%s720 + $0x740] sm:$0xff] %v1185
                  %v1187 = vld [vmem:[%s719 + $0xe90] sm:$0xff]
                  %1188 = vst [vmem:[%s720 + $0x748] sm:$0xff] %v1187
                  %v1189 = vld [vmem:[%s719 + $0xea0] sm:$0xff]
                  %1190 = vst [vmem:[%s720 + $0x750] sm:$0xff] %v1189
                  %v1191 = vld [vmem:[%s719 + $0xeb0] sm:$0xff]
                  %1192 = vst [vmem:[%s720 + $0x758] sm:$0xff] %v1191
                  %v1193 = vld [vmem:[%s719 + $0xec0] sm:$0xff]
                  %1194 = vst [vmem:[%s720 + $0x760] sm:$0xff] %v1193
                  %v1195 = vld [vmem:[%s719 + $0xed0] sm:$0xff]
                  %1196 = vst [vmem:[%s720 + $0x768] sm:$0xff] %v1195
                  %v1197 = vld [vmem:[%s719 + $0xee0] sm:$0xff]
                  %1198 = vst [vmem:[%s720 + $0x770] sm:$0xff] %v1197
                  %v1199 = vld [vmem:[%s719 + $0xef0] sm:$0xff]
                  %1200 = vst [vmem:[%s720 + $0x778] sm:$0xff] %v1199
                  %v1201 = vld [vmem:[%s719 + $0xf00] sm:$0xff]
                  %1202 = vst [vmem:[%s720 + $0x780] sm:$0xff] %v1201
                  %v1203 = vld [vmem:[%s719 + $0xf10] sm:$0xff]
                  %1204 = vst [vmem:[%s720 + $0x788] sm:$0xff] %v1203
                  %v1205 = vld [vmem:[%s719 + $0xf20] sm:$0xff]
                  %1206 = vst [vmem:[%s720 + $0x790] sm:$0xff] %v1205
                  %v1207 = vld [vmem:[%s719 + $0xf30] sm:$0xff]
                  %1208 = vst [vmem:[%s720 + $0x798] sm:$0xff] %v1207
                  %v1209 = vld [vmem:[%s719 + $0xf40] sm:$0xff]
                  %1210 = vst [vmem:[%s720 + $0x7a0] sm:$0xff] %v1209
                  %v1211 = vld [vmem:[%s719 + $0xf50] sm:$0xff]
                  %1212 = vst [vmem:[%s720 + $0x7a8] sm:$0xff] %v1211
                  %v1213 = vld [vmem:[%s719 + $0xf60] sm:$0xff]
                  %1214 = vst [vmem:[%s720 + $0x7b0] sm:$0xff] %v1213
                  %v1215 = vld [vmem:[%s719 + $0xf70] sm:$0xff]
                  %1216 = vst [vmem:[%s720 + $0x7b8] sm:$0xff] %v1215
                  %v1217 = vld [vmem:[%s719 + $0xf80] sm:$0xff]
                  %1218 = vst [vmem:[%s720 + $0x7c0] sm:$0xff] %v1217
                  %v1219 = vld [vmem:[%s719 + $0xf90] sm:$0xff]
                  %1220 = vst [vmem:[%s720 + $0x7c8] sm:$0xff] %v1219
                  %v1221 = vld [vmem:[%s719 + $0xfa0] sm:$0xff]
                  %1222 = vst [vmem:[%s720 + $0x7d0] sm:$0xff] %v1221
                  %v1223 = vld [vmem:[%s719 + $0xfb0] sm:$0xff]
                  %1224 = vst [vmem:[%s720 + $0x7d8] sm:$0xff] %v1223
                  %v1225 = vld [vmem:[%s719 + $0xfc0] sm:$0xff]
                  %1226 = vst [vmem:[%s720 + $0x7e0] sm:$0xff] %v1225
                  %v1227 = vld [vmem:[%s719 + $0xfd0] sm:$0xff]
                  %1228 = vst [vmem:[%s720 + $0x7e8] sm:$0xff] %v1227
                  %v1229 = vld [vmem:[%s719 + $0xfe0] sm:$0xff]
                  %1230 = vst [vmem:[%s720 + $0x7f0] sm:$0xff] %v1229
                  %v1231 = vld [vmem:[%s719 + $0xff0] sm:$0xff]
                  %1232 = vst [vmem:[%s720 + $0x7f8] sm:$0xff] %v1231
                $region52: #{net_discriminator.8} parent=46 // loop_footer
                  %s718 = sadd.s32 1, %s714
                $region53: #{net_discriminator.8} parent=46 // loop_footer_branch
                  %713 = sbr.rel target = $region49
                $region54: #{net_discriminator.8} parent=46 // loop_exit
                  _
              $region47: #{net_discriminator.8} parent=31 // pred_fallthru
                _
              // Predicated region
              $region55: #{net_discriminator.8} parent=31 // pred_check
                _
              $region56: #{net_discriminator.8} parent=31 // pred_check_branch
                %1234 = sbr.rel target = $region58
              $region57: #{net_discriminator.8} parent=31 // pred_region
                _
              $region58: #{net_discriminator.8} parent=31 // pred_fallthru
                _
            $region32: #{net_discriminator.8} parent=27 // pred_fallthru
              _
            // Predicated region
            $region33: #{net_discriminator.8} parent=27 // pred_check
              _
            $region34: #{net_discriminator.8} parent=27 // pred_check_branch
              %188 = sbr.rel target = $region36
            $region35: #{net_discriminator.8} parent=27 // pred_region
              %s190 = ssub.s32 256, 1
              loop: start=0, step=1, limit=1
              $region37: #{net_discriminator.8} parent=35 // loop_pre_header
                _
              $region38: #{net_discriminator.8} parent=35 // loop_header
                %s192 = sphi 0, %s196
                %p193 = scmp.ge.s32.totalorder %s192, 1
                %s197 = sphi %s182, %s182
                %s198 = sphi %s176, %s176
              $region39: #{net_discriminator.8} parent=35 // loop_header_branch
                %195 = sbr.rel (%p193) target = $region43
              $region40: #{net_discriminator.8} parent=35 // loop_body
                %v199 = vld [vmem:[%s197] sm:%s190]
                %200 = vst [vmem:[%s198] sm:%s190] %v199
                %v201 = vld [vmem:[%s197 + $0x10] sm:%s190]
                %202 = vst [vmem:[%s198 + $0x8] sm:%s190] %v201
                %v203 = vld [vmem:[%s197 + $0x20] sm:%s190]
                %204 = vst [vmem:[%s198 + $0x10] sm:%s190] %v203
                %v205 = vld [vmem:[%s197 + $0x30] sm:%s190]
                %206 = vst [vmem:[%s198 + $0x18] sm:%s190] %v205
                %v207 = vld [vmem:[%s197 + $0x40] sm:%s190]
                %208 = vst [vmem:[%s198 + $0x20] sm:%s190] %v207
                %v209 = vld [vmem:[%s197 + $0x50] sm:%s190]
                %210 = vst [vmem:[%s198 + $0x28] sm:%s190] %v209
                %v211 = vld [vmem:[%s197 + $0x60] sm:%s190]
                %212 = vst [vmem:[%s198 + $0x30] sm:%s190] %v211
                %v213 = vld [vmem:[%s197 + $0x70] sm:%s190]
                %214 = vst [vmem:[%s198 + $0x38] sm:%s190] %v213
                %v215 = vld [vmem:[%s197 + $0x80] sm:%s190]
                %216 = vst [vmem:[%s198 + $0x40] sm:%s190] %v215
                %v217 = vld [vmem:[%s197 + $0x90] sm:%s190]
                %218 = vst [vmem:[%s198 + $0x48] sm:%s190] %v217
                %v219 = vld [vmem:[%s197 + $0xa0] sm:%s190]
                %220 = vst [vmem:[%s198 + $0x50] sm:%s190] %v219
                %v221 = vld [vmem:[%s197 + $0xb0] sm:%s190]
                %222 = vst [vmem:[%s198 + $0x58] sm:%s190] %v221
                %v223 = vld [vmem:[%s197 + $0xc0] sm:%s190]
                %224 = vst [vmem:[%s198 + $0x60] sm:%s190] %v223
                %v225 = vld [vmem:[%s197 + $0xd0] sm:%s190]
                %226 = vst [vmem:[%s198 + $0x68] sm:%s190] %v225
                %v227 = vld [vmem:[%s197 + $0xe0] sm:%s190]
                %228 = vst [vmem:[%s198 + $0x70] sm:%s190] %v227
                %v229 = vld [vmem:[%s197 + $0xf0] sm:%s190]
                %230 = vst [vmem:[%s198 + $0x78] sm:%s190] %v229
                %v231 = vld [vmem:[%s197 + $0x100] sm:%s190]
                %232 = vst [vmem:[%s198 + $0x80] sm:%s190] %v231
                %v233 = vld [vmem:[%s197 + $0x110] sm:%s190]
                %234 = vst [vmem:[%s198 + $0x88] sm:%s190] %v233
                %v235 = vld [vmem:[%s197 + $0x120] sm:%s190]
                %236 = vst [vmem:[%s198 + $0x90] sm:%s190] %v235
                %v237 = vld [vmem:[%s197 + $0x130] sm:%s190]
                %238 = vst [vmem:[%s198 + $0x98] sm:%s190] %v237
                %v239 = vld [vmem:[%s197 + $0x140] sm:%s190]
                %240 = vst [vmem:[%s198 + $0xa0] sm:%s190] %v239
                %v241 = vld [vmem:[%s197 + $0x150] sm:%s190]
                %242 = vst [vmem:[%s198 + $0xa8] sm:%s190] %v241
                %v243 = vld [vmem:[%s197 + $0x160] sm:%s190]
                %244 = vst [vmem:[%s198 + $0xb0] sm:%s190] %v243
                %v245 = vld [vmem:[%s197 + $0x170] sm:%s190]
                %246 = vst [vmem:[%s198 + $0xb8] sm:%s190] %v245
                %v247 = vld [vmem:[%s197 + $0x180] sm:%s190]
                %248 = vst [vmem:[%s198 + $0xc0] sm:%s190] %v247
                %v249 = vld [vmem:[%s197 + $0x190] sm:%s190]
                %250 = vst [vmem:[%s198 + $0xc8] sm:%s190] %v249
                %v251 = vld [vmem:[%s197 + $0x1a0] sm:%s190]
                %252 = vst [vmem:[%s198 + $0xd0] sm:%s190] %v251
                %v253 = vld [vmem:[%s197 + $0x1b0] sm:%s190]
                %254 = vst [vmem:[%s198 + $0xd8] sm:%s190] %v253
                %v255 = vld [vmem:[%s197 + $0x1c0] sm:%s190]
                %256 = vst [vmem:[%s198 + $0xe0] sm:%s190] %v255
                %v257 = vld [vmem:[%s197 + $0x1d0] sm:%s190]
                %258 = vst [vmem:[%s198 + $0xe8] sm:%s190] %v257
                %v259 = vld [vmem:[%s197 + $0x1e0] sm:%s190]
                %260 = vst [vmem:[%s198 + $0xf0] sm:%s190] %v259
                %v261 = vld [vmem:[%s197 + $0x1f0] sm:%s190]
                %262 = vst [vmem:[%s198 + $0xf8] sm:%s190] %v261
                %v263 = vld [vmem:[%s197 + $0x200] sm:%s190]
                %264 = vst [vmem:[%s198 + $0x100] sm:%s190] %v263
                %v265 = vld [vmem:[%s197 + $0x210] sm:%s190]
                %266 = vst [vmem:[%s198 + $0x108] sm:%s190] %v265
                %v267 = vld [vmem:[%s197 + $0x220] sm:%s190]
                %268 = vst [vmem:[%s198 + $0x110] sm:%s190] %v267
                %v269 = vld [vmem:[%s197 + $0x230] sm:%s190]
                %270 = vst [vmem:[%s198 + $0x118] sm:%s190] %v269
                %v271 = vld [vmem:[%s197 + $0x240] sm:%s190]
                %272 = vst [vmem:[%s198 + $0x120] sm:%s190] %v271
                %v273 = vld [vmem:[%s197 + $0x250] sm:%s190]
                %274 = vst [vmem:[%s198 + $0x128] sm:%s190] %v273
                %v275 = vld [vmem:[%s197 + $0x260] sm:%s190]
                %276 = vst [vmem:[%s198 + $0x130] sm:%s190] %v275
                %v277 = vld [vmem:[%s197 + $0x270] sm:%s190]
                %278 = vst [vmem:[%s198 + $0x138] sm:%s190] %v277
                %v279 = vld [vmem:[%s197 + $0x280] sm:%s190]
                %280 = vst [vmem:[%s198 + $0x140] sm:%s190] %v279
                %v281 = vld [vmem:[%s197 + $0x290] sm:%s190]
                %282 = vst [vmem:[%s198 + $0x148] sm:%s190] %v281
                %v283 = vld [vmem:[%s197 + $0x2a0] sm:%s190]
                %284 = vst [vmem:[%s198 + $0x150] sm:%s190] %v283
                %v285 = vld [vmem:[%s197 + $0x2b0] sm:%s190]
                %286 = vst [vmem:[%s198 + $0x158] sm:%s190] %v285
                %v287 = vld [vmem:[%s197 + $0x2c0] sm:%s190]
                %288 = vst [vmem:[%s198 + $0x160] sm:%s190] %v287
                %v289 = vld [vmem:[%s197 + $0x2d0] sm:%s190]
                %290 = vst [vmem:[%s198 + $0x168] sm:%s190] %v289
                %v291 = vld [vmem:[%s197 + $0x2e0] sm:%s190]
                %292 = vst [vmem:[%s198 + $0x170] sm:%s190] %v291
                %v293 = vld [vmem:[%s197 + $0x2f0] sm:%s190]
                %294 = vst [vmem:[%s198 + $0x178] sm:%s190] %v293
                %v295 = vld [vmem:[%s197 + $0x300] sm:%s190]
                %296 = vst [vmem:[%s198 + $0x180] sm:%s190] %v295
                %v297 = vld [vmem:[%s197 + $0x310] sm:%s190]
                %298 = vst [vmem:[%s198 + $0x188] sm:%s190] %v297
                %v299 = vld [vmem:[%s197 + $0x320] sm:%s190]
                %300 = vst [vmem:[%s198 + $0x190] sm:%s190] %v299
                %v301 = vld [vmem:[%s197 + $0x330] sm:%s190]
                %302 = vst [vmem:[%s198 + $0x198] sm:%s190] %v301
                %v303 = vld [vmem:[%s197 + $0x340] sm:%s190]
                %304 = vst [vmem:[%s198 + $0x1a0] sm:%s190] %v303
                %v305 = vld [vmem:[%s197 + $0x350] sm:%s190]
                %306 = vst [vmem:[%s198 + $0x1a8] sm:%s190] %v305
                %v307 = vld [vmem:[%s197 + $0x360] sm:%s190]
                %308 = vst [vmem:[%s198 + $0x1b0] sm:%s190] %v307
                %v309 = vld [vmem:[%s197 + $0x370] sm:%s190]
                %310 = vst [vmem:[%s198 + $0x1b8] sm:%s190] %v309
                %v311 = vld [vmem:[%s197 + $0x380] sm:%s190]
                %312 = vst [vmem:[%s198 + $0x1c0] sm:%s190] %v311
                %v313 = vld [vmem:[%s197 + $0x390] sm:%s190]
                %314 = vst [vmem:[%s198 + $0x1c8] sm:%s190] %v313
                %v315 = vld [vmem:[%s197 + $0x3a0] sm:%s190]
                %316 = vst [vmem:[%s198 + $0x1d0] sm:%s190] %v315
                %v317 = vld [vmem:[%s197 + $0x3b0] sm:%s190]
                %318 = vst [vmem:[%s198 + $0x1d8] sm:%s190] %v317
                %v319 = vld [vmem:[%s197 + $0x3c0] sm:%s190]
                %320 = vst [vmem:[%s198 + $0x1e0] sm:%s190] %v319
                %v321 = vld [vmem:[%s197 + $0x3d0] sm:%s190]
                %322 = vst [vmem:[%s198 + $0x1e8] sm:%s190] %v321
                %v323 = vld [vmem:[%s197 + $0x3e0] sm:%s190]
                %324 = vst [vmem:[%s198 + $0x1f0] sm:%s190] %v323
                %v325 = vld [vmem:[%s197 + $0x3f0] sm:%s190]
                %326 = vst [vmem:[%s198 + $0x1f8] sm:%s190] %v325
                %v327 = vld [vmem:[%s197 + $0x400] sm:%s190]
                %328 = vst [vmem:[%s198 + $0x200] sm:%s190] %v327
                %v329 = vld [vmem:[%s197 + $0x410] sm:%s190]
                %330 = vst [vmem:[%s198 + $0x208] sm:%s190] %v329
                %v331 = vld [vmem:[%s197 + $0x420] sm:%s190]
                %332 = vst [vmem:[%s198 + $0x210] sm:%s190] %v331
                %v333 = vld [vmem:[%s197 + $0x430] sm:%s190]
                %334 = vst [vmem:[%s198 + $0x218] sm:%s190] %v333
                %v335 = vld [vmem:[%s197 + $0x440] sm:%s190]
                %336 = vst [vmem:[%s198 + $0x220] sm:%s190] %v335
                %v337 = vld [vmem:[%s197 + $0x450] sm:%s190]
                %338 = vst [vmem:[%s198 + $0x228] sm:%s190] %v337
                %v339 = vld [vmem:[%s197 + $0x460] sm:%s190]
                %340 = vst [vmem:[%s198 + $0x230] sm:%s190] %v339
                %v341 = vld [vmem:[%s197 + $0x470] sm:%s190]
                %342 = vst [vmem:[%s198 + $0x238] sm:%s190] %v341
                %v343 = vld [vmem:[%s197 + $0x480] sm:%s190]
                %344 = vst [vmem:[%s198 + $0x240] sm:%s190] %v343
                %v345 = vld [vmem:[%s197 + $0x490] sm:%s190]
                %346 = vst [vmem:[%s198 + $0x248] sm:%s190] %v345
                %v347 = vld [vmem:[%s197 + $0x4a0] sm:%s190]
                %348 = vst [vmem:[%s198 + $0x250] sm:%s190] %v347
                %v349 = vld [vmem:[%s197 + $0x4b0] sm:%s190]
                %350 = vst [vmem:[%s198 + $0x258] sm:%s190] %v349
                %v351 = vld [vmem:[%s197 + $0x4c0] sm:%s190]
                %352 = vst [vmem:[%s198 + $0x260] sm:%s190] %v351
                %v353 = vld [vmem:[%s197 + $0x4d0] sm:%s190]
                %354 = vst [vmem:[%s198 + $0x268] sm:%s190] %v353
                %v355 = vld [vmem:[%s197 + $0x4e0] sm:%s190]
                %356 = vst [vmem:[%s198 + $0x270] sm:%s190] %v355
                %v357 = vld [vmem:[%s197 + $0x4f0] sm:%s190]
                %358 = vst [vmem:[%s198 + $0x278] sm:%s190] %v357
                %v359 = vld [vmem:[%s197 + $0x500] sm:%s190]
                %360 = vst [vmem:[%s198 + $0x280] sm:%s190] %v359
                %v361 = vld [vmem:[%s197 + $0x510] sm:%s190]
                %362 = vst [vmem:[%s198 + $0x288] sm:%s190] %v361
                %v363 = vld [vmem:[%s197 + $0x520] sm:%s190]
                %364 = vst [vmem:[%s198 + $0x290] sm:%s190] %v363
                %v365 = vld [vmem:[%s197 + $0x530] sm:%s190]
                %366 = vst [vmem:[%s198 + $0x298] sm:%s190] %v365
                %v367 = vld [vmem:[%s197 + $0x540] sm:%s190]
                %368 = vst [vmem:[%s198 + $0x2a0] sm:%s190] %v367
                %v369 = vld [vmem:[%s197 + $0x550] sm:%s190]
                %370 = vst [vmem:[%s198 + $0x2a8] sm:%s190] %v369
                %v371 = vld [vmem:[%s197 + $0x560] sm:%s190]
                %372 = vst [vmem:[%s198 + $0x2b0] sm:%s190] %v371
                %v373 = vld [vmem:[%s197 + $0x570] sm:%s190]
                %374 = vst [vmem:[%s198 + $0x2b8] sm:%s190] %v373
                %v375 = vld [vmem:[%s197 + $0x580] sm:%s190]
                %376 = vst [vmem:[%s198 + $0x2c0] sm:%s190] %v375
                %v377 = vld [vmem:[%s197 + $0x590] sm:%s190]
                %378 = vst [vmem:[%s198 + $0x2c8] sm:%s190] %v377
                %v379 = vld [vmem:[%s197 + $0x5a0] sm:%s190]
                %380 = vst [vmem:[%s198 + $0x2d0] sm:%s190] %v379
                %v381 = vld [vmem:[%s197 + $0x5b0] sm:%s190]
                %382 = vst [vmem:[%s198 + $0x2d8] sm:%s190] %v381
                %v383 = vld [vmem:[%s197 + $0x5c0] sm:%s190]
                %384 = vst [vmem:[%s198 + $0x2e0] sm:%s190] %v383
                %v385 = vld [vmem:[%s197 + $0x5d0] sm:%s190]
                %386 = vst [vmem:[%s198 + $0x2e8] sm:%s190] %v385
                %v387 = vld [vmem:[%s197 + $0x5e0] sm:%s190]
                %388 = vst [vmem:[%s198 + $0x2f0] sm:%s190] %v387
                %v389 = vld [vmem:[%s197 + $0x5f0] sm:%s190]
                %390 = vst [vmem:[%s198 + $0x2f8] sm:%s190] %v389
                %v391 = vld [vmem:[%s197 + $0x600] sm:%s190]
                %392 = vst [vmem:[%s198 + $0x300] sm:%s190] %v391
                %v393 = vld [vmem:[%s197 + $0x610] sm:%s190]
                %394 = vst [vmem:[%s198 + $0x308] sm:%s190] %v393
                %v395 = vld [vmem:[%s197 + $0x620] sm:%s190]
                %396 = vst [vmem:[%s198 + $0x310] sm:%s190] %v395
                %v397 = vld [vmem:[%s197 + $0x630] sm:%s190]
                %398 = vst [vmem:[%s198 + $0x318] sm:%s190] %v397
                %v399 = vld [vmem:[%s197 + $0x640] sm:%s190]
                %400 = vst [vmem:[%s198 + $0x320] sm:%s190] %v399
                %v401 = vld [vmem:[%s197 + $0x650] sm:%s190]
                %402 = vst [vmem:[%s198 + $0x328] sm:%s190] %v401
                %v403 = vld [vmem:[%s197 + $0x660] sm:%s190]
                %404 = vst [vmem:[%s198 + $0x330] sm:%s190] %v403
                %v405 = vld [vmem:[%s197 + $0x670] sm:%s190]
                %406 = vst [vmem:[%s198 + $0x338] sm:%s190] %v405
                %v407 = vld [vmem:[%s197 + $0x680] sm:%s190]
                %408 = vst [vmem:[%s198 + $0x340] sm:%s190] %v407
                %v409 = vld [vmem:[%s197 + $0x690] sm:%s190]
                %410 = vst [vmem:[%s198 + $0x348] sm:%s190] %v409
                %v411 = vld [vmem:[%s197 + $0x6a0] sm:%s190]
                %412 = vst [vmem:[%s198 + $0x350] sm:%s190] %v411
                %v413 = vld [vmem:[%s197 + $0x6b0] sm:%s190]
                %414 = vst [vmem:[%s198 + $0x358] sm:%s190] %v413
                %v415 = vld [vmem:[%s197 + $0x6c0] sm:%s190]
                %416 = vst [vmem:[%s198 + $0x360] sm:%s190] %v415
                %v417 = vld [vmem:[%s197 + $0x6d0] sm:%s190]
                %418 = vst [vmem:[%s198 + $0x368] sm:%s190] %v417
                %v419 = vld [vmem:[%s197 + $0x6e0] sm:%s190]
                %420 = vst [vmem:[%s198 + $0x370] sm:%s190] %v419
                %v421 = vld [vmem:[%s197 + $0x6f0] sm:%s190]
                %422 = vst [vmem:[%s198 + $0x378] sm:%s190] %v421
                %v423 = vld [vmem:[%s197 + $0x700] sm:%s190]
                %424 = vst [vmem:[%s198 + $0x380] sm:%s190] %v423
                %v425 = vld [vmem:[%s197 + $0x710] sm:%s190]
                %426 = vst [vmem:[%s198 + $0x388] sm:%s190] %v425
                %v427 = vld [vmem:[%s197 + $0x720] sm:%s190]
                %428 = vst [vmem:[%s198 + $0x390] sm:%s190] %v427
                %v429 = vld [vmem:[%s197 + $0x730] sm:%s190]
                %430 = vst [vmem:[%s198 + $0x398] sm:%s190] %v429
                %v431 = vld [vmem:[%s197 + $0x740] sm:%s190]
                %432 = vst [vmem:[%s198 + $0x3a0] sm:%s190] %v431
                %v433 = vld [vmem:[%s197 + $0x750] sm:%s190]
                %434 = vst [vmem:[%s198 + $0x3a8] sm:%s190] %v433
                %v435 = vld [vmem:[%s197 + $0x760] sm:%s190]
                %436 = vst [vmem:[%s198 + $0x3b0] sm:%s190] %v435
                %v437 = vld [vmem:[%s197 + $0x770] sm:%s190]
                %438 = vst [vmem:[%s198 + $0x3b8] sm:%s190] %v437
                %v439 = vld [vmem:[%s197 + $0x780] sm:%s190]
                %440 = vst [vmem:[%s198 + $0x3c0] sm:%s190] %v439
                %v441 = vld [vmem:[%s197 + $0x790] sm:%s190]
                %442 = vst [vmem:[%s198 + $0x3c8] sm:%s190] %v441
                %v443 = vld [vmem:[%s197 + $0x7a0] sm:%s190]
                %444 = vst [vmem:[%s198 + $0x3d0] sm:%s190] %v443
                %v445 = vld [vmem:[%s197 + $0x7b0] sm:%s190]
                %446 = vst [vmem:[%s198 + $0x3d8] sm:%s190] %v445
                %v447 = vld [vmem:[%s197 + $0x7c0] sm:%s190]
                %448 = vst [vmem:[%s198 + $0x3e0] sm:%s190] %v447
                %v449 = vld [vmem:[%s197 + $0x7d0] sm:%s190]
                %450 = vst [vmem:[%s198 + $0x3e8] sm:%s190] %v449
                %v451 = vld [vmem:[%s197 + $0x7e0] sm:%s190]
                %452 = vst [vmem:[%s198 + $0x3f0] sm:%s190] %v451
                %v453 = vld [vmem:[%s197 + $0x7f0] sm:%s190]
                %454 = vst [vmem:[%s198 + $0x3f8] sm:%s190] %v453
                %v455 = vld [vmem:[%s197 + $0x800] sm:%s190]
                %456 = vst [vmem:[%s198 + $0x400] sm:%s190] %v455
                %v457 = vld [vmem:[%s197 + $0x810] sm:%s190]
                %458 = vst [vmem:[%s198 + $0x408] sm:%s190] %v457
                %v459 = vld [vmem:[%s197 + $0x820] sm:%s190]
                %460 = vst [vmem:[%s198 + $0x410] sm:%s190] %v459
                %v461 = vld [vmem:[%s197 + $0x830] sm:%s190]
                %462 = vst [vmem:[%s198 + $0x418] sm:%s190] %v461
                %v463 = vld [vmem:[%s197 + $0x840] sm:%s190]
                %464 = vst [vmem:[%s198 + $0x420] sm:%s190] %v463
                %v465 = vld [vmem:[%s197 + $0x850] sm:%s190]
                %466 = vst [vmem:[%s198 + $0x428] sm:%s190] %v465
                %v467 = vld [vmem:[%s197 + $0x860] sm:%s190]
                %468 = vst [vmem:[%s198 + $0x430] sm:%s190] %v467
                %v469 = vld [vmem:[%s197 + $0x870] sm:%s190]
                %470 = vst [vmem:[%s198 + $0x438] sm:%s190] %v469
                %v471 = vld [vmem:[%s197 + $0x880] sm:%s190]
                %472 = vst [vmem:[%s198 + $0x440] sm:%s190] %v471
                %v473 = vld [vmem:[%s197 + $0x890] sm:%s190]
                %474 = vst [vmem:[%s198 + $0x448] sm:%s190] %v473
                %v475 = vld [vmem:[%s197 + $0x8a0] sm:%s190]
                %476 = vst [vmem:[%s198 + $0x450] sm:%s190] %v475
                %v477 = vld [vmem:[%s197 + $0x8b0] sm:%s190]
                %478 = vst [vmem:[%s198 + $0x458] sm:%s190] %v477
                %v479 = vld [vmem:[%s197 + $0x8c0] sm:%s190]
                %480 = vst [vmem:[%s198 + $0x460] sm:%s190] %v479
                %v481 = vld [vmem:[%s197 + $0x8d0] sm:%s190]
                %482 = vst [vmem:[%s198 + $0x468] sm:%s190] %v481
                %v483 = vld [vmem:[%s197 + $0x8e0] sm:%s190]
                %484 = vst [vmem:[%s198 + $0x470] sm:%s190] %v483
                %v485 = vld [vmem:[%s197 + $0x8f0] sm:%s190]
                %486 = vst [vmem:[%s198 + $0x478] sm:%s190] %v485
                %v487 = vld [vmem:[%s197 + $0x900] sm:%s190]
                %488 = vst [vmem:[%s198 + $0x480] sm:%s190] %v487
                %v489 = vld [vmem:[%s197 + $0x910] sm:%s190]
                %490 = vst [vmem:[%s198 + $0x488] sm:%s190] %v489
                %v491 = vld [vmem:[%s197 + $0x920] sm:%s190]
                %492 = vst [vmem:[%s198 + $0x490] sm:%s190] %v491
                %v493 = vld [vmem:[%s197 + $0x930] sm:%s190]
                %494 = vst [vmem:[%s198 + $0x498] sm:%s190] %v493
                %v495 = vld [vmem:[%s197 + $0x940] sm:%s190]
                %496 = vst [vmem:[%s198 + $0x4a0] sm:%s190] %v495
                %v497 = vld [vmem:[%s197 + $0x950] sm:%s190]
                %498 = vst [vmem:[%s198 + $0x4a8] sm:%s190] %v497
                %v499 = vld [vmem:[%s197 + $0x960] sm:%s190]
                %500 = vst [vmem:[%s198 + $0x4b0] sm:%s190] %v499
                %v501 = vld [vmem:[%s197 + $0x970] sm:%s190]
                %502 = vst [vmem:[%s198 + $0x4b8] sm:%s190] %v501
                %v503 = vld [vmem:[%s197 + $0x980] sm:%s190]
                %504 = vst [vmem:[%s198 + $0x4c0] sm:%s190] %v503
                %v505 = vld [vmem:[%s197 + $0x990] sm:%s190]
                %506 = vst [vmem:[%s198 + $0x4c8] sm:%s190] %v505
                %v507 = vld [vmem:[%s197 + $0x9a0] sm:%s190]
                %508 = vst [vmem:[%s198 + $0x4d0] sm:%s190] %v507
                %v509 = vld [vmem:[%s197 + $0x9b0] sm:%s190]
                %510 = vst [vmem:[%s198 + $0x4d8] sm:%s190] %v509
                %v511 = vld [vmem:[%s197 + $0x9c0] sm:%s190]
                %512 = vst [vmem:[%s198 + $0x4e0] sm:%s190] %v511
                %v513 = vld [vmem:[%s197 + $0x9d0] sm:%s190]
                %514 = vst [vmem:[%s198 + $0x4e8] sm:%s190] %v513
                %v515 = vld [vmem:[%s197 + $0x9e0] sm:%s190]
                %516 = vst [vmem:[%s198 + $0x4f0] sm:%s190] %v515
                %v517 = vld [vmem:[%s197 + $0x9f0] sm:%s190]
                %518 = vst [vmem:[%s198 + $0x4f8] sm:%s190] %v517
                %v519 = vld [vmem:[%s197 + $0xa00] sm:%s190]
                %520 = vst [vmem:[%s198 + $0x500] sm:%s190] %v519
                %v521 = vld [vmem:[%s197 + $0xa10] sm:%s190]
                %522 = vst [vmem:[%s198 + $0x508] sm:%s190] %v521
                %v523 = vld [vmem:[%s197 + $0xa20] sm:%s190]
                %524 = vst [vmem:[%s198 + $0x510] sm:%s190] %v523
                %v525 = vld [vmem:[%s197 + $0xa30] sm:%s190]
                %526 = vst [vmem:[%s198 + $0x518] sm:%s190] %v525
                %v527 = vld [vmem:[%s197 + $0xa40] sm:%s190]
                %528 = vst [vmem:[%s198 + $0x520] sm:%s190] %v527
                %v529 = vld [vmem:[%s197 + $0xa50] sm:%s190]
                %530 = vst [vmem:[%s198 + $0x528] sm:%s190] %v529
                %v531 = vld [vmem:[%s197 + $0xa60] sm:%s190]
                %532 = vst [vmem:[%s198 + $0x530] sm:%s190] %v531
                %v533 = vld [vmem:[%s197 + $0xa70] sm:%s190]
                %534 = vst [vmem:[%s198 + $0x538] sm:%s190] %v533
                %v535 = vld [vmem:[%s197 + $0xa80] sm:%s190]
                %536 = vst [vmem:[%s198 + $0x540] sm:%s190] %v535
                %v537 = vld [vmem:[%s197 + $0xa90] sm:%s190]
                %538 = vst [vmem:[%s198 + $0x548] sm:%s190] %v537
                %v539 = vld [vmem:[%s197 + $0xaa0] sm:%s190]
                %540 = vst [vmem:[%s198 + $0x550] sm:%s190] %v539
                %v541 = vld [vmem:[%s197 + $0xab0] sm:%s190]
                %542 = vst [vmem:[%s198 + $0x558] sm:%s190] %v541
                %v543 = vld [vmem:[%s197 + $0xac0] sm:%s190]
                %544 = vst [vmem:[%s198 + $0x560] sm:%s190] %v543
                %v545 = vld [vmem:[%s197 + $0xad0] sm:%s190]
                %546 = vst [vmem:[%s198 + $0x568] sm:%s190] %v545
                %v547 = vld [vmem:[%s197 + $0xae0] sm:%s190]
                %548 = vst [vmem:[%s198 + $0x570] sm:%s190] %v547
                %v549 = vld [vmem:[%s197 + $0xaf0] sm:%s190]
                %550 = vst [vmem:[%s198 + $0x578] sm:%s190] %v549
                %v551 = vld [vmem:[%s197 + $0xb00] sm:%s190]
                %552 = vst [vmem:[%s198 + $0x580] sm:%s190] %v551
                %v553 = vld [vmem:[%s197 + $0xb10] sm:%s190]
                %554 = vst [vmem:[%s198 + $0x588] sm:%s190] %v553
                %v555 = vld [vmem:[%s197 + $0xb20] sm:%s190]
                %556 = vst [vmem:[%s198 + $0x590] sm:%s190] %v555
                %v557 = vld [vmem:[%s197 + $0xb30] sm:%s190]
                %558 = vst [vmem:[%s198 + $0x598] sm:%s190] %v557
                %v559 = vld [vmem:[%s197 + $0xb40] sm:%s190]
                %560 = vst [vmem:[%s198 + $0x5a0] sm:%s190] %v559
                %v561 = vld [vmem:[%s197 + $0xb50] sm:%s190]
                %562 = vst [vmem:[%s198 + $0x5a8] sm:%s190] %v561
                %v563 = vld [vmem:[%s197 + $0xb60] sm:%s190]
                %564 = vst [vmem:[%s198 + $0x5b0] sm:%s190] %v563
                %v565 = vld [vmem:[%s197 + $0xb70] sm:%s190]
                %566 = vst [vmem:[%s198 + $0x5b8] sm:%s190] %v565
                %v567 = vld [vmem:[%s197 + $0xb80] sm:%s190]
                %568 = vst [vmem:[%s198 + $0x5c0] sm:%s190] %v567
                %v569 = vld [vmem:[%s197 + $0xb90] sm:%s190]
                %570 = vst [vmem:[%s198 + $0x5c8] sm:%s190] %v569
                %v571 = vld [vmem:[%s197 + $0xba0] sm:%s190]
                %572 = vst [vmem:[%s198 + $0x5d0] sm:%s190] %v571
                %v573 = vld [vmem:[%s197 + $0xbb0] sm:%s190]
                %574 = vst [vmem:[%s198 + $0x5d8] sm:%s190] %v573
                %v575 = vld [vmem:[%s197 + $0xbc0] sm:%s190]
                %576 = vst [vmem:[%s198 + $0x5e0] sm:%s190] %v575
                %v577 = vld [vmem:[%s197 + $0xbd0] sm:%s190]
                %578 = vst [vmem:[%s198 + $0x5e8] sm:%s190] %v577
                %v579 = vld [vmem:[%s197 + $0xbe0] sm:%s190]
                %580 = vst [vmem:[%s198 + $0x5f0] sm:%s190] %v579
                %v581 = vld [vmem:[%s197 + $0xbf0] sm:%s190]
                %582 = vst [vmem:[%s198 + $0x5f8] sm:%s190] %v581
                %v583 = vld [vmem:[%s197 + $0xc00] sm:%s190]
                %584 = vst [vmem:[%s198 + $0x600] sm:%s190] %v583
                %v585 = vld [vmem:[%s197 + $0xc10] sm:%s190]
                %586 = vst [vmem:[%s198 + $0x608] sm:%s190] %v585
                %v587 = vld [vmem:[%s197 + $0xc20] sm:%s190]
                %588 = vst [vmem:[%s198 + $0x610] sm:%s190] %v587
                %v589 = vld [vmem:[%s197 + $0xc30] sm:%s190]
                %590 = vst [vmem:[%s198 + $0x618] sm:%s190] %v589
                %v591 = vld [vmem:[%s197 + $0xc40] sm:%s190]
                %592 = vst [vmem:[%s198 + $0x620] sm:%s190] %v591
                %v593 = vld [vmem:[%s197 + $0xc50] sm:%s190]
                %594 = vst [vmem:[%s198 + $0x628] sm:%s190] %v593
                %v595 = vld [vmem:[%s197 + $0xc60] sm:%s190]
                %596 = vst [vmem:[%s198 + $0x630] sm:%s190] %v595
                %v597 = vld [vmem:[%s197 + $0xc70] sm:%s190]
                %598 = vst [vmem:[%s198 + $0x638] sm:%s190] %v597
                %v599 = vld [vmem:[%s197 + $0xc80] sm:%s190]
                %600 = vst [vmem:[%s198 + $0x640] sm:%s190] %v599
                %v601 = vld [vmem:[%s197 + $0xc90] sm:%s190]
                %602 = vst [vmem:[%s198 + $0x648] sm:%s190] %v601
                %v603 = vld [vmem:[%s197 + $0xca0] sm:%s190]
                %604 = vst [vmem:[%s198 + $0x650] sm:%s190] %v603
                %v605 = vld [vmem:[%s197 + $0xcb0] sm:%s190]
                %606 = vst [vmem:[%s198 + $0x658] sm:%s190] %v605
                %v607 = vld [vmem:[%s197 + $0xcc0] sm:%s190]
                %608 = vst [vmem:[%s198 + $0x660] sm:%s190] %v607
                %v609 = vld [vmem:[%s197 + $0xcd0] sm:%s190]
                %610 = vst [vmem:[%s198 + $0x668] sm:%s190] %v609
                %v611 = vld [vmem:[%s197 + $0xce0] sm:%s190]
                %612 = vst [vmem:[%s198 + $0x670] sm:%s190] %v611
                %v613 = vld [vmem:[%s197 + $0xcf0] sm:%s190]
                %614 = vst [vmem:[%s198 + $0x678] sm:%s190] %v613
                %v615 = vld [vmem:[%s197 + $0xd00] sm:%s190]
                %616 = vst [vmem:[%s198 + $0x680] sm:%s190] %v615
                %v617 = vld [vmem:[%s197 + $0xd10] sm:%s190]
                %618 = vst [vmem:[%s198 + $0x688] sm:%s190] %v617
                %v619 = vld [vmem:[%s197 + $0xd20] sm:%s190]
                %620 = vst [vmem:[%s198 + $0x690] sm:%s190] %v619
                %v621 = vld [vmem:[%s197 + $0xd30] sm:%s190]
                %622 = vst [vmem:[%s198 + $0x698] sm:%s190] %v621
                %v623 = vld [vmem:[%s197 + $0xd40] sm:%s190]
                %624 = vst [vmem:[%s198 + $0x6a0] sm:%s190] %v623
                %v625 = vld [vmem:[%s197 + $0xd50] sm:%s190]
                %626 = vst [vmem:[%s198 + $0x6a8] sm:%s190] %v625
                %v627 = vld [vmem:[%s197 + $0xd60] sm:%s190]
                %628 = vst [vmem:[%s198 + $0x6b0] sm:%s190] %v627
                %v629 = vld [vmem:[%s197 + $0xd70] sm:%s190]
                %630 = vst [vmem:[%s198 + $0x6b8] sm:%s190] %v629
                %v631 = vld [vmem:[%s197 + $0xd80] sm:%s190]
                %632 = vst [vmem:[%s198 + $0x6c0] sm:%s190] %v631
                %v633 = vld [vmem:[%s197 + $0xd90] sm:%s190]
                %634 = vst [vmem:[%s198 + $0x6c8] sm:%s190] %v633
                %v635 = vld [vmem:[%s197 + $0xda0] sm:%s190]
                %636 = vst [vmem:[%s198 + $0x6d0] sm:%s190] %v635
                %v637 = vld [vmem:[%s197 + $0xdb0] sm:%s190]
                %638 = vst [vmem:[%s198 + $0x6d8] sm:%s190] %v637
                %v639 = vld [vmem:[%s197 + $0xdc0] sm:%s190]
                %640 = vst [vmem:[%s198 + $0x6e0] sm:%s190] %v639
                %v641 = vld [vmem:[%s197 + $0xdd0] sm:%s190]
                %642 = vst [vmem:[%s198 + $0x6e8] sm:%s190] %v641
                %v643 = vld [vmem:[%s197 + $0xde0] sm:%s190]
                %644 = vst [vmem:[%s198 + $0x6f0] sm:%s190] %v643
                %v645 = vld [vmem:[%s197 + $0xdf0] sm:%s190]
                %646 = vst [vmem:[%s198 + $0x6f8] sm:%s190] %v645
                %v647 = vld [vmem:[%s197 + $0xe00] sm:%s190]
                %648 = vst [vmem:[%s198 + $0x700] sm:%s190] %v647
                %v649 = vld [vmem:[%s197 + $0xe10] sm:%s190]
                %650 = vst [vmem:[%s198 + $0x708] sm:%s190] %v649
                %v651 = vld [vmem:[%s197 + $0xe20] sm:%s190]
                %652 = vst [vmem:[%s198 + $0x710] sm:%s190] %v651
                %v653 = vld [vmem:[%s197 + $0xe30] sm:%s190]
                %654 = vst [vmem:[%s198 + $0x718] sm:%s190] %v653
                %v655 = vld [vmem:[%s197 + $0xe40] sm:%s190]
                %656 = vst [vmem:[%s198 + $0x720] sm:%s190] %v655
                %v657 = vld [vmem:[%s197 + $0xe50] sm:%s190]
                %658 = vst [vmem:[%s198 + $0x728] sm:%s190] %v657
                %v659 = vld [vmem:[%s197 + $0xe60] sm:%s190]
                %660 = vst [vmem:[%s198 + $0x730] sm:%s190] %v659
                %v661 = vld [vmem:[%s197 + $0xe70] sm:%s190]
                %662 = vst [vmem:[%s198 + $0x738] sm:%s190] %v661
                %v663 = vld [vmem:[%s197 + $0xe80] sm:%s190]
                %664 = vst [vmem:[%s198 + $0x740] sm:%s190] %v663
                %v665 = vld [vmem:[%s197 + $0xe90] sm:%s190]
                %666 = vst [vmem:[%s198 + $0x748] sm:%s190] %v665
                %v667 = vld [vmem:[%s197 + $0xea0] sm:%s190]
                %668 = vst [vmem:[%s198 + $0x750] sm:%s190] %v667
                %v669 = vld [vmem:[%s197 + $0xeb0] sm:%s190]
                %670 = vst [vmem:[%s198 + $0x758] sm:%s190] %v669
                %v671 = vld [vmem:[%s197 + $0xec0] sm:%s190]
                %672 = vst [vmem:[%s198 + $0x760] sm:%s190] %v671
                %v673 = vld [vmem:[%s197 + $0xed0] sm:%s190]
                %674 = vst [vmem:[%s198 + $0x768] sm:%s190] %v673
                %v675 = vld [vmem:[%s197 + $0xee0] sm:%s190]
                %676 = vst [vmem:[%s198 + $0x770] sm:%s190] %v675
                %v677 = vld [vmem:[%s197 + $0xef0] sm:%s190]
                %678 = vst [vmem:[%s198 + $0x778] sm:%s190] %v677
                %v679 = vld [vmem:[%s197 + $0xf00] sm:%s190]
                %680 = vst [vmem:[%s198 + $0x780] sm:%s190] %v679
                %v681 = vld [vmem:[%s197 + $0xf10] sm:%s190]
                %682 = vst [vmem:[%s198 + $0x788] sm:%s190] %v681
                %v683 = vld [vmem:[%s197 + $0xf20] sm:%s190]
                %684 = vst [vmem:[%s198 + $0x790] sm:%s190] %v683
                %v685 = vld [vmem:[%s197 + $0xf30] sm:%s190]
                %686 = vst [vmem:[%s198 + $0x798] sm:%s190] %v685
                %v687 = vld [vmem:[%s197 + $0xf40] sm:%s190]
                %688 = vst [vmem:[%s198 + $0x7a0] sm:%s190] %v687
                %v689 = vld [vmem:[%s197 + $0xf50] sm:%s190]
                %690 = vst [vmem:[%s198 + $0x7a8] sm:%s190] %v689
                %v691 = vld [vmem:[%s197 + $0xf60] sm:%s190]
                %692 = vst [vmem:[%s198 + $0x7b0] sm:%s190] %v691
                %v693 = vld [vmem:[%s197 + $0xf70] sm:%s190]
                %694 = vst [vmem:[%s198 + $0x7b8] sm:%s190] %v693
                %v695 = vld [vmem:[%s197 + $0xf80] sm:%s190]
                %696 = vst [vmem:[%s198 + $0x7c0] sm:%s190] %v695
                %v697 = vld [vmem:[%s197 + $0xf90] sm:%s190]
                %698 = vst [vmem:[%s198 + $0x7c8] sm:%s190] %v697
                %v699 = vld [vmem:[%s197 + $0xfa0] sm:%s190]
                %700 = vst [vmem:[%s198 + $0x7d0] sm:%s190] %v699
                %v701 = vld [vmem:[%s197 + $0xfb0] sm:%s190]
                %702 = vst [vmem:[%s198 + $0x7d8] sm:%s190] %v701
                %v703 = vld [vmem:[%s197 + $0xfc0] sm:%s190]
                %704 = vst [vmem:[%s198 + $0x7e0] sm:%s190] %v703
                %v705 = vld [vmem:[%s197 + $0xfd0] sm:%s190]
                %706 = vst [vmem:[%s198 + $0x7e8] sm:%s190] %v705
                %v707 = vld [vmem:[%s197 + $0xfe0] sm:%s190]
                %708 = vst [vmem:[%s198 + $0x7f0] sm:%s190] %v707
                %v709 = vld [vmem:[%s197 + $0xff0] sm:%s190]
                %710 = vst [vmem:[%s198 + $0x7f8] sm:%s190] %v709
              $region41: #{net_discriminator.8} parent=35 // loop_footer
                %s196 = sadd.s32 1, %s192
              $region42: #{net_discriminator.8} parent=35 // loop_footer_branch
                %191 = sbr.rel target = $region38
              $region43: #{net_discriminator.8} parent=35 // loop_exit
                _
            $region36: #{net_discriminator.8} parent=27 // pred_fallthru
              _
          $region28: #{net_discriminator.8} parent=23 // pred_fallthru
            _
          %1235 = vnop
        $region24: #{net_discriminator.8} parent=15 // pred_fallthru
          _
        // Predicated region
        $region59: #{net_discriminator.8} parent=15 // pred_check
          %p1236 = pneg %p104
        $region60: #{net_discriminator.8} parent=15 // pred_check_branch
          %1238 = sbr.rel (%p1236) target = $region62
        $region61: #{net_discriminator.8} parent=15 // pred_region
          %s1239 = smul.u32 2, %s17
          %p1240 = scmp.lt.s32.totalorder %s1239, 3
          %s1241 = scalar_select %p1240, %s1239, 3
          %s1242 = scalar_lea.vmem %s2, %s1241
          %s1243 = smul.u32 2, %s17
        $region62: #{net_discriminator.8} parent=15 // pred_fallthru
          _
      $region16: #{net_discriminator.8} parent=5 // pred_fallthru
        _
      %p1244 = scmp.le.s32.totalorder 1, %s9
      %p1245 = scmp.lt.s32.totalorder %s9, 5
      %p1246 = pnand %p1244, %p1245
      %p1247 = pneg %p1246
      // Predicated region
      $region63: #{net_discriminator.8} parent=5 // pred_check
        _
      $region64: #{net_discriminator.8} parent=5 // pred_check_branch
        %1249 = sbr.rel (%p1246) target = $region66
      $region65: #{net_discriminator.8} parent=5 // pred_region
        %s1250 = ssub.s32 %s9, 1
        %s1251 = sand.u32 %s71, 1
        %s1252 = sand.u32 %s71, 1
        %s1253 = smul.addr %s1252, 2048
        %s1254 = scalar_lea.vmem [#allocation3], %s1253
        // Predicated region
        $region67: #{net_discriminator.8} parent=65 // pred_check
          %p1255 = pneg %p84
        $region68: #{net_discriminator.8} parent=65 // pred_check_branch
          %1257 = sbr.rel (%p1255) target = $region70
        $region69: #{net_discriminator.8} parent=65 // pred_region
          _
        $region70: #{net_discriminator.8} parent=65 // pred_fallthru
          _
        %s1258 = smul.u32 16, %s21
        %p1259 = scmp.lt.s32.totalorder %s19, 0
        %s1260 = scalar_select %p1259, %s19, 0
        %p1261 = scmp.lt.s32.totalorder %s1258, 31
        %s1262 = scalar_select %p1261, %s1258, 31
        %s1263 = smul.addr %s1260, 32
        %s1264 = sadd.s32 %s1262, %s1263
        %s1265 = smul.addr %s1264, 4
        %s1266 = scalar_lea.vmem %s0, %s1265
        %p1267 = pneg %p56
        %p1268 = pneg %p53
        %s1269 = sand.u32 %s71, 1
        %s1270 = sand.u32 %s71, 1
        %s1271 = smul.addr %s1270, 2048
        %s1272 = scalar_lea.vmem [#allocation3], %s1271
        %p1273 = pneg %p84
        %p1274 = pneg %p81
        %s1275 = smul.u32 2, %s20
        %p1276 = scmp.lt.s32.totalorder %s1275, 3
        %s1277 = scalar_select %p1276, %s1275, 3
        %s1278 = scalar_lea.vmem %s2, %s1277
        %p1279 = pneg %p110
        %p1280 = pneg %p107
        %p1281 = pneg %p138
        %p1282 = pneg %p135
        %s1283 = smul.u32 2, %s20
        %p1284 = scmp.lt.s32.totalorder %s19, 0
        %s1285 = scalar_select %p1284, %s19, 0
        %p1286 = scmp.lt.s32.totalorder %s1283, 3
        %s1287 = scalar_select %p1286, %s1283, 3
        %s1288 = smul.addr %s1285, 4
        %s1289 = sadd.s32 %s1287, %s1288
        %s1290 = smul.addr %s1289, 4
        %s1291 = scalar_lea.vmem %s3, %s1290
        %s1292 = smul.u32 16, %s21
        %p1293 = scmp.lt.s32.totalorder %s19, 0
        %s1294 = scalar_select %p1293, %s19, 0
        %p1295 = scmp.lt.s32.totalorder %s1292, 31
        %s1296 = scalar_select %p1295, %s1292, 31
        %s1297 = smul.addr %s1294, 32
        %s1298 = sadd.s32 %s1296, %s1297
        %s1299 = smul.addr %s1298, 4
        %s1300 = scalar_lea.vmem %s0, %s1299
        %s1301 = smul.u32 16, %s21
        %s1302 = smul.u32 256, %s21
        %s1303 = smul.u32 2, %s20
        %s1304 = smul.u32 2, %s20
        %p1305 = scmp.lt.s32.totalorder %s1304, 3
        %s1306 = scalar_select %p1305, %s1304, 3
        %s1307 = scalar_lea.vmem %s2, %s1306
        %s1308 = smul.u32 2, %s20
        %s1309 = smul.u32 2, %s20
        %p1310 = scmp.lt.s32.totalorder %s19, 0
        %s1311 = scalar_select %p1310, %s19, 0
        %p1312 = scmp.lt.s32.totalorder %s1309, 3
        %s1313 = scalar_select %p1312, %s1309, 3
        %s1314 = smul.addr %s1311, 4
        %s1315 = sadd.s32 %s1313, %s1314
        %s1316 = smul.addr %s1315, 4
        %s1317 = scalar_lea.vmem %s3, %s1316
        %s1318 = smul.u32 2, %s20
        %p1319 = scmp.eq.s32.totalorder %s21, 0
        // Predicated region
        $region71: #{net_discriminator.8} parent=65 // pred_check
          %p1320 = pneg %p1319
        $region72: #{net_discriminator.8} parent=65 // pred_check_branch
          %1322 = sbr.rel (%p1320) target = $region74
        $region73: #{net_discriminator.8} parent=65 // pred_region
          %1323 = vst [vmem:[#allocation2] sm:$0xff] 0.0
          %1324 = vst [vmem:[#allocation2 + $0x8] sm:$0xff] 0.0
        $region74: #{net_discriminator.8} parent=65 // pred_fallthru
          _
        %v1325 = vld [vmem:[#allocation2] sm:$0xff]
        %v1326 = vld [vmem:[#allocation2 + $0x8] sm:$0xff]
        %v1327 = vld [vmem:[%s1300] sm:$0xff]
        %v1328 = vld [vmem:[%s1300 + $0x8] sm:$0xff]
        %v1329 = vld [vmem:[%s1300 + $0x10] sm:$0xff]
        %v1330 = vld [vmem:[%s1300 + $0x18] sm:$0xff]
        %v1331 = vld [vmem:[%s1300 + $0x20] sm:$0xff]
        %v1332 = vld [vmem:[%s1300 + $0x28] sm:$0xff]
        %v1333 = vld [vmem:[%s1300 + $0x30] sm:$0xff]
        %v1334 = vld [vmem:[%s1300 + $0x38] sm:$0xff]
        %v1335 = vld [vmem:[%s1254] sm:$0xff]
        %v1336 = vld [vmem:[%s1254 + $0x8] sm:$0xff]
        %v1337 = vld [vmem:[%s1254 + $0x10] sm:$0xff]
        %v1338 = vld [vmem:[%s1254 + $0x18] sm:$0xff]
        %v1339 = vld [vmem:[%s1254 + $0x20] sm:$0xff]
        %v1340 = vld [vmem:[%s1254 + $0x28] sm:$0xff]
        %v1341 = vld [vmem:[%s1254 + $0x30] sm:$0xff]
        %v1342 = vld [vmem:[%s1254 + $0x38] sm:$0xff]
        %v1343 = vld [vmem:[%s1254 + $0x40] sm:$0xff]
        %v1344 = vld [vmem:[%s1254 + $0x48] sm:$0xff]
        %v1345 = vld [vmem:[%s1254 + $0x50] sm:$0xff]
        %v1346 = vld [vmem:[%s1254 + $0x58] sm:$0xff]
        %v1347 = vld [vmem:[%s1254 + $0x60] sm:$0xff]
        %v1348 = vld [vmem:[%s1254 + $0x68] sm:$0xff]
        %v1349 = vld [vmem:[%s1254 + $0x70] sm:$0xff]
        %v1350 = vld [vmem:[%s1254 + $0x78] sm:$0xff]
        %v1351 = vld [vmem:[%s1254 + $0x80] sm:$0xff]
        %v1352 = vld [vmem:[%s1254 + $0x88] sm:$0xff]
        %v1353 = vld [vmem:[%s1254 + $0x90] sm:$0xff]
        %v1354 = vld [vmem:[%s1254 + $0x98] sm:$0xff]
        %v1355 = vld [vmem:[%s1254 + $0xa0] sm:$0xff]
        %v1356 = vld [vmem:[%s1254 + $0xa8] sm:$0xff]
        %v1357 = vld [vmem:[%s1254 + $0xb0] sm:$0xff]
        %v1358 = vld [vmem:[%s1254 + $0xb8] sm:$0xff]
        %v1359 = vld [vmem:[%s1254 + $0xc0] sm:$0xff]
        %v1360 = vld [vmem:[%s1254 + $0xc8] sm:$0xff]
        %v1361 = vld [vmem:[%s1254 + $0xd0] sm:$0xff]
        %v1362 = vld [vmem:[%s1254 + $0xd8] sm:$0xff]
        %v1363 = vld [vmem:[%s1254 + $0xe0] sm:$0xff]
        %v1364 = vld [vmem:[%s1254 + $0xe8] sm:$0xff]
        %v1365 = vld [vmem:[%s1254 + $0xf0] sm:$0xff]
        %v1366 = vld [vmem:[%s1254 + $0xf8] sm:$0xff]
        %v1367 = vld [vmem:[%s1254 + $0x100] sm:$0xff]
        %v1368 = vld [vmem:[%s1254 + $0x108] sm:$0xff]
        %v1369 = vld [vmem:[%s1254 + $0x110] sm:$0xff]
        %v1370 = vld [vmem:[%s1254 + $0x118] sm:$0xff]
        %v1371 = vld [vmem:[%s1254 + $0x120] sm:$0xff]
        %v1372 = vld [vmem:[%s1254 + $0x128] sm:$0xff]
        %v1373 = vld [vmem:[%s1254 + $0x130] sm:$0xff]
        %v1374 = vld [vmem:[%s1254 + $0x138] sm:$0xff]
        %v1375 = vld [vmem:[%s1254 + $0x140] sm:$0xff]
        %v1376 = vld [vmem:[%s1254 + $0x148] sm:$0xff]
        %v1377 = vld [vmem:[%s1254 + $0x150] sm:$0xff]
        %v1378 = vld [vmem:[%s1254 + $0x158] sm:$0xff]
        %v1379 = vld [vmem:[%s1254 + $0x160] sm:$0xff]
        %v1380 = vld [vmem:[%s1254 + $0x168] sm:$0xff]
        %v1381 = vld [vmem:[%s1254 + $0x170] sm:$0xff]
        %v1382 = vld [vmem:[%s1254 + $0x178] sm:$0xff]
        %v1383 = vld [vmem:[%s1254 + $0x180] sm:$0xff]
        %v1384 = vld [vmem:[%s1254 + $0x188] sm:$0xff]
        %v1385 = vld [vmem:[%s1254 + $0x190] sm:$0xff]
        %v1386 = vld [vmem:[%s1254 + $0x198] sm:$0xff]
        %v1387 = vld [vmem:[%s1254 + $0x1a0] sm:$0xff]
        %v1388 = vld [vmem:[%s1254 + $0x1a8] sm:$0xff]
        %v1389 = vld [vmem:[%s1254 + $0x1b0] sm:$0xff]
        %v1390 = vld [vmem:[%s1254 + $0x1b8] sm:$0xff]
        %v1391 = vld [vmem:[%s1254 + $0x1c0] sm:$0xff]
        %v1392 = vld [vmem:[%s1254 + $0x1c8] sm:$0xff]
        %v1393 = vld [vmem:[%s1254 + $0x1d0] sm:$0xff]
        %v1394 = vld [vmem:[%s1254 + $0x1d8] sm:$0xff]
        %v1395 = vld [vmem:[%s1254 + $0x1e0] sm:$0xff]
        %v1396 = vld [vmem:[%s1254 + $0x1e8] sm:$0xff]
        %v1397 = vld [vmem:[%s1254 + $0x1f0] sm:$0xff]
        %v1398 = vld [vmem:[%s1254 + $0x1f8] sm:$0xff]
        %v1399 = vld [vmem:[%s1254 + $0x200] sm:$0xff]
        %v1400 = vld [vmem:[%s1254 + $0x208] sm:$0xff]
        %v1401 = vld [vmem:[%s1254 + $0x210] sm:$0xff]
        %v1402 = vld [vmem:[%s1254 + $0x218] sm:$0xff]
        %v1403 = vld [vmem:[%s1254 + $0x220] sm:$0xff]
        %v1404 = vld [vmem:[%s1254 + $0x228] sm:$0xff]
        %v1405 = vld [vmem:[%s1254 + $0x230] sm:$0xff]
        %v1406 = vld [vmem:[%s1254 + $0x238] sm:$0xff]
        %v1407 = vld [vmem:[%s1254 + $0x240] sm:$0xff]
        %v1408 = vld [vmem:[%s1254 + $0x248] sm:$0xff]
        %v1409 = vld [vmem:[%s1254 + $0x250] sm:$0xff]
        %v1410 = vld [vmem:[%s1254 + $0x258] sm:$0xff]
        %v1411 = vld [vmem:[%s1254 + $0x260] sm:$0xff]
        %v1412 = vld [vmem:[%s1254 + $0x268] sm:$0xff]
        %v1413 = vld [vmem:[%s1254 + $0x270] sm:$0xff]
        %v1414 = vld [vmem:[%s1254 + $0x278] sm:$0xff]
        %v1415 = vld [vmem:[%s1254 + $0x280] sm:$0xff]
        %v1416 = vld [vmem:[%s1254 + $0x288] sm:$0xff]
        %v1417 = vld [vmem:[%s1254 + $0x290] sm:$0xff]
        %v1418 = vld [vmem:[%s1254 + $0x298] sm:$0xff]
        %v1419 = vld [vmem:[%s1254 + $0x2a0] sm:$0xff]
        %v1420 = vld [vmem:[%s1254 + $0x2a8] sm:$0xff]
        %v1421 = vld [vmem:[%s1254 + $0x2b0] sm:$0xff]
        %v1422 = vld [vmem:[%s1254 + $0x2b8] sm:$0xff]
        %v1423 = vld [vmem:[%s1254 + $0x2c0] sm:$0xff]
        %v1424 = vld [vmem:[%s1254 + $0x2c8] sm:$0xff]
        %v1425 = vld [vmem:[%s1254 + $0x2d0] sm:$0xff]
        %v1426 = vld [vmem:[%s1254 + $0x2d8] sm:$0xff]
        %v1427 = vld [vmem:[%s1254 + $0x2e0] sm:$0xff]
        %v1428 = vld [vmem:[%s1254 + $0x2e8] sm:$0xff]
        %v1429 = vld [vmem:[%s1254 + $0x2f0] sm:$0xff]
        %v1430 = vld [vmem:[%s1254 + $0x2f8] sm:$0xff]
        %v1431 = vld [vmem:[%s1254 + $0x300] sm:$0xff]
        %v1432 = vld [vmem:[%s1254 + $0x308] sm:$0xff]
        %v1433 = vld [vmem:[%s1254 + $0x310] sm:$0xff]
        %v1434 = vld [vmem:[%s1254 + $0x318] sm:$0xff]
        %v1435 = vld [vmem:[%s1254 + $0x320] sm:$0xff]
        %v1436 = vld [vmem:[%s1254 + $0x328] sm:$0xff]
        %v1437 = vld [vmem:[%s1254 + $0x330] sm:$0xff]
        %v1438 = vld [vmem:[%s1254 + $0x338] sm:$0xff]
        %v1439 = vld [vmem:[%s1254 + $0x340] sm:$0xff]
        %v1440 = vld [vmem:[%s1254 + $0x348] sm:$0xff]
        %v1441 = vld [vmem:[%s1254 + $0x350] sm:$0xff]
        %v1442 = vld [vmem:[%s1254 + $0x358] sm:$0xff]
        %v1443 = vld [vmem:[%s1254 + $0x360] sm:$0xff]
        %v1444 = vld [vmem:[%s1254 + $0x368] sm:$0xff]
        %v1445 = vld [vmem:[%s1254 + $0x370] sm:$0xff]
        %v1446 = vld [vmem:[%s1254 + $0x378] sm:$0xff]
        %v1447 = vld [vmem:[%s1254 + $0x380] sm:$0xff]
        %v1448 = vld [vmem:[%s1254 + $0x388] sm:$0xff]
        %v1449 = vld [vmem:[%s1254 + $0x390] sm:$0xff]
        %v1450 = vld [vmem:[%s1254 + $0x398] sm:$0xff]
        %v1451 = vld [vmem:[%s1254 + $0x3a0] sm:$0xff]
        %v1452 = vld [vmem:[%s1254 + $0x3a8] sm:$0xff]
        %v1453 = vld [vmem:[%s1254 + $0x3b0] sm:$0xff]
        %v1454 = vld [vmem:[%s1254 + $0x3b8] sm:$0xff]
        %v1455 = vld [vmem:[%s1254 + $0x3c0] sm:$0xff]
        %v1456 = vld [vmem:[%s1254 + $0x3c8] sm:$0xff]
        %v1457 = vld [vmem:[%s1254 + $0x3d0] sm:$0xff]
        %v1458 = vld [vmem:[%s1254 + $0x3d8] sm:$0xff]
        %v1459 = vld [vmem:[%s1254 + $0x3e0] sm:$0xff]
        %v1460 = vld [vmem:[%s1254 + $0x3e8] sm:$0xff]
        %v1461 = vld [vmem:[%s1254 + $0x3f0] sm:$0xff]
        %v1462 = vld [vmem:[%s1254 + $0x3f8] sm:$0xff]
        %v1463 = vld [vmem:[%s1254 + $0x400] sm:$0xff]
        %v1464 = vld [vmem:[%s1254 + $0x408] sm:$0xff]
        %v1465 = vld [vmem:[%s1254 + $0x410] sm:$0xff]
        %v1466 = vld [vmem:[%s1254 + $0x418] sm:$0xff]
        %v1467 = vld [vmem:[%s1254 + $0x420] sm:$0xff]
        %v1468 = vld [vmem:[%s1254 + $0x428] sm:$0xff]
        %v1469 = vld [vmem:[%s1254 + $0x430] sm:$0xff]
        %v1470 = vld [vmem:[%s1254 + $0x438] sm:$0xff]
        %v1471 = vld [vmem:[%s1254 + $0x440] sm:$0xff]
        %v1472 = vld [vmem:[%s1254 + $0x448] sm:$0xff]
        %v1473 = vld [vmem:[%s1254 + $0x450] sm:$0xff]
        %v1474 = vld [vmem:[%s1254 + $0x458] sm:$0xff]
        %v1475 = vld [vmem:[%s1254 + $0x460] sm:$0xff]
        %v1476 = vld [vmem:[%s1254 + $0x468] sm:$0xff]
        %v1477 = vld [vmem:[%s1254 + $0x470] sm:$0xff]
        %v1478 = vld [vmem:[%s1254 + $0x478] sm:$0xff]
        %v1479 = vld [vmem:[%s1254 + $0x480] sm:$0xff]
        %v1480 = vld [vmem:[%s1254 + $0x488] sm:$0xff]
        %v1481 = vld [vmem:[%s1254 + $0x490] sm:$0xff]
        %v1482 = vld [vmem:[%s1254 + $0x498] sm:$0xff]
        %v1483 = vld [vmem:[%s1254 + $0x4a0] sm:$0xff]
        %v1484 = vld [vmem:[%s1254 + $0x4a8] sm:$0xff]
        %v1485 = vld [vmem:[%s1254 + $0x4b0] sm:$0xff]
        %v1486 = vld [vmem:[%s1254 + $0x4b8] sm:$0xff]
        %v1487 = vld [vmem:[%s1254 + $0x4c0] sm:$0xff]
        %v1488 = vld [vmem:[%s1254 + $0x4c8] sm:$0xff]
        %v1489 = vld [vmem:[%s1254 + $0x4d0] sm:$0xff]
        %v1490 = vld [vmem:[%s1254 + $0x4d8] sm:$0xff]
        %v1491 = vld [vmem:[%s1254 + $0x4e0] sm:$0xff]
        %v1492 = vld [vmem:[%s1254 + $0x4e8] sm:$0xff]
        %v1493 = vld [vmem:[%s1254 + $0x4f0] sm:$0xff]
        %v1494 = vld [vmem:[%s1254 + $0x4f8] sm:$0xff]
        %v1495 = vld [vmem:[%s1254 + $0x500] sm:$0xff]
        %v1496 = vld [vmem:[%s1254 + $0x508] sm:$0xff]
        %v1497 = vld [vmem:[%s1254 + $0x510] sm:$0xff]
        %v1498 = vld [vmem:[%s1254 + $0x518] sm:$0xff]
        %v1499 = vld [vmem:[%s1254 + $0x520] sm:$0xff]
        %v1500 = vld [vmem:[%s1254 + $0x528] sm:$0xff]
        %v1501 = vld [vmem:[%s1254 + $0x530] sm:$0xff]
        %v1502 = vld [vmem:[%s1254 + $0x538] sm:$0xff]
        %v1503 = vld [vmem:[%s1254 + $0x540] sm:$0xff]
        %v1504 = vld [vmem:[%s1254 + $0x548] sm:$0xff]
        %v1505 = vld [vmem:[%s1254 + $0x550] sm:$0xff]
        %v1506 = vld [vmem:[%s1254 + $0x558] sm:$0xff]
        %v1507 = vld [vmem:[%s1254 + $0x560] sm:$0xff]
        %v1508 = vld [vmem:[%s1254 + $0x568] sm:$0xff]
        %v1509 = vld [vmem:[%s1254 + $0x570] sm:$0xff]
        %v1510 = vld [vmem:[%s1254 + $0x578] sm:$0xff]
        %v1511 = vld [vmem:[%s1254 + $0x580] sm:$0xff]
        %v1512 = vld [vmem:[%s1254 + $0x588] sm:$0xff]
        %v1513 = vld [vmem:[%s1254 + $0x590] sm:$0xff]
        %v1514 = vld [vmem:[%s1254 + $0x598] sm:$0xff]
        %v1515 = vld [vmem:[%s1254 + $0x5a0] sm:$0xff]
        %v1516 = vld [vmem:[%s1254 + $0x5a8] sm:$0xff]
        %v1517 = vld [vmem:[%s1254 + $0x5b0] sm:$0xff]
        %v1518 = vld [vmem:[%s1254 + $0x5b8] sm:$0xff]
        %v1519 = vld [vmem:[%s1254 + $0x5c0] sm:$0xff]
        %v1520 = vld [vmem:[%s1254 + $0x5c8] sm:$0xff]
        %v1521 = vld [vmem:[%s1254 + $0x5d0] sm:$0xff]
        %v1522 = vld [vmem:[%s1254 + $0x5d8] sm:$0xff]
        %v1523 = vld [vmem:[%s1254 + $0x5e0] sm:$0xff]
        %v1524 = vld [vmem:[%s1254 + $0x5e8] sm:$0xff]
        %v1525 = vld [vmem:[%s1254 + $0x5f0] sm:$0xff]
        %v1526 = vld [vmem:[%s1254 + $0x5f8] sm:$0xff]
        %v1527 = vld [vmem:[%s1254 + $0x600] sm:$0xff]
        %v1528 = vld [vmem:[%s1254 + $0x608] sm:$0xff]
        %v1529 = vld [vmem:[%s1254 + $0x610] sm:$0xff]
        %v1530 = vld [vmem:[%s1254 + $0x618] sm:$0xff]
        %v1531 = vld [vmem:[%s1254 + $0x620] sm:$0xff]
        %v1532 = vld [vmem:[%s1254 + $0x628] sm:$0xff]
        %v1533 = vld [vmem:[%s1254 + $0x630] sm:$0xff]
        %v1534 = vld [vmem:[%s1254 + $0x638] sm:$0xff]
        %v1535 = vld [vmem:[%s1254 + $0x640] sm:$0xff]
        %v1536 = vld [vmem:[%s1254 + $0x648] sm:$0xff]
        %v1537 = vld [vmem:[%s1254 + $0x650] sm:$0xff]
        %v1538 = vld [vmem:[%s1254 + $0x658] sm:$0xff]
        %v1539 = vld [vmem:[%s1254 + $0x660] sm:$0xff]
        %v1540 = vld [vmem:[%s1254 + $0x668] sm:$0xff]
        %v1541 = vld [vmem:[%s1254 + $0x670] sm:$0xff]
        %v1542 = vld [vmem:[%s1254 + $0x678] sm:$0xff]
        %v1543 = vld [vmem:[%s1254 + $0x680] sm:$0xff]
        %v1544 = vld [vmem:[%s1254 + $0x688] sm:$0xff]
        %v1545 = vld [vmem:[%s1254 + $0x690] sm:$0xff]
        %v1546 = vld [vmem:[%s1254 + $0x698] sm:$0xff]
        %v1547 = vld [vmem:[%s1254 + $0x6a0] sm:$0xff]
        %v1548 = vld [vmem:[%s1254 + $0x6a8] sm:$0xff]
        %v1549 = vld [vmem:[%s1254 + $0x6b0] sm:$0xff]
        %v1550 = vld [vmem:[%s1254 + $0x6b8] sm:$0xff]
        %v1551 = vld [vmem:[%s1254 + $0x6c0] sm:$0xff]
        %v1552 = vld [vmem:[%s1254 + $0x6c8] sm:$0xff]
        %v1553 = vld [vmem:[%s1254 + $0x6d0] sm:$0xff]
        %v1554 = vld [vmem:[%s1254 + $0x6d8] sm:$0xff]
        %v1555 = vld [vmem:[%s1254 + $0x6e0] sm:$0xff]
        %v1556 = vld [vmem:[%s1254 + $0x6e8] sm:$0xff]
        %v1557 = vld [vmem:[%s1254 + $0x6f0] sm:$0xff]
        %v1558 = vld [vmem:[%s1254 + $0x6f8] sm:$0xff]
        %v1559 = vld [vmem:[%s1254 + $0x700] sm:$0xff]
        %v1560 = vld [vmem:[%s1254 + $0x708] sm:$0xff]
        %v1561 = vld [vmem:[%s1254 + $0x710] sm:$0xff]
        %v1562 = vld [vmem:[%s1254 + $0x718] sm:$0xff]
        %v1563 = vld [vmem:[%s1254 + $0x720] sm:$0xff]
        %v1564 = vld [vmem:[%s1254 + $0x728] sm:$0xff]
        %v1565 = vld [vmem:[%s1254 + $0x730] sm:$0xff]
        %v1566 = vld [vmem:[%s1254 + $0x738] sm:$0xff]
        %v1567 = vld [vmem:[%s1254 + $0x740] sm:$0xff]
        %v1568 = vld [vmem:[%s1254 + $0x748] sm:$0xff]
        %v1569 = vld [vmem:[%s1254 + $0x750] sm:$0xff]
        %v1570 = vld [vmem:[%s1254 + $0x758] sm:$0xff]
        %v1571 = vld [vmem:[%s1254 + $0x760] sm:$0xff]
        %v1572 = vld [vmem:[%s1254 + $0x768] sm:$0xff]
        %v1573 = vld [vmem:[%s1254 + $0x770] sm:$0xff]
        %v1574 = vld [vmem:[%s1254 + $0x778] sm:$0xff]
        %v1575 = vld [vmem:[%s1254 + $0x780] sm:$0xff]
        %v1576 = vld [vmem:[%s1254 + $0x788] sm:$0xff]
        %v1577 = vld [vmem:[%s1254 + $0x790] sm:$0xff]
        %v1578 = vld [vmem:[%s1254 + $0x798] sm:$0xff]
        %v1579 = vld [vmem:[%s1254 + $0x7a0] sm:$0xff]
        %v1580 = vld [vmem:[%s1254 + $0x7a8] sm:$0xff]
        %v1581 = vld [vmem:[%s1254 + $0x7b0] sm:$0xff]
        %v1582 = vld [vmem:[%s1254 + $0x7b8] sm:$0xff]
        %v1583 = vld [vmem:[%s1254 + $0x7c0] sm:$0xff]
        %v1584 = vld [vmem:[%s1254 + $0x7c8] sm:$0xff]
        %v1585 = vld [vmem:[%s1254 + $0x7d0] sm:$0xff]
        %v1586 = vld [vmem:[%s1254 + $0x7d8] sm:$0xff]
        %v1587 = vld [vmem:[%s1254 + $0x7e0] sm:$0xff]
        %v1588 = vld [vmem:[%s1254 + $0x7e8] sm:$0xff]
        %v1589 = vld [vmem:[%s1254 + $0x7f0] sm:$0xff]
        %v1590 = vld [vmem:[%s1254 + $0x7f8] sm:$0xff]
        %v1599 = vunpack.c.l.b16 %v1327
        %v1600 = vunpack.c.h.b16 %v1327
        %v1601 = vunpack.c.l.b16 %v1328
        %v1602 = vunpack.c.h.b16 %v1328
        %v1603 = vunpack.c.l.b16 %v1329
        %v1604 = vunpack.c.h.b16 %v1329
        %v1605 = vunpack.c.l.b16 %v1330
        %v1606 = vunpack.c.h.b16 %v1330
        %v1607 = vunpack.c.l.b16 %v1331
        %v1608 = vunpack.c.h.b16 %v1331
        %v1609 = vunpack.c.l.b16 %v1332
        %v1610 = vunpack.c.h.b16 %v1332
        %v1611 = vunpack.c.l.b16 %v1333
        %v1612 = vunpack.c.h.b16 %v1333
        %v1613 = vunpack.c.l.b16 %v1334
        %v1614 = vunpack.c.h.b16 %v1334
        %v1615 = vpack.c.b16 %v1599, %v1599
        %v1616 = vpack.c.b16 %v1600, %v1600
        %v1617 = vpack.c.b16 %v1601, %v1601
        %v1618 = vpack.c.b16 %v1602, %v1602
        %v1619 = vpack.c.b16 %v1603, %v1603
        %v1620 = vpack.c.b16 %v1604, %v1604
        %v1621 = vpack.c.b16 %v1605, %v1605
        %v1622 = vpack.c.b16 %v1606, %v1606
        %v1623 = vpack.c.b16 %v1607, %v1607
        %v1624 = vpack.c.b16 %v1608, %v1608
        %v1625 = vpack.c.b16 %v1609, %v1609
        %v1626 = vpack.c.b16 %v1610, %v1610
        %v1627 = vpack.c.b16 %v1611, %v1611
        %v1628 = vpack.c.b16 %v1612, %v1612
        %v1629 = vpack.c.b16 %v1613, %v1613
        %v1630 = vpack.c.b16 %v1614, %v1614
        %v1903 = vunpack.c.l.b16 %v1335
        %v1904 = vunpack.c.h.b16 %v1335
        %v1905 = vunpack.c.l.b16 %v1336
        %v1906 = vunpack.c.h.b16 %v1336
        %v1907 = vunpack.c.l.b16 %v1337
        %v1908 = vunpack.c.h.b16 %v1337
        %v1909 = vunpack.c.l.b16 %v1338
        %v1910 = vunpack.c.h.b16 %v1338
        %v1911 = vunpack.c.l.b16 %v1339
        %v1912 = vunpack.c.h.b16 %v1339
        %v1913 = vunpack.c.l.b16 %v1340
        %v1914 = vunpack.c.h.b16 %v1340
        %v1915 = vunpack.c.l.b16 %v1341
        %v1916 = vunpack.c.h.b16 %v1341
        %v1917 = vunpack.c.l.b16 %v1342
        %v1918 = vunpack.c.h.b16 %v1342
        %v1919 = vunpack.c.l.b16 %v1343
        %v1920 = vunpack.c.h.b16 %v1343
        %v1921 = vunpack.c.l.b16 %v1344
        %v1922 = vunpack.c.h.b16 %v1344
        %v1923 = vunpack.c.l.b16 %v1345
        %v1924 = vunpack.c.h.b16 %v1345
        %v1925 = vunpack.c.l.b16 %v1346
        %v1926 = vunpack.c.h.b16 %v1346
        %v1927 = vunpack.c.l.b16 %v1347
        %v1928 = vunpack.c.h.b16 %v1347
        %v1929 = vunpack.c.l.b16 %v1348
        %v1930 = vunpack.c.h.b16 %v1348
        %v1931 = vunpack.c.l.b16 %v1349
        %v1932 = vunpack.c.h.b16 %v1349
        %v1933 = vunpack.c.l.b16 %v1350
        %v1934 = vunpack.c.h.b16 %v1350
        %v1935 = vunpack.c.l.b16 %v1351
        %v1936 = vunpack.c.h.b16 %v1351
        %v1937 = vunpack.c.l.b16 %v1352
        %v1938 = vunpack.c.h.b16 %v1352
        %v1939 = vunpack.c.l.b16 %v1353
        %v1940 = vunpack.c.h.b16 %v1353
        %v1941 = vunpack.c.l.b16 %v1354
        %v1942 = vunpack.c.h.b16 %v1354
        %v1943 = vunpack.c.l.b16 %v1355
        %v1944 = vunpack.c.h.b16 %v1355
        %v1945 = vunpack.c.l.b16 %v1356
        %v1946 = vunpack.c.h.b16 %v1356
        %v1947 = vunpack.c.l.b16 %v1357
        %v1948 = vunpack.c.h.b16 %v1357
        %v1949 = vunpack.c.l.b16 %v1358
        %v1950 = vunpack.c.h.b16 %v1358
        %v1951 = vunpack.c.l.b16 %v1359
        %v1952 = vunpack.c.h.b16 %v1359
        %v1953 = vunpack.c.l.b16 %v1360
        %v1954 = vunpack.c.h.b16 %v1360
        %v1955 = vunpack.c.l.b16 %v1361
        %v1956 = vunpack.c.h.b16 %v1361
        %v1957 = vunpack.c.l.b16 %v1362
        %v1958 = vunpack.c.h.b16 %v1362
        %v1959 = vunpack.c.l.b16 %v1363
        %v1960 = vunpack.c.h.b16 %v1363
        %v1961 = vunpack.c.l.b16 %v1364
        %v1962 = vunpack.c.h.b16 %v1364
        %v1963 = vunpack.c.l.b16 %v1365
        %v1964 = vunpack.c.h.b16 %v1365
        %v1965 = vunpack.c.l.b16 %v1366
        %v1966 = vunpack.c.h.b16 %v1366
        %v1967 = vunpack.c.l.b16 %v1367
        %v1968 = vunpack.c.h.b16 %v1367
        %v1969 = vunpack.c.l.b16 %v1368
        %v1970 = vunpack.c.h.b16 %v1368
        %v1971 = vunpack.c.l.b16 %v1369
        %v1972 = vunpack.c.h.b16 %v1369
        %v1973 = vunpack.c.l.b16 %v1370
        %v1974 = vunpack.c.h.b16 %v1370
        %v1975 = vunpack.c.l.b16 %v1371
        %v1976 = vunpack.c.h.b16 %v1371
        %v1977 = vunpack.c.l.b16 %v1372
        %v1978 = vunpack.c.h.b16 %v1372
        %v1979 = vunpack.c.l.b16 %v1373
        %v1980 = vunpack.c.h.b16 %v1373
        %v1981 = vunpack.c.l.b16 %v1374
        %v1982 = vunpack.c.h.b16 %v1374
        %v1983 = vunpack.c.l.b16 %v1375
        %v1984 = vunpack.c.h.b16 %v1375
        %v1985 = vunpack.c.l.b16 %v1376
        %v1986 = vunpack.c.h.b16 %v1376
        %v1987 = vunpack.c.l.b16 %v1377
        %v1988 = vunpack.c.h.b16 %v1377
        %v1989 = vunpack.c.l.b16 %v1378
        %v1990 = vunpack.c.h.b16 %v1378
        %v1991 = vunpack.c.l.b16 %v1379
        %v1992 = vunpack.c.h.b16 %v1379
        %v1993 = vunpack.c.l.b16 %v1380
        %v1994 = vunpack.c.h.b16 %v1380
        %v1995 = vunpack.c.l.b16 %v1381
        %v1996 = vunpack.c.h.b16 %v1381
        %v1997 = vunpack.c.l.b16 %v1382
        %v1998 = vunpack.c.h.b16 %v1382
        %v1999 = vunpack.c.l.b16 %v1383
        %v2000 = vunpack.c.h.b16 %v1383
        %v2001 = vunpack.c.l.b16 %v1384
        %v2002 = vunpack.c.h.b16 %v1384
        %v2003 = vunpack.c.l.b16 %v1385
        %v2004 = vunpack.c.h.b16 %v1385
        %v2005 = vunpack.c.l.b16 %v1386
        %v2006 = vunpack.c.h.b16 %v1386
        %v2007 = vunpack.c.l.b16 %v1387
        %v2008 = vunpack.c.h.b16 %v1387
        %v2009 = vunpack.c.l.b16 %v1388
        %v2010 = vunpack.c.h.b16 %v1388
        %v2011 = vunpack.c.l.b16 %v1389
        %v2012 = vunpack.c.h.b16 %v1389
        %v2013 = vunpack.c.l.b16 %v1390
        %v2014 = vunpack.c.h.b16 %v1390
        %v2015 = vunpack.c.l.b16 %v1391
        %v2016 = vunpack.c.h.b16 %v1391
        %v2017 = vunpack.c.l.b16 %v1392
        %v2018 = vunpack.c.h.b16 %v1392
        %v2019 = vunpack.c.l.b16 %v1393
        %v2020 = vunpack.c.h.b16 %v1393
        %v2021 = vunpack.c.l.b16 %v1394
        %v2022 = vunpack.c.h.b16 %v1394
        %v2023 = vunpack.c.l.b16 %v1395
        %v2024 = vunpack.c.h.b16 %v1395
        %v2025 = vunpack.c.l.b16 %v1396
        %v2026 = vunpack.c.h.b16 %v1396
        %v2027 = vunpack.c.l.b16 %v1397
        %v2028 = vunpack.c.h.b16 %v1397
        %v2029 = vunpack.c.l.b16 %v1398
        %v2030 = vunpack.c.h.b16 %v1398
        %v2031 = vunpack.c.l.b16 %v1399
        %v2032 = vunpack.c.h.b16 %v1399
        %v2033 = vunpack.c.l.b16 %v1400
        %v2034 = vunpack.c.h.b16 %v1400
        %v2035 = vunpack.c.l.b16 %v1401
        %v2036 = vunpack.c.h.b16 %v1401
        %v2037 = vunpack.c.l.b16 %v1402
        %v2038 = vunpack.c.h.b16 %v1402
        %v2039 = vunpack.c.l.b16 %v1403
        %v2040 = vunpack.c.h.b16 %v1403
        %v2041 = vunpack.c.l.b16 %v1404
        %v2042 = vunpack.c.h.b16 %v1404
        %v2043 = vunpack.c.l.b16 %v1405
        %v2044 = vunpack.c.h.b16 %v1405
        %v2045 = vunpack.c.l.b16 %v1406
        %v2046 = vunpack.c.h.b16 %v1406
        %v2047 = vunpack.c.l.b16 %v1407
        %v2048 = vunpack.c.h.b16 %v1407
        %v2049 = vunpack.c.l.b16 %v1408
        %v2050 = vunpack.c.h.b16 %v1408
        %v2051 = vunpack.c.l.b16 %v1409
        %v2052 = vunpack.c.h.b16 %v1409
        %v2053 = vunpack.c.l.b16 %v1410
        %v2054 = vunpack.c.h.b16 %v1410
        %v2055 = vunpack.c.l.b16 %v1411
        %v2056 = vunpack.c.h.b16 %v1411
        %v2057 = vunpack.c.l.b16 %v1412
        %v2058 = vunpack.c.h.b16 %v1412
        %v2059 = vunpack.c.l.b16 %v1413
        %v2060 = vunpack.c.h.b16 %v1413
        %v2061 = vunpack.c.l.b16 %v1414
        %v2062 = vunpack.c.h.b16 %v1414
        %v2063 = vunpack.c.l.b16 %v1415
        %v2064 = vunpack.c.h.b16 %v1415
        %v2065 = vunpack.c.l.b16 %v1416
        %v2066 = vunpack.c.h.b16 %v1416
        %v2067 = vunpack.c.l.b16 %v1417
        %v2068 = vunpack.c.h.b16 %v1417
        %v2069 = vunpack.c.l.b16 %v1418
        %v2070 = vunpack.c.h.b16 %v1418
        %v2071 = vunpack.c.l.b16 %v1419
        %v2072 = vunpack.c.h.b16 %v1419
        %v2073 = vunpack.c.l.b16 %v1420
        %v2074 = vunpack.c.h.b16 %v1420
        %v2075 = vunpack.c.l.b16 %v1421
        %v2076 = vunpack.c.h.b16 %v1421
        %v2077 = vunpack.c.l.b16 %v1422
        %v2078 = vunpack.c.h.b16 %v1422
        %v2079 = vunpack.c.l.b16 %v1423
        %v2080 = vunpack.c.h.b16 %v1423
        %v2081 = vunpack.c.l.b16 %v1424
        %v2082 = vunpack.c.h.b16 %v1424
        %v2083 = vunpack.c.l.b16 %v1425
        %v2084 = vunpack.c.h.b16 %v1425
        %v2085 = vunpack.c.l.b16 %v1426
        %v2086 = vunpack.c.h.b16 %v1426
        %v2087 = vunpack.c.l.b16 %v1427
        %v2088 = vunpack.c.h.b16 %v1427
        %v2089 = vunpack.c.l.b16 %v1428
        %v2090 = vunpack.c.h.b16 %v1428
        %v2091 = vunpack.c.l.b16 %v1429
        %v2092 = vunpack.c.h.b16 %v1429
        %v2093 = vunpack.c.l.b16 %v1430
        %v2094 = vunpack.c.h.b16 %v1430
        %v2095 = vunpack.c.l.b16 %v1431
        %v2096 = vunpack.c.h.b16 %v1431
        %v2097 = vunpack.c.l.b16 %v1432
        %v2098 = vunpack.c.h.b16 %v1432
        %v2099 = vunpack.c.l.b16 %v1433
        %v2100 = vunpack.c.h.b16 %v1433
        %v2101 = vunpack.c.l.b16 %v1434
        %v2102 = vunpack.c.h.b16 %v1434
        %v2103 = vunpack.c.l.b16 %v1435
        %v2104 = vunpack.c.h.b16 %v1435
        %v2105 = vunpack.c.l.b16 %v1436
        %v2106 = vunpack.c.h.b16 %v1436
        %v2107 = vunpack.c.l.b16 %v1437
        %v2108 = vunpack.c.h.b16 %v1437
        %v2109 = vunpack.c.l.b16 %v1438
        %v2110 = vunpack.c.h.b16 %v1438
        %v2111 = vunpack.c.l.b16 %v1439
        %v2112 = vunpack.c.h.b16 %v1439
        %v2113 = vunpack.c.l.b16 %v1440
        %v2114 = vunpack.c.h.b16 %v1440
        %v2115 = vunpack.c.l.b16 %v1441
        %v2116 = vunpack.c.h.b16 %v1441
        %v2117 = vunpack.c.l.b16 %v1442
        %v2118 = vunpack.c.h.b16 %v1442
        %v2119 = vunpack.c.l.b16 %v1443
        %v2120 = vunpack.c.h.b16 %v1443
        %v2121 = vunpack.c.l.b16 %v1444
        %v2122 = vunpack.c.h.b16 %v1444
        %v2123 = vunpack.c.l.b16 %v1445
        %v2124 = vunpack.c.h.b16 %v1445
        %v2125 = vunpack.c.l.b16 %v1446
        %v2126 = vunpack.c.h.b16 %v1446
        %v2127 = vunpack.c.l.b16 %v1447
        %v2128 = vunpack.c.h.b16 %v1447
        %v2129 = vunpack.c.l.b16 %v1448
        %v2130 = vunpack.c.h.b16 %v1448
        %v2131 = vunpack.c.l.b16 %v1449
        %v2132 = vunpack.c.h.b16 %v1449
        %v2133 = vunpack.c.l.b16 %v1450
        %v2134 = vunpack.c.h.b16 %v1450
        %v2135 = vunpack.c.l.b16 %v1451
        %v2136 = vunpack.c.h.b16 %v1451
        %v2137 = vunpack.c.l.b16 %v1452
        %v2138 = vunpack.c.h.b16 %v1452
        %v2139 = vunpack.c.l.b16 %v1453
        %v2140 = vunpack.c.h.b16 %v1453
        %v2141 = vunpack.c.l.b16 %v1454
        %v2142 = vunpack.c.h.b16 %v1454
        %v2143 = vunpack.c.l.b16 %v1455
        %v2144 = vunpack.c.h.b16 %v1455
        %v2145 = vunpack.c.l.b16 %v1456
        %v2146 = vunpack.c.h.b16 %v1456
        %v2147 = vunpack.c.l.b16 %v1457
        %v2148 = vunpack.c.h.b16 %v1457
        %v2149 = vunpack.c.l.b16 %v1458
        %v2150 = vunpack.c.h.b16 %v1458
        %v2151 = vunpack.c.l.b16 %v1459
        %v2152 = vunpack.c.h.b16 %v1459
        %v2153 = vunpack.c.l.b16 %v1460
        %v2154 = vunpack.c.h.b16 %v1460
        %v2155 = vunpack.c.l.b16 %v1461
        %v2156 = vunpack.c.h.b16 %v1461
        %v2157 = vunpack.c.l.b16 %v1462
        %v2158 = vunpack.c.h.b16 %v1462
        %v2159 = vunpack.c.l.b16 %v1463
        %v2160 = vunpack.c.h.b16 %v1463
        %v2161 = vunpack.c.l.b16 %v1464
        %v2162 = vunpack.c.h.b16 %v1464
        %v2163 = vunpack.c.l.b16 %v1465
        %v2164 = vunpack.c.h.b16 %v1465
        %v2165 = vunpack.c.l.b16 %v1466
        %v2166 = vunpack.c.h.b16 %v1466
        %v2167 = vunpack.c.l.b16 %v1467
        %v2168 = vunpack.c.h.b16 %v1467
        %v2169 = vunpack.c.l.b16 %v1468
        %v2170 = vunpack.c.h.b16 %v1468
        %v2171 = vunpack.c.l.b16 %v1469
        %v2172 = vunpack.c.h.b16 %v1469
        %v2173 = vunpack.c.l.b16 %v1470
        %v2174 = vunpack.c.h.b16 %v1470
        %v2175 = vunpack.c.l.b16 %v1471
        %v2176 = vunpack.c.h.b16 %v1471
        %v2177 = vunpack.c.l.b16 %v1472
        %v2178 = vunpack.c.h.b16 %v1472
        %v2179 = vunpack.c.l.b16 %v1473
        %v2180 = vunpack.c.h.b16 %v1473
        %v2181 = vunpack.c.l.b16 %v1474
        %v2182 = vunpack.c.h.b16 %v1474
        %v2183 = vunpack.c.l.b16 %v1475
        %v2184 = vunpack.c.h.b16 %v1475
        %v2185 = vunpack.c.l.b16 %v1476
        %v2186 = vunpack.c.h.b16 %v1476
        %v2187 = vunpack.c.l.b16 %v1477
        %v2188 = vunpack.c.h.b16 %v1477
        %v2189 = vunpack.c.l.b16 %v1478
        %v2190 = vunpack.c.h.b16 %v1478
        %v2191 = vunpack.c.l.b16 %v1479
        %v2192 = vunpack.c.h.b16 %v1479
        %v2193 = vunpack.c.l.b16 %v1480
        %v2194 = vunpack.c.h.b16 %v1480
        %v2195 = vunpack.c.l.b16 %v1481
        %v2196 = vunpack.c.h.b16 %v1481
        %v2197 = vunpack.c.l.b16 %v1482
        %v2198 = vunpack.c.h.b16 %v1482
        %v2199 = vunpack.c.l.b16 %v1483
        %v2200 = vunpack.c.h.b16 %v1483
        %v2201 = vunpack.c.l.b16 %v1484
        %v2202 = vunpack.c.h.b16 %v1484
        %v2203 = vunpack.c.l.b16 %v1485
        %v2204 = vunpack.c.h.b16 %v1485
        %v2205 = vunpack.c.l.b16 %v1486
        %v2206 = vunpack.c.h.b16 %v1486
        %v2207 = vunpack.c.l.b16 %v1487
        %v2208 = vunpack.c.h.b16 %v1487
        %v2209 = vunpack.c.l.b16 %v1488
        %v2210 = vunpack.c.h.b16 %v1488
        %v2211 = vunpack.c.l.b16 %v1489
        %v2212 = vunpack.c.h.b16 %v1489
        %v2213 = vunpack.c.l.b16 %v1490
        %v2214 = vunpack.c.h.b16 %v1490
        %v2215 = vunpack.c.l.b16 %v1491
        %v2216 = vunpack.c.h.b16 %v1491
        %v2217 = vunpack.c.l.b16 %v1492
        %v2218 = vunpack.c.h.b16 %v1492
        %v2219 = vunpack.c.l.b16 %v1493
        %v2220 = vunpack.c.h.b16 %v1493
        %v2221 = vunpack.c.l.b16 %v1494
        %v2222 = vunpack.c.h.b16 %v1494
        %v2223 = vunpack.c.l.b16 %v1495
        %v2224 = vunpack.c.h.b16 %v1495
        %v2225 = vunpack.c.l.b16 %v1496
        %v2226 = vunpack.c.h.b16 %v1496
        %v2227 = vunpack.c.l.b16 %v1497
        %v2228 = vunpack.c.h.b16 %v1497
        %v2229 = vunpack.c.l.b16 %v1498
        %v2230 = vunpack.c.h.b16 %v1498
        %v2231 = vunpack.c.l.b16 %v1499
        %v2232 = vunpack.c.h.b16 %v1499
        %v2233 = vunpack.c.l.b16 %v1500
        %v2234 = vunpack.c.h.b16 %v1500
        %v2235 = vunpack.c.l.b16 %v1501
        %v2236 = vunpack.c.h.b16 %v1501
        %v2237 = vunpack.c.l.b16 %v1502
        %v2238 = vunpack.c.h.b16 %v1502
        %v2239 = vunpack.c.l.b16 %v1503
        %v2240 = vunpack.c.h.b16 %v1503
        %v2241 = vunpack.c.l.b16 %v1504
        %v2242 = vunpack.c.h.b16 %v1504
        %v2243 = vunpack.c.l.b16 %v1505
        %v2244 = vunpack.c.h.b16 %v1505
        %v2245 = vunpack.c.l.b16 %v1506
        %v2246 = vunpack.c.h.b16 %v1506
        %v2247 = vunpack.c.l.b16 %v1507
        %v2248 = vunpack.c.h.b16 %v1507
        %v2249 = vunpack.c.l.b16 %v1508
        %v2250 = vunpack.c.h.b16 %v1508
        %v2251 = vunpack.c.l.b16 %v1509
        %v2252 = vunpack.c.h.b16 %v1509
        %v2253 = vunpack.c.l.b16 %v1510
        %v2254 = vunpack.c.h.b16 %v1510
        %v2255 = vunpack.c.l.b16 %v1511
        %v2256 = vunpack.c.h.b16 %v1511
        %v2257 = vunpack.c.l.b16 %v1512
        %v2258 = vunpack.c.h.b16 %v1512
        %v2259 = vunpack.c.l.b16 %v1513
        %v2260 = vunpack.c.h.b16 %v1513
        %v2261 = vunpack.c.l.b16 %v1514
        %v2262 = vunpack.c.h.b16 %v1514
        %v2263 = vunpack.c.l.b16 %v1515
        %v2264 = vunpack.c.h.b16 %v1515
        %v2265 = vunpack.c.l.b16 %v1516
        %v2266 = vunpack.c.h.b16 %v1516
        %v2267 = vunpack.c.l.b16 %v1517
        %v2268 = vunpack.c.h.b16 %v1517
        %v2269 = vunpack.c.l.b16 %v1518
        %v2270 = vunpack.c.h.b16 %v1518
        %v2271 = vunpack.c.l.b16 %v1519
        %v2272 = vunpack.c.h.b16 %v1519
        %v2273 = vunpack.c.l.b16 %v1520
        %v2274 = vunpack.c.h.b16 %v1520
        %v2275 = vunpack.c.l.b16 %v1521
        %v2276 = vunpack.c.h.b16 %v1521
        %v2277 = vunpack.c.l.b16 %v1522
        %v2278 = vunpack.c.h.b16 %v1522
        %v2279 = vunpack.c.l.b16 %v1523
        %v2280 = vunpack.c.h.b16 %v1523
        %v2281 = vunpack.c.l.b16 %v1524
        %v2282 = vunpack.c.h.b16 %v1524
        %v2283 = vunpack.c.l.b16 %v1525
        %v2284 = vunpack.c.h.b16 %v1525
        %v2285 = vunpack.c.l.b16 %v1526
        %v2286 = vunpack.c.h.b16 %v1526
        %v2287 = vunpack.c.l.b16 %v1527
        %v2288 = vunpack.c.h.b16 %v1527
        %v2289 = vunpack.c.l.b16 %v1528
        %v2290 = vunpack.c.h.b16 %v1528
        %v2291 = vunpack.c.l.b16 %v1529
        %v2292 = vunpack.c.h.b16 %v1529
        %v2293 = vunpack.c.l.b16 %v1530
        %v2294 = vunpack.c.h.b16 %v1530
        %v2295 = vunpack.c.l.b16 %v1531
        %v2296 = vunpack.c.h.b16 %v1531
        %v2297 = vunpack.c.l.b16 %v1532
        %v2298 = vunpack.c.h.b16 %v1532
        %v2299 = vunpack.c.l.b16 %v1533
        %v2300 = vunpack.c.h.b16 %v1533
        %v2301 = vunpack.c.l.b16 %v1534
        %v2302 = vunpack.c.h.b16 %v1534
        %v2303 = vunpack.c.l.b16 %v1535
        %v2304 = vunpack.c.h.b16 %v1535
        %v2305 = vunpack.c.l.b16 %v1536
        %v2306 = vunpack.c.h.b16 %v1536
        %v2307 = vunpack.c.l.b16 %v1537
        %v2308 = vunpack.c.h.b16 %v1537
        %v2309 = vunpack.c.l.b16 %v1538
        %v2310 = vunpack.c.h.b16 %v1538
        %v2311 = vunpack.c.l.b16 %v1539
        %v2312 = vunpack.c.h.b16 %v1539
        %v2313 = vunpack.c.l.b16 %v1540
        %v2314 = vunpack.c.h.b16 %v1540
        %v2315 = vunpack.c.l.b16 %v1541
        %v2316 = vunpack.c.h.b16 %v1541
        %v2317 = vunpack.c.l.b16 %v1542
        %v2318 = vunpack.c.h.b16 %v1542
        %v2319 = vunpack.c.l.b16 %v1543
        %v2320 = vunpack.c.h.b16 %v1543
        %v2321 = vunpack.c.l.b16 %v1544
        %v2322 = vunpack.c.h.b16 %v1544
        %v2323 = vunpack.c.l.b16 %v1545
        %v2324 = vunpack.c.h.b16 %v1545
        %v2325 = vunpack.c.l.b16 %v1546
        %v2326 = vunpack.c.h.b16 %v1546
        %v2327 = vunpack.c.l.b16 %v1547
        %v2328 = vunpack.c.h.b16 %v1547
        %v2329 = vunpack.c.l.b16 %v1548
        %v2330 = vunpack.c.h.b16 %v1548
        %v2331 = vunpack.c.l.b16 %v1549
        %v2332 = vunpack.c.h.b16 %v1549
        %v2333 = vunpack.c.l.b16 %v1550
        %v2334 = vunpack.c.h.b16 %v1550
        %v2335 = vunpack.c.l.b16 %v1551
        %v2336 = vunpack.c.h.b16 %v1551
        %v2337 = vunpack.c.l.b16 %v1552
        %v2338 = vunpack.c.h.b16 %v1552
        %v2339 = vunpack.c.l.b16 %v1553
        %v2340 = vunpack.c.h.b16 %v1553
        %v2341 = vunpack.c.l.b16 %v1554
        %v2342 = vunpack.c.h.b16 %v1554
        %v2343 = vunpack.c.l.b16 %v1555
        %v2344 = vunpack.c.h.b16 %v1555
        %v2345 = vunpack.c.l.b16 %v1556
        %v2346 = vunpack.c.h.b16 %v1556
        %v2347 = vunpack.c.l.b16 %v1557
        %v2348 = vunpack.c.h.b16 %v1557
        %v2349 = vunpack.c.l.b16 %v1558
        %v2350 = vunpack.c.h.b16 %v1558
        %v2351 = vunpack.c.l.b16 %v1559
        %v2352 = vunpack.c.h.b16 %v1559
        %v2353 = vunpack.c.l.b16 %v1560
        %v2354 = vunpack.c.h.b16 %v1560
        %v2355 = vunpack.c.l.b16 %v1561
        %v2356 = vunpack.c.h.b16 %v1561
        %v2357 = vunpack.c.l.b16 %v1562
        %v2358 = vunpack.c.h.b16 %v1562
        %v2359 = vunpack.c.l.b16 %v1563
        %v2360 = vunpack.c.h.b16 %v1563
        %v2361 = vunpack.c.l.b16 %v1564
        %v2362 = vunpack.c.h.b16 %v1564
        %v2363 = vunpack.c.l.b16 %v1565
        %v2364 = vunpack.c.h.b16 %v1565
        %v2365 = vunpack.c.l.b16 %v1566
        %v2366 = vunpack.c.h.b16 %v1566
        %v2367 = vunpack.c.l.b16 %v1567
        %v2368 = vunpack.c.h.b16 %v1567
        %v2369 = vunpack.c.l.b16 %v1568
        %v2370 = vunpack.c.h.b16 %v1568
        %v2371 = vunpack.c.l.b16 %v1569
        %v2372 = vunpack.c.h.b16 %v1569
        %v2373 = vunpack.c.l.b16 %v1570
        %v2374 = vunpack.c.h.b16 %v1570
        %v2375 = vunpack.c.l.b16 %v1571
        %v2376 = vunpack.c.h.b16 %v1571
        %v2377 = vunpack.c.l.b16 %v1572
        %v2378 = vunpack.c.h.b16 %v1572
        %v2379 = vunpack.c.l.b16 %v1573
        %v2380 = vunpack.c.h.b16 %v1573
        %v2381 = vunpack.c.l.b16 %v1574
        %v2382 = vunpack.c.h.b16 %v1574
        %v2383 = vunpack.c.l.b16 %v1575
        %v2384 = vunpack.c.h.b16 %v1575
        %v2385 = vunpack.c.l.b16 %v1576
        %v2386 = vunpack.c.h.b16 %v1576
        %v2387 = vunpack.c.l.b16 %v1577
        %v2388 = vunpack.c.h.b16 %v1577
        %v2389 = vunpack.c.l.b16 %v1578
        %v2390 = vunpack.c.h.b16 %v1578
        %v2391 = vunpack.c.l.b16 %v1579
        %v2392 = vunpack.c.h.b16 %v1579
        %v2393 = vunpack.c.l.b16 %v1580
        %v2394 = vunpack.c.h.b16 %v1580
        %v2395 = vunpack.c.l.b16 %v1581
        %v2396 = vunpack.c.h.b16 %v1581
        %v2397 = vunpack.c.l.b16 %v1582
        %v2398 = vunpack.c.h.b16 %v1582
        %v2399 = vunpack.c.l.b16 %v1583
        %v2400 = vunpack.c.h.b16 %v1583
        %v2401 = vunpack.c.l.b16 %v1584
        %v2402 = vunpack.c.h.b16 %v1584
        %v2403 = vunpack.c.l.b16 %v1585
        %v2404 = vunpack.c.h.b16 %v1585
        %v2405 = vunpack.c.l.b16 %v1586
        %v2406 = vunpack.c.h.b16 %v1586
        %v2407 = vunpack.c.l.b16 %v1587
        %v2408 = vunpack.c.h.b16 %v1587
        %v2409 = vunpack.c.l.b16 %v1588
        %v2410 = vunpack.c.h.b16 %v1588
        %v2411 = vunpack.c.l.b16 %v1589
        %v2412 = vunpack.c.h.b16 %v1589
        %v2413 = vunpack.c.l.b16 %v1590
        %v2414 = vunpack.c.h.b16 %v1590
        %v2415 = vpack.c.b16 %v1905, %v1903
        %v2416 = vpack.c.b16 %v1906, %v1904
        %v2417 = vpack.c.b16 %v1909, %v1907
        %v2418 = vpack.c.b16 %v1910, %v1908
        %v2419 = vpack.c.b16 %v1913, %v1911
        %v2420 = vpack.c.b16 %v1914, %v1912
        %v2421 = vpack.c.b16 %v1917, %v1915
        %v2422 = vpack.c.b16 %v1918, %v1916
        %v2423 = vpack.c.b16 %v1921, %v1919
        %v2424 = vpack.c.b16 %v1922, %v1920
        %v2425 = vpack.c.b16 %v1925, %v1923
        %v2426 = vpack.c.b16 %v1926, %v1924
        %v2427 = vpack.c.b16 %v1929, %v1927
        %v2428 = vpack.c.b16 %v1930, %v1928
        %v2429 = vpack.c.b16 %v1933, %v1931
        %v2430 = vpack.c.b16 %v1934, %v1932
        %v2431 = vpack.c.b16 %v1937, %v1935
        %v2432 = vpack.c.b16 %v1938, %v1936
        %v2433 = vpack.c.b16 %v1941, %v1939
        %v2434 = vpack.c.b16 %v1942, %v1940
        %v2435 = vpack.c.b16 %v1945, %v1943
        %v2436 = vpack.c.b16 %v1946, %v1944
        %v2437 = vpack.c.b16 %v1949, %v1947
        %v2438 = vpack.c.b16 %v1950, %v1948
        %v2439 = vpack.c.b16 %v1953, %v1951
        %v2440 = vpack.c.b16 %v1954, %v1952
        %v2441 = vpack.c.b16 %v1957, %v1955
        %v2442 = vpack.c.b16 %v1958, %v1956
        %v2443 = vpack.c.b16 %v1961, %v1959
        %v2444 = vpack.c.b16 %v1962, %v1960
        %v2445 = vpack.c.b16 %v1965, %v1963
        %v2446 = vpack.c.b16 %v1966, %v1964
        %v2447 = vpack.c.b16 %v1969, %v1967
        %v2448 = vpack.c.b16 %v1970, %v1968
        %v2449 = vpack.c.b16 %v1973, %v1971
        %v2450 = vpack.c.b16 %v1974, %v1972
        %v2451 = vpack.c.b16 %v1977, %v1975
        %v2452 = vpack.c.b16 %v1978, %v1976
        %v2453 = vpack.c.b16 %v1981, %v1979
        %v2454 = vpack.c.b16 %v1982, %v1980
        %v2455 = vpack.c.b16 %v1985, %v1983
        %v2456 = vpack.c.b16 %v1986, %v1984
        %v2457 = vpack.c.b16 %v1989, %v1987
        %v2458 = vpack.c.b16 %v1990, %v1988
        %v2459 = vpack.c.b16 %v1993, %v1991
        %v2460 = vpack.c.b16 %v1994, %v1992
        %v2461 = vpack.c.b16 %v1997, %v1995
        %v2462 = vpack.c.b16 %v1998, %v1996
        %v2463 = vpack.c.b16 %v2001, %v1999
        %v2464 = vpack.c.b16 %v2002, %v2000
        %v2465 = vpack.c.b16 %v2005, %v2003
        %v2466 = vpack.c.b16 %v2006, %v2004
        %v2467 = vpack.c.b16 %v2009, %v2007
        %v2468 = vpack.c.b16 %v2010, %v2008
        %v2469 = vpack.c.b16 %v2013, %v2011
        %v2470 = vpack.c.b16 %v2014, %v2012
        %v2471 = vpack.c.b16 %v2017, %v2015
        %v2472 = vpack.c.b16 %v2018, %v2016
        %v2473 = vpack.c.b16 %v2021, %v2019
        %v2474 = vpack.c.b16 %v2022, %v2020
        %v2475 = vpack.c.b16 %v2025, %v2023
        %v2476 = vpack.c.b16 %v2026, %v2024
        %v2477 = vpack.c.b16 %v2029, %v2027
        %v2478 = vpack.c.b16 %v2030, %v2028
        %v2479 = vpack.c.b16 %v2033, %v2031
        %v2480 = vpack.c.b16 %v2034, %v2032
        %v2481 = vpack.c.b16 %v2037, %v2035
        %v2482 = vpack.c.b16 %v2038, %v2036
        %v2483 = vpack.c.b16 %v2041, %v2039
        %v2484 = vpack.c.b16 %v2042, %v2040
        %v2485 = vpack.c.b16 %v2045, %v2043
        %v2486 = vpack.c.b16 %v2046, %v2044
        %v2487 = vpack.c.b16 %v2049, %v2047
        %v2488 = vpack.c.b16 %v2050, %v2048
        %v2489 = vpack.c.b16 %v2053, %v2051
        %v2490 = vpack.c.b16 %v2054, %v2052
        %v2491 = vpack.c.b16 %v2057, %v2055
        %v2492 = vpack.c.b16 %v2058, %v2056
        %v2493 = vpack.c.b16 %v2061, %v2059
        %v2494 = vpack.c.b16 %v2062, %v2060
        %v2495 = vpack.c.b16 %v2065, %v2063
        %v2496 = vpack.c.b16 %v2066, %v2064
        %v2497 = vpack.c.b16 %v2069, %v2067
        %v2498 = vpack.c.b16 %v2070, %v2068
        %v2499 = vpack.c.b16 %v2073, %v2071
        %v2500 = vpack.c.b16 %v2074, %v2072
        %v2501 = vpack.c.b16 %v2077, %v2075
        %v2502 = vpack.c.b16 %v2078, %v2076
        %v2503 = vpack.c.b16 %v2081, %v2079
        %v2504 = vpack.c.b16 %v2082, %v2080
        %v2505 = vpack.c.b16 %v2085, %v2083
        %v2506 = vpack.c.b16 %v2086, %v2084
        %v2507 = vpack.c.b16 %v2089, %v2087
        %v2508 = vpack.c.b16 %v2090, %v2088
        %v2509 = vpack.c.b16 %v2093, %v2091
        %v2510 = vpack.c.b16 %v2094, %v2092
        %v2511 = vpack.c.b16 %v2097, %v2095
        %v2512 = vpack.c.b16 %v2098, %v2096
        %v2513 = vpack.c.b16 %v2101, %v2099
        %v2514 = vpack.c.b16 %v2102, %v2100
        %v2515 = vpack.c.b16 %v2105, %v2103
        %v2516 = vpack.c.b16 %v2106, %v2104
        %v2517 = vpack.c.b16 %v2109, %v2107
        %v2518 = vpack.c.b16 %v2110, %v2108
        %v2519 = vpack.c.b16 %v2113, %v2111
        %v2520 = vpack.c.b16 %v2114, %v2112
        %v2521 = vpack.c.b16 %v2117, %v2115
        %v2522 = vpack.c.b16 %v2118, %v2116
        %v2523 = vpack.c.b16 %v2121, %v2119
        %v2524 = vpack.c.b16 %v2122, %v2120
        %v2525 = vpack.c.b16 %v2125, %v2123
        %v2526 = vpack.c.b16 %v2126, %v2124
        %v2527 = vpack.c.b16 %v2129, %v2127
        %v2528 = vpack.c.b16 %v2130, %v2128
        %v2529 = vpack.c.b16 %v2133, %v2131
        %v2530 = vpack.c.b16 %v2134, %v2132
        %v2531 = vpack.c.b16 %v2137, %v2135
        %v2532 = vpack.c.b16 %v2138, %v2136
        %v2533 = vpack.c.b16 %v2141, %v2139
        %v2534 = vpack.c.b16 %v2142, %v2140
        %v2535 = vpack.c.b16 %v2145, %v2143
        %v2536 = vpack.c.b16 %v2146, %v2144
        %v2537 = vpack.c.b16 %v2149, %v2147
        %v2538 = vpack.c.b16 %v2150, %v2148
        %v2539 = vpack.c.b16 %v2153, %v2151
        %v2540 = vpack.c.b16 %v2154, %v2152
        %v2541 = vpack.c.b16 %v2157, %v2155
        %v2542 = vpack.c.b16 %v2158, %v2156
        %v2543 = vpack.c.b16 %v2161, %v2159
        %v2544 = vpack.c.b16 %v2162, %v2160
        %v2545 = vpack.c.b16 %v2165, %v2163
        %v2546 = vpack.c.b16 %v2166, %v2164
        %v2547 = vpack.c.b16 %v2169, %v2167
        %v2548 = vpack.c.b16 %v2170, %v2168
        %v2549 = vpack.c.b16 %v2173, %v2171
        %v2550 = vpack.c.b16 %v2174, %v2172
        %v2551 = vpack.c.b16 %v2177, %v2175
        %v2552 = vpack.c.b16 %v2178, %v2176
        %v2553 = vpack.c.b16 %v2181, %v2179
        %v2554 = vpack.c.b16 %v2182, %v2180
        %v2555 = vpack.c.b16 %v2185, %v2183
        %v2556 = vpack.c.b16 %v2186, %v2184
        %v2557 = vpack.c.b16 %v2189, %v2187
        %v2558 = vpack.c.b16 %v2190, %v2188
        %v2559 = vpack.c.b16 %v2193, %v2191
        %v2560 = vpack.c.b16 %v2194, %v2192
        %v2561 = vpack.c.b16 %v2197, %v2195
        %v2562 = vpack.c.b16 %v2198, %v2196
        %v2563 = vpack.c.b16 %v2201, %v2199
        %v2564 = vpack.c.b16 %v2202, %v2200
        %v2565 = vpack.c.b16 %v2205, %v2203
        %v2566 = vpack.c.b16 %v2206, %v2204
        %v2567 = vpack.c.b16 %v2209, %v2207
        %v2568 = vpack.c.b16 %v2210, %v2208
        %v2569 = vpack.c.b16 %v2213, %v2211
        %v2570 = vpack.c.b16 %v2214, %v2212
        %v2571 = vpack.c.b16 %v2217, %v2215
        %v2572 = vpack.c.b16 %v2218, %v2216
        %v2573 = vpack.c.b16 %v2221, %v2219
        %v2574 = vpack.c.b16 %v2222, %v2220
        %v2575 = vpack.c.b16 %v2225, %v2223
        %v2576 = vpack.c.b16 %v2226, %v2224
        %v2577 = vpack.c.b16 %v2229, %v2227
        %v2578 = vpack.c.b16 %v2230, %v2228
        %v2579 = vpack.c.b16 %v2233, %v2231
        %v2580 = vpack.c.b16 %v2234, %v2232
        %v2581 = vpack.c.b16 %v2237, %v2235
        %v2582 = vpack.c.b16 %v2238, %v2236
        %v2583 = vpack.c.b16 %v2241, %v2239
        %v2584 = vpack.c.b16 %v2242, %v2240
        %v2585 = vpack.c.b16 %v2245, %v2243
        %v2586 = vpack.c.b16 %v2246, %v2244
        %v2587 = vpack.c.b16 %v2249, %v2247
        %v2588 = vpack.c.b16 %v2250, %v2248
        %v2589 = vpack.c.b16 %v2253, %v2251
        %v2590 = vpack.c.b16 %v2254, %v2252
        %v2591 = vpack.c.b16 %v2257, %v2255
        %v2592 = vpack.c.b16 %v2258, %v2256
        %v2593 = vpack.c.b16 %v2261, %v2259
        %v2594 = vpack.c.b16 %v2262, %v2260
        %v2595 = vpack.c.b16 %v2265, %v2263
        %v2596 = vpack.c.b16 %v2266, %v2264
        %v2597 = vpack.c.b16 %v2269, %v2267
        %v2598 = vpack.c.b16 %v2270, %v2268
        %v2599 = vpack.c.b16 %v2273, %v2271
        %v2600 = vpack.c.b16 %v2274, %v2272
        %v2601 = vpack.c.b16 %v2277, %v2275
        %v2602 = vpack.c.b16 %v2278, %v2276
        %v2603 = vpack.c.b16 %v2281, %v2279
        %v2604 = vpack.c.b16 %v2282, %v2280
        %v2605 = vpack.c.b16 %v2285, %v2283
        %v2606 = vpack.c.b16 %v2286, %v2284
        %v2607 = vpack.c.b16 %v2289, %v2287
        %v2608 = vpack.c.b16 %v2290, %v2288
        %v2609 = vpack.c.b16 %v2293, %v2291
        %v2610 = vpack.c.b16 %v2294, %v2292
        %v2611 = vpack.c.b16 %v2297, %v2295
        %v2612 = vpack.c.b16 %v2298, %v2296
        %v2613 = vpack.c.b16 %v2301, %v2299
        %v2614 = vpack.c.b16 %v2302, %v2300
        %v2615 = vpack.c.b16 %v2305, %v2303
        %v2616 = vpack.c.b16 %v2306, %v2304
        %v2617 = vpack.c.b16 %v2309, %v2307
        %v2618 = vpack.c.b16 %v2310, %v2308
        %v2619 = vpack.c.b16 %v2313, %v2311
        %v2620 = vpack.c.b16 %v2314, %v2312
        %v2621 = vpack.c.b16 %v2317, %v2315
        %v2622 = vpack.c.b16 %v2318, %v2316
        %v2623 = vpack.c.b16 %v2321, %v2319
        %v2624 = vpack.c.b16 %v2322, %v2320
        %v2625 = vpack.c.b16 %v2325, %v2323
        %v2626 = vpack.c.b16 %v2326, %v2324
        %v2627 = vpack.c.b16 %v2329, %v2327
        %v2628 = vpack.c.b16 %v2330, %v2328
        %v2629 = vpack.c.b16 %v2333, %v2331
        %v2630 = vpack.c.b16 %v2334, %v2332
        %v2631 = vpack.c.b16 %v2337, %v2335
        %v2632 = vpack.c.b16 %v2338, %v2336
        %v2633 = vpack.c.b16 %v2341, %v2339
        %v2634 = vpack.c.b16 %v2342, %v2340
        %v2635 = vpack.c.b16 %v2345, %v2343
        %v2636 = vpack.c.b16 %v2346, %v2344
        %v2637 = vpack.c.b16 %v2349, %v2347
        %v2638 = vpack.c.b16 %v2350, %v2348
        %v2639 = vpack.c.b16 %v2353, %v2351
        %v2640 = vpack.c.b16 %v2354, %v2352
        %v2641 = vpack.c.b16 %v2357, %v2355
        %v2642 = vpack.c.b16 %v2358, %v2356
        %v2643 = vpack.c.b16 %v2361, %v2359
        %v2644 = vpack.c.b16 %v2362, %v2360
        %v2645 = vpack.c.b16 %v2365, %v2363
        %v2646 = vpack.c.b16 %v2366, %v2364
        %v2647 = vpack.c.b16 %v2369, %v2367
        %v2648 = vpack.c.b16 %v2370, %v2368
        %v2649 = vpack.c.b16 %v2373, %v2371
        %v2650 = vpack.c.b16 %v2374, %v2372
        %v2651 = vpack.c.b16 %v2377, %v2375
        %v2652 = vpack.c.b16 %v2378, %v2376
        %v2653 = vpack.c.b16 %v2381, %v2379
        %v2654 = vpack.c.b16 %v2382, %v2380
        %v2655 = vpack.c.b16 %v2385, %v2383
        %v2656 = vpack.c.b16 %v2386, %v2384
        %v2657 = vpack.c.b16 %v2389, %v2387
        %v2658 = vpack.c.b16 %v2390, %v2388
        %v2659 = vpack.c.b16 %v2393, %v2391
        %v2660 = vpack.c.b16 %v2394, %v2392
        %v2661 = vpack.c.b16 %v2397, %v2395
        %v2662 = vpack.c.b16 %v2398, %v2396
        %v2663 = vpack.c.b16 %v2401, %v2399
        %v2664 = vpack.c.b16 %v2402, %v2400
        %v2665 = vpack.c.b16 %v2405, %v2403
        %v2666 = vpack.c.b16 %v2406, %v2404
        %v2667 = vpack.c.b16 %v2409, %v2407
        %v2668 = vpack.c.b16 %v2410, %v2408
        %v2669 = vpack.c.b16 %v2413, %v2411
        %v2670 = vpack.c.b16 %v2414, %v2412
        %2927 = vmatprep.subr.bf16.mxu0 %v2430
        %2928 = vmatpush1.bf16.msra.mxu0 %v2429
        %2929 = vmatprep.subr.bf16.mxu0 %v2428
        %2930 = vmatpush1.bf16.msra.mxu0 %v2427
        %2931 = vmatprep.subr.bf16.mxu0 %v2426
        %2932 = vmatpush1.bf16.msra.mxu0 %v2425
        %2933 = vmatprep.subr.bf16.mxu0 %v2424
        %2934 = vmatpush1.bf16.msra.mxu0 %v2423
        %2935 = vmatprep.subr.bf16.mxu0 %v2422
        %2936 = vmatpush1.bf16.msra.mxu0 %v2421
        %2937 = vmatprep.subr.bf16.mxu0 %v2420
        %2938 = vmatpush1.bf16.msra.mxu0 %v2419
        %2939 = vmatprep.subr.bf16.mxu0 %v2418
        %2940 = vmatpush1.bf16.msra.mxu0 %v2417
        %2941 = vmatprep.subr.bf16.mxu0 %v2416
        %2942 = vmatpush1.bf16.msra.mxu0 %v2415
        %2943 = vmatprep.subr.bf16.mxu0 %v2446
        %2944 = vmatpush2.bf16.msra.mxu0 %v2445
        %2945 = vmatprep.subr.bf16.mxu0 %v2444
        %2946 = vmatpush2.bf16.msra.mxu0 %v2443
        %2947 = vmatprep.subr.bf16.mxu0 %v2442
        %2948 = vmatpush2.bf16.msra.mxu0 %v2441
        %2949 = vmatprep.subr.bf16.mxu0 %v2440
        %2950 = vmatpush2.bf16.msra.mxu0 %v2439
        %2951 = vmatprep.subr.bf16.mxu0 %v2438
        %2952 = vmatpush2.bf16.msra.mxu0 %v2437
        %2953 = vmatprep.subr.bf16.mxu0 %v2436
        %2954 = vmatpush2.bf16.msra.mxu0 %v2435
        %2955 = vmatprep.subr.bf16.mxu0 %v2434
        %2956 = vmatpush2.bf16.msra.mxu0 %v2433
        %2957 = vmatprep.subr.bf16.mxu0 %v2432
        %2958 = vmatpush2.bf16.msra.mxu0 %v2431
        %2959 = vmatprep.mubr.bf16.mxu0 %v1616
        %2960 = vmatmul.mubr.bf16.gmra.mxu0 %v1615
        %v2961 = vpop.f32.mrf.mxu0
        %v2962 = vadd.f32 0.0, %v2961
        %v2963 = vpop.f32.mrf.mxu0
        %v2964 = vadd.f32 0.0, %v2963
        %v2965 = vpop.f32.mrf.mxu0
        %v2966 = vpop.f32.mrf.mxu0
        %2967 = vdwg.mxu0
        %2968 = vmatprep.subr.bf16.mxu0 %v2462
        %2969 = vmatpush1.bf16.msra.mxu0 %v2461
        %2970 = vmatprep.subr.bf16.mxu0 %v2460
        %2971 = vmatpush1.bf16.msra.mxu0 %v2459
        %2972 = vmatprep.subr.bf16.mxu0 %v2458
        %2973 = vmatpush1.bf16.msra.mxu0 %v2457
        %2974 = vmatprep.subr.bf16.mxu0 %v2456
        %2975 = vmatpush1.bf16.msra.mxu0 %v2455
        %2976 = vmatprep.subr.bf16.mxu0 %v2454
        %2977 = vmatpush1.bf16.msra.mxu0 %v2453
        %2978 = vmatprep.subr.bf16.mxu0 %v2452
        %2979 = vmatpush1.bf16.msra.mxu0 %v2451
        %2980 = vmatprep.subr.bf16.mxu0 %v2450
        %2981 = vmatpush1.bf16.msra.mxu0 %v2449
        %2982 = vmatprep.subr.bf16.mxu0 %v2448
        %2983 = vmatpush1.bf16.msra.mxu0 %v2447
        %2984 = vmatprep.subr.bf16.mxu0 %v2478
        %2985 = vmatpush2.bf16.msra.mxu0 %v2477
        %2986 = vmatprep.subr.bf16.mxu0 %v2476
        %2987 = vmatpush2.bf16.msra.mxu0 %v2475
        %2988 = vmatprep.subr.bf16.mxu0 %v2474
        %2989 = vmatpush2.bf16.msra.mxu0 %v2473
        %2990 = vmatprep.subr.bf16.mxu0 %v2472
        %2991 = vmatpush2.bf16.msra.mxu0 %v2471
        %2992 = vmatprep.subr.bf16.mxu0 %v2470
        %2993 = vmatpush2.bf16.msra.mxu0 %v2469
        %2994 = vmatprep.subr.bf16.mxu0 %v2468
        %2995 = vmatpush2.bf16.msra.mxu0 %v2467
        %2996 = vmatprep.subr.bf16.mxu0 %v2466
        %2997 = vmatpush2.bf16.msra.mxu0 %v2465
        %2998 = vmatprep.subr.bf16.mxu0 %v2464
        %2999 = vmatpush2.bf16.msra.mxu0 %v2463
        %3000 = vmatprep.mubr.bf16.mxu0 %v1618
        %3001 = vmatmul.mubr.bf16.gmra.mxu0 %v1617
        %v3002 = vpop.f32.mrf.mxu0
        %v3003 = vadd.f32 %v2962, %v3002
        %v3004 = vpop.f32.mrf.mxu0
        %v3005 = vadd.f32 %v2964, %v3004
        %v3006 = vpop.f32.mrf.mxu0
        %v3007 = vpop.f32.mrf.mxu0
        %3008 = vdwg.mxu0
        %3009 = vmatprep.subr.bf16.mxu0 %v2494
        %3010 = vmatpush1.bf16.msra.mxu0 %v2493
        %3011 = vmatprep.subr.bf16.mxu0 %v2492
        %3012 = vmatpush1.bf16.msra.mxu0 %v2491
        %3013 = vmatprep.subr.bf16.mxu0 %v2490
        %3014 = vmatpush1.bf16.msra.mxu0 %v2489
        %3015 = vmatprep.subr.bf16.mxu0 %v2488
        %3016 = vmatpush1.bf16.msra.mxu0 %v2487
        %3017 = vmatprep.subr.bf16.mxu0 %v2486
        %3018 = vmatpush1.bf16.msra.mxu0 %v2485
        %3019 = vmatprep.subr.bf16.mxu0 %v2484
        %3020 = vmatpush1.bf16.msra.mxu0 %v2483
        %3021 = vmatprep.subr.bf16.mxu0 %v2482
        %3022 = vmatpush1.bf16.msra.mxu0 %v2481
        %3023 = vmatprep.subr.bf16.mxu0 %v2480
        %3024 = vmatpush1.bf16.msra.mxu0 %v2479
        %3025 = vmatprep.subr.bf16.mxu0 %v2510
        %3026 = vmatpush2.bf16.msra.mxu0 %v2509
        %3027 = vmatprep.subr.bf16.mxu0 %v2508
        %3028 = vmatpush2.bf16.msra.mxu0 %v2507
        %3029 = vmatprep.subr.bf16.mxu0 %v2506
        %3030 = vmatpush2.bf16.msra.mxu0 %v2505
        %3031 = vmatprep.subr.bf16.mxu0 %v2504
        %3032 = vmatpush2.bf16.msra.mxu0 %v2503
        %3033 = vmatprep.subr.bf16.mxu0 %v2502
        %3034 = vmatpush2.bf16.msra.mxu0 %v2501
        %3035 = vmatprep.subr.bf16.mxu0 %v2500
        %3036 = vmatpush2.bf16.msra.mxu0 %v2499
        %3037 = vmatprep.subr.bf16.mxu0 %v2498
        %3038 = vmatpush2.bf16.msra.mxu0 %v2497
        %3039 = vmatprep.subr.bf16.mxu0 %v2496
        %3040 = vmatpush2.bf16.msra.mxu0 %v2495
        %3041 = vmatprep.mubr.bf16.mxu0 %v1620
        %3042 = vmatmul.mubr.bf16.gmra.mxu0 %v1619
        %v3043 = vpop.f32.mrf.mxu0
        %v3044 = vadd.f32 %v3003, %v3043
        %v3045 = vpop.f32.mrf.mxu0
        %v3046 = vadd.f32 %v3005, %v3045
        %v3047 = vpop.f32.mrf.mxu0
        %v3048 = vpop.f32.mrf.mxu0
        %3049 = vdwg.mxu0
        %3050 = vmatprep.subr.bf16.mxu0 %v2526
        %3051 = vmatpush1.bf16.msra.mxu0 %v2525
        %3052 = vmatprep.subr.bf16.mxu0 %v2524
        %3053 = vmatpush1.bf16.msra.mxu0 %v2523
        %3054 = vmatprep.subr.bf16.mxu0 %v2522
        %3055 = vmatpush1.bf16.msra.mxu0 %v2521
        %3056 = vmatprep.subr.bf16.mxu0 %v2520
        %3057 = vmatpush1.bf16.msra.mxu0 %v2519
        %3058 = vmatprep.subr.bf16.mxu0 %v2518
        %3059 = vmatpush1.bf16.msra.mxu0 %v2517
        %3060 = vmatprep.subr.bf16.mxu0 %v2516
        %3061 = vmatpush1.bf16.msra.mxu0 %v2515
        %3062 = vmatprep.subr.bf16.mxu0 %v2514
        %3063 = vmatpush1.bf16.msra.mxu0 %v2513
        %3064 = vmatprep.subr.bf16.mxu0 %v2512
        %3065 = vmatpush1.bf16.msra.mxu0 %v2511
        %3066 = vmatprep.subr.bf16.mxu0 %v2542
        %3067 = vmatpush2.bf16.msra.mxu0 %v2541
        %3068 = vmatprep.subr.bf16.mxu0 %v2540
        %3069 = vmatpush2.bf16.msra.mxu0 %v2539
        %3070 = vmatprep.subr.bf16.mxu0 %v2538
        %3071 = vmatpush2.bf16.msra.mxu0 %v2537
        %3072 = vmatprep.subr.bf16.mxu0 %v2536
        %3073 = vmatpush2.bf16.msra.mxu0 %v2535
        %3074 = vmatprep.subr.bf16.mxu0 %v2534
        %3075 = vmatpush2.bf16.msra.mxu0 %v2533
        %3076 = vmatprep.subr.bf16.mxu0 %v2532
        %3077 = vmatpush2.bf16.msra.mxu0 %v2531
        %3078 = vmatprep.subr.bf16.mxu0 %v2530
        %3079 = vmatpush2.bf16.msra.mxu0 %v2529
        %3080 = vmatprep.subr.bf16.mxu0 %v2528
        %3081 = vmatpush2.bf16.msra.mxu0 %v2527
        %3082 = vmatprep.mubr.bf16.mxu0 %v1622
        %3083 = vmatmul.mubr.bf16.gmra.mxu0 %v1621
        %v3084 = vpop.f32.mrf.mxu0
        %v3085 = vadd.f32 %v3044, %v3084
        %v3086 = vpop.f32.mrf.mxu0
        %v3087 = vadd.f32 %v3046, %v3086
        %v3088 = vpop.f32.mrf.mxu0
        %v3089 = vpop.f32.mrf.mxu0
        %3090 = vdwg.mxu0
        %3091 = vmatprep.subr.bf16.mxu0 %v2558
        %3092 = vmatpush1.bf16.msra.mxu0 %v2557
        %3093 = vmatprep.subr.bf16.mxu0 %v2556
        %3094 = vmatpush1.bf16.msra.mxu0 %v2555
        %3095 = vmatprep.subr.bf16.mxu0 %v2554
        %3096 = vmatpush1.bf16.msra.mxu0 %v2553
        %3097 = vmatprep.subr.bf16.mxu0 %v2552
        %3098 = vmatpush1.bf16.msra.mxu0 %v2551
        %3099 = vmatprep.subr.bf16.mxu0 %v2550
        %3100 = vmatpush1.bf16.msra.mxu0 %v2549
        %3101 = vmatprep.subr.bf16.mxu0 %v2548
        %3102 = vmatpush1.bf16.msra.mxu0 %v2547
        %3103 = vmatprep.subr.bf16.mxu0 %v2546
        %3104 = vmatpush1.bf16.msra.mxu0 %v2545
        %3105 = vmatprep.subr.bf16.mxu0 %v2544
        %3106 = vmatpush1.bf16.msra.mxu0 %v2543
        %3107 = vmatprep.subr.bf16.mxu0 %v2574
        %3108 = vmatpush2.bf16.msra.mxu0 %v2573
        %3109 = vmatprep.subr.bf16.mxu0 %v2572
        %3110 = vmatpush2.bf16.msra.mxu0 %v2571
        %3111 = vmatprep.subr.bf16.mxu0 %v2570
        %3112 = vmatpush2.bf16.msra.mxu0 %v2569
        %3113 = vmatprep.subr.bf16.mxu0 %v2568
        %3114 = vmatpush2.bf16.msra.mxu0 %v2567
        %3115 = vmatprep.subr.bf16.mxu0 %v2566
        %3116 = vmatpush2.bf16.msra.mxu0 %v2565
        %3117 = vmatprep.subr.bf16.mxu0 %v2564
        %3118 = vmatpush2.bf16.msra.mxu0 %v2563
        %3119 = vmatprep.subr.bf16.mxu0 %v2562
        %3120 = vmatpush2.bf16.msra.mxu0 %v2561
        %3121 = vmatprep.subr.bf16.mxu0 %v2560
        %3122 = vmatpush2.bf16.msra.mxu0 %v2559
        %3123 = vmatprep.mubr.bf16.mxu0 %v1624
        %3124 = vmatmul.mubr.bf16.gmra.mxu0 %v1623
        %v3125 = vpop.f32.mrf.mxu0
        %v3126 = vadd.f32 %v3085, %v3125
        %v3127 = vpop.f32.mrf.mxu0
        %v3128 = vadd.f32 %v3087, %v3127
        %v3129 = vpop.f32.mrf.mxu0
        %v3130 = vpop.f32.mrf.mxu0
        %3131 = vdwg.mxu0
        %3132 = vmatprep.subr.bf16.mxu0 %v2590
        %3133 = vmatpush1.bf16.msra.mxu0 %v2589
        %3134 = vmatprep.subr.bf16.mxu0 %v2588
        %3135 = vmatpush1.bf16.msra.mxu0 %v2587
        %3136 = vmatprep.subr.bf16.mxu0 %v2586
        %3137 = vmatpush1.bf16.msra.mxu0 %v2585
        %3138 = vmatprep.subr.bf16.mxu0 %v2584
        %3139 = vmatpush1.bf16.msra.mxu0 %v2583
        %3140 = vmatprep.subr.bf16.mxu0 %v2582
        %3141 = vmatpush1.bf16.msra.mxu0 %v2581
        %3142 = vmatprep.subr.bf16.mxu0 %v2580
        %3143 = vmatpush1.bf16.msra.mxu0 %v2579
        %3144 = vmatprep.subr.bf16.mxu0 %v2578
        %3145 = vmatpush1.bf16.msra.mxu0 %v2577
        %3146 = vmatprep.subr.bf16.mxu0 %v2576
        %3147 = vmatpush1.bf16.msra.mxu0 %v2575
        %3148 = vmatprep.subr.bf16.mxu0 %v2606
        %3149 = vmatpush2.bf16.msra.mxu0 %v2605
        %3150 = vmatprep.subr.bf16.mxu0 %v2604
        %3151 = vmatpush2.bf16.msra.mxu0 %v2603
        %3152 = vmatprep.subr.bf16.mxu0 %v2602
        %3153 = vmatpush2.bf16.msra.mxu0 %v2601
        %3154 = vmatprep.subr.bf16.mxu0 %v2600
        %3155 = vmatpush2.bf16.msra.mxu0 %v2599
        %3156 = vmatprep.subr.bf16.mxu0 %v2598
        %3157 = vmatpush2.bf16.msra.mxu0 %v2597
        %3158 = vmatprep.subr.bf16.mxu0 %v2596
        %3159 = vmatpush2.bf16.msra.mxu0 %v2595
        %3160 = vmatprep.subr.bf16.mxu0 %v2594
        %3161 = vmatpush2.bf16.msra.mxu0 %v2593
        %3162 = vmatprep.subr.bf16.mxu0 %v2592
        %3163 = vmatpush2.bf16.msra.mxu0 %v2591
        %3164 = vmatprep.mubr.bf16.mxu0 %v1626
        %3165 = vmatmul.mubr.bf16.gmra.mxu0 %v1625
        %v3166 = vpop.f32.mrf.mxu0
        %v3167 = vadd.f32 %v3126, %v3166
        %v3168 = vpop.f32.mrf.mxu0
        %v3169 = vadd.f32 %v3128, %v3168
        %v3170 = vpop.f32.mrf.mxu0
        %v3171 = vpop.f32.mrf.mxu0
        %3172 = vdwg.mxu0
        %3173 = vmatprep.subr.bf16.mxu0 %v2622
        %3174 = vmatpush1.bf16.msra.mxu0 %v2621
        %3175 = vmatprep.subr.bf16.mxu0 %v2620
        %3176 = vmatpush1.bf16.msra.mxu0 %v2619
        %3177 = vmatprep.subr.bf16.mxu0 %v2618
        %3178 = vmatpush1.bf16.msra.mxu0 %v2617
        %3179 = vmatprep.subr.bf16.mxu0 %v2616
        %3180 = vmatpush1.bf16.msra.mxu0 %v2615
        %3181 = vmatprep.subr.bf16.mxu0 %v2614
        %3182 = vmatpush1.bf16.msra.mxu0 %v2613
        %3183 = vmatprep.subr.bf16.mxu0 %v2612
        %3184 = vmatpush1.bf16.msra.mxu0 %v2611
        %3185 = vmatprep.subr.bf16.mxu0 %v2610
        %3186 = vmatpush1.bf16.msra.mxu0 %v2609
        %3187 = vmatprep.subr.bf16.mxu0 %v2608
        %3188 = vmatpush1.bf16.msra.mxu0 %v2607
        %3189 = vmatprep.subr.bf16.mxu0 %v2638
        %3190 = vmatpush2.bf16.msra.mxu0 %v2637
        %3191 = vmatprep.subr.bf16.mxu0 %v2636
        %3192 = vmatpush2.bf16.msra.mxu0 %v2635
        %3193 = vmatprep.subr.bf16.mxu0 %v2634
        %3194 = vmatpush2.bf16.msra.mxu0 %v2633
        %3195 = vmatprep.subr.bf16.mxu0 %v2632
        %3196 = vmatpush2.bf16.msra.mxu0 %v2631
        %3197 = vmatprep.subr.bf16.mxu0 %v2630
        %3198 = vmatpush2.bf16.msra.mxu0 %v2629
        %3199 = vmatprep.subr.bf16.mxu0 %v2628
        %3200 = vmatpush2.bf16.msra.mxu0 %v2627
        %3201 = vmatprep.subr.bf16.mxu0 %v2626
        %3202 = vmatpush2.bf16.msra.mxu0 %v2625
        %3203 = vmatprep.subr.bf16.mxu0 %v2624
        %3204 = vmatpush2.bf16.msra.mxu0 %v2623
        %3205 = vmatprep.mubr.bf16.mxu0 %v1628
        %3206 = vmatmul.mubr.bf16.gmra.mxu0 %v1627
        %v3207 = vpop.f32.mrf.mxu0
        %v3208 = vadd.f32 %v3167, %v3207
        %v3209 = vpop.f32.mrf.mxu0
        %v3210 = vadd.f32 %v3169, %v3209
        %v3211 = vpop.f32.mrf.mxu0
        %v3212 = vpop.f32.mrf.mxu0
        %3213 = vdwg.mxu0
        %3214 = vmatprep.subr.bf16.mxu0 %v2654
        %3215 = vmatpush1.bf16.msra.mxu0 %v2653
        %3216 = vmatprep.subr.bf16.mxu0 %v2652
        %3217 = vmatpush1.bf16.msra.mxu0 %v2651
        %3218 = vmatprep.subr.bf16.mxu0 %v2650
        %3219 = vmatpush1.bf16.msra.mxu0 %v2649
        %3220 = vmatprep.subr.bf16.mxu0 %v2648
        %3221 = vmatpush1.bf16.msra.mxu0 %v2647
        %3222 = vmatprep.subr.bf16.mxu0 %v2646
        %3223 = vmatpush1.bf16.msra.mxu0 %v2645
        %3224 = vmatprep.subr.bf16.mxu0 %v2644
        %3225 = vmatpush1.bf16.msra.mxu0 %v2643
        %3226 = vmatprep.subr.bf16.mxu0 %v2642
        %3227 = vmatpush1.bf16.msra.mxu0 %v2641
        %3228 = vmatprep.subr.bf16.mxu0 %v2640
        %3229 = vmatpush1.bf16.msra.mxu0 %v2639
        %3230 = vmatprep.subr.bf16.mxu0 %v2670
        %3231 = vmatpush2.bf16.msra.mxu0 %v2669
        %3232 = vmatprep.subr.bf16.mxu0 %v2668
        %3233 = vmatpush2.bf16.msra.mxu0 %v2667
        %3234 = vmatprep.subr.bf16.mxu0 %v2666
        %3235 = vmatpush2.bf16.msra.mxu0 %v2665
        %3236 = vmatprep.subr.bf16.mxu0 %v2664
        %3237 = vmatpush2.bf16.msra.mxu0 %v2663
        %3238 = vmatprep.subr.bf16.mxu0 %v2662
        %3239 = vmatpush2.bf16.msra.mxu0 %v2661
        %3240 = vmatprep.subr.bf16.mxu0 %v2660
        %3241 = vmatpush2.bf16.msra.mxu0 %v2659
        %3242 = vmatprep.subr.bf16.mxu0 %v2658
        %3243 = vmatpush2.bf16.msra.mxu0 %v2657
        %3244 = vmatprep.subr.bf16.mxu0 %v2656
        %3245 = vmatpush2.bf16.msra.mxu0 %v2655
        %3246 = vmatprep.mubr.bf16.mxu0 %v1630
        %3247 = vmatmul.mubr.bf16.gmra.mxu0 %v1629
        %v3248 = vpop.f32.mrf.mxu0
        %v3249 = vadd.f32 %v3208, %v3248
        %v3250 = vpop.f32.mrf.mxu0
        %v3251 = vadd.f32 %v3210, %v3250
        %v3252 = vpop.f32.mrf.mxu0
        %v3253 = vpop.f32.mrf.mxu0
        %3254 = vdwg.mxu0
        %v3255 = vadd.f32 %v1325, %v3249
        %v3256 = vadd.f32 %v1326, %v3251
        %3257 = vst [vmem:[#allocation2] sm:$0xff] %v3255
        %3258 = vst [vmem:[#allocation2 + $0x8] sm:$0xff] %v3256
        %p3259 = scmp.eq.s32.totalorder %s21, 1
        // Predicated region
        $region75: #{net_discriminator.8} parent=65 // pred_check
          %p3260 = pneg %p3259
        $region76: #{net_discriminator.8} parent=65 // pred_check_branch
          %3262 = sbr.rel (%p3260) target = $region78
        $region77: #{net_discriminator.8} parent=65 // pred_region
          %v3263 = vld [vmem:[#allocation2] sm:$0xff]
          %v3264 = vld [vmem:[#allocation2 + $0x8] sm:$0xff]
          %v3265 = vld [vmem:[%s1307] sm:$0x3]
          %v3267 = vlaneseq
          %v3268 = vshrl.u32 %v3267, 7
          %v3269 = vsub.s32 0, %v3268
          %v3270 = vrot.slane %v3265, %v3269
          %v3271 = vlaneseq
          %v3272 = vshrl.u32 %v3271, 7
          %v3273 = vsub.s32 1, %v3272
          %v3274 = vrot.slane %v3265, %v3273
          %v3277 = vadd.f32 %v3263, %v3270
          %v3278 = vadd.f32 %v3264, %v3274
          %v3279 = vmul.f32 %v3277, 0.2
          %v3280 = vmul.f32 %v3278, 0.2
          %v3281 = vmax.f32 %v3277, %v3279
          %v3282 = vmax.f32 %v3278, %v3280
          %v3283 = vpack.c.bf16 %v3281, %v3281
          %v3284 = vpack.c.bf16 %v3282, %v3282
          %v3287 = vunpack.c.l.b16 %v3283
          %v3288 = vunpack.c.l.b16 %v3284
          %v3289 = vpack.c.b16 %v3288, %v3287
          %3291 = vst [vmem:[%s1317] sm:$0xff] %v3289
        $region78: #{net_discriminator.8} parent=65 // pred_fallthru
          _
        %s3292 = smul.u32 2, %s20
        %p3293 = scmp.lt.s32.totalorder %s19, 0
        %s3294 = scalar_select %p3293, %s19, 0
        %p3295 = scmp.lt.s32.totalorder %s3292, 3
        %s3296 = scalar_select %p3295, %s3292, 3
        %s3297 = smul.addr %s3294, 4
        %s3298 = sadd.s32 %s3296, %s3297
        %s3299 = smul.addr %s3298, 4
        %s3300 = scalar_lea.vmem %s3, %s3299
        // Predicated region
        $region79: #{net_discriminator.8} parent=65 // pred_check
          %p3301 = pneg %p135
        $region80: #{net_discriminator.8} parent=65 // pred_check_branch
          %3303 = sbr.rel (%p3301) target = $region82
        $region81: #{net_discriminator.8} parent=65 // pred_region
          %s3304 = smul.u32 2, %s20
        $region82: #{net_discriminator.8} parent=65 // pred_fallthru
          _
      $region66: #{net_discriminator.8} parent=5 // pred_fallthru
        _
      %p3305 = scmp.le.s32.totalorder 2, %s9
      // Predicated region
      $region83: #{net_discriminator.8} parent=5 // pred_check
        %p3306 = pneg %p3305
      $region84: #{net_discriminator.8} parent=5 // pred_check_branch
        %3308 = sbr.rel (%p3306) target = $region86
      $region85: #{net_discriminator.8} parent=5 // pred_region
        %s3309 = ssub.s32 %s9, 2
        // Predicated region
        $region87: #{net_discriminator.8} parent=85 // pred_check
          %p3310 = pneg %p141
        $region88: #{net_discriminator.8} parent=85 // pred_check_branch
          %3312 = sbr.rel (%p3310) target = $region90
        $region89: #{net_discriminator.8} parent=85 // pred_region
          %s3313 = smul.u32 2, %s23
          %p3314 = scmp.lt.s32.totalorder %s22, 0
          %s3315 = scalar_select %p3314, %s22, 0
          %p3316 = scmp.lt.s32.totalorder %s3313, 3
          %s3317 = scalar_select %p3316, %s3313, 3
          %s3318 = smul.addr %s3315, 4
          %s3319 = sadd.s32 %s3317, %s3318
          %s3320 = smul.addr %s3319, 4
          %s3321 = scalar_lea.vmem %s3, %s3320
        $region90: #{net_discriminator.8} parent=85 // pred_fallthru
          _
      $region86: #{net_discriminator.8} parent=5 // pred_fallthru
        _
    $region6: #{net_discriminator.8} parent=1 // loop_footer
      %s13 = sadd.s32 1, %s9
    $region7: #{net_discriminator.8} parent=1 // loop_footer_branch
      %8 = sbr.rel target = $region3
    $region8: #{net_discriminator.8} parent=1 // loop_exit
      _

// kernel: net_discriminator.9
$region0: #{net_discriminator.9}
  #allocation0 [shape = 'u32[]', space=smem, size = 0x4, offset = 0x4, fixed_abs, tag = 'smem constant byte address 0x4 - core index']
  #allocation1 [shape = 'u32[144,128]{1,0:T(1,128)}', space=vmem, size = 0x12000, scoped, tag = 'internal scratch']
  #allocation2 [shape = 'f32[8,512]{1,0:T(8,128)}', space=vmem, size = 0x4000, scoped, tag = 'scratch operand']
  %s0 = inlined_call_operand.vmem [shape: bf16[8,8192], index: 0, kind: input, shape index: {}]
  %s1 = inlined_call_operand.vmem [shape: bf16[8192,512], index: 1, kind: input, shape index: {}]
  %s2 = inlined_call_operand.vmem [shape: f32[1,512], index: 2, kind: input, shape index: {}]
  %s3 = inlined_call_operand.vmem [shape: bf16[512,128], index: 3, kind: input, shape index: {}]
  %s4 = inlined_call_operand.vmem [shape: f32[1,128], index: 4, kind: input, shape index: {}]
  %s5 = inlined_call_operand.vmem [shape: f32[8,128], index: 5, kind: output, shape index: {}]
  %s6 = sld [smem:[#allocation0]]
  $region61: #{net_discriminator.9} parent=0
    _
  %s8 = ssub.s32 1, %s6
  %s9 = scalar_select 0, %s8, %s6
  loop: start=0, step=1, limit=6
  $region2: #{net_discriminator.9} parent=0 // loop_pre_header
    _
  $region3: #{net_discriminator.9} parent=0 // loop_header
    %s11 = sphi 0, %s15
    %p12 = scmp.ge.s32.totalorder %s11, 6
    %s21 = sphi 0, %s23
    %s24 = sphi 0, %s21
    %s25 = sphi 0, %s24
    %s41 = sphi 0, %s25
    %s47 = sphi 0, %s49
    %s50 = sphi 0, %s47
    %s51 = sphi 0, %s50
    %s67 = sphi 0, %s51
    %s71 = sphi 0, %s71
    %s73 = sphi 0, %s71
    %s74 = sphi 0, %s73
    %s88 = sphi 0, %s74
    %s92 = sphi 0, %s92
    %s94 = sphi 0, %s92
    %s95 = sphi 0, %s94
    %s109 = sphi 0, %s95
    %s113 = sphi 0, %s113
    %s115 = sphi 0, %s113
    %s116 = sphi 0, %s115
    %s130 = sphi 0, %s116
    %s134 = sphi 0, %s134
    %s136 = sphi 0, %s134
    %s137 = sphi 0, %s136
    %s151 = sphi 0, %s137
  $region4: #{net_discriminator.9} parent=0 // loop_header_branch
    %14 = sbr.rel (%p12) target = $region8
  $region5: #{net_discriminator.9} parent=0 // loop_body
    %s16 = ssub.s32 %s11, 1
    %s17 = ssub.s32 %s11, 2
    %s18 = sadd.s32 %s11, 1
    %s19 = ssub.s32 %s11, %s18
    %p20 = scmp.eq.s32.totalorder %s19, 0
    %s22 = sadd.s32 %s21, 1
    %s23 = scalar_select %p20, %s21, %s22
    %p26 = pneg %p20
    %p27 = scmp.eq.s32.totalorder %s11, 3
    %p28 = por %p26, %p27
    %p29 = scmp.ne.s32.totalorder %s21, %s24
    %p30 = scmp.eq.s32.totalorder %s11, 0
    %p31 = por %p29, %p30
    %p32 = scmp.ne.s32.totalorder %s21, %s24
    %p33 = scmp.eq.s32.totalorder %s16, 3
    %p34 = por %p32, %p33
    %p35 = scmp.ne.s32.totalorder %s24, %s25
    %p36 = scmp.eq.s32.totalorder %s16, 0
    %p37 = por %p35, %p36
    %p38 = scmp.ne.s32.totalorder %s24, %s25
    %p39 = scmp.eq.s32.totalorder %s17, 3
    %p40 = por %p38, %p39
    %p42 = scmp.ne.s32.totalorder %s25, %s41
    %p43 = scmp.eq.s32.totalorder %s17, 0
    %p44 = por %p42, %p43
    %s45 = ssub.s32 %s11, %s18
    %p46 = scmp.eq.s32.totalorder %s45, 0
    %s48 = sadd.s32 %s47, 1
    %s49 = scalar_select %p46, %s47, %s48
    %p52 = pneg %p46
    %p53 = scmp.eq.s32.totalorder %s11, 3
    %p54 = por %p52, %p53
    %p55 = scmp.ne.s32.totalorder %s47, %s50
    %p56 = scmp.eq.s32.totalorder %s11, 0
    %p57 = por %p55, %p56
    %p58 = scmp.ne.s32.totalorder %s47, %s50
    %p59 = scmp.eq.s32.totalorder %s16, 3
    %p60 = por %p58, %p59
    %p61 = scmp.ne.s32.totalorder %s50, %s51
    %p62 = scmp.eq.s32.totalorder %s16, 0
    %p63 = por %p61, %p62
    %p64 = scmp.ne.s32.totalorder %s50, %s51
    %p65 = scmp.eq.s32.totalorder %s17, 3
    %p66 = por %p64, %p65
    %p68 = scmp.ne.s32.totalorder %s51, %s67
    %p69 = scmp.eq.s32.totalorder %s17, 0
    %p70 = por %p68, %p69
    %s72 = sadd.s32 %s71, 1
    %p75 = scmp.eq.s32.totalorder %s11, 3
    %p76 = scmp.ne.s32.totalorder %s71, %s73
    %p77 = scmp.eq.s32.totalorder %s11, 0
    %p78 = por %p76, %p77
    %p79 = scmp.ne.s32.totalorder %s71, %s73
    %p80 = scmp.eq.s32.totalorder %s16, 3
    %p81 = por %p79, %p80
    %p82 = scmp.ne.s32.totalorder %s73, %s74
    %p83 = scmp.eq.s32.totalorder %s16, 0
    %p84 = por %p82, %p83
    %p85 = scmp.ne.s32.totalorder %s73, %s74
    %p86 = scmp.eq.s32.totalorder %s17, 3
    %p87 = por %p85, %p86
    %p89 = scmp.ne.s32.totalorder %s74, %s88
    %p90 = scmp.eq.s32.totalorder %s17, 0
    %p91 = por %p89, %p90
    %s93 = sadd.s32 %s92, 1
    %p96 = scmp.eq.s32.totalorder %s11, 3
    %p97 = scmp.ne.s32.totalorder %s92, %s94
    %p98 = scmp.eq.s32.totalorder %s11, 0
    %p99 = por %p97, %p98
    %p100 = scmp.ne.s32.totalorder %s92, %s94
    %p101 = scmp.eq.s32.totalorder %s16, 3
    %p102 = por %p100, %p101
    %p103 = scmp.ne.s32.totalorder %s94, %s95
    %p104 = scmp.eq.s32.totalorder %s16, 0
    %p105 = por %p103, %p104
    %p106 = scmp.ne.s32.totalorder %s94, %s95
    %p107 = scmp.eq.s32.totalorder %s17, 3
    %p108 = por %p106, %p107
    %p110 = scmp.ne.s32.totalorder %s95, %s109
    %p111 = scmp.eq.s32.totalorder %s17, 0
    %p112 = por %p110, %p111
    %s114 = sadd.s32 %s113, 1
    %p117 = scmp.eq.s32.totalorder %s11, 3
    %p118 = scmp.ne.s32.totalorder %s113, %s115
    %p119 = scmp.eq.s32.totalorder %s11, 0
    %p120 = por %p118, %p119
    %p121 = scmp.ne.s32.totalorder %s113, %s115
    %p122 = scmp.eq.s32.totalorder %s16, 3
    %p123 = por %p121, %p122
    %p124 = scmp.ne.s32.totalorder %s115, %s116
    %p125 = scmp.eq.s32.totalorder %s16, 0
    %p126 = por %p124, %p125
    %p127 = scmp.ne.s32.totalorder %s115, %s116
    %p128 = scmp.eq.s32.totalorder %s17, 3
    %p129 = por %p127, %p128
    %p131 = scmp.ne.s32.totalorder %s116, %s130
    %p132 = scmp.eq.s32.totalorder %s17, 0
    %p133 = por %p131, %p132
    %s135 = sadd.s32 %s134, 1
    %p138 = scmp.eq.s32.totalorder %s11, 3
    %p139 = scmp.ne.s32.totalorder %s134, %s136
    %p140 = scmp.eq.s32.totalorder %s11, 0
    %p141 = por %p139, %p140
    %p142 = scmp.ne.s32.totalorder %s134, %s136
    %p143 = scmp.eq.s32.totalorder %s16, 3
    %p144 = por %p142, %p143
    %p145 = scmp.ne.s32.totalorder %s136, %s137
    %p146 = scmp.eq.s32.totalorder %s16, 0
    %p147 = por %p145, %p146
    %p148 = scmp.ne.s32.totalorder %s136, %s137
    %p149 = scmp.eq.s32.totalorder %s17, 3
    %p150 = por %p148, %p149
    %p152 = scmp.ne.s32.totalorder %s137, %s151
    %p153 = scmp.eq.s32.totalorder %s17, 0
    %p154 = por %p152, %p153
    %p155 = scmp.le.s32.totalorder 1, %s11
    %p156 = scmp.lt.s32.totalorder %s11, 5
    %p157 = pnand %p155, %p156
    %p158 = pneg %p157
    // Predicated region
    $region9: #{net_discriminator.9} parent=5 // pred_check
      _
    $region10: #{net_discriminator.9} parent=5 // pred_check_branch
      %160 = sbr.rel (%p157) target = $region12
    $region11: #{net_discriminator.9} parent=5 // pred_region
      %s161 = ssub.s32 %s11, 1
      // Predicated region
      $region13: #{net_discriminator.9} parent=11 // pred_check
        %p162 = pneg %p84
      $region14: #{net_discriminator.9} parent=11 // pred_check_branch
        %164 = sbr.rel (%p162) target = $region16
      $region15: #{net_discriminator.9} parent=11 // pred_region
        _
      $region16: #{net_discriminator.9} parent=11 // pred_fallthru
        _
      // Predicated region
      $region17: #{net_discriminator.9} parent=11 // pred_check
        %p165 = pneg %p105
      $region18: #{net_discriminator.9} parent=11 // pred_check_branch
        %167 = sbr.rel (%p165) target = $region20
      $region19: #{net_discriminator.9} parent=11 // pred_region
        _
      $region20: #{net_discriminator.9} parent=11 // pred_fallthru
        _
      // Predicated region
      $region21: #{net_discriminator.9} parent=11 // pred_check
        %p168 = pneg %p126
      $region22: #{net_discriminator.9} parent=11 // pred_check_branch
        %170 = sbr.rel (%p168) target = $region24
      $region23: #{net_discriminator.9} parent=11 // pred_region
        _
      $region24: #{net_discriminator.9} parent=11 // pred_fallthru
        _
    $region12: #{net_discriminator.9} parent=5 // pred_fallthru
      _
    %p171 = scmp.lt.s32.totalorder %s11, 4
    // Predicated region
    $region25: #{net_discriminator.9} parent=5 // pred_check
      %p172 = pneg %p171
    $region26: #{net_discriminator.9} parent=5 // pred_check_branch
      %174 = sbr.rel (%p172) target = $region28
    $region27: #{net_discriminator.9} parent=5 // pred_region
      // Predicated region
      $region29: #{net_discriminator.9} parent=27 // pred_check
        %p175 = pneg %p31
      $region30: #{net_discriminator.9} parent=27 // pred_check_branch
        %177 = sbr.rel (%p175) target = $region32
      $region31: #{net_discriminator.9} parent=27 // pred_region
        %s178 = smul.u32 16, %s11
        %p179 = scmp.lt.s32.totalorder %s178, 63
        %s180 = scalar_select %p179, %s178, 63
        %s181 = smul.addr %s180, 4
        %s182 = scalar_lea.vmem %s0, %s181
        %s183 = smul.u32 16, %s11
      $region32: #{net_discriminator.9} parent=27 // pred_fallthru
        _
      // Predicated region
      $region33: #{net_discriminator.9} parent=27 // pred_check
        %p184 = pneg %p57
      $region34: #{net_discriminator.9} parent=27 // pred_check_branch
        %186 = sbr.rel (%p184) target = $region36
      $region35: #{net_discriminator.9} parent=27 // pred_region
        %s187 = smul.u32 256, %s11
        %p188 = scmp.lt.s32.totalorder %s187, 1023
        %s189 = scalar_select %p188, %s187, 1023
        %s190 = smul.addr %s189, 4
        %s191 = smul.addr %s190, 4
        %s192 = scalar_lea.vmem %s1, %s191
        %s193 = smul.u32 256, %s11
      $region36: #{net_discriminator.9} parent=27 // pred_fallthru
        _
    $region28: #{net_discriminator.9} parent=5 // pred_fallthru
      _
    %p194 = scmp.le.s32.totalorder 1, %s11
    %p195 = scmp.lt.s32.totalorder %s11, 5
    %p196 = pnand %p194, %p195
    %p197 = pneg %p196
    // Predicated region
    $region37: #{net_discriminator.9} parent=5 // pred_check
      _
    $region38: #{net_discriminator.9} parent=5 // pred_check_branch
      %199 = sbr.rel (%p196) target = $region40
    $region39: #{net_discriminator.9} parent=5 // pred_region
      %s200 = ssub.s32 %s11, 1
      %s201 = smul.u32 16, %s16
      %p202 = scmp.lt.s32.totalorder %s201, 63
      %s203 = scalar_select %p202, %s201, 63
      %s204 = smul.addr %s203, 4
      %s205 = scalar_lea.vmem %s0, %s204
      %p206 = pneg %p37
      %p207 = pneg %p34
      %s208 = smul.u32 256, %s16
      %p209 = scmp.lt.s32.totalorder %s208, 1023
      %s210 = scalar_select %p209, %s208, 1023
      %s211 = smul.addr %s210, 4
      %s212 = smul.addr %s211, 4
      %s213 = scalar_lea.vmem %s1, %s212
      %p214 = pneg %p63
      %p215 = pneg %p60
      %p216 = pneg %p84
      %p217 = pneg %p81
      %p218 = pneg %p105
      %p219 = pneg %p102
      %p220 = pneg %p126
      %p221 = pneg %p123
      %p222 = pneg %p147
      %p223 = pneg %p144
      %s224 = smul.u32 16, %s16
      %p225 = scmp.lt.s32.totalorder %s224, 63
      %s226 = scalar_select %p225, %s224, 63
      %s227 = smul.addr %s226, 4
      %s228 = scalar_lea.vmem %s0, %s227
      %s229 = smul.u32 16, %s16
      %s230 = smul.u32 256, %s16
      %p231 = scmp.lt.s32.totalorder %s230, 1023
      %s232 = scalar_select %p231, %s230, 1023
      %s233 = smul.addr %s232, 4
      %s234 = smul.addr %s233, 4
      %s235 = scalar_lea.vmem %s1, %s234
      %s236 = smul.u32 256, %s16
      %p238 = scmp.eq.s32.totalorder %s16, 0
      // Predicated region
      $region41: #{net_discriminator.9} parent=39 // pred_check
        %p239 = pneg %p238
      $region42: #{net_discriminator.9} parent=39 // pred_check_branch
        %241 = sbr.rel (%p239) target = $region44
      $region43: #{net_discriminator.9} parent=39 // pred_region
        %242 = vst [vmem:[#allocation2] sm:$0xff] 0.0
        %243 = vst [vmem:[#allocation2 + $0x8] sm:$0xff] 0.0
        %244 = vst [vmem:[#allocation2 + $0x10] sm:$0xff] 0.0
        %245 = vst [vmem:[#allocation2 + $0x18] sm:$0xff] 0.0
      $region44: #{net_discriminator.9} parent=39 // pred_fallthru
        _
      %v246 = vld [vmem:[#allocation2] sm:$0xff]
      %v247 = vld [vmem:[#allocation2 + $0x8] sm:$0xff]
      %v248 = vld [vmem:[#allocation2 + $0x10] sm:$0xff]
      %v249 = vld [vmem:[#allocation2 + $0x18] sm:$0xff]
      %v250 = vld [vmem:[%s228] sm:$0xff]
      %v251 = vld [vmem:[%s228 + $0x8] sm:$0xff]
      %v252 = vld [vmem:[%s228 + $0x10] sm:$0xff]
      %v253 = vld [vmem:[%s228 + $0x18] sm:$0xff]
      %v254 = vld [vmem:[%s228 + $0x20] sm:$0xff]
      %v255 = vld [vmem:[%s228 + $0x28] sm:$0xff]
      %v256 = vld [vmem:[%s228 + $0x30] sm:$0xff]
      %v257 = vld [vmem:[%s228 + $0x38] sm:$0xff]
      %v258 = vld [vmem:[%s235] sm:$0xff]
      %v259 = vld [vmem:[%s235 + $0x8] sm:$0xff]
      %v260 = vld [vmem:[%s235 + $0x10] sm:$0xff]
      %v261 = vld [vmem:[%s235 + $0x18] sm:$0xff]
      %v262 = vld [vmem:[%s235 + $0x20] sm:$0xff]
      %v263 = vld [vmem:[%s235 + $0x28] sm:$0xff]
      %v264 = vld [vmem:[%s235 + $0x30] sm:$0xff]
      %v265 = vld [vmem:[%s235 + $0x38] sm:$0xff]
      %v266 = vld [vmem:[%s235 + $0x40] sm:$0xff]
      %v267 = vld [vmem:[%s235 + $0x48] sm:$0xff]
      %v268 = vld [vmem:[%s235 + $0x50] sm:$0xff]
      %v269 = vld [vmem:[%s235 + $0x58] sm:$0xff]
      %v270 = vld [vmem:[%s235 + $0x60] sm:$0xff]
      %v271 = vld [vmem:[%s235 + $0x68] sm:$0xff]
      %v272 = vld [vmem:[%s235 + $0x70] sm:$0xff]
      %v273 = vld [vmem:[%s235 + $0x78] sm:$0xff]
      %v274 = vld [vmem:[%s235 + $0x80] sm:$0xff]
      %v275 = vld [vmem:[%s235 + $0x88] sm:$0xff]
      %v276 = vld [vmem:[%s235 + $0x90] sm:$0xff]
      %v277 = vld [vmem:[%s235 + $0x98] sm:$0xff]
      %v278 = vld [vmem:[%s235 + $0xa0] sm:$0xff]
      %v279 = vld [vmem:[%s235 + $0xa8] sm:$0xff]
      %v280 = vld [vmem:[%s235 + $0xb0] sm:$0xff]
      %v281 = vld [vmem:[%s235 + $0xb8] sm:$0xff]
      %v282 = vld [vmem:[%s235 + $0xc0] sm:$0xff]
      %v283 = vld [vmem:[%s235 + $0xc8] sm:$0xff]
      %v284 = vld [vmem:[%s235 + $0xd0] sm:$0xff]
      %v285 = vld [vmem:[%s235 + $0xd8] sm:$0xff]
      %v286 = vld [vmem:[%s235 + $0xe0] sm:$0xff]
      %v287 = vld [vmem:[%s235 + $0xe8] sm:$0xff]
      %v288 = vld [vmem:[%s235 + $0xf0] sm:$0xff]
      %v289 = vld [vmem:[%s235 + $0xf8] sm:$0xff]
      %v290 = vld [vmem:[%s235 + $0x100] sm:$0xff]
      %v291 = vld [vmem:[%s235 + $0x108] sm:$0xff]
      %v292 = vld [vmem:[%s235 + $0x110] sm:$0xff]
      %v293 = vld [vmem:[%s235 + $0x118] sm:$0xff]
      %v294 = vld [vmem:[%s235 + $0x120] sm:$0xff]
      %v295 = vld [vmem:[%s235 + $0x128] sm:$0xff]
      %v296 = vld [vmem:[%s235 + $0x130] sm:$0xff]
      %v297 = vld [vmem:[%s235 + $0x138] sm:$0xff]
      %v298 = vld [vmem:[%s235 + $0x140] sm:$0xff]
      %v299 = vld [vmem:[%s235 + $0x148] sm:$0xff]
      %v300 = vld [vmem:[%s235 + $0x150] sm:$0xff]
      %v301 = vld [vmem:[%s235 + $0x158] sm:$0xff]
      %v302 = vld [vmem:[%s235 + $0x160] sm:$0xff]
      %v303 = vld [vmem:[%s235 + $0x168] sm:$0xff]
      %v304 = vld [vmem:[%s235 + $0x170] sm:$0xff]
      %v305 = vld [vmem:[%s235 + $0x178] sm:$0xff]
      %v306 = vld [vmem:[%s235 + $0x180] sm:$0xff]
      %v307 = vld [vmem:[%s235 + $0x188] sm:$0xff]
      %v308 = vld [vmem:[%s235 + $0x190] sm:$0xff]
      %v309 = vld [vmem:[%s235 + $0x198] sm:$0xff]
      %v310 = vld [vmem:[%s235 + $0x1a0] sm:$0xff]
      %v311 = vld [vmem:[%s235 + $0x1a8] sm:$0xff]
      %v312 = vld [vmem:[%s235 + $0x1b0] sm:$0xff]
      %v313 = vld [vmem:[%s235 + $0x1b8] sm:$0xff]
      %v314 = vld [vmem:[%s235 + $0x1c0] sm:$0xff]
      %v315 = vld [vmem:[%s235 + $0x1c8] sm:$0xff]
      %v316 = vld [vmem:[%s235 + $0x1d0] sm:$0xff]
      %v317 = vld [vmem:[%s235 + $0x1d8] sm:$0xff]
      %v318 = vld [vmem:[%s235 + $0x1e0] sm:$0xff]
      %v319 = vld [vmem:[%s235 + $0x1e8] sm:$0xff]
      %v320 = vld [vmem:[%s235 + $0x1f0] sm:$0xff]
      %v321 = vld [vmem:[%s235 + $0x1f8] sm:$0xff]
      %v322 = vld [vmem:[%s235 + $0x200] sm:$0xff]
      %v323 = vld [vmem:[%s235 + $0x208] sm:$0xff]
      %v324 = vld [vmem:[%s235 + $0x210] sm:$0xff]
      %v325 = vld [vmem:[%s235 + $0x218] sm:$0xff]
      %v326 = vld [vmem:[%s235 + $0x220] sm:$0xff]
      %v327 = vld [vmem:[%s235 + $0x228] sm:$0xff]
      %v328 = vld [vmem:[%s235 + $0x230] sm:$0xff]
      %v329 = vld [vmem:[%s235 + $0x238] sm:$0xff]
      %v330 = vld [vmem:[%s235 + $0x240] sm:$0xff]
      %v331 = vld [vmem:[%s235 + $0x248] sm:$0xff]
      %v332 = vld [vmem:[%s235 + $0x250] sm:$0xff]
      %v333 = vld [vmem:[%s235 + $0x258] sm:$0xff]
      %v334 = vld [vmem:[%s235 + $0x260] sm:$0xff]
      %v335 = vld [vmem:[%s235 + $0x268] sm:$0xff]
      %v336 = vld [vmem:[%s235 + $0x270] sm:$0xff]
      %v337 = vld [vmem:[%s235 + $0x278] sm:$0xff]
      %v338 = vld [vmem:[%s235 + $0x280] sm:$0xff]
      %v339 = vld [vmem:[%s235 + $0x288] sm:$0xff]
      %v340 = vld [vmem:[%s235 + $0x290] sm:$0xff]
      %v341 = vld [vmem:[%s235 + $0x298] sm:$0xff]
      %v342 = vld [vmem:[%s235 + $0x2a0] sm:$0xff]
      %v343 = vld [vmem:[%s235 + $0x2a8] sm:$0xff]
      %v344 = vld [vmem:[%s235 + $0x2b0] sm:$0xff]
      %v345 = vld [vmem:[%s235 + $0x2b8] sm:$0xff]
      %v346 = vld [vmem:[%s235 + $0x2c0] sm:$0xff]
      %v347 = vld [vmem:[%s235 + $0x2c8] sm:$0xff]
      %v348 = vld [vmem:[%s235 + $0x2d0] sm:$0xff]
      %v349 = vld [vmem:[%s235 + $0x2d8] sm:$0xff]
      %v350 = vld [vmem:[%s235 + $0x2e0] sm:$0xff]
      %v351 = vld [vmem:[%s235 + $0x2e8] sm:$0xff]
      %v352 = vld [vmem:[%s235 + $0x2f0] sm:$0xff]
      %v353 = vld [vmem:[%s235 + $0x2f8] sm:$0xff]
      %v354 = vld [vmem:[%s235 + $0x300] sm:$0xff]
      %v355 = vld [vmem:[%s235 + $0x308] sm:$0xff]
      %v356 = vld [vmem:[%s235 + $0x310] sm:$0xff]
      %v357 = vld [vmem:[%s235 + $0x318] sm:$0xff]
      %v358 = vld [vmem:[%s235 + $0x320] sm:$0xff]
      %v359 = vld [vmem:[%s235 + $0x328] sm:$0xff]
      %v360 = vld [vmem:[%s235 + $0x330] sm:$0xff]
      %v361 = vld [vmem:[%s235 + $0x338] sm:$0xff]
      %v362 = vld [vmem:[%s235 + $0x340] sm:$0xff]
      %v363 = vld [vmem:[%s235 + $0x348] sm:$0xff]
      %v364 = vld [vmem:[%s235 + $0x350] sm:$0xff]
      %v365 = vld [vmem:[%s235 + $0x358] sm:$0xff]
      %v366 = vld [vmem:[%s235 + $0x360] sm:$0xff]
      %v367 = vld [vmem:[%s235 + $0x368] sm:$0xff]
      %v368 = vld [vmem:[%s235 + $0x370] sm:$0xff]
      %v369 = vld [vmem:[%s235 + $0x378] sm:$0xff]
      %v370 = vld [vmem:[%s235 + $0x380] sm:$0xff]
      %v371 = vld [vmem:[%s235 + $0x388] sm:$0xff]
      %v372 = vld [vmem:[%s235 + $0x390] sm:$0xff]
      %v373 = vld [vmem:[%s235 + $0x398] sm:$0xff]
      %v374 = vld [vmem:[%s235 + $0x3a0] sm:$0xff]
      %v375 = vld [vmem:[%s235 + $0x3a8] sm:$0xff]
      %v376 = vld [vmem:[%s235 + $0x3b0] sm:$0xff]
      %v377 = vld [vmem:[%s235 + $0x3b8] sm:$0xff]
      %v378 = vld [vmem:[%s235 + $0x3c0] sm:$0xff]
      %v379 = vld [vmem:[%s235 + $0x3c8] sm:$0xff]
      %v380 = vld [vmem:[%s235 + $0x3d0] sm:$0xff]
      %v381 = vld [vmem:[%s235 + $0x3d8] sm:$0xff]
      %v382 = vld [vmem:[%s235 + $0x3e0] sm:$0xff]
      %v383 = vld [vmem:[%s235 + $0x3e8] sm:$0xff]
      %v384 = vld [vmem:[%s235 + $0x3f0] sm:$0xff]
      %v385 = vld [vmem:[%s235 + $0x3f8] sm:$0xff]
      %v386 = vld [vmem:[%s235 + $0x400] sm:$0xff]
      %v387 = vld [vmem:[%s235 + $0x408] sm:$0xff]
      %v388 = vld [vmem:[%s235 + $0x410] sm:$0xff]
      %v389 = vld [vmem:[%s235 + $0x418] sm:$0xff]
      %v390 = vld [vmem:[%s235 + $0x420] sm:$0xff]
      %v391 = vld [vmem:[%s235 + $0x428] sm:$0xff]
      %v392 = vld [vmem:[%s235 + $0x430] sm:$0xff]
      %v393 = vld [vmem:[%s235 + $0x438] sm:$0xff]
      %v394 = vld [vmem:[%s235 + $0x440] sm:$0xff]
      %v395 = vld [vmem:[%s235 + $0x448] sm:$0xff]
      %v396 = vld [vmem:[%s235 + $0x450] sm:$0xff]
      %v397 = vld [vmem:[%s235 + $0x458] sm:$0xff]
      %v398 = vld [vmem:[%s235 + $0x460] sm:$0xff]
      %v399 = vld [vmem:[%s235 + $0x468] sm:$0xff]
      %v400 = vld [vmem:[%s235 + $0x470] sm:$0xff]
      %v401 = vld [vmem:[%s235 + $0x478] sm:$0xff]
      %v402 = vld [vmem:[%s235 + $0x480] sm:$0xff]
      %v403 = vld [vmem:[%s235 + $0x488] sm:$0xff]
      %v404 = vld [vmem:[%s235 + $0x490] sm:$0xff]
      %v405 = vld [vmem:[%s235 + $0x498] sm:$0xff]
      %v406 = vld [vmem:[%s235 + $0x4a0] sm:$0xff]
      %v407 = vld [vmem:[%s235 + $0x4a8] sm:$0xff]
      %v408 = vld [vmem:[%s235 + $0x4b0] sm:$0xff]
      %v409 = vld [vmem:[%s235 + $0x4b8] sm:$0xff]
      %v410 = vld [vmem:[%s235 + $0x4c0] sm:$0xff]
      %v411 = vld [vmem:[%s235 + $0x4c8] sm:$0xff]
      %v412 = vld [vmem:[%s235 + $0x4d0] sm:$0xff]
      %v413 = vld [vmem:[%s235 + $0x4d8] sm:$0xff]
      %v414 = vld [vmem:[%s235 + $0x4e0] sm:$0xff]
      %v415 = vld [vmem:[%s235 + $0x4e8] sm:$0xff]
      %v416 = vld [vmem:[%s235 + $0x4f0] sm:$0xff]
      %v417 = vld [vmem:[%s235 + $0x4f8] sm:$0xff]
      %v418 = vld [vmem:[%s235 + $0x500] sm:$0xff]
      %v419 = vld [vmem:[%s235 + $0x508] sm:$0xff]
      %v420 = vld [vmem:[%s235 + $0x510] sm:$0xff]
      %v421 = vld [vmem:[%s235 + $0x518] sm:$0xff]
      %v422 = vld [vmem:[%s235 + $0x520] sm:$0xff]
      %v423 = vld [vmem:[%s235 + $0x528] sm:$0xff]
      %v424 = vld [vmem:[%s235 + $0x530] sm:$0xff]
      %v425 = vld [vmem:[%s235 + $0x538] sm:$0xff]
      %v426 = vld [vmem:[%s235 + $0x540] sm:$0xff]
      %v427 = vld [vmem:[%s235 + $0x548] sm:$0xff]
      %v428 = vld [vmem:[%s235 + $0x550] sm:$0xff]
      %v429 = vld [vmem:[%s235 + $0x558] sm:$0xff]
      %v430 = vld [vmem:[%s235 + $0x560] sm:$0xff]
      %v431 = vld [vmem:[%s235 + $0x568] sm:$0xff]
      %v432 = vld [vmem:[%s235 + $0x570] sm:$0xff]
      %v433 = vld [vmem:[%s235 + $0x578] sm:$0xff]
      %v434 = vld [vmem:[%s235 + $0x580] sm:$0xff]
      %v435 = vld [vmem:[%s235 + $0x588] sm:$0xff]
      %v436 = vld [vmem:[%s235 + $0x590] sm:$0xff]
      %v437 = vld [vmem:[%s235 + $0x598] sm:$0xff]
      %v438 = vld [vmem:[%s235 + $0x5a0] sm:$0xff]
      %v439 = vld [vmem:[%s235 + $0x5a8] sm:$0xff]
      %v440 = vld [vmem:[%s235 + $0x5b0] sm:$0xff]
      %v441 = vld [vmem:[%s235 + $0x5b8] sm:$0xff]
      %v442 = vld [vmem:[%s235 + $0x5c0] sm:$0xff]
      %v443 = vld [vmem:[%s235 + $0x5c8] sm:$0xff]
      %v444 = vld [vmem:[%s235 + $0x5d0] sm:$0xff]
      %v445 = vld [vmem:[%s235 + $0x5d8] sm:$0xff]
      %v446 = vld [vmem:[%s235 + $0x5e0] sm:$0xff]
      %v447 = vld [vmem:[%s235 + $0x5e8] sm:$0xff]
      %v448 = vld [vmem:[%s235 + $0x5f0] sm:$0xff]
      %v449 = vld [vmem:[%s235 + $0x5f8] sm:$0xff]
      %v450 = vld [vmem:[%s235 + $0x600] sm:$0xff]
      %v451 = vld [vmem:[%s235 + $0x608] sm:$0xff]
      %v452 = vld [vmem:[%s235 + $0x610] sm:$0xff]
      %v453 = vld [vmem:[%s235 + $0x618] sm:$0xff]
      %v454 = vld [vmem:[%s235 + $0x620] sm:$0xff]
      %v455 = vld [vmem:[%s235 + $0x628] sm:$0xff]
      %v456 = vld [vmem:[%s235 + $0x630] sm:$0xff]
      %v457 = vld [vmem:[%s235 + $0x638] sm:$0xff]
      %v458 = vld [vmem:[%s235 + $0x640] sm:$0xff]
      %v459 = vld [vmem:[%s235 + $0x648] sm:$0xff]
      %v460 = vld [vmem:[%s235 + $0x650] sm:$0xff]
      %v461 = vld [vmem:[%s235 + $0x658] sm:$0xff]
      %v462 = vld [vmem:[%s235 + $0x660] sm:$0xff]
      %v463 = vld [vmem:[%s235 + $0x668] sm:$0xff]
      %v464 = vld [vmem:[%s235 + $0x670] sm:$0xff]
      %v465 = vld [vmem:[%s235 + $0x678] sm:$0xff]
      %v466 = vld [vmem:[%s235 + $0x680] sm:$0xff]
      %v467 = vld [vmem:[%s235 + $0x688] sm:$0xff]
      %v468 = vld [vmem:[%s235 + $0x690] sm:$0xff]
      %v469 = vld [vmem:[%s235 + $0x698] sm:$0xff]
      %v470 = vld [vmem:[%s235 + $0x6a0] sm:$0xff]
      %v471 = vld [vmem:[%s235 + $0x6a8] sm:$0xff]
      %v472 = vld [vmem:[%s235 + $0x6b0] sm:$0xff]
      %v473 = vld [vmem:[%s235 + $0x6b8] sm:$0xff]
      %v474 = vld [vmem:[%s235 + $0x6c0] sm:$0xff]
      %v475 = vld [vmem:[%s235 + $0x6c8] sm:$0xff]
      %v476 = vld [vmem:[%s235 + $0x6d0] sm:$0xff]
      %v477 = vld [vmem:[%s235 + $0x6d8] sm:$0xff]
      %v478 = vld [vmem:[%s235 + $0x6e0] sm:$0xff]
      %v479 = vld [vmem:[%s235 + $0x6e8] sm:$0xff]
      %v480 = vld [vmem:[%s235 + $0x6f0] sm:$0xff]
      %v481 = vld [vmem:[%s235 + $0x6f8] sm:$0xff]
      %v482 = vld [vmem:[%s235 + $0x700] sm:$0xff]
      %v483 = vld [vmem:[%s235 + $0x708] sm:$0xff]
      %v484 = vld [vmem:[%s235 + $0x710] sm:$0xff]
      %v485 = vld [vmem:[%s235 + $0x718] sm:$0xff]
      %v486 = vld [vmem:[%s235 + $0x720] sm:$0xff]
      %v487 = vld [vmem:[%s235 + $0x728] sm:$0xff]
      %v488 = vld [vmem:[%s235 + $0x730] sm:$0xff]
      %v489 = vld [vmem:[%s235 + $0x738] sm:$0xff]
      %v490 = vld [vmem:[%s235 + $0x740] sm:$0xff]
      %v491 = vld [vmem:[%s235 + $0x748] sm:$0xff]
      %v492 = vld [vmem:[%s235 + $0x750] sm:$0xff]
      %v493 = vld [vmem:[%s235 + $0x758] sm:$0xff]
      %v494 = vld [vmem:[%s235 + $0x760] sm:$0xff]
      %v495 = vld [vmem:[%s235 + $0x768] sm:$0xff]
      %v496 = vld [vmem:[%s235 + $0x770] sm:$0xff]
      %v497 = vld [vmem:[%s235 + $0x778] sm:$0xff]
      %v498 = vld [vmem:[%s235 + $0x780] sm:$0xff]
      %v499 = vld [vmem:[%s235 + $0x788] sm:$0xff]
      %v500 = vld [vmem:[%s235 + $0x790] sm:$0xff]
      %v501 = vld [vmem:[%s235 + $0x798] sm:$0xff]
      %v502 = vld [vmem:[%s235 + $0x7a0] sm:$0xff]
      %v503 = vld [vmem:[%s235 + $0x7a8] sm:$0xff]
      %v504 = vld [vmem:[%s235 + $0x7b0] sm:$0xff]
      %v505 = vld [vmem:[%s235 + $0x7b8] sm:$0xff]
      %v506 = vld [vmem:[%s235 + $0x7c0] sm:$0xff]
      %v507 = vld [vmem:[%s235 + $0x7c8] sm:$0xff]
      %v508 = vld [vmem:[%s235 + $0x7d0] sm:$0xff]
      %v509 = vld [vmem:[%s235 + $0x7d8] sm:$0xff]
      %v510 = vld [vmem:[%s235 + $0x7e0] sm:$0xff]
      %v511 = vld [vmem:[%s235 + $0x7e8] sm:$0xff]
      %v512 = vld [vmem:[%s235 + $0x7f0] sm:$0xff]
      %v513 = vld [vmem:[%s235 + $0x7f8] sm:$0xff]
      %v514 = vld [vmem:[%s235 + $0x800] sm:$0xff]
      %v515 = vld [vmem:[%s235 + $0x808] sm:$0xff]
      %v516 = vld [vmem:[%s235 + $0x810] sm:$0xff]
      %v517 = vld [vmem:[%s235 + $0x818] sm:$0xff]
      %v518 = vld [vmem:[%s235 + $0x820] sm:$0xff]
      %v519 = vld [vmem:[%s235 + $0x828] sm:$0xff]
      %v520 = vld [vmem:[%s235 + $0x830] sm:$0xff]
      %v521 = vld [vmem:[%s235 + $0x838] sm:$0xff]
      %v522 = vld [vmem:[%s235 + $0x840] sm:$0xff]
      %v523 = vld [vmem:[%s235 + $0x848] sm:$0xff]
      %v524 = vld [vmem:[%s235 + $0x850] sm:$0xff]
      %v525 = vld [vmem:[%s235 + $0x858] sm:$0xff]
      %v526 = vld [vmem:[%s235 + $0x860] sm:$0xff]
      %v527 = vld [vmem:[%s235 + $0x868] sm:$0xff]
      %v528 = vld [vmem:[%s235 + $0x870] sm:$0xff]
      %v529 = vld [vmem:[%s235 + $0x878] sm:$0xff]
      %v530 = vld [vmem:[%s235 + $0x880] sm:$0xff]
      %v531 = vld [vmem:[%s235 + $0x888] sm:$0xff]
      %v532 = vld [vmem:[%s235 + $0x890] sm:$0xff]
      %v533 = vld [vmem:[%s235 + $0x898] sm:$0xff]
      %v534 = vld [vmem:[%s235 + $0x8a0] sm:$0xff]
      %v535 = vld [vmem:[%s235 + $0x8a8] sm:$0xff]
      %v536 = vld [vmem:[%s235 + $0x8b0] sm:$0xff]
      %v537 = vld [vmem:[%s235 + $0x8b8] sm:$0xff]
      %v538 = vld [vmem:[%s235 + $0x8c0] sm:$0xff]
      %v539 = vld [vmem:[%s235 + $0x8c8] sm:$0xff]
      %v540 = vld [vmem:[%s235 + $0x8d0] sm:$0xff]
      %v541 = vld [vmem:[%s235 + $0x8d8] sm:$0xff]
      %v542 = vld [vmem:[%s235 + $0x8e0] sm:$0xff]
      %v543 = vld [vmem:[%s235 + $0x8e8] sm:$0xff]
      %v544 = vld [vmem:[%s235 + $0x8f0] sm:$0xff]
      %v545 = vld [vmem:[%s235 + $0x8f8] sm:$0xff]
      %v546 = vld [vmem:[%s235 + $0x900] sm:$0xff]
      %v547 = vld [vmem:[%s235 + $0x908] sm:$0xff]
      %v548 = vld [vmem:[%s235 + $0x910] sm:$0xff]
      %v549 = vld [vmem:[%s235 + $0x918] sm:$0xff]
      %v550 = vld [vmem:[%s235 + $0x920] sm:$0xff]
      %v551 = vld [vmem:[%s235 + $0x928] sm:$0xff]
      %v552 = vld [vmem:[%s235 + $0x930] sm:$0xff]
      %v553 = vld [vmem:[%s235 + $0x938] sm:$0xff]
      %v554 = vld [vmem:[%s235 + $0x940] sm:$0xff]
      %v555 = vld [vmem:[%s235 + $0x948] sm:$0xff]
      %v556 = vld [vmem:[%s235 + $0x950] sm:$0xff]
      %v557 = vld [vmem:[%s235 + $0x958] sm:$0xff]
      %v558 = vld [vmem:[%s235 + $0x960] sm:$0xff]
      %v559 = vld [vmem:[%s235 + $0x968] sm:$0xff]
      %v560 = vld [vmem:[%s235 + $0x970] sm:$0xff]
      %v561 = vld [vmem:[%s235 + $0x978] sm:$0xff]
      %v562 = vld [vmem:[%s235 + $0x980] sm:$0xff]
      %v563 = vld [vmem:[%s235 + $0x988] sm:$0xff]
      %v564 = vld [vmem:[%s235 + $0x990] sm:$0xff]
      %v565 = vld [vmem:[%s235 + $0x998] sm:$0xff]
      %v566 = vld [vmem:[%s235 + $0x9a0] sm:$0xff]
      %v567 = vld [vmem:[%s235 + $0x9a8] sm:$0xff]
      %v568 = vld [vmem:[%s235 + $0x9b0] sm:$0xff]
      %v569 = vld [vmem:[%s235 + $0x9b8] sm:$0xff]
      %v570 = vld [vmem:[%s235 + $0x9c0] sm:$0xff]
      %v571 = vld [vmem:[%s235 + $0x9c8] sm:$0xff]
      %v572 = vld [vmem:[%s235 + $0x9d0] sm:$0xff]
      %v573 = vld [vmem:[%s235 + $0x9d8] sm:$0xff]
      %v574 = vld [vmem:[%s235 + $0x9e0] sm:$0xff]
      %v575 = vld [vmem:[%s235 + $0x9e8] sm:$0xff]
      %v576 = vld [vmem:[%s235 + $0x9f0] sm:$0xff]
      %v577 = vld [vmem:[%s235 + $0x9f8] sm:$0xff]
      %v578 = vld [vmem:[%s235 + $0xa00] sm:$0xff]
      %v579 = vld [vmem:[%s235 + $0xa08] sm:$0xff]
      %v580 = vld [vmem:[%s235 + $0xa10] sm:$0xff]
      %v581 = vld [vmem:[%s235 + $0xa18] sm:$0xff]
      %v582 = vld [vmem:[%s235 + $0xa20] sm:$0xff]
      %v583 = vld [vmem:[%s235 + $0xa28] sm:$0xff]
      %v584 = vld [vmem:[%s235 + $0xa30] sm:$0xff]
      %v585 = vld [vmem:[%s235 + $0xa38] sm:$0xff]
      %v586 = vld [vmem:[%s235 + $0xa40] sm:$0xff]
      %v587 = vld [vmem:[%s235 + $0xa48] sm:$0xff]
      %v588 = vld [vmem:[%s235 + $0xa50] sm:$0xff]
      %v589 = vld [vmem:[%s235 + $0xa58] sm:$0xff]
      %v590 = vld [vmem:[%s235 + $0xa60] sm:$0xff]
      %v591 = vld [vmem:[%s235 + $0xa68] sm:$0xff]
      %v592 = vld [vmem:[%s235 + $0xa70] sm:$0xff]
      %v593 = vld [vmem:[%s235 + $0xa78] sm:$0xff]
      %v594 = vld [vmem:[%s235 + $0xa80] sm:$0xff]
      %v595 = vld [vmem:[%s235 + $0xa88] sm:$0xff]
      %v596 = vld [vmem:[%s235 + $0xa90] sm:$0xff]
      %v597 = vld [vmem:[%s235 + $0xa98] sm:$0xff]
      %v598 = vld [vmem:[%s235 + $0xaa0] sm:$0xff]
      %v599 = vld [vmem:[%s235 + $0xaa8] sm:$0xff]
      %v600 = vld [vmem:[%s235 + $0xab0] sm:$0xff]
      %v601 = vld [vmem:[%s235 + $0xab8] sm:$0xff]
      %v602 = vld [vmem:[%s235 + $0xac0] sm:$0xff]
      %v603 = vld [vmem:[%s235 + $0xac8] sm:$0xff]
      %v604 = vld [vmem:[%s235 + $0xad0] sm:$0xff]
      %v605 = vld [vmem:[%s235 + $0xad8] sm:$0xff]
      %v606 = vld [vmem:[%s235 + $0xae0] sm:$0xff]
      %v607 = vld [vmem:[%s235 + $0xae8] sm:$0xff]
      %v608 = vld [vmem:[%s235 + $0xaf0] sm:$0xff]
      %v609 = vld [vmem:[%s235 + $0xaf8] sm:$0xff]
      %v610 = vld [vmem:[%s235 + $0xb00] sm:$0xff]
      %v611 = vld [vmem:[%s235 + $0xb08] sm:$0xff]
      %v612 = vld [vmem:[%s235 + $0xb10] sm:$0xff]
      %v613 = vld [vmem:[%s235 + $0xb18] sm:$0xff]
      %v614 = vld [vmem:[%s235 + $0xb20] sm:$0xff]
      %v615 = vld [vmem:[%s235 + $0xb28] sm:$0xff]
      %v616 = vld [vmem:[%s235 + $0xb30] sm:$0xff]
      %v617 = vld [vmem:[%s235 + $0xb38] sm:$0xff]
      %v618 = vld [vmem:[%s235 + $0xb40] sm:$0xff]
      %v619 = vld [vmem:[%s235 + $0xb48] sm:$0xff]
      %v620 = vld [vmem:[%s235 + $0xb50] sm:$0xff]
      %v621 = vld [vmem:[%s235 + $0xb58] sm:$0xff]
      %v622 = vld [vmem:[%s235 + $0xb60] sm:$0xff]
      %v623 = vld [vmem:[%s235 + $0xb68] sm:$0xff]
      %v624 = vld [vmem:[%s235 + $0xb70] sm:$0xff]
      %v625 = vld [vmem:[%s235 + $0xb78] sm:$0xff]
      %v626 = vld [vmem:[%s235 + $0xb80] sm:$0xff]
      %v627 = vld [vmem:[%s235 + $0xb88] sm:$0xff]
      %v628 = vld [vmem:[%s235 + $0xb90] sm:$0xff]
      %v629 = vld [vmem:[%s235 + $0xb98] sm:$0xff]
      %v630 = vld [vmem:[%s235 + $0xba0] sm:$0xff]
      %v631 = vld [vmem:[%s235 + $0xba8] sm:$0xff]
      %v632 = vld [vmem:[%s235 + $0xbb0] sm:$0xff]
      %v633 = vld [vmem:[%s235 + $0xbb8] sm:$0xff]
      %v634 = vld [vmem:[%s235 + $0xbc0] sm:$0xff]
      %v635 = vld [vmem:[%s235 + $0xbc8] sm:$0xff]
      %v636 = vld [vmem:[%s235 + $0xbd0] sm:$0xff]
      %v637 = vld [vmem:[%s235 + $0xbd8] sm:$0xff]
      %v638 = vld [vmem:[%s235 + $0xbe0] sm:$0xff]
      %v639 = vld [vmem:[%s235 + $0xbe8] sm:$0xff]
      %v640 = vld [vmem:[%s235 + $0xbf0] sm:$0xff]
      %v641 = vld [vmem:[%s235 + $0xbf8] sm:$0xff]
      %v642 = vld [vmem:[%s235 + $0xc00] sm:$0xff]
      %v643 = vld [vmem:[%s235 + $0xc08] sm:$0xff]
      %v644 = vld [vmem:[%s235 + $0xc10] sm:$0xff]
      %v645 = vld [vmem:[%s235 + $0xc18] sm:$0xff]
      %v646 = vld [vmem:[%s235 + $0xc20] sm:$0xff]
      %v647 = vld [vmem:[%s235 + $0xc28] sm:$0xff]
      %v648 = vld [vmem:[%s235 + $0xc30] sm:$0xff]
      %v649 = vld [vmem:[%s235 + $0xc38] sm:$0xff]
      %v650 = vld [vmem:[%s235 + $0xc40] sm:$0xff]
      %v651 = vld [vmem:[%s235 + $0xc48] sm:$0xff]
      %v652 = vld [vmem:[%s235 + $0xc50] sm:$0xff]
      %v653 = vld [vmem:[%s235 + $0xc58] sm:$0xff]
      %v654 = vld [vmem:[%s235 + $0xc60] sm:$0xff]
      %v655 = vld [vmem:[%s235 + $0xc68] sm:$0xff]
      %v656 = vld [vmem:[%s235 + $0xc70] sm:$0xff]
      %v657 = vld [vmem:[%s235 + $0xc78] sm:$0xff]
      %v658 = vld [vmem:[%s235 + $0xc80] sm:$0xff]
      %v659 = vld [vmem:[%s235 + $0xc88] sm:$0xff]
      %v660 = vld [vmem:[%s235 + $0xc90] sm:$0xff]
      %v661 = vld [vmem:[%s235 + $0xc98] sm:$0xff]
      %v662 = vld [vmem:[%s235 + $0xca0] sm:$0xff]
      %v663 = vld [vmem:[%s235 + $0xca8] sm:$0xff]
      %v664 = vld [vmem:[%s235 + $0xcb0] sm:$0xff]
      %v665 = vld [vmem:[%s235 + $0xcb8] sm:$0xff]
      %v666 = vld [vmem:[%s235 + $0xcc0] sm:$0xff]
      %v667 = vld [vmem:[%s235 + $0xcc8] sm:$0xff]
      %v668 = vld [vmem:[%s235 + $0xcd0] sm:$0xff]
      %v669 = vld [vmem:[%s235 + $0xcd8] sm:$0xff]
      %v670 = vld [vmem:[%s235 + $0xce0] sm:$0xff]
      %v671 = vld [vmem:[%s235 + $0xce8] sm:$0xff]
      %v672 = vld [vmem:[%s235 + $0xcf0] sm:$0xff]
      %v673 = vld [vmem:[%s235 + $0xcf8] sm:$0xff]
      %v674 = vld [vmem:[%s235 + $0xd00] sm:$0xff]
      %v675 = vld [vmem:[%s235 + $0xd08] sm:$0xff]
      %v676 = vld [vmem:[%s235 + $0xd10] sm:$0xff]
      %v677 = vld [vmem:[%s235 + $0xd18] sm:$0xff]
      %v678 = vld [vmem:[%s235 + $0xd20] sm:$0xff]
      %v679 = vld [vmem:[%s235 + $0xd28] sm:$0xff]
      %v680 = vld [vmem:[%s235 + $0xd30] sm:$0xff]
      %v681 = vld [vmem:[%s235 + $0xd38] sm:$0xff]
      %v682 = vld [vmem:[%s235 + $0xd40] sm:$0xff]
      %v683 = vld [vmem:[%s235 + $0xd48] sm:$0xff]
      %v684 = vld [vmem:[%s235 + $0xd50] sm:$0xff]
      %v685 = vld [vmem:[%s235 + $0xd58] sm:$0xff]
      %v686 = vld [vmem:[%s235 + $0xd60] sm:$0xff]
      %v687 = vld [vmem:[%s235 + $0xd68] sm:$0xff]
      %v688 = vld [vmem:[%s235 + $0xd70] sm:$0xff]
      %v689 = vld [vmem:[%s235 + $0xd78] sm:$0xff]
      %v690 = vld [vmem:[%s235 + $0xd80] sm:$0xff]
      %v691 = vld [vmem:[%s235 + $0xd88] sm:$0xff]
      %v692 = vld [vmem:[%s235 + $0xd90] sm:$0xff]
      %v693 = vld [vmem:[%s235 + $0xd98] sm:$0xff]
      %v694 = vld [vmem:[%s235 + $0xda0] sm:$0xff]
      %v695 = vld [vmem:[%s235 + $0xda8] sm:$0xff]
      %v696 = vld [vmem:[%s235 + $0xdb0] sm:$0xff]
      %v697 = vld [vmem:[%s235 + $0xdb8] sm:$0xff]
      %v698 = vld [vmem:[%s235 + $0xdc0] sm:$0xff]
      %v699 = vld [vmem:[%s235 + $0xdc8] sm:$0xff]
      %v700 = vld [vmem:[%s235 + $0xdd0] sm:$0xff]
      %v701 = vld [vmem:[%s235 + $0xdd8] sm:$0xff]
      %v702 = vld [vmem:[%s235 + $0xde0] sm:$0xff]
      %v703 = vld [vmem:[%s235 + $0xde8] sm:$0xff]
      %v704 = vld [vmem:[%s235 + $0xdf0] sm:$0xff]
      %v705 = vld [vmem:[%s235 + $0xdf8] sm:$0xff]
      %v706 = vld [vmem:[%s235 + $0xe00] sm:$0xff]
      %v707 = vld [vmem:[%s235 + $0xe08] sm:$0xff]
      %v708 = vld [vmem:[%s235 + $0xe10] sm:$0xff]
      %v709 = vld [vmem:[%s235 + $0xe18] sm:$0xff]
      %v710 = vld [vmem:[%s235 + $0xe20] sm:$0xff]
      %v711 = vld [vmem:[%s235 + $0xe28] sm:$0xff]
      %v712 = vld [vmem:[%s235 + $0xe30] sm:$0xff]
      %v713 = vld [vmem:[%s235 + $0xe38] sm:$0xff]
      %v714 = vld [vmem:[%s235 + $0xe40] sm:$0xff]
      %v715 = vld [vmem:[%s235 + $0xe48] sm:$0xff]
      %v716 = vld [vmem:[%s235 + $0xe50] sm:$0xff]
      %v717 = vld [vmem:[%s235 + $0xe58] sm:$0xff]
      %v718 = vld [vmem:[%s235 + $0xe60] sm:$0xff]
      %v719 = vld [vmem:[%s235 + $0xe68] sm:$0xff]
      %v720 = vld [vmem:[%s235 + $0xe70] sm:$0xff]
      %v721 = vld [vmem:[%s235 + $0xe78] sm:$0xff]
      %v722 = vld [vmem:[%s235 + $0xe80] sm:$0xff]
      %v723 = vld [vmem:[%s235 + $0xe88] sm:$0xff]
      %v724 = vld [vmem:[%s235 + $0xe90] sm:$0xff]
      %v725 = vld [vmem:[%s235 + $0xe98] sm:$0xff]
      %v726 = vld [vmem:[%s235 + $0xea0] sm:$0xff]
      %v727 = vld [vmem:[%s235 + $0xea8] sm:$0xff]
      %v728 = vld [vmem:[%s235 + $0xeb0] sm:$0xff]
      %v729 = vld [vmem:[%s235 + $0xeb8] sm:$0xff]
      %v730 = vld [vmem:[%s235 + $0xec0] sm:$0xff]
      %v731 = vld [vmem:[%s235 + $0xec8] sm:$0xff]
      %v732 = vld [vmem:[%s235 + $0xed0] sm:$0xff]
      %v733 = vld [vmem:[%s235 + $0xed8] sm:$0xff]
      %v734 = vld [vmem:[%s235 + $0xee0] sm:$0xff]
      %v735 = vld [vmem:[%s235 + $0xee8] sm:$0xff]
      %v736 = vld [vmem:[%s235 + $0xef0] sm:$0xff]
      %v737 = vld [vmem:[%s235 + $0xef8] sm:$0xff]
      %v738 = vld [vmem:[%s235 + $0xf00] sm:$0xff]
      %v739 = vld [vmem:[%s235 + $0xf08] sm:$0xff]
      %v740 = vld [vmem:[%s235 + $0xf10] sm:$0xff]
      %v741 = vld [vmem:[%s235 + $0xf18] sm:$0xff]
      %v742 = vld [vmem:[%s235 + $0xf20] sm:$0xff]
      %v743 = vld [vmem:[%s235 + $0xf28] sm:$0xff]
      %v744 = vld [vmem:[%s235 + $0xf30] sm:$0xff]
      %v745 = vld [vmem:[%s235 + $0xf38] sm:$0xff]
      %v746 = vld [vmem:[%s235 + $0xf40] sm:$0xff]
      %v747 = vld [vmem:[%s235 + $0xf48] sm:$0xff]
      %v748 = vld [vmem:[%s235 + $0xf50] sm:$0xff]
      %v749 = vld [vmem:[%s235 + $0xf58] sm:$0xff]
      %v750 = vld [vmem:[%s235 + $0xf60] sm:$0xff]
      %v751 = vld [vmem:[%s235 + $0xf68] sm:$0xff]
      %v752 = vld [vmem:[%s235 + $0xf70] sm:$0xff]
      %v753 = vld [vmem:[%s235 + $0xf78] sm:$0xff]
      %v754 = vld [vmem:[%s235 + $0xf80] sm:$0xff]
      %v755 = vld [vmem:[%s235 + $0xf88] sm:$0xff]
      %v756 = vld [vmem:[%s235 + $0xf90] sm:$0xff]
      %v757 = vld [vmem:[%s235 + $0xf98] sm:$0xff]
      %v758 = vld [vmem:[%s235 + $0xfa0] sm:$0xff]
      %v759 = vld [vmem:[%s235 + $0xfa8] sm:$0xff]
      %v760 = vld [vmem:[%s235 + $0xfb0] sm:$0xff]
      %v761 = vld [vmem:[%s235 + $0xfb8] sm:$0xff]
      %v762 = vld [vmem:[%s235 + $0xfc0] sm:$0xff]
      %v763 = vld [vmem:[%s235 + $0xfc8] sm:$0xff]
      %v764 = vld [vmem:[%s235 + $0xfd0] sm:$0xff]
      %v765 = vld [vmem:[%s235 + $0xfd8] sm:$0xff]
      %v766 = vld [vmem:[%s235 + $0xfe0] sm:$0xff]
      %v767 = vld [vmem:[%s235 + $0xfe8] sm:$0xff]
      %v768 = vld [vmem:[%s235 + $0xff0] sm:$0xff]
      %v769 = vld [vmem:[%s235 + $0xff8] sm:$0xff]
      %v778 = vunpack.c.l.b16 %v250
      %v779 = vunpack.c.h.b16 %v250
      %v780 = vunpack.c.l.b16 %v251
      %v781 = vunpack.c.h.b16 %v251
      %v782 = vunpack.c.l.b16 %v252
      %v783 = vunpack.c.h.b16 %v252
      %v784 = vunpack.c.l.b16 %v253
      %v785 = vunpack.c.h.b16 %v253
      %v786 = vunpack.c.l.b16 %v254
      %v787 = vunpack.c.h.b16 %v254
      %v788 = vunpack.c.l.b16 %v255
      %v789 = vunpack.c.h.b16 %v255
      %v790 = vunpack.c.l.b16 %v256
      %v791 = vunpack.c.h.b16 %v256
      %v792 = vunpack.c.l.b16 %v257
      %v793 = vunpack.c.h.b16 %v257
      %v794 = vpack.c.b16 %v778, %v778
      %v795 = vpack.c.b16 %v779, %v779
      %v796 = vpack.c.b16 %v780, %v780
      %v797 = vpack.c.b16 %v781, %v781
      %v798 = vpack.c.b16 %v782, %v782
      %v799 = vpack.c.b16 %v783, %v783
      %v800 = vpack.c.b16 %v784, %v784
      %v801 = vpack.c.b16 %v785, %v785
      %v802 = vpack.c.b16 %v786, %v786
      %v803 = vpack.c.b16 %v787, %v787
      %v804 = vpack.c.b16 %v788, %v788
      %v805 = vpack.c.b16 %v789, %v789
      %v806 = vpack.c.b16 %v790, %v790
      %v807 = vpack.c.b16 %v791, %v791
      %v808 = vpack.c.b16 %v792, %v792
      %v809 = vpack.c.b16 %v793, %v793
      %v1338 = vunpack.c.l.b16 %v258
      %v1339 = vunpack.c.h.b16 %v258
      %v1340 = vunpack.c.l.b16 %v259
      %v1341 = vunpack.c.h.b16 %v259
      %v1342 = vunpack.c.l.b16 %v260
      %v1343 = vunpack.c.h.b16 %v260
      %v1344 = vunpack.c.l.b16 %v261
      %v1345 = vunpack.c.h.b16 %v261
      %v1346 = vunpack.c.l.b16 %v262
      %v1347 = vunpack.c.h.b16 %v262
      %v1348 = vunpack.c.l.b16 %v263
      %v1349 = vunpack.c.h.b16 %v263
      %v1350 = vunpack.c.l.b16 %v264
      %v1351 = vunpack.c.h.b16 %v264
      %v1352 = vunpack.c.l.b16 %v265
      %v1353 = vunpack.c.h.b16 %v265
      %v1354 = vunpack.c.l.b16 %v266
      %v1355 = vunpack.c.h.b16 %v266
      %v1356 = vunpack.c.l.b16 %v267
      %v1357 = vunpack.c.h.b16 %v267
      %v1358 = vunpack.c.l.b16 %v268
      %v1359 = vunpack.c.h.b16 %v268
      %v1360 = vunpack.c.l.b16 %v269
      %v1361 = vunpack.c.h.b16 %v269
      %v1362 = vunpack.c.l.b16 %v270
      %v1363 = vunpack.c.h.b16 %v270
      %v1364 = vunpack.c.l.b16 %v271
      %v1365 = vunpack.c.h.b16 %v271
      %v1366 = vunpack.c.l.b16 %v272
      %v1367 = vunpack.c.h.b16 %v272
      %v1368 = vunpack.c.l.b16 %v273
      %v1369 = vunpack.c.h.b16 %v273
      %v1370 = vunpack.c.l.b16 %v274
      %v1371 = vunpack.c.h.b16 %v274
      %v1372 = vunpack.c.l.b16 %v275
      %v1373 = vunpack.c.h.b16 %v275
      %v1374 = vunpack.c.l.b16 %v276
      %v1375 = vunpack.c.h.b16 %v276
      %v1376 = vunpack.c.l.b16 %v277
      %v1377 = vunpack.c.h.b16 %v277
      %v1378 = vunpack.c.l.b16 %v278
      %v1379 = vunpack.c.h.b16 %v278
      %v1380 = vunpack.c.l.b16 %v279
      %v1381 = vunpack.c.h.b16 %v279
      %v1382 = vunpack.c.l.b16 %v280
      %v1383 = vunpack.c.h.b16 %v280
      %v1384 = vunpack.c.l.b16 %v281
      %v1385 = vunpack.c.h.b16 %v281
      %v1386 = vunpack.c.l.b16 %v282
      %v1387 = vunpack.c.h.b16 %v282
      %v1388 = vunpack.c.l.b16 %v283
      %v1389 = vunpack.c.h.b16 %v283
      %v1390 = vunpack.c.l.b16 %v284
      %v1391 = vunpack.c.h.b16 %v284
      %v1392 = vunpack.c.l.b16 %v285
      %v1393 = vunpack.c.h.b16 %v285
      %v1394 = vunpack.c.l.b16 %v286
      %v1395 = vunpack.c.h.b16 %v286
      %v1396 = vunpack.c.l.b16 %v287
      %v1397 = vunpack.c.h.b16 %v287
      %v1398 = vunpack.c.l.b16 %v288
      %v1399 = vunpack.c.h.b16 %v288
      %v1400 = vunpack.c.l.b16 %v289
      %v1401 = vunpack.c.h.b16 %v289
      %v1402 = vunpack.c.l.b16 %v290
      %v1403 = vunpack.c.h.b16 %v290
      %v1404 = vunpack.c.l.b16 %v291
      %v1405 = vunpack.c.h.b16 %v291
      %v1406 = vunpack.c.l.b16 %v292
      %v1407 = vunpack.c.h.b16 %v292
      %v1408 = vunpack.c.l.b16 %v293
      %v1409 = vunpack.c.h.b16 %v293
      %v1410 = vunpack.c.l.b16 %v294
      %v1411 = vunpack.c.h.b16 %v294
      %v1412 = vunpack.c.l.b16 %v295
      %v1413 = vunpack.c.h.b16 %v295
      %v1414 = vunpack.c.l.b16 %v296
      %v1415 = vunpack.c.h.b16 %v296
      %v1416 = vunpack.c.l.b16 %v297
      %v1417 = vunpack.c.h.b16 %v297
      %v1418 = vunpack.c.l.b16 %v298
      %v1419 = vunpack.c.h.b16 %v298
      %v1420 = vunpack.c.l.b16 %v299
      %v1421 = vunpack.c.h.b16 %v299
      %v1422 = vunpack.c.l.b16 %v300
      %v1423 = vunpack.c.h.b16 %v300
      %v1424 = vunpack.c.l.b16 %v301
      %v1425 = vunpack.c.h.b16 %v301
      %v1426 = vunpack.c.l.b16 %v302
      %v1427 = vunpack.c.h.b16 %v302
      %v1428 = vunpack.c.l.b16 %v303
      %v1429 = vunpack.c.h.b16 %v303
      %v1430 = vunpack.c.l.b16 %v304
      %v1431 = vunpack.c.h.b16 %v304
      %v1432 = vunpack.c.l.b16 %v305
      %v1433 = vunpack.c.h.b16 %v305
      %v1434 = vunpack.c.l.b16 %v306
      %v1435 = vunpack.c.h.b16 %v306
      %v1436 = vunpack.c.l.b16 %v307
      %v1437 = vunpack.c.h.b16 %v307
      %v1438 = vunpack.c.l.b16 %v308
      %v1439 = vunpack.c.h.b16 %v308
      %v1440 = vunpack.c.l.b16 %v309
      %v1441 = vunpack.c.h.b16 %v309
      %v1442 = vunpack.c.l.b16 %v310
      %v1443 = vunpack.c.h.b16 %v310
      %v1444 = vunpack.c.l.b16 %v311
      %v1445 = vunpack.c.h.b16 %v311
      %v1446 = vunpack.c.l.b16 %v312
      %v1447 = vunpack.c.h.b16 %v312
      %v1448 = vunpack.c.l.b16 %v313
      %v1449 = vunpack.c.h.b16 %v313
      %v1450 = vunpack.c.l.b16 %v314
      %v1451 = vunpack.c.h.b16 %v314
      %v1452 = vunpack.c.l.b16 %v315
      %v1453 = vunpack.c.h.b16 %v315
      %v1454 = vunpack.c.l.b16 %v316
      %v1455 = vunpack.c.h.b16 %v316
      %v1456 = vunpack.c.l.b16 %v317
      %v1457 = vunpack.c.h.b16 %v317
      %v1458 = vunpack.c.l.b16 %v318
      %v1459 = vunpack.c.h.b16 %v318
      %v1460 = vunpack.c.l.b16 %v319
      %v1461 = vunpack.c.h.b16 %v319
      %v1462 = vunpack.c.l.b16 %v320
      %v1463 = vunpack.c.h.b16 %v320
      %v1464 = vunpack.c.l.b16 %v321
      %v1465 = vunpack.c.h.b16 %v321
      %v1466 = vunpack.c.l.b16 %v322
      %v1467 = vunpack.c.h.b16 %v322
      %v1468 = vunpack.c.l.b16 %v323
      %v1469 = vunpack.c.h.b16 %v323
      %v1470 = vunpack.c.l.b16 %v324
      %v1471 = vunpack.c.h.b16 %v324
      %v1472 = vunpack.c.l.b16 %v325
      %v1473 = vunpack.c.h.b16 %v325
      %v1474 = vunpack.c.l.b16 %v326
      %v1475 = vunpack.c.h.b16 %v326
      %v1476 = vunpack.c.l.b16 %v327
      %v1477 = vunpack.c.h.b16 %v327
      %v1478 = vunpack.c.l.b16 %v328
      %v1479 = vunpack.c.h.b16 %v328
      %v1480 = vunpack.c.l.b16 %v329
      %v1481 = vunpack.c.h.b16 %v329
      %v1482 = vunpack.c.l.b16 %v330
      %v1483 = vunpack.c.h.b16 %v330
      %v1484 = vunpack.c.l.b16 %v331
      %v1485 = vunpack.c.h.b16 %v331
      %v1486 = vunpack.c.l.b16 %v332
      %v1487 = vunpack.c.h.b16 %v332
      %v1488 = vunpack.c.l.b16 %v333
      %v1489 = vunpack.c.h.b16 %v333
      %v1490 = vunpack.c.l.b16 %v334
      %v1491 = vunpack.c.h.b16 %v334
      %v1492 = vunpack.c.l.b16 %v335
      %v1493 = vunpack.c.h.b16 %v335
      %v1494 = vunpack.c.l.b16 %v336
      %v1495 = vunpack.c.h.b16 %v336
      %v1496 = vunpack.c.l.b16 %v337
      %v1497 = vunpack.c.h.b16 %v337
      %v1498 = vunpack.c.l.b16 %v338
      %v1499 = vunpack.c.h.b16 %v338
      %v1500 = vunpack.c.l.b16 %v339
      %v1501 = vunpack.c.h.b16 %v339
      %v1502 = vunpack.c.l.b16 %v340
      %v1503 = vunpack.c.h.b16 %v340
      %v1504 = vunpack.c.l.b16 %v341
      %v1505 = vunpack.c.h.b16 %v341
      %v1506 = vunpack.c.l.b16 %v342
      %v1507 = vunpack.c.h.b16 %v342
      %v1508 = vunpack.c.l.b16 %v343
      %v1509 = vunpack.c.h.b16 %v343
      %v1510 = vunpack.c.l.b16 %v344
      %v1511 = vunpack.c.h.b16 %v344
      %v1512 = vunpack.c.l.b16 %v345
      %v1513 = vunpack.c.h.b16 %v345
      %v1514 = vunpack.c.l.b16 %v346
      %v1515 = vunpack.c.h.b16 %v346
      %v1516 = vunpack.c.l.b16 %v347
      %v1517 = vunpack.c.h.b16 %v347
      %v1518 = vunpack.c.l.b16 %v348
      %v1519 = vunpack.c.h.b16 %v348
      %v1520 = vunpack.c.l.b16 %v349
      %v1521 = vunpack.c.h.b16 %v349
      %v1522 = vunpack.c.l.b16 %v350
      %v1523 = vunpack.c.h.b16 %v350
      %v1524 = vunpack.c.l.b16 %v351
      %v1525 = vunpack.c.h.b16 %v351
      %v1526 = vunpack.c.l.b16 %v352
      %v1527 = vunpack.c.h.b16 %v352
      %v1528 = vunpack.c.l.b16 %v353
      %v1529 = vunpack.c.h.b16 %v353
      %v1530 = vunpack.c.l.b16 %v354
      %v1531 = vunpack.c.h.b16 %v354
      %v1532 = vunpack.c.l.b16 %v355
      %v1533 = vunpack.c.h.b16 %v355
      %v1534 = vunpack.c.l.b16 %v356
      %v1535 = vunpack.c.h.b16 %v356
      %v1536 = vunpack.c.l.b16 %v357
      %v1537 = vunpack.c.h.b16 %v357
      %v1538 = vunpack.c.l.b16 %v358
      %v1539 = vunpack.c.h.b16 %v358
      %v1540 = vunpack.c.l.b16 %v359
      %v1541 = vunpack.c.h.b16 %v359
      %v1542 = vunpack.c.l.b16 %v360
      %v1543 = vunpack.c.h.b16 %v360
      %v1544 = vunpack.c.l.b16 %v361
      %v1545 = vunpack.c.h.b16 %v361
      %v1546 = vunpack.c.l.b16 %v362
      %v1547 = vunpack.c.h.b16 %v362
      %v1548 = vunpack.c.l.b16 %v363
      %v1549 = vunpack.c.h.b16 %v363
      %v1550 = vunpack.c.l.b16 %v364
      %v1551 = vunpack.c.h.b16 %v364
      %v1552 = vunpack.c.l.b16 %v365
      %v1553 = vunpack.c.h.b16 %v365
      %v1554 = vunpack.c.l.b16 %v366
      %v1555 = vunpack.c.h.b16 %v366
      %v1556 = vunpack.c.l.b16 %v367
      %v1557 = vunpack.c.h.b16 %v367
      %v1558 = vunpack.c.l.b16 %v368
      %v1559 = vunpack.c.h.b16 %v368
      %v1560 = vunpack.c.l.b16 %v369
      %v1561 = vunpack.c.h.b16 %v369
      %v1562 = vunpack.c.l.b16 %v370
      %v1563 = vunpack.c.h.b16 %v370
      %v1564 = vunpack.c.l.b16 %v371
      %v1565 = vunpack.c.h.b16 %v371
      %v1566 = vunpack.c.l.b16 %v372
      %v1567 = vunpack.c.h.b16 %v372
      %v1568 = vunpack.c.l.b16 %v373
      %v1569 = vunpack.c.h.b16 %v373
      %v1570 = vunpack.c.l.b16 %v374
      %v1571 = vunpack.c.h.b16 %v374
      %v1572 = vunpack.c.l.b16 %v375
      %v1573 = vunpack.c.h.b16 %v375
      %v1574 = vunpack.c.l.b16 %v376
      %v1575 = vunpack.c.h.b16 %v376
      %v1576 = vunpack.c.l.b16 %v377
      %v1577 = vunpack.c.h.b16 %v377
      %v1578 = vunpack.c.l.b16 %v378
      %v1579 = vunpack.c.h.b16 %v378
      %v1580 = vunpack.c.l.b16 %v379
      %v1581 = vunpack.c.h.b16 %v379
      %v1582 = vunpack.c.l.b16 %v380
      %v1583 = vunpack.c.h.b16 %v380
      %v1584 = vunpack.c.l.b16 %v381
      %v1585 = vunpack.c.h.b16 %v381
      %v1586 = vunpack.c.l.b16 %v382
      %v1587 = vunpack.c.h.b16 %v382
      %v1588 = vunpack.c.l.b16 %v383
      %v1589 = vunpack.c.h.b16 %v383
      %v1590 = vunpack.c.l.b16 %v384
      %v1591 = vunpack.c.h.b16 %v384
      %v1592 = vunpack.c.l.b16 %v385
      %v1593 = vunpack.c.h.b16 %v385
      %v1594 = vunpack.c.l.b16 %v386
      %v1595 = vunpack.c.h.b16 %v386
      %v1596 = vunpack.c.l.b16 %v387
      %v1597 = vunpack.c.h.b16 %v387
      %v1598 = vunpack.c.l.b16 %v388
      %v1599 = vunpack.c.h.b16 %v388
      %v1600 = vunpack.c.l.b16 %v389
      %v1601 = vunpack.c.h.b16 %v389
      %v1602 = vunpack.c.l.b16 %v390
      %v1603 = vunpack.c.h.b16 %v390
      %v1604 = vunpack.c.l.b16 %v391
      %v1605 = vunpack.c.h.b16 %v391
      %v1606 = vunpack.c.l.b16 %v392
      %v1607 = vunpack.c.h.b16 %v392
      %v1608 = vunpack.c.l.b16 %v393
      %v1609 = vunpack.c.h.b16 %v393
      %v1610 = vunpack.c.l.b16 %v394
      %v1611 = vunpack.c.h.b16 %v394
      %v1612 = vunpack.c.l.b16 %v395
      %v1613 = vunpack.c.h.b16 %v395
      %v1614 = vunpack.c.l.b16 %v396
      %v1615 = vunpack.c.h.b16 %v396
      %v1616 = vunpack.c.l.b16 %v397
      %v1617 = vunpack.c.h.b16 %v397
      %v1618 = vunpack.c.l.b16 %v398
      %v1619 = vunpack.c.h.b16 %v398
      %v1620 = vunpack.c.l.b16 %v399
      %v1621 = vunpack.c.h.b16 %v399
      %v1622 = vunpack.c.l.b16 %v400
      %v1623 = vunpack.c.h.b16 %v400
      %v1624 = vunpack.c.l.b16 %v401
      %v1625 = vunpack.c.h.b16 %v401
      %v1626 = vunpack.c.l.b16 %v402
      %v1627 = vunpack.c.h.b16 %v402
      %v1628 = vunpack.c.l.b16 %v403
      %v1629 = vunpack.c.h.b16 %v403
      %v1630 = vunpack.c.l.b16 %v404
      %v1631 = vunpack.c.h.b16 %v404
      %v1632 = vunpack.c.l.b16 %v405
      %v1633 = vunpack.c.h.b16 %v405
      %v1634 = vunpack.c.l.b16 %v406
      %v1635 = vunpack.c.h.b16 %v406
      %v1636 = vunpack.c.l.b16 %v407
      %v1637 = vunpack.c.h.b16 %v407
      %v1638 = vunpack.c.l.b16 %v408
      %v1639 = vunpack.c.h.b16 %v408
      %v1640 = vunpack.c.l.b16 %v409
      %v1641 = vunpack.c.h.b16 %v409
      %v1642 = vunpack.c.l.b16 %v410
      %v1643 = vunpack.c.h.b16 %v410
      %v1644 = vunpack.c.l.b16 %v411
      %v1645 = vunpack.c.h.b16 %v411
      %v1646 = vunpack.c.l.b16 %v412
      %v1647 = vunpack.c.h.b16 %v412
      %v1648 = vunpack.c.l.b16 %v413
      %v1649 = vunpack.c.h.b16 %v413
      %v1650 = vunpack.c.l.b16 %v414
      %v1651 = vunpack.c.h.b16 %v414
      %v1652 = vunpack.c.l.b16 %v415
      %v1653 = vunpack.c.h.b16 %v415
      %v1654 = vunpack.c.l.b16 %v416
      %v1655 = vunpack.c.h.b16 %v416
      %v1656 = vunpack.c.l.b16 %v417
      %v1657 = vunpack.c.h.b16 %v417
      %v1658 = vunpack.c.l.b16 %v418
      %v1659 = vunpack.c.h.b16 %v418
      %v1660 = vunpack.c.l.b16 %v419
      %v1661 = vunpack.c.h.b16 %v419
      %v1662 = vunpack.c.l.b16 %v420
      %v1663 = vunpack.c.h.b16 %v420
      %v1664 = vunpack.c.l.b16 %v421
      %v1665 = vunpack.c.h.b16 %v421
      %v1666 = vunpack.c.l.b16 %v422
      %v1667 = vunpack.c.h.b16 %v422
      %v1668 = vunpack.c.l.b16 %v423
      %v1669 = vunpack.c.h.b16 %v423
      %v1670 = vunpack.c.l.b16 %v424
      %v1671 = vunpack.c.h.b16 %v424
      %v1672 = vunpack.c.l.b16 %v425
      %v1673 = vunpack.c.h.b16 %v425
      %v1674 = vunpack.c.l.b16 %v426
      %v1675 = vunpack.c.h.b16 %v426
      %v1676 = vunpack.c.l.b16 %v427
      %v1677 = vunpack.c.h.b16 %v427
      %v1678 = vunpack.c.l.b16 %v428
      %v1679 = vunpack.c.h.b16 %v428
      %v1680 = vunpack.c.l.b16 %v429
      %v1681 = vunpack.c.h.b16 %v429
      %v1682 = vunpack.c.l.b16 %v430
      %v1683 = vunpack.c.h.b16 %v430
      %v1684 = vunpack.c.l.b16 %v431
      %v1685 = vunpack.c.h.b16 %v431
      %v1686 = vunpack.c.l.b16 %v432
      %v1687 = vunpack.c.h.b16 %v432
      %v1688 = vunpack.c.l.b16 %v433
      %v1689 = vunpack.c.h.b16 %v433
      %v1690 = vunpack.c.l.b16 %v434
      %v1691 = vunpack.c.h.b16 %v434
      %v1692 = vunpack.c.l.b16 %v435
      %v1693 = vunpack.c.h.b16 %v435
      %v1694 = vunpack.c.l.b16 %v436
      %v1695 = vunpack.c.h.b16 %v436
      %v1696 = vunpack.c.l.b16 %v437
      %v1697 = vunpack.c.h.b16 %v437
      %v1698 = vunpack.c.l.b16 %v438
      %v1699 = vunpack.c.h.b16 %v438
      %v1700 = vunpack.c.l.b16 %v439
      %v1701 = vunpack.c.h.b16 %v439
      %v1702 = vunpack.c.l.b16 %v440
      %v1703 = vunpack.c.h.b16 %v440
      %v1704 = vunpack.c.l.b16 %v441
      %v1705 = vunpack.c.h.b16 %v441
      %v1706 = vunpack.c.l.b16 %v442
      %v1707 = vunpack.c.h.b16 %v442
      %v1708 = vunpack.c.l.b16 %v443
      %v1709 = vunpack.c.h.b16 %v443
      %v1710 = vunpack.c.l.b16 %v444
      %v1711 = vunpack.c.h.b16 %v444
      %v1712 = vunpack.c.l.b16 %v445
      %v1713 = vunpack.c.h.b16 %v445
      %v1714 = vunpack.c.l.b16 %v446
      %v1715 = vunpack.c.h.b16 %v446
      %v1716 = vunpack.c.l.b16 %v447
      %v1717 = vunpack.c.h.b16 %v447
      %v1718 = vunpack.c.l.b16 %v448
      %v1719 = vunpack.c.h.b16 %v448
      %v1720 = vunpack.c.l.b16 %v449
      %v1721 = vunpack.c.h.b16 %v449
      %v1722 = vunpack.c.l.b16 %v450
      %v1723 = vunpack.c.h.b16 %v450
      %v1724 = vunpack.c.l.b16 %v451
      %v1725 = vunpack.c.h.b16 %v451
      %v1726 = vunpack.c.l.b16 %v452
      %v1727 = vunpack.c.h.b16 %v452
      %v1728 = vunpack.c.l.b16 %v453
      %v1729 = vunpack.c.h.b16 %v453
      %v1730 = vunpack.c.l.b16 %v454
      %v1731 = vunpack.c.h.b16 %v454
      %v1732 = vunpack.c.l.b16 %v455
      %v1733 = vunpack.c.h.b16 %v455
      %v1734 = vunpack.c.l.b16 %v456
      %v1735 = vunpack.c.h.b16 %v456
      %v1736 = vunpack.c.l.b16 %v457
      %v1737 = vunpack.c.h.b16 %v457
      %v1738 = vunpack.c.l.b16 %v458
      %v1739 = vunpack.c.h.b16 %v458
      %v1740 = vunpack.c.l.b16 %v459
      %v1741 = vunpack.c.h.b16 %v459
      %v1742 = vunpack.c.l.b16 %v460
      %v1743 = vunpack.c.h.b16 %v460
      %v1744 = vunpack.c.l.b16 %v461
      %v1745 = vunpack.c.h.b16 %v461
      %v1746 = vunpack.c.l.b16 %v462
      %v1747 = vunpack.c.h.b16 %v462
      %v1748 = vunpack.c.l.b16 %v463
      %v1749 = vunpack.c.h.b16 %v463
      %v1750 = vunpack.c.l.b16 %v464
      %v1751 = vunpack.c.h.b16 %v464
      %v1752 = vunpack.c.l.b16 %v465
      %v1753 = vunpack.c.h.b16 %v465
      %v1754 = vunpack.c.l.b16 %v466
      %v1755 = vunpack.c.h.b16 %v466
      %v1756 = vunpack.c.l.b16 %v467
      %v1757 = vunpack.c.h.b16 %v467
      %v1758 = vunpack.c.l.b16 %v468
      %v1759 = vunpack.c.h.b16 %v468
      %v1760 = vunpack.c.l.b16 %v469
      %v1761 = vunpack.c.h.b16 %v469
      %v1762 = vunpack.c.l.b16 %v470
      %v1763 = vunpack.c.h.b16 %v470
      %v1764 = vunpack.c.l.b16 %v471
      %v1765 = vunpack.c.h.b16 %v471
      %v1766 = vunpack.c.l.b16 %v472
      %v1767 = vunpack.c.h.b16 %v472
      %v1768 = vunpack.c.l.b16 %v473
      %v1769 = vunpack.c.h.b16 %v473
      %v1770 = vunpack.c.l.b16 %v474
      %v1771 = vunpack.c.h.b16 %v474
      %v1772 = vunpack.c.l.b16 %v475
      %v1773 = vunpack.c.h.b16 %v475
      %v1774 = vunpack.c.l.b16 %v476
      %v1775 = vunpack.c.h.b16 %v476
      %v1776 = vunpack.c.l.b16 %v477
      %v1777 = vunpack.c.h.b16 %v477
      %v1778 = vunpack.c.l.b16 %v478
      %v1779 = vunpack.c.h.b16 %v478
      %v1780 = vunpack.c.l.b16 %v479
      %v1781 = vunpack.c.h.b16 %v479
      %v1782 = vunpack.c.l.b16 %v480
      %v1783 = vunpack.c.h.b16 %v480
      %v1784 = vunpack.c.l.b16 %v481
      %v1785 = vunpack.c.h.b16 %v481
      %v1786 = vunpack.c.l.b16 %v482
      %v1787 = vunpack.c.h.b16 %v482
      %v1788 = vunpack.c.l.b16 %v483
      %v1789 = vunpack.c.h.b16 %v483
      %v1790 = vunpack.c.l.b16 %v484
      %v1791 = vunpack.c.h.b16 %v484
      %v1792 = vunpack.c.l.b16 %v485
      %v1793 = vunpack.c.h.b16 %v485
      %v1794 = vunpack.c.l.b16 %v486
      %v1795 = vunpack.c.h.b16 %v486
      %v1796 = vunpack.c.l.b16 %v487
      %v1797 = vunpack.c.h.b16 %v487
      %v1798 = vunpack.c.l.b16 %v488
      %v1799 = vunpack.c.h.b16 %v488
      %v1800 = vunpack.c.l.b16 %v489
      %v1801 = vunpack.c.h.b16 %v489
      %v1802 = vunpack.c.l.b16 %v490
      %v1803 = vunpack.c.h.b16 %v490
      %v1804 = vunpack.c.l.b16 %v491
      %v1805 = vunpack.c.h.b16 %v491
      %v1806 = vunpack.c.l.b16 %v492
      %v1807 = vunpack.c.h.b16 %v492
      %v1808 = vunpack.c.l.b16 %v493
      %v1809 = vunpack.c.h.b16 %v493
      %v1810 = vunpack.c.l.b16 %v494
      %v1811 = vunpack.c.h.b16 %v494
      %v1812 = vunpack.c.l.b16 %v495
      %v1813 = vunpack.c.h.b16 %v495
      %v1814 = vunpack.c.l.b16 %v496
      %v1815 = vunpack.c.h.b16 %v496
      %v1816 = vunpack.c.l.b16 %v497
      %v1817 = vunpack.c.h.b16 %v497
      %v1818 = vunpack.c.l.b16 %v498
      %v1819 = vunpack.c.h.b16 %v498
      %v1820 = vunpack.c.l.b16 %v499
      %v1821 = vunpack.c.h.b16 %v499
      %v1822 = vunpack.c.l.b16 %v500
      %v1823 = vunpack.c.h.b16 %v500
      %v1824 = vunpack.c.l.b16 %v501
      %v1825 = vunpack.c.h.b16 %v501
      %v1826 = vunpack.c.l.b16 %v502
      %v1827 = vunpack.c.h.b16 %v502
      %v1828 = vunpack.c.l.b16 %v503
      %v1829 = vunpack.c.h.b16 %v503
      %v1830 = vunpack.c.l.b16 %v504
      %v1831 = vunpack.c.h.b16 %v504
      %v1832 = vunpack.c.l.b16 %v505
      %v1833 = vunpack.c.h.b16 %v505
      %v1834 = vunpack.c.l.b16 %v506
      %v1835 = vunpack.c.h.b16 %v506
      %v1836 = vunpack.c.l.b16 %v507
      %v1837 = vunpack.c.h.b16 %v507
      %v1838 = vunpack.c.l.b16 %v508
      %v1839 = vunpack.c.h.b16 %v508
      %v1840 = vunpack.c.l.b16 %v509
      %v1841 = vunpack.c.h.b16 %v509
      %v1842 = vunpack.c.l.b16 %v510
      %v1843 = vunpack.c.h.b16 %v510
      %v1844 = vunpack.c.l.b16 %v511
      %v1845 = vunpack.c.h.b16 %v511
      %v1846 = vunpack.c.l.b16 %v512
      %v1847 = vunpack.c.h.b16 %v512
      %v1848 = vunpack.c.l.b16 %v513
      %v1849 = vunpack.c.h.b16 %v513
      %v1850 = vunpack.c.l.b16 %v514
      %v1851 = vunpack.c.h.b16 %v514
      %v1852 = vunpack.c.l.b16 %v515
      %v1853 = vunpack.c.h.b16 %v515
      %v1854 = vunpack.c.l.b16 %v516
      %v1855 = vunpack.c.h.b16 %v516
      %v1856 = vunpack.c.l.b16 %v517
      %v1857 = vunpack.c.h.b16 %v517
      %v1858 = vunpack.c.l.b16 %v518
      %v1859 = vunpack.c.h.b16 %v518
      %v1860 = vunpack.c.l.b16 %v519
      %v1861 = vunpack.c.h.b16 %v519
      %v1862 = vunpack.c.l.b16 %v520
      %v1863 = vunpack.c.h.b16 %v520
      %v1864 = vunpack.c.l.b16 %v521
      %v1865 = vunpack.c.h.b16 %v521
      %v1866 = vunpack.c.l.b16 %v522
      %v1867 = vunpack.c.h.b16 %v522
      %v1868 = vunpack.c.l.b16 %v523
      %v1869 = vunpack.c.h.b16 %v523
      %v1870 = vunpack.c.l.b16 %v524
      %v1871 = vunpack.c.h.b16 %v524
      %v1872 = vunpack.c.l.b16 %v525
      %v1873 = vunpack.c.h.b16 %v525
      %v1874 = vunpack.c.l.b16 %v526
      %v1875 = vunpack.c.h.b16 %v526
      %v1876 = vunpack.c.l.b16 %v527
      %v1877 = vunpack.c.h.b16 %v527
      %v1878 = vunpack.c.l.b16 %v528
      %v1879 = vunpack.c.h.b16 %v528
      %v1880 = vunpack.c.l.b16 %v529
      %v1881 = vunpack.c.h.b16 %v529
      %v1882 = vunpack.c.l.b16 %v530
      %v1883 = vunpack.c.h.b16 %v530
      %v1884 = vunpack.c.l.b16 %v531
      %v1885 = vunpack.c.h.b16 %v531
      %v1886 = vunpack.c.l.b16 %v532
      %v1887 = vunpack.c.h.b16 %v532
      %v1888 = vunpack.c.l.b16 %v533
      %v1889 = vunpack.c.h.b16 %v533
      %v1890 = vunpack.c.l.b16 %v534
      %v1891 = vunpack.c.h.b16 %v534
      %v1892 = vunpack.c.l.b16 %v535
      %v1893 = vunpack.c.h.b16 %v535
      %v1894 = vunpack.c.l.b16 %v536
      %v1895 = vunpack.c.h.b16 %v536
      %v1896 = vunpack.c.l.b16 %v537
      %v1897 = vunpack.c.h.b16 %v537
      %v1898 = vunpack.c.l.b16 %v538
      %v1899 = vunpack.c.h.b16 %v538
      %v1900 = vunpack.c.l.b16 %v539
      %v1901 = vunpack.c.h.b16 %v539
      %v1902 = vunpack.c.l.b16 %v540
      %v1903 = vunpack.c.h.b16 %v540
      %v1904 = vunpack.c.l.b16 %v541
      %v1905 = vunpack.c.h.b16 %v541
      %v1906 = vunpack.c.l.b16 %v542
      %v1907 = vunpack.c.h.b16 %v542
      %v1908 = vunpack.c.l.b16 %v543
      %v1909 = vunpack.c.h.b16 %v543
      %v1910 = vunpack.c.l.b16 %v544
      %v1911 = vunpack.c.h.b16 %v544
      %v1912 = vunpack.c.l.b16 %v545
      %v1913 = vunpack.c.h.b16 %v545
      %v1914 = vunpack.c.l.b16 %v546
      %v1915 = vunpack.c.h.b16 %v546
      %v1916 = vunpack.c.l.b16 %v547
      %v1917 = vunpack.c.h.b16 %v547
      %v1918 = vunpack.c.l.b16 %v548
      %v1919 = vunpack.c.h.b16 %v548
      %v1920 = vunpack.c.l.b16 %v549
      %v1921 = vunpack.c.h.b16 %v549
      %v1922 = vunpack.c.l.b16 %v550
      %v1923 = vunpack.c.h.b16 %v550
      %v1924 = vunpack.c.l.b16 %v551
      %v1925 = vunpack.c.h.b16 %v551
      %v1926 = vunpack.c.l.b16 %v552
      %v1927 = vunpack.c.h.b16 %v552
      %v1928 = vunpack.c.l.b16 %v553
      %v1929 = vunpack.c.h.b16 %v553
      %v1930 = vunpack.c.l.b16 %v554
      %v1931 = vunpack.c.h.b16 %v554
      %v1932 = vunpack.c.l.b16 %v555
      %v1933 = vunpack.c.h.b16 %v555
      %v1934 = vunpack.c.l.b16 %v556
      %v1935 = vunpack.c.h.b16 %v556
      %v1936 = vunpack.c.l.b16 %v557
      %v1937 = vunpack.c.h.b16 %v557
      %v1938 = vunpack.c.l.b16 %v558
      %v1939 = vunpack.c.h.b16 %v558
      %v1940 = vunpack.c.l.b16 %v559
      %v1941 = vunpack.c.h.b16 %v559
      %v1942 = vunpack.c.l.b16 %v560
      %v1943 = vunpack.c.h.b16 %v560
      %v1944 = vunpack.c.l.b16 %v561
      %v1945 = vunpack.c.h.b16 %v561
      %v1946 = vunpack.c.l.b16 %v562
      %v1947 = vunpack.c.h.b16 %v562
      %v1948 = vunpack.c.l.b16 %v563
      %v1949 = vunpack.c.h.b16 %v563
      %v1950 = vunpack.c.l.b16 %v564
      %v1951 = vunpack.c.h.b16 %v564
      %v1952 = vunpack.c.l.b16 %v565
      %v1953 = vunpack.c.h.b16 %v565
      %v1954 = vunpack.c.l.b16 %v566
      %v1955 = vunpack.c.h.b16 %v566
      %v1956 = vunpack.c.l.b16 %v567
      %v1957 = vunpack.c.h.b16 %v567
      %v1958 = vunpack.c.l.b16 %v568
      %v1959 = vunpack.c.h.b16 %v568
      %v1960 = vunpack.c.l.b16 %v569
      %v1961 = vunpack.c.h.b16 %v569
      %v1962 = vunpack.c.l.b16 %v570
      %v1963 = vunpack.c.h.b16 %v570
      %v1964 = vunpack.c.l.b16 %v571
      %v1965 = vunpack.c.h.b16 %v571
      %v1966 = vunpack.c.l.b16 %v572
      %v1967 = vunpack.c.h.b16 %v572
      %v1968 = vunpack.c.l.b16 %v573
      %v1969 = vunpack.c.h.b16 %v573
      %v1970 = vunpack.c.l.b16 %v574
      %v1971 = vunpack.c.h.b16 %v574
      %v1972 = vunpack.c.l.b16 %v575
      %v1973 = vunpack.c.h.b16 %v575
      %v1974 = vunpack.c.l.b16 %v576
      %v1975 = vunpack.c.h.b16 %v576
      %v1976 = vunpack.c.l.b16 %v577
      %v1977 = vunpack.c.h.b16 %v577
      %v1978 = vunpack.c.l.b16 %v578
      %v1979 = vunpack.c.h.b16 %v578
      %v1980 = vunpack.c.l.b16 %v579
      %v1981 = vunpack.c.h.b16 %v579
      %v1982 = vunpack.c.l.b16 %v580
      %v1983 = vunpack.c.h.b16 %v580
      %v1984 = vunpack.c.l.b16 %v581
      %v1985 = vunpack.c.h.b16 %v581
      %v1986 = vunpack.c.l.b16 %v582
      %v1987 = vunpack.c.h.b16 %v582
      %v1988 = vunpack.c.l.b16 %v583
      %v1989 = vunpack.c.h.b16 %v583
      %v1990 = vunpack.c.l.b16 %v584
      %v1991 = vunpack.c.h.b16 %v584
      %v1992 = vunpack.c.l.b16 %v585
      %v1993 = vunpack.c.h.b16 %v585
      %v1994 = vunpack.c.l.b16 %v586
      %v1995 = vunpack.c.h.b16 %v586
      %v1996 = vunpack.c.l.b16 %v587
      %v1997 = vunpack.c.h.b16 %v587
      %v1998 = vunpack.c.l.b16 %v588
      %v1999 = vunpack.c.h.b16 %v588
      %v2000 = vunpack.c.l.b16 %v589
      %v2001 = vunpack.c.h.b16 %v589
      %v2002 = vunpack.c.l.b16 %v590
      %v2003 = vunpack.c.h.b16 %v590
      %v2004 = vunpack.c.l.b16 %v591
      %v2005 = vunpack.c.h.b16 %v591
      %v2006 = vunpack.c.l.b16 %v592
      %v2007 = vunpack.c.h.b16 %v592
      %v2008 = vunpack.c.l.b16 %v593
      %v2009 = vunpack.c.h.b16 %v593
      %v2010 = vunpack.c.l.b16 %v594
      %v2011 = vunpack.c.h.b16 %v594
      %v2012 = vunpack.c.l.b16 %v595
      %v2013 = vunpack.c.h.b16 %v595
      %v2014 = vunpack.c.l.b16 %v596
      %v2015 = vunpack.c.h.b16 %v596
      %v2016 = vunpack.c.l.b16 %v597
      %v2017 = vunpack.c.h.b16 %v597
      %v2018 = vunpack.c.l.b16 %v598
      %v2019 = vunpack.c.h.b16 %v598
      %v2020 = vunpack.c.l.b16 %v599
      %v2021 = vunpack.c.h.b16 %v599
      %v2022 = vunpack.c.l.b16 %v600
      %v2023 = vunpack.c.h.b16 %v600
      %v2024 = vunpack.c.l.b16 %v601
      %v2025 = vunpack.c.h.b16 %v601
      %v2026 = vunpack.c.l.b16 %v602
      %v2027 = vunpack.c.h.b16 %v602
      %v2028 = vunpack.c.l.b16 %v603
      %v2029 = vunpack.c.h.b16 %v603
      %v2030 = vunpack.c.l.b16 %v604
      %v2031 = vunpack.c.h.b16 %v604
      %v2032 = vunpack.c.l.b16 %v605
      %v2033 = vunpack.c.h.b16 %v605
      %v2034 = vunpack.c.l.b16 %v606
      %v2035 = vunpack.c.h.b16 %v606
      %v2036 = vunpack.c.l.b16 %v607
      %v2037 = vunpack.c.h.b16 %v607
      %v2038 = vunpack.c.l.b16 %v608
      %v2039 = vunpack.c.h.b16 %v608
      %v2040 = vunpack.c.l.b16 %v609
      %v2041 = vunpack.c.h.b16 %v609
      %v2042 = vunpack.c.l.b16 %v610
      %v2043 = vunpack.c.h.b16 %v610
      %v2044 = vunpack.c.l.b16 %v611
      %v2045 = vunpack.c.h.b16 %v611
      %v2046 = vunpack.c.l.b16 %v612
      %v2047 = vunpack.c.h.b16 %v612
      %v2048 = vunpack.c.l.b16 %v613
      %v2049 = vunpack.c.h.b16 %v613
      %v2050 = vunpack.c.l.b16 %v614
      %v2051 = vunpack.c.h.b16 %v614
      %v2052 = vunpack.c.l.b16 %v615
      %v2053 = vunpack.c.h.b16 %v615
      %v2054 = vunpack.c.l.b16 %v616
      %v2055 = vunpack.c.h.b16 %v616
      %v2056 = vunpack.c.l.b16 %v617
      %v2057 = vunpack.c.h.b16 %v617
      %v2058 = vunpack.c.l.b16 %v618
      %v2059 = vunpack.c.h.b16 %v618
      %v2060 = vunpack.c.l.b16 %v619
      %v2061 = vunpack.c.h.b16 %v619
      %v2062 = vunpack.c.l.b16 %v620
      %v2063 = vunpack.c.h.b16 %v620
      %v2064 = vunpack.c.l.b16 %v621
      %v2065 = vunpack.c.h.b16 %v621
      %v2066 = vunpack.c.l.b16 %v622
      %v2067 = vunpack.c.h.b16 %v622
      %v2068 = vunpack.c.l.b16 %v623
      %v2069 = vunpack.c.h.b16 %v623
      %v2070 = vunpack.c.l.b16 %v624
      %v2071 = vunpack.c.h.b16 %v624
      %v2072 = vunpack.c.l.b16 %v625
      %v2073 = vunpack.c.h.b16 %v625
      %v2074 = vunpack.c.l.b16 %v626
      %v2075 = vunpack.c.h.b16 %v626
      %v2076 = vunpack.c.l.b16 %v627
      %v2077 = vunpack.c.h.b16 %v627
      %v2078 = vunpack.c.l.b16 %v628
      %v2079 = vunpack.c.h.b16 %v628
      %v2080 = vunpack.c.l.b16 %v629
      %v2081 = vunpack.c.h.b16 %v629
      %v2082 = vunpack.c.l.b16 %v630
      %v2083 = vunpack.c.h.b16 %v630
      %v2084 = vunpack.c.l.b16 %v631
      %v2085 = vunpack.c.h.b16 %v631
      %v2086 = vunpack.c.l.b16 %v632
      %v2087 = vunpack.c.h.b16 %v632
      %v2088 = vunpack.c.l.b16 %v633
      %v2089 = vunpack.c.h.b16 %v633
      %v2090 = vunpack.c.l.b16 %v634
      %v2091 = vunpack.c.h.b16 %v634
      %v2092 = vunpack.c.l.b16 %v635
      %v2093 = vunpack.c.h.b16 %v635
      %v2094 = vunpack.c.l.b16 %v636
      %v2095 = vunpack.c.h.b16 %v636
      %v2096 = vunpack.c.l.b16 %v637
      %v2097 = vunpack.c.h.b16 %v637
      %v2098 = vunpack.c.l.b16 %v638
      %v2099 = vunpack.c.h.b16 %v638
      %v2100 = vunpack.c.l.b16 %v639
      %v2101 = vunpack.c.h.b16 %v639
      %v2102 = vunpack.c.l.b16 %v640
      %v2103 = vunpack.c.h.b16 %v640
      %v2104 = vunpack.c.l.b16 %v641
      %v2105 = vunpack.c.h.b16 %v641
      %v2106 = vunpack.c.l.b16 %v642
      %v2107 = vunpack.c.h.b16 %v642
      %v2108 = vunpack.c.l.b16 %v643
      %v2109 = vunpack.c.h.b16 %v643
      %v2110 = vunpack.c.l.b16 %v644
      %v2111 = vunpack.c.h.b16 %v644
      %v2112 = vunpack.c.l.b16 %v645
      %v2113 = vunpack.c.h.b16 %v645
      %v2114 = vunpack.c.l.b16 %v646
      %v2115 = vunpack.c.h.b16 %v646
      %v2116 = vunpack.c.l.b16 %v647
      %v2117 = vunpack.c.h.b16 %v647
      %v2118 = vunpack.c.l.b16 %v648
      %v2119 = vunpack.c.h.b16 %v648
      %v2120 = vunpack.c.l.b16 %v649
      %v2121 = vunpack.c.h.b16 %v649
      %v2122 = vunpack.c.l.b16 %v650
      %v2123 = vunpack.c.h.b16 %v650
      %v2124 = vunpack.c.l.b16 %v651
      %v2125 = vunpack.c.h.b16 %v651
      %v2126 = vunpack.c.l.b16 %v652
      %v2127 = vunpack.c.h.b16 %v652
      %v2128 = vunpack.c.l.b16 %v653
      %v2129 = vunpack.c.h.b16 %v653
      %v2130 = vunpack.c.l.b16 %v654
      %v2131 = vunpack.c.h.b16 %v654
      %v2132 = vunpack.c.l.b16 %v655
      %v2133 = vunpack.c.h.b16 %v655
      %v2134 = vunpack.c.l.b16 %v656
      %v2135 = vunpack.c.h.b16 %v656
      %v2136 = vunpack.c.l.b16 %v657
      %v2137 = vunpack.c.h.b16 %v657
      %v2138 = vunpack.c.l.b16 %v658
      %v2139 = vunpack.c.h.b16 %v658
      %v2140 = vunpack.c.l.b16 %v659
      %v2141 = vunpack.c.h.b16 %v659
      %v2142 = vunpack.c.l.b16 %v660
      %v2143 = vunpack.c.h.b16 %v660
      %v2144 = vunpack.c.l.b16 %v661
      %v2145 = vunpack.c.h.b16 %v661
      %v2146 = vunpack.c.l.b16 %v662
      %v2147 = vunpack.c.h.b16 %v662
      %v2148 = vunpack.c.l.b16 %v663
      %v2149 = vunpack.c.h.b16 %v663
      %v2150 = vunpack.c.l.b16 %v664
      %v2151 = vunpack.c.h.b16 %v664
      %v2152 = vunpack.c.l.b16 %v665
      %v2153 = vunpack.c.h.b16 %v665
      %v2154 = vunpack.c.l.b16 %v666
      %v2155 = vunpack.c.h.b16 %v666
      %v2156 = vunpack.c.l.b16 %v667
      %v2157 = vunpack.c.h.b16 %v667
      %v2158 = vunpack.c.l.b16 %v668
      %v2159 = vunpack.c.h.b16 %v668
      %v2160 = vunpack.c.l.b16 %v669
      %v2161 = vunpack.c.h.b16 %v669
      %v2162 = vunpack.c.l.b16 %v670
      %v2163 = vunpack.c.h.b16 %v670
      %v2164 = vunpack.c.l.b16 %v671
      %v2165 = vunpack.c.h.b16 %v671
      %v2166 = vunpack.c.l.b16 %v672
      %v2167 = vunpack.c.h.b16 %v672
      %v2168 = vunpack.c.l.b16 %v673
      %v2169 = vunpack.c.h.b16 %v673
      %v2170 = vunpack.c.l.b16 %v674
      %v2171 = vunpack.c.h.b16 %v674
      %v2172 = vunpack.c.l.b16 %v675
      %v2173 = vunpack.c.h.b16 %v675
      %v2174 = vunpack.c.l.b16 %v676
      %v2175 = vunpack.c.h.b16 %v676
      %v2176 = vunpack.c.l.b16 %v677
      %v2177 = vunpack.c.h.b16 %v677
      %v2178 = vunpack.c.l.b16 %v678
      %v2179 = vunpack.c.h.b16 %v678
      %v2180 = vunpack.c.l.b16 %v679
      %v2181 = vunpack.c.h.b16 %v679
      %v2182 = vunpack.c.l.b16 %v680
      %v2183 = vunpack.c.h.b16 %v680
      %v2184 = vunpack.c.l.b16 %v681
      %v2185 = vunpack.c.h.b16 %v681
      %v2186 = vunpack.c.l.b16 %v682
      %v2187 = vunpack.c.h.b16 %v682
      %v2188 = vunpack.c.l.b16 %v683
      %v2189 = vunpack.c.h.b16 %v683
      %v2190 = vunpack.c.l.b16 %v684
      %v2191 = vunpack.c.h.b16 %v684
      %v2192 = vunpack.c.l.b16 %v685
      %v2193 = vunpack.c.h.b16 %v685
      %v2194 = vunpack.c.l.b16 %v686
      %v2195 = vunpack.c.h.b16 %v686
      %v2196 = vunpack.c.l.b16 %v687
      %v2197 = vunpack.c.h.b16 %v687
      %v2198 = vunpack.c.l.b16 %v688
      %v2199 = vunpack.c.h.b16 %v688
      %v2200 = vunpack.c.l.b16 %v689
      %v2201 = vunpack.c.h.b16 %v689
      %v2202 = vunpack.c.l.b16 %v690
      %v2203 = vunpack.c.h.b16 %v690
      %v2204 = vunpack.c.l.b16 %v691
      %v2205 = vunpack.c.h.b16 %v691
      %v2206 = vunpack.c.l.b16 %v692
      %v2207 = vunpack.c.h.b16 %v692
      %v2208 = vunpack.c.l.b16 %v693
      %v2209 = vunpack.c.h.b16 %v693
      %v2210 = vunpack.c.l.b16 %v694
      %v2211 = vunpack.c.h.b16 %v694
      %v2212 = vunpack.c.l.b16 %v695
      %v2213 = vunpack.c.h.b16 %v695
      %v2214 = vunpack.c.l.b16 %v696
      %v2215 = vunpack.c.h.b16 %v696
      %v2216 = vunpack.c.l.b16 %v697
      %v2217 = vunpack.c.h.b16 %v697
      %v2218 = vunpack.c.l.b16 %v698
      %v2219 = vunpack.c.h.b16 %v698
      %v2220 = vunpack.c.l.b16 %v699
      %v2221 = vunpack.c.h.b16 %v699
      %v2222 = vunpack.c.l.b16 %v700
      %v2223 = vunpack.c.h.b16 %v700
      %v2224 = vunpack.c.l.b16 %v701
      %v2225 = vunpack.c.h.b16 %v701
      %v2226 = vunpack.c.l.b16 %v702
      %v2227 = vunpack.c.h.b16 %v702
      %v2228 = vunpack.c.l.b16 %v703
      %v2229 = vunpack.c.h.b16 %v703
      %v2230 = vunpack.c.l.b16 %v704
      %v2231 = vunpack.c.h.b16 %v704
      %v2232 = vunpack.c.l.b16 %v705
      %v2233 = vunpack.c.h.b16 %v705
      %v2234 = vunpack.c.l.b16 %v706
      %v2235 = vunpack.c.h.b16 %v706
      %v2236 = vunpack.c.l.b16 %v707
      %v2237 = vunpack.c.h.b16 %v707
      %v2238 = vunpack.c.l.b16 %v708
      %v2239 = vunpack.c.h.b16 %v708
      %v2240 = vunpack.c.l.b16 %v709
      %v2241 = vunpack.c.h.b16 %v709
      %v2242 = vunpack.c.l.b16 %v710
      %v2243 = vunpack.c.h.b16 %v710
      %v2244 = vunpack.c.l.b16 %v711
      %v2245 = vunpack.c.h.b16 %v711
      %v2246 = vunpack.c.l.b16 %v712
      %v2247 = vunpack.c.h.b16 %v712
      %v2248 = vunpack.c.l.b16 %v713
      %v2249 = vunpack.c.h.b16 %v713
      %v2250 = vunpack.c.l.b16 %v714
      %v2251 = vunpack.c.h.b16 %v714
      %v2252 = vunpack.c.l.b16 %v715
      %v2253 = vunpack.c.h.b16 %v715
      %v2254 = vunpack.c.l.b16 %v716
      %v2255 = vunpack.c.h.b16 %v716
      %v2256 = vunpack.c.l.b16 %v717
      %v2257 = vunpack.c.h.b16 %v717
      %v2258 = vunpack.c.l.b16 %v718
      %v2259 = vunpack.c.h.b16 %v718
      %v2260 = vunpack.c.l.b16 %v719
      %v2261 = vunpack.c.h.b16 %v719
      %v2262 = vunpack.c.l.b16 %v720
      %v2263 = vunpack.c.h.b16 %v720
      %v2264 = vunpack.c.l.b16 %v721
      %v2265 = vunpack.c.h.b16 %v721
      %v2266 = vunpack.c.l.b16 %v722
      %v2267 = vunpack.c.h.b16 %v722
      %v2268 = vunpack.c.l.b16 %v723
      %v2269 = vunpack.c.h.b16 %v723
      %v2270 = vunpack.c.l.b16 %v724
      %v2271 = vunpack.c.h.b16 %v724
      %v2272 = vunpack.c.l.b16 %v725
      %v2273 = vunpack.c.h.b16 %v725
      %v2274 = vunpack.c.l.b16 %v726
      %v2275 = vunpack.c.h.b16 %v726
      %v2276 = vunpack.c.l.b16 %v727
      %v2277 = vunpack.c.h.b16 %v727
      %v2278 = vunpack.c.l.b16 %v728
      %v2279 = vunpack.c.h.b16 %v728
      %v2280 = vunpack.c.l.b16 %v729
      %v2281 = vunpack.c.h.b16 %v729
      %v2282 = vunpack.c.l.b16 %v730
      %v2283 = vunpack.c.h.b16 %v730
      %v2284 = vunpack.c.l.b16 %v731
      %v2285 = vunpack.c.h.b16 %v731
      %v2286 = vunpack.c.l.b16 %v732
      %v2287 = vunpack.c.h.b16 %v732
      %v2288 = vunpack.c.l.b16 %v733
      %v2289 = vunpack.c.h.b16 %v733
      %v2290 = vunpack.c.l.b16 %v734
      %v2291 = vunpack.c.h.b16 %v734
      %v2292 = vunpack.c.l.b16 %v735
      %v2293 = vunpack.c.h.b16 %v735
      %v2294 = vunpack.c.l.b16 %v736
      %v2295 = vunpack.c.h.b16 %v736
      %v2296 = vunpack.c.l.b16 %v737
      %v2297 = vunpack.c.h.b16 %v737
      %v2298 = vunpack.c.l.b16 %v738
      %v2299 = vunpack.c.h.b16 %v738
      %v2300 = vunpack.c.l.b16 %v739
      %v2301 = vunpack.c.h.b16 %v739
      %v2302 = vunpack.c.l.b16 %v740
      %v2303 = vunpack.c.h.b16 %v740
      %v2304 = vunpack.c.l.b16 %v741
      %v2305 = vunpack.c.h.b16 %v741
      %v2306 = vunpack.c.l.b16 %v742
      %v2307 = vunpack.c.h.b16 %v742
      %v2308 = vunpack.c.l.b16 %v743
      %v2309 = vunpack.c.h.b16 %v743
      %v2310 = vunpack.c.l.b16 %v744
      %v2311 = vunpack.c.h.b16 %v744
      %v2312 = vunpack.c.l.b16 %v745
      %v2313 = vunpack.c.h.b16 %v745
      %v2314 = vunpack.c.l.b16 %v746
      %v2315 = vunpack.c.h.b16 %v746
      %v2316 = vunpack.c.l.b16 %v747
      %v2317 = vunpack.c.h.b16 %v747
      %v2318 = vunpack.c.l.b16 %v748
      %v2319 = vunpack.c.h.b16 %v748
      %v2320 = vunpack.c.l.b16 %v749
      %v2321 = vunpack.c.h.b16 %v749
      %v2322 = vunpack.c.l.b16 %v750
      %v2323 = vunpack.c.h.b16 %v750
      %v2324 = vunpack.c.l.b16 %v751
      %v2325 = vunpack.c.h.b16 %v751
      %v2326 = vunpack.c.l.b16 %v752
      %v2327 = vunpack.c.h.b16 %v752
      %v2328 = vunpack.c.l.b16 %v753
      %v2329 = vunpack.c.h.b16 %v753
      %v2330 = vunpack.c.l.b16 %v754
      %v2331 = vunpack.c.h.b16 %v754
      %v2332 = vunpack.c.l.b16 %v755
      %v2333 = vunpack.c.h.b16 %v755
      %v2334 = vunpack.c.l.b16 %v756
      %v2335 = vunpack.c.h.b16 %v756
      %v2336 = vunpack.c.l.b16 %v757
      %v2337 = vunpack.c.h.b16 %v757
      %v2338 = vunpack.c.l.b16 %v758
      %v2339 = vunpack.c.h.b16 %v758
      %v2340 = vunpack.c.l.b16 %v759
      %v2341 = vunpack.c.h.b16 %v759
      %v2342 = vunpack.c.l.b16 %v760
      %v2343 = vunpack.c.h.b16 %v760
      %v2344 = vunpack.c.l.b16 %v761
      %v2345 = vunpack.c.h.b16 %v761
      %v2346 = vunpack.c.l.b16 %v762
      %v2347 = vunpack.c.h.b16 %v762
      %v2348 = vunpack.c.l.b16 %v763
      %v2349 = vunpack.c.h.b16 %v763
      %v2350 = vunpack.c.l.b16 %v764
      %v2351 = vunpack.c.h.b16 %v764
      %v2352 = vunpack.c.l.b16 %v765
      %v2353 = vunpack.c.h.b16 %v765
      %v2354 = vunpack.c.l.b16 %v766
      %v2355 = vunpack.c.h.b16 %v766
      %v2356 = vunpack.c.l.b16 %v767
      %v2357 = vunpack.c.h.b16 %v767
      %v2358 = vunpack.c.l.b16 %v768
      %v2359 = vunpack.c.h.b16 %v768
      %v2360 = vunpack.c.l.b16 %v769
      %v2361 = vunpack.c.h.b16 %v769
      %v2362 = vpack.c.b16 %v1342, %v1338
      %v2363 = vpack.c.b16 %v1343, %v1339
      %v2364 = vpack.c.b16 %v1344, %v1340
      %v2365 = vpack.c.b16 %v1345, %v1341
      %v2366 = vpack.c.b16 %v1350, %v1346
      %v2367 = vpack.c.b16 %v1351, %v1347
      %v2368 = vpack.c.b16 %v1352, %v1348
      %v2369 = vpack.c.b16 %v1353, %v1349
      %v2370 = vpack.c.b16 %v1358, %v1354
      %v2371 = vpack.c.b16 %v1359, %v1355
      %v2372 = vpack.c.b16 %v1360, %v1356
      %v2373 = vpack.c.b16 %v1361, %v1357
      %v2374 = vpack.c.b16 %v1366, %v1362
      %v2375 = vpack.c.b16 %v1367, %v1363
      %v2376 = vpack.c.b16 %v1368, %v1364
      %v2377 = vpack.c.b16 %v1369, %v1365
      %v2378 = vpack.c.b16 %v1374, %v1370
      %v2379 = vpack.c.b16 %v1375, %v1371
      %v2380 = vpack.c.b16 %v1376, %v1372
      %v2381 = vpack.c.b16 %v1377, %v1373
      %v2382 = vpack.c.b16 %v1382, %v1378
      %v2383 = vpack.c.b16 %v1383, %v1379
      %v2384 = vpack.c.b16 %v1384, %v1380
      %v2385 = vpack.c.b16 %v1385, %v1381
      %v2386 = vpack.c.b16 %v1390, %v1386
      %v2387 = vpack.c.b16 %v1391, %v1387
      %v2388 = vpack.c.b16 %v1392, %v1388
      %v2389 = vpack.c.b16 %v1393, %v1389
      %v2390 = vpack.c.b16 %v1398, %v1394
      %v2391 = vpack.c.b16 %v1399, %v1395
      %v2392 = vpack.c.b16 %v1400, %v1396
      %v2393 = vpack.c.b16 %v1401, %v1397
      %v2394 = vpack.c.b16 %v1406, %v1402
      %v2395 = vpack.c.b16 %v1407, %v1403
      %v2396 = vpack.c.b16 %v1408, %v1404
      %v2397 = vpack.c.b16 %v1409, %v1405
      %v2398 = vpack.c.b16 %v1414, %v1410
      %v2399 = vpack.c.b16 %v1415, %v1411
      %v2400 = vpack.c.b16 %v1416, %v1412
      %v2401 = vpack.c.b16 %v1417, %v1413
      %v2402 = vpack.c.b16 %v1422, %v1418
      %v2403 = vpack.c.b16 %v1423, %v1419
      %v2404 = vpack.c.b16 %v1424, %v1420
      %v2405 = vpack.c.b16 %v1425, %v1421
      %v2406 = vpack.c.b16 %v1430, %v1426
      %v2407 = vpack.c.b16 %v1431, %v1427
      %v2408 = vpack.c.b16 %v1432, %v1428
      %v2409 = vpack.c.b16 %v1433, %v1429
      %v2410 = vpack.c.b16 %v1438, %v1434
      %v2411 = vpack.c.b16 %v1439, %v1435
      %v2412 = vpack.c.b16 %v1440, %v1436
      %v2413 = vpack.c.b16 %v1441, %v1437
      %v2414 = vpack.c.b16 %v1446, %v1442
      %v2415 = vpack.c.b16 %v1447, %v1443
      %v2416 = vpack.c.b16 %v1448, %v1444
      %v2417 = vpack.c.b16 %v1449, %v1445
      %v2418 = vpack.c.b16 %v1454, %v1450
      %v2419 = vpack.c.b16 %v1455, %v1451
      %v2420 = vpack.c.b16 %v1456, %v1452
      %v2421 = vpack.c.b16 %v1457, %v1453
      %v2422 = vpack.c.b16 %v1462, %v1458
      %v2423 = vpack.c.b16 %v1463, %v1459
      %v2424 = vpack.c.b16 %v1464, %v1460
      %v2425 = vpack.c.b16 %v1465, %v1461
      %v2426 = vpack.c.b16 %v1470, %v1466
      %v2427 = vpack.c.b16 %v1471, %v1467
      %v2428 = vpack.c.b16 %v1472, %v1468
      %v2429 = vpack.c.b16 %v1473, %v1469
      %v2430 = vpack.c.b16 %v1478, %v1474
      %v2431 = vpack.c.b16 %v1479, %v1475
      %v2432 = vpack.c.b16 %v1480, %v1476
      %v2433 = vpack.c.b16 %v1481, %v1477
      %v2434 = vpack.c.b16 %v1486, %v1482
      %v2435 = vpack.c.b16 %v1487, %v1483
      %v2436 = vpack.c.b16 %v1488, %v1484
      %v2437 = vpack.c.b16 %v1489, %v1485
      %v2438 = vpack.c.b16 %v1494, %v1490
      %v2439 = vpack.c.b16 %v1495, %v1491
      %v2440 = vpack.c.b16 %v1496, %v1492
      %v2441 = vpack.c.b16 %v1497, %v1493
      %v2442 = vpack.c.b16 %v1502, %v1498
      %v2443 = vpack.c.b16 %v1503, %v1499
      %v2444 = vpack.c.b16 %v1504, %v1500
      %v2445 = vpack.c.b16 %v1505, %v1501
      %v2446 = vpack.c.b16 %v1510, %v1506
      %v2447 = vpack.c.b16 %v1511, %v1507
      %v2448 = vpack.c.b16 %v1512, %v1508
      %v2449 = vpack.c.b16 %v1513, %v1509
      %v2450 = vpack.c.b16 %v1518, %v1514
      %v2451 = vpack.c.b16 %v1519, %v1515
      %v2452 = vpack.c.b16 %v1520, %v1516
      %v2453 = vpack.c.b16 %v1521, %v1517
      %v2454 = vpack.c.b16 %v1526, %v1522
      %v2455 = vpack.c.b16 %v1527, %v1523
      %v2456 = vpack.c.b16 %v1528, %v1524
      %v2457 = vpack.c.b16 %v1529, %v1525
      %v2458 = vpack.c.b16 %v1534, %v1530
      %v2459 = vpack.c.b16 %v1535, %v1531
      %v2460 = vpack.c.b16 %v1536, %v1532
      %v2461 = vpack.c.b16 %v1537, %v1533
      %v2462 = vpack.c.b16 %v1542, %v1538
      %v2463 = vpack.c.b16 %v1543, %v1539
      %v2464 = vpack.c.b16 %v1544, %v1540
      %v2465 = vpack.c.b16 %v1545, %v1541
      %v2466 = vpack.c.b16 %v1550, %v1546
      %v2467 = vpack.c.b16 %v1551, %v1547
      %v2468 = vpack.c.b16 %v1552, %v1548
      %v2469 = vpack.c.b16 %v1553, %v1549
      %v2470 = vpack.c.b16 %v1558, %v1554
      %v2471 = vpack.c.b16 %v1559, %v1555
      %v2472 = vpack.c.b16 %v1560, %v1556
      %v2473 = vpack.c.b16 %v1561, %v1557
      %v2474 = vpack.c.b16 %v1566, %v1562
      %v2475 = vpack.c.b16 %v1567, %v1563
      %v2476 = vpack.c.b16 %v1568, %v1564
      %v2477 = vpack.c.b16 %v1569, %v1565
      %v2478 = vpack.c.b16 %v1574, %v1570
      %v2479 = vpack.c.b16 %v1575, %v1571
      %v2480 = vpack.c.b16 %v1576, %v1572
      %v2481 = vpack.c.b16 %v1577, %v1573
      %v2482 = vpack.c.b16 %v1582, %v1578
      %v2483 = vpack.c.b16 %v1583, %v1579
      %v2484 = vpack.c.b16 %v1584, %v1580
      %v2485 = vpack.c.b16 %v1585, %v1581
      %v2486 = vpack.c.b16 %v1590, %v1586
      %v2487 = vpack.c.b16 %v1591, %v1587
      %v2488 = vpack.c.b16 %v1592, %v1588
      %v2489 = vpack.c.b16 %v1593, %v1589
      %v2490 = vpack.c.b16 %v1598, %v1594
      %v2491 = vpack.c.b16 %v1599, %v1595
      %v2492 = vpack.c.b16 %v1600, %v1596
      %v2493 = vpack.c.b16 %v1601, %v1597
      %v2494 = vpack.c.b16 %v1606, %v1602
      %v2495 = vpack.c.b16 %v1607, %v1603
      %v2496 = vpack.c.b16 %v1608, %v1604
      %v2497 = vpack.c.b16 %v1609, %v1605
      %v2498 = vpack.c.b16 %v1614, %v1610
      %v2499 = vpack.c.b16 %v1615, %v1611
      %v2500 = vpack.c.b16 %v1616, %v1612
      %v2501 = vpack.c.b16 %v1617, %v1613
      %v2502 = vpack.c.b16 %v1622, %v1618
      %v2503 = vpack.c.b16 %v1623, %v1619
      %v2504 = vpack.c.b16 %v1624, %v1620
      %v2505 = vpack.c.b16 %v1625, %v1621
      %v2506 = vpack.c.b16 %v1630, %v1626
      %v2507 = vpack.c.b16 %v1631, %v1627
      %v2508 = vpack.c.b16 %v1632, %v1628
      %v2509 = vpack.c.b16 %v1633, %v1629
      %v2510 = vpack.c.b16 %v1638, %v1634
      %v2511 = vpack.c.b16 %v1639, %v1635
      %v2512 = vpack.c.b16 %v1640, %v1636
      %v2513 = vpack.c.b16 %v1641, %v1637
      %v2514 = vpack.c.b16 %v1646, %v1642
      %v2515 = vpack.c.b16 %v1647, %v1643
      %v2516 = vpack.c.b16 %v1648, %v1644
      %v2517 = vpack.c.b16 %v1649, %v1645
      %v2518 = vpack.c.b16 %v1654, %v1650
      %v2519 = vpack.c.b16 %v1655, %v1651
      %v2520 = vpack.c.b16 %v1656, %v1652
      %v2521 = vpack.c.b16 %v1657, %v1653
      %v2522 = vpack.c.b16 %v1662, %v1658
      %v2523 = vpack.c.b16 %v1663, %v1659
      %v2524 = vpack.c.b16 %v1664, %v1660
      %v2525 = vpack.c.b16 %v1665, %v1661
      %v2526 = vpack.c.b16 %v1670, %v1666
      %v2527 = vpack.c.b16 %v1671, %v1667
      %v2528 = vpack.c.b16 %v1672, %v1668
      %v2529 = vpack.c.b16 %v1673, %v1669
      %v2530 = vpack.c.b16 %v1678, %v1674
      %v2531 = vpack.c.b16 %v1679, %v1675
      %v2532 = vpack.c.b16 %v1680, %v1676
      %v2533 = vpack.c.b16 %v1681, %v1677
      %v2534 = vpack.c.b16 %v1686, %v1682
      %v2535 = vpack.c.b16 %v1687, %v1683
      %v2536 = vpack.c.b16 %v1688, %v1684
      %v2537 = vpack.c.b16 %v1689, %v1685
      %v2538 = vpack.c.b16 %v1694, %v1690
      %v2539 = vpack.c.b16 %v1695, %v1691
      %v2540 = vpack.c.b16 %v1696, %v1692
      %v2541 = vpack.c.b16 %v1697, %v1693
      %v2542 = vpack.c.b16 %v1702, %v1698
      %v2543 = vpack.c.b16 %v1703, %v1699
      %v2544 = vpack.c.b16 %v1704, %v1700
      %v2545 = vpack.c.b16 %v1705, %v1701
      %v2546 = vpack.c.b16 %v1710, %v1706
      %v2547 = vpack.c.b16 %v1711, %v1707
      %v2548 = vpack.c.b16 %v1712, %v1708
      %v2549 = vpack.c.b16 %v1713, %v1709
      %v2550 = vpack.c.b16 %v1718, %v1714
      %v2551 = vpack.c.b16 %v1719, %v1715
      %v2552 = vpack.c.b16 %v1720, %v1716
      %v2553 = vpack.c.b16 %v1721, %v1717
      %v2554 = vpack.c.b16 %v1726, %v1722
      %v2555 = vpack.c.b16 %v1727, %v1723
      %v2556 = vpack.c.b16 %v1728, %v1724
      %v2557 = vpack.c.b16 %v1729, %v1725
      %v2558 = vpack.c.b16 %v1734, %v1730
      %v2559 = vpack.c.b16 %v1735, %v1731
      %v2560 = vpack.c.b16 %v1736, %v1732
      %v2561 = vpack.c.b16 %v1737, %v1733
      %v2562 = vpack.c.b16 %v1742, %v1738
      %v2563 = vpack.c.b16 %v1743, %v1739
      %v2564 = vpack.c.b16 %v1744, %v1740
      %v2565 = vpack.c.b16 %v1745, %v1741
      %v2566 = vpack.c.b16 %v1750, %v1746
      %v2567 = vpack.c.b16 %v1751, %v1747
      %v2568 = vpack.c.b16 %v1752, %v1748
      %v2569 = vpack.c.b16 %v1753, %v1749
      %v2570 = vpack.c.b16 %v1758, %v1754
      %v2571 = vpack.c.b16 %v1759, %v1755
      %v2572 = vpack.c.b16 %v1760, %v1756
      %v2573 = vpack.c.b16 %v1761, %v1757
      %v2574 = vpack.c.b16 %v1766, %v1762
      %v2575 = vpack.c.b16 %v1767, %v1763
      %v2576 = vpack.c.b16 %v1768, %v1764
      %v2577 = vpack.c.b16 %v1769, %v1765
      %v2578 = vpack.c.b16 %v1774, %v1770
      %v2579 = vpack.c.b16 %v1775, %v1771
      %v2580 = vpack.c.b16 %v1776, %v1772
      %v2581 = vpack.c.b16 %v1777, %v1773
      %v2582 = vpack.c.b16 %v1782, %v1778
      %v2583 = vpack.c.b16 %v1783, %v1779
      %v2584 = vpack.c.b16 %v1784, %v1780
      %v2585 = vpack.c.b16 %v1785, %v1781
      %v2586 = vpack.c.b16 %v1790, %v1786
      %v2587 = vpack.c.b16 %v1791, %v1787
      %v2588 = vpack.c.b16 %v1792, %v1788
      %v2589 = vpack.c.b16 %v1793, %v1789
      %v2590 = vpack.c.b16 %v1798, %v1794
      %v2591 = vpack.c.b16 %v1799, %v1795
      %v2592 = vpack.c.b16 %v1800, %v1796
      %v2593 = vpack.c.b16 %v1801, %v1797
      %v2594 = vpack.c.b16 %v1806, %v1802
      %v2595 = vpack.c.b16 %v1807, %v1803
      %v2596 = vpack.c.b16 %v1808, %v1804
      %v2597 = vpack.c.b16 %v1809, %v1805
      %v2598 = vpack.c.b16 %v1814, %v1810
      %v2599 = vpack.c.b16 %v1815, %v1811
      %v2600 = vpack.c.b16 %v1816, %v1812
      %v2601 = vpack.c.b16 %v1817, %v1813
      %v2602 = vpack.c.b16 %v1822, %v1818
      %v2603 = vpack.c.b16 %v1823, %v1819
      %v2604 = vpack.c.b16 %v1824, %v1820
      %v2605 = vpack.c.b16 %v1825, %v1821
      %v2606 = vpack.c.b16 %v1830, %v1826
      %v2607 = vpack.c.b16 %v1831, %v1827
      %v2608 = vpack.c.b16 %v1832, %v1828
      %v2609 = vpack.c.b16 %v1833, %v1829
      %v2610 = vpack.c.b16 %v1838, %v1834
      %v2611 = vpack.c.b16 %v1839, %v1835
      %v2612 = vpack.c.b16 %v1840, %v1836
      %v2613 = vpack.c.b16 %v1841, %v1837
      %v2614 = vpack.c.b16 %v1846, %v1842
      %v2615 = vpack.c.b16 %v1847, %v1843
      %v2616 = vpack.c.b16 %v1848, %v1844
      %v2617 = vpack.c.b16 %v1849, %v1845
      %v2618 = vpack.c.b16 %v1854, %v1850
      %v2619 = vpack.c.b16 %v1855, %v1851
      %v2620 = vpack.c.b16 %v1856, %v1852
      %v2621 = vpack.c.b16 %v1857, %v1853
      %v2622 = vpack.c.b16 %v1862, %v1858
      %v2623 = vpack.c.b16 %v1863, %v1859
      %v2624 = vpack.c.b16 %v1864, %v1860
      %v2625 = vpack.c.b16 %v1865, %v1861
      %v2626 = vpack.c.b16 %v1870, %v1866
      %v2627 = vpack.c.b16 %v1871, %v1867
      %v2628 = vpack.c.b16 %v1872, %v1868
      %v2629 = vpack.c.b16 %v1873, %v1869
      %v2630 = vpack.c.b16 %v1878, %v1874
      %v2631 = vpack.c.b16 %v1879, %v1875
      %v2632 = vpack.c.b16 %v1880, %v1876
      %v2633 = vpack.c.b16 %v1881, %v1877
      %v2634 = vpack.c.b16 %v1886, %v1882
      %v2635 = vpack.c.b16 %v1887, %v1883
      %v2636 = vpack.c.b16 %v1888, %v1884
      %v2637 = vpack.c.b16 %v1889, %v1885
      %v2638 = vpack.c.b16 %v1894, %v1890
      %v2639 = vpack.c.b16 %v1895, %v1891
      %v2640 = vpack.c.b16 %v1896, %v1892
      %v2641 = vpack.c.b16 %v1897, %v1893
      %v2642 = vpack.c.b16 %v1902, %v1898
      %v2643 = vpack.c.b16 %v1903, %v1899
      %v2644 = vpack.c.b16 %v1904, %v1900
      %v2645 = vpack.c.b16 %v1905, %v1901
      %v2646 = vpack.c.b16 %v1910, %v1906
      %v2647 = vpack.c.b16 %v1911, %v1907
      %v2648 = vpack.c.b16 %v1912, %v1908
      %v2649 = vpack.c.b16 %v1913, %v1909
      %v2650 = vpack.c.b16 %v1918, %v1914
      %v2651 = vpack.c.b16 %v1919, %v1915
      %v2652 = vpack.c.b16 %v1920, %v1916
      %v2653 = vpack.c.b16 %v1921, %v1917
      %v2654 = vpack.c.b16 %v1926, %v1922
      %v2655 = vpack.c.b16 %v1927, %v1923
      %v2656 = vpack.c.b16 %v1928, %v1924
      %v2657 = vpack.c.b16 %v1929, %v1925
      %v2658 = vpack.c.b16 %v1934, %v1930
      %v2659 = vpack.c.b16 %v1935, %v1931
      %v2660 = vpack.c.b16 %v1936, %v1932
      %v2661 = vpack.c.b16 %v1937, %v1933
      %v2662 = vpack.c.b16 %v1942, %v1938
      %v2663 = vpack.c.b16 %v1943, %v1939
      %v2664 = vpack.c.b16 %v1944, %v1940
      %v2665 = vpack.c.b16 %v1945, %v1941
      %v2666 = vpack.c.b16 %v1950, %v1946
      %v2667 = vpack.c.b16 %v1951, %v1947
      %v2668 = vpack.c.b16 %v1952, %v1948
      %v2669 = vpack.c.b16 %v1953, %v1949
      %v2670 = vpack.c.b16 %v1958, %v1954
      %v2671 = vpack.c.b16 %v1959, %v1955
      %v2672 = vpack.c.b16 %v1960, %v1956
      %v2673 = vpack.c.b16 %v1961, %v1957
      %v2674 = vpack.c.b16 %v1966, %v1962
      %v2675 = vpack.c.b16 %v1967, %v1963
      %v2676 = vpack.c.b16 %v1968, %v1964
      %v2677 = vpack.c.b16 %v1969, %v1965
      %v2678 = vpack.c.b16 %v1974, %v1970
      %v2679 = vpack.c.b16 %v1975, %v1971
      %v2680 = vpack.c.b16 %v1976, %v1972
      %v2681 = vpack.c.b16 %v1977, %v1973
      %v2682 = vpack.c.b16 %v1982, %v1978
      %v2683 = vpack.c.b16 %v1983, %v1979
      %v2684 = vpack.c.b16 %v1984, %v1980
      %v2685 = vpack.c.b16 %v1985, %v1981
      %v2686 = vpack.c.b16 %v1990, %v1986
      %v2687 = vpack.c.b16 %v1991, %v1987
      %v2688 = vpack.c.b16 %v1992, %v1988
      %v2689 = vpack.c.b16 %v1993, %v1989
      %v2690 = vpack.c.b16 %v1998, %v1994
      %v2691 = vpack.c.b16 %v1999, %v1995
      %v2692 = vpack.c.b16 %v2000, %v1996
      %v2693 = vpack.c.b16 %v2001, %v1997
      %v2694 = vpack.c.b16 %v2006, %v2002
      %v2695 = vpack.c.b16 %v2007, %v2003
      %v2696 = vpack.c.b16 %v2008, %v2004
      %v2697 = vpack.c.b16 %v2009, %v2005
      %v2698 = vpack.c.b16 %v2014, %v2010
      %v2699 = vpack.c.b16 %v2015, %v2011
      %v2700 = vpack.c.b16 %v2016, %v2012
      %v2701 = vpack.c.b16 %v2017, %v2013
      %v2702 = vpack.c.b16 %v2022, %v2018
      %v2703 = vpack.c.b16 %v2023, %v2019
      %v2704 = vpack.c.b16 %v2024, %v2020
      %v2705 = vpack.c.b16 %v2025, %v2021
      %v2706 = vpack.c.b16 %v2030, %v2026
      %v2707 = vpack.c.b16 %v2031, %v2027
      %v2708 = vpack.c.b16 %v2032, %v2028
      %v2709 = vpack.c.b16 %v2033, %v2029
      %v2710 = vpack.c.b16 %v2038, %v2034
      %v2711 = vpack.c.b16 %v2039, %v2035
      %v2712 = vpack.c.b16 %v2040, %v2036
      %v2713 = vpack.c.b16 %v2041, %v2037
      %v2714 = vpack.c.b16 %v2046, %v2042
      %v2715 = vpack.c.b16 %v2047, %v2043
      %v2716 = vpack.c.b16 %v2048, %v2044
      %v2717 = vpack.c.b16 %v2049, %v2045
      %v2718 = vpack.c.b16 %v2054, %v2050
      %v2719 = vpack.c.b16 %v2055, %v2051
      %v2720 = vpack.c.b16 %v2056, %v2052
      %v2721 = vpack.c.b16 %v2057, %v2053
      %v2722 = vpack.c.b16 %v2062, %v2058
      %v2723 = vpack.c.b16 %v2063, %v2059
      %v2724 = vpack.c.b16 %v2064, %v2060
      %v2725 = vpack.c.b16 %v2065, %v2061
      %v2726 = vpack.c.b16 %v2070, %v2066
      %v2727 = vpack.c.b16 %v2071, %v2067
      %v2728 = vpack.c.b16 %v2072, %v2068
      %v2729 = vpack.c.b16 %v2073, %v2069
      %v2730 = vpack.c.b16 %v2078, %v2074
      %v2731 = vpack.c.b16 %v2079, %v2075
      %v2732 = vpack.c.b16 %v2080, %v2076
      %v2733 = vpack.c.b16 %v2081, %v2077
      %v2734 = vpack.c.b16 %v2086, %v2082
      %v2735 = vpack.c.b16 %v2087, %v2083
      %v2736 = vpack.c.b16 %v2088, %v2084
      %v2737 = vpack.c.b16 %v2089, %v2085
      %v2738 = vpack.c.b16 %v2094, %v2090
      %v2739 = vpack.c.b16 %v2095, %v2091
      %v2740 = vpack.c.b16 %v2096, %v2092
      %v2741 = vpack.c.b16 %v2097, %v2093
      %v2742 = vpack.c.b16 %v2102, %v2098
      %v2743 = vpack.c.b16 %v2103, %v2099
      %v2744 = vpack.c.b16 %v2104, %v2100
      %v2745 = vpack.c.b16 %v2105, %v2101
      %v2746 = vpack.c.b16 %v2110, %v2106
      %v2747 = vpack.c.b16 %v2111, %v2107
      %v2748 = vpack.c.b16 %v2112, %v2108
      %v2749 = vpack.c.b16 %v2113, %v2109
      %v2750 = vpack.c.b16 %v2118, %v2114
      %v2751 = vpack.c.b16 %v2119, %v2115
      %v2752 = vpack.c.b16 %v2120, %v2116
      %v2753 = vpack.c.b16 %v2121, %v2117
      %v2754 = vpack.c.b16 %v2126, %v2122
      %v2755 = vpack.c.b16 %v2127, %v2123
      %v2756 = vpack.c.b16 %v2128, %v2124
      %v2757 = vpack.c.b16 %v2129, %v2125
      %v2758 = vpack.c.b16 %v2134, %v2130
      %v2759 = vpack.c.b16 %v2135, %v2131
      %v2760 = vpack.c.b16 %v2136, %v2132
      %v2761 = vpack.c.b16 %v2137, %v2133
      %v2762 = vpack.c.b16 %v2142, %v2138
      %v2763 = vpack.c.b16 %v2143, %v2139
      %v2764 = vpack.c.b16 %v2144, %v2140
      %v2765 = vpack.c.b16 %v2145, %v2141
      %v2766 = vpack.c.b16 %v2150, %v2146
      %v2767 = vpack.c.b16 %v2151, %v2147
      %v2768 = vpack.c.b16 %v2152, %v2148
      %v2769 = vpack.c.b16 %v2153, %v2149
      %v2770 = vpack.c.b16 %v2158, %v2154
      %v2771 = vpack.c.b16 %v2159, %v2155
      %v2772 = vpack.c.b16 %v2160, %v2156
      %v2773 = vpack.c.b16 %v2161, %v2157
      %v2774 = vpack.c.b16 %v2166, %v2162
      %v2775 = vpack.c.b16 %v2167, %v2163
      %v2776 = vpack.c.b16 %v2168, %v2164
      %v2777 = vpack.c.b16 %v2169, %v2165
      %v2778 = vpack.c.b16 %v2174, %v2170
      %v2779 = vpack.c.b16 %v2175, %v2171
      %v2780 = vpack.c.b16 %v2176, %v2172
      %v2781 = vpack.c.b16 %v2177, %v2173
      %v2782 = vpack.c.b16 %v2182, %v2178
      %v2783 = vpack.c.b16 %v2183, %v2179
      %v2784 = vpack.c.b16 %v2184, %v2180
      %v2785 = vpack.c.b16 %v2185, %v2181
      %v2786 = vpack.c.b16 %v2190, %v2186
      %v2787 = vpack.c.b16 %v2191, %v2187
      %v2788 = vpack.c.b16 %v2192, %v2188
      %v2789 = vpack.c.b16 %v2193, %v2189
      %v2790 = vpack.c.b16 %v2198, %v2194
      %v2791 = vpack.c.b16 %v2199, %v2195
      %v2792 = vpack.c.b16 %v2200, %v2196
      %v2793 = vpack.c.b16 %v2201, %v2197
      %v2794 = vpack.c.b16 %v2206, %v2202
      %v2795 = vpack.c.b16 %v2207, %v2203
      %v2796 = vpack.c.b16 %v2208, %v2204
      %v2797 = vpack.c.b16 %v2209, %v2205
      %v2798 = vpack.c.b16 %v2214, %v2210
      %v2799 = vpack.c.b16 %v2215, %v2211
      %v2800 = vpack.c.b16 %v2216, %v2212
      %v2801 = vpack.c.b16 %v2217, %v2213
      %v2802 = vpack.c.b16 %v2222, %v2218
      %v2803 = vpack.c.b16 %v2223, %v2219
      %v2804 = vpack.c.b16 %v2224, %v2220
      %v2805 = vpack.c.b16 %v2225, %v2221
      %v2806 = vpack.c.b16 %v2230, %v2226
      %v2807 = vpack.c.b16 %v2231, %v2227
      %v2808 = vpack.c.b16 %v2232, %v2228
      %v2809 = vpack.c.b16 %v2233, %v2229
      %v2810 = vpack.c.b16 %v2238, %v2234
      %v2811 = vpack.c.b16 %v2239, %v2235
      %v2812 = vpack.c.b16 %v2240, %v2236
      %v2813 = vpack.c.b16 %v2241, %v2237
      %v2814 = vpack.c.b16 %v2246, %v2242
      %v2815 = vpack.c.b16 %v2247, %v2243
      %v2816 = vpack.c.b16 %v2248, %v2244
      %v2817 = vpack.c.b16 %v2249, %v2245
      %v2818 = vpack.c.b16 %v2254, %v2250
      %v2819 = vpack.c.b16 %v2255, %v2251
      %v2820 = vpack.c.b16 %v2256, %v2252
      %v2821 = vpack.c.b16 %v2257, %v2253
      %v2822 = vpack.c.b16 %v2262, %v2258
      %v2823 = vpack.c.b16 %v2263, %v2259
      %v2824 = vpack.c.b16 %v2264, %v2260
      %v2825 = vpack.c.b16 %v2265, %v2261
      %v2826 = vpack.c.b16 %v2270, %v2266
      %v2827 = vpack.c.b16 %v2271, %v2267
      %v2828 = vpack.c.b16 %v2272, %v2268
      %v2829 = vpack.c.b16 %v2273, %v2269
      %v2830 = vpack.c.b16 %v2278, %v2274
      %v2831 = vpack.c.b16 %v2279, %v2275
      %v2832 = vpack.c.b16 %v2280, %v2276
      %v2833 = vpack.c.b16 %v2281, %v2277
      %v2834 = vpack.c.b16 %v2286, %v2282
      %v2835 = vpack.c.b16 %v2287, %v2283
      %v2836 = vpack.c.b16 %v2288, %v2284
      %v2837 = vpack.c.b16 %v2289, %v2285
      %v2838 = vpack.c.b16 %v2294, %v2290
      %v2839 = vpack.c.b16 %v2295, %v2291
      %v2840 = vpack.c.b16 %v2296, %v2292
      %v2841 = vpack.c.b16 %v2297, %v2293
      %v2842 = vpack.c.b16 %v2302, %v2298
      %v2843 = vpack.c.b16 %v2303, %v2299
      %v2844 = vpack.c.b16 %v2304, %v2300
      %v2845 = vpack.c.b16 %v2305, %v2301
      %v2846 = vpack.c.b16 %v2310, %v2306
      %v2847 = vpack.c.b16 %v2311, %v2307
      %v2848 = vpack.c.b16 %v2312, %v2308
      %v2849 = vpack.c.b16 %v2313, %v2309
      %v2850 = vpack.c.b16 %v2318, %v2314
      %v2851 = vpack.c.b16 %v2319, %v2315
      %v2852 = vpack.c.b16 %v2320, %v2316
      %v2853 = vpack.c.b16 %v2321, %v2317
      %v2854 = vpack.c.b16 %v2326, %v2322
      %v2855 = vpack.c.b16 %v2327, %v2323
      %v2856 = vpack.c.b16 %v2328, %v2324
      %v2857 = vpack.c.b16 %v2329, %v2325
      %v2858 = vpack.c.b16 %v2334, %v2330
      %v2859 = vpack.c.b16 %v2335, %v2331
      %v2860 = vpack.c.b16 %v2336, %v2332
      %v2861 = vpack.c.b16 %v2337, %v2333
      %v2862 = vpack.c.b16 %v2342, %v2338
      %v2863 = vpack.c.b16 %v2343, %v2339
      %v2864 = vpack.c.b16 %v2344, %v2340
      %v2865 = vpack.c.b16 %v2345, %v2341
      %v2866 = vpack.c.b16 %v2350, %v2346
      %v2867 = vpack.c.b16 %v2351, %v2347
      %v2868 = vpack.c.b16 %v2352, %v2348
      %v2869 = vpack.c.b16 %v2353, %v2349
      %v2870 = vpack.c.b16 %v2358, %v2354
      %v2871 = vpack.c.b16 %v2359, %v2355
      %v2872 = vpack.c.b16 %v2360, %v2356
      %v2873 = vpack.c.b16 %v2361, %v2357
      %3386 = vmatprep.subr.bf16.mxu0 %v2391
      %3387 = vmatpush1.bf16.msra.mxu0 %v2390
      %3388 = vmatprep.subr.bf16.mxu0 %v2387
      %3389 = vmatpush1.bf16.msra.mxu0 %v2386
      %3390 = vmatprep.subr.bf16.mxu0 %v2383
      %3391 = vmatpush1.bf16.msra.mxu0 %v2382
      %3392 = vmatprep.subr.bf16.mxu0 %v2379
      %3393 = vmatpush1.bf16.msra.mxu0 %v2378
      %3394 = vmatprep.subr.bf16.mxu0 %v2375
      %3395 = vmatpush1.bf16.msra.mxu0 %v2374
      %3396 = vmatprep.subr.bf16.mxu0 %v2371
      %3397 = vmatpush1.bf16.msra.mxu0 %v2370
      %3398 = vmatprep.subr.bf16.mxu0 %v2367
      %3399 = vmatpush1.bf16.msra.mxu0 %v2366
      %3400 = vmatprep.subr.bf16.mxu0 %v2363
      %3401 = vmatpush1.bf16.msra.mxu0 %v2362
      %3402 = vmatprep.subr.bf16.mxu0 %v2423
      %3403 = vmatpush2.bf16.msra.mxu0 %v2422
      %3404 = vmatprep.subr.bf16.mxu0 %v2419
      %3405 = vmatpush2.bf16.msra.mxu0 %v2418
      %3406 = vmatprep.subr.bf16.mxu0 %v2415
      %3407 = vmatpush2.bf16.msra.mxu0 %v2414
      %3408 = vmatprep.subr.bf16.mxu0 %v2411
      %3409 = vmatpush2.bf16.msra.mxu0 %v2410
      %3410 = vmatprep.subr.bf16.mxu0 %v2407
      %3411 = vmatpush2.bf16.msra.mxu0 %v2406
      %3412 = vmatprep.subr.bf16.mxu0 %v2403
      %3413 = vmatpush2.bf16.msra.mxu0 %v2402
      %3414 = vmatprep.subr.bf16.mxu0 %v2399
      %3415 = vmatpush2.bf16.msra.mxu0 %v2398
      %3416 = vmatprep.subr.bf16.mxu0 %v2395
      %3417 = vmatpush2.bf16.msra.mxu0 %v2394
      %3418 = vmatprep.mubr.bf16.mxu0 %v795
      %3419 = vmatmul.mubr.bf16.gmra.mxu0 %v794
      %v3420 = vpop.f32.mrf.mxu0
      %v3421 = vadd.f32 0.0, %v3420
      %v3422 = vpop.f32.mrf.mxu0
      %v3423 = vadd.f32 0.0, %v3422
      %v3424 = vpop.f32.mrf.mxu0
      %v3425 = vpop.f32.mrf.mxu0
      %3426 = vdwg.mxu0
      %3427 = vmatprep.subr.bf16.mxu0 %v2455
      %3428 = vmatpush1.bf16.msra.mxu0 %v2454
      %3429 = vmatprep.subr.bf16.mxu0 %v2451
      %3430 = vmatpush1.bf16.msra.mxu0 %v2450
      %3431 = vmatprep.subr.bf16.mxu0 %v2447
      %3432 = vmatpush1.bf16.msra.mxu0 %v2446
      %3433 = vmatprep.subr.bf16.mxu0 %v2443
      %3434 = vmatpush1.bf16.msra.mxu0 %v2442
      %3435 = vmatprep.subr.bf16.mxu0 %v2439
      %3436 = vmatpush1.bf16.msra.mxu0 %v2438
      %3437 = vmatprep.subr.bf16.mxu0 %v2435
      %3438 = vmatpush1.bf16.msra.mxu0 %v2434
      %3439 = vmatprep.subr.bf16.mxu0 %v2431
      %3440 = vmatpush1.bf16.msra.mxu0 %v2430
      %3441 = vmatprep.subr.bf16.mxu0 %v2427
      %3442 = vmatpush1.bf16.msra.mxu0 %v2426
      %3443 = vmatprep.subr.bf16.mxu0 %v2487
      %3444 = vmatpush2.bf16.msra.mxu0 %v2486
      %3445 = vmatprep.subr.bf16.mxu0 %v2483
      %3446 = vmatpush2.bf16.msra.mxu0 %v2482
      %3447 = vmatprep.subr.bf16.mxu0 %v2479
      %3448 = vmatpush2.bf16.msra.mxu0 %v2478
      %3449 = vmatprep.subr.bf16.mxu0 %v2475
      %3450 = vmatpush2.bf16.msra.mxu0 %v2474
      %3451 = vmatprep.subr.bf16.mxu0 %v2471
      %3452 = vmatpush2.bf16.msra.mxu0 %v2470
      %3453 = vmatprep.subr.bf16.mxu0 %v2467
      %3454 = vmatpush2.bf16.msra.mxu0 %v2466
      %3455 = vmatprep.subr.bf16.mxu0 %v2463
      %3456 = vmatpush2.bf16.msra.mxu0 %v2462
      %3457 = vmatprep.subr.bf16.mxu0 %v2459
      %3458 = vmatpush2.bf16.msra.mxu0 %v2458
      %3459 = vmatprep.mubr.bf16.mxu0 %v797
      %3460 = vmatmul.mubr.bf16.gmra.mxu0 %v796
      %v3461 = vpop.f32.mrf.mxu0
      %v3462 = vadd.f32 %v3421, %v3461
      %v3463 = vpop.f32.mrf.mxu0
      %v3464 = vadd.f32 %v3423, %v3463
      %v3465 = vpop.f32.mrf.mxu0
      %v3466 = vpop.f32.mrf.mxu0
      %3467 = vdwg.mxu0
      %3468 = vmatprep.subr.bf16.mxu0 %v2519
      %3469 = vmatpush1.bf16.msra.mxu0 %v2518
      %3470 = vmatprep.subr.bf16.mxu0 %v2515
      %3471 = vmatpush1.bf16.msra.mxu0 %v2514
      %3472 = vmatprep.subr.bf16.mxu0 %v2511
      %3473 = vmatpush1.bf16.msra.mxu0 %v2510
      %3474 = vmatprep.subr.bf16.mxu0 %v2507
      %3475 = vmatpush1.bf16.msra.mxu0 %v2506
      %3476 = vmatprep.subr.bf16.mxu0 %v2503
      %3477 = vmatpush1.bf16.msra.mxu0 %v2502
      %3478 = vmatprep.subr.bf16.mxu0 %v2499
      %3479 = vmatpush1.bf16.msra.mxu0 %v2498
      %3480 = vmatprep.subr.bf16.mxu0 %v2495
      %3481 = vmatpush1.bf16.msra.mxu0 %v2494
      %3482 = vmatprep.subr.bf16.mxu0 %v2491
      %3483 = vmatpush1.bf16.msra.mxu0 %v2490
      %3484 = vmatprep.subr.bf16.mxu0 %v2551
      %3485 = vmatpush2.bf16.msra.mxu0 %v2550
      %3486 = vmatprep.subr.bf16.mxu0 %v2547
      %3487 = vmatpush2.bf16.msra.mxu0 %v2546
      %3488 = vmatprep.subr.bf16.mxu0 %v2543
      %3489 = vmatpush2.bf16.msra.mxu0 %v2542
      %3490 = vmatprep.subr.bf16.mxu0 %v2539
      %3491 = vmatpush2.bf16.msra.mxu0 %v2538
      %3492 = vmatprep.subr.bf16.mxu0 %v2535
      %3493 = vmatpush2.bf16.msra.mxu0 %v2534
      %3494 = vmatprep.subr.bf16.mxu0 %v2531
      %3495 = vmatpush2.bf16.msra.mxu0 %v2530
      %3496 = vmatprep.subr.bf16.mxu0 %v2527
      %3497 = vmatpush2.bf16.msra.mxu0 %v2526
      %3498 = vmatprep.subr.bf16.mxu0 %v2523
      %3499 = vmatpush2.bf16.msra.mxu0 %v2522
      %3500 = vmatprep.mubr.bf16.mxu0 %v799
      %3501 = vmatmul.mubr.bf16.gmra.mxu0 %v798
      %v3502 = vpop.f32.mrf.mxu0
      %v3503 = vadd.f32 %v3462, %v3502
      %v3504 = vpop.f32.mrf.mxu0
      %v3505 = vadd.f32 %v3464, %v3504
      %v3506 = vpop.f32.mrf.mxu0
      %v3507 = vpop.f32.mrf.mxu0
      %3508 = vdwg.mxu0
      %3509 = vmatprep.subr.bf16.mxu0 %v2583
      %3510 = vmatpush1.bf16.msra.mxu0 %v2582
      %3511 = vmatprep.subr.bf16.mxu0 %v2579
      %3512 = vmatpush1.bf16.msra.mxu0 %v2578
      %3513 = vmatprep.subr.bf16.mxu0 %v2575
      %3514 = vmatpush1.bf16.msra.mxu0 %v2574
      %3515 = vmatprep.subr.bf16.mxu0 %v2571
      %3516 = vmatpush1.bf16.msra.mxu0 %v2570
      %3517 = vmatprep.subr.bf16.mxu0 %v2567
      %3518 = vmatpush1.bf16.msra.mxu0 %v2566
      %3519 = vmatprep.subr.bf16.mxu0 %v2563
      %3520 = vmatpush1.bf16.msra.mxu0 %v2562
      %3521 = vmatprep.subr.bf16.mxu0 %v2559
      %3522 = vmatpush1.bf16.msra.mxu0 %v2558
      %3523 = vmatprep.subr.bf16.mxu0 %v2555
      %3524 = vmatpush1.bf16.msra.mxu0 %v2554
      %3525 = vmatprep.subr.bf16.mxu0 %v2615
      %3526 = vmatpush2.bf16.msra.mxu0 %v2614
      %3527 = vmatprep.subr.bf16.mxu0 %v2611
      %3528 = vmatpush2.bf16.msra.mxu0 %v2610
      %3529 = vmatprep.subr.bf16.mxu0 %v2607
      %3530 = vmatpush2.bf16.msra.mxu0 %v2606
      %3531 = vmatprep.subr.bf16.mxu0 %v2603
      %3532 = vmatpush2.bf16.msra.mxu0 %v2602
      %3533 = vmatprep.subr.bf16.mxu0 %v2599
      %3534 = vmatpush2.bf16.msra.mxu0 %v2598
      %3535 = vmatprep.subr.bf16.mxu0 %v2595
      %3536 = vmatpush2.bf16.msra.mxu0 %v2594
      %3537 = vmatprep.subr.bf16.mxu0 %v2591
      %3538 = vmatpush2.bf16.msra.mxu0 %v2590
      %3539 = vmatprep.subr.bf16.mxu0 %v2587
      %3540 = vmatpush2.bf16.msra.mxu0 %v2586
      %3541 = vmatprep.mubr.bf16.mxu0 %v801
      %3542 = vmatmul.mubr.bf16.gmra.mxu0 %v800
      %v3543 = vpop.f32.mrf.mxu0
      %v3544 = vadd.f32 %v3503, %v3543
      %v3545 = vpop.f32.mrf.mxu0
      %v3546 = vadd.f32 %v3505, %v3545
      %v3547 = vpop.f32.mrf.mxu0
      %v3548 = vpop.f32.mrf.mxu0
      %3549 = vdwg.mxu0
      %3550 = vmatprep.subr.bf16.mxu0 %v2647
      %3551 = vmatpush1.bf16.msra.mxu0 %v2646
      %3552 = vmatprep.subr.bf16.mxu0 %v2643
      %3553 = vmatpush1.bf16.msra.mxu0 %v2642
      %3554 = vmatprep.subr.bf16.mxu0 %v2639
      %3555 = vmatpush1.bf16.msra.mxu0 %v2638
      %3556 = vmatprep.subr.bf16.mxu0 %v2635
      %3557 = vmatpush1.bf16.msra.mxu0 %v2634
      %3558 = vmatprep.subr.bf16.mxu0 %v2631
      %3559 = vmatpush1.bf16.msra.mxu0 %v2630
      %3560 = vmatprep.subr.bf16.mxu0 %v2627
      %3561 = vmatpush1.bf16.msra.mxu0 %v2626
      %3562 = vmatprep.subr.bf16.mxu0 %v2623
      %3563 = vmatpush1.bf16.msra.mxu0 %v2622
      %3564 = vmatprep.subr.bf16.mxu0 %v2619
      %3565 = vmatpush1.bf16.msra.mxu0 %v2618
      %3566 = vmatprep.subr.bf16.mxu0 %v2679
      %3567 = vmatpush2.bf16.msra.mxu0 %v2678
      %3568 = vmatprep.subr.bf16.mxu0 %v2675
      %3569 = vmatpush2.bf16.msra.mxu0 %v2674
      %3570 = vmatprep.subr.bf16.mxu0 %v2671
      %3571 = vmatpush2.bf16.msra.mxu0 %v2670
      %3572 = vmatprep.subr.bf16.mxu0 %v2667
      %3573 = vmatpush2.bf16.msra.mxu0 %v2666
      %3574 = vmatprep.subr.bf16.mxu0 %v2663
      %3575 = vmatpush2.bf16.msra.mxu0 %v2662
      %3576 = vmatprep.subr.bf16.mxu0 %v2659
      %3577 = vmatpush2.bf16.msra.mxu0 %v2658
      %3578 = vmatprep.subr.bf16.mxu0 %v2655
      %3579 = vmatpush2.bf16.msra.mxu0 %v2654
      %3580 = vmatprep.subr.bf16.mxu0 %v2651
      %3581 = vmatpush2.bf16.msra.mxu0 %v2650
      %3582 = vmatprep.mubr.bf16.mxu0 %v803
      %3583 = vmatmul.mubr.bf16.gmra.mxu0 %v802
      %v3584 = vpop.f32.mrf.mxu0
      %v3585 = vadd.f32 %v3544, %v3584
      %v3586 = vpop.f32.mrf.mxu0
      %v3587 = vadd.f32 %v3546, %v3586
      %v3588 = vpop.f32.mrf.mxu0
      %v3589 = vpop.f32.mrf.mxu0
      %3590 = vdwg.mxu0
      %3591 = vmatprep.subr.bf16.mxu0 %v2711
      %3592 = vmatpush1.bf16.msra.mxu0 %v2710
      %3593 = vmatprep.subr.bf16.mxu0 %v2707
      %3594 = vmatpush1.bf16.msra.mxu0 %v2706
      %3595 = vmatprep.subr.bf16.mxu0 %v2703
      %3596 = vmatpush1.bf16.msra.mxu0 %v2702
      %3597 = vmatprep.subr.bf16.mxu0 %v2699
      %3598 = vmatpush1.bf16.msra.mxu0 %v2698
      %3599 = vmatprep.subr.bf16.mxu0 %v2695
      %3600 = vmatpush1.bf16.msra.mxu0 %v2694
      %3601 = vmatprep.subr.bf16.mxu0 %v2691
      %3602 = vmatpush1.bf16.msra.mxu0 %v2690
      %3603 = vmatprep.subr.bf16.mxu0 %v2687
      %3604 = vmatpush1.bf16.msra.mxu0 %v2686
      %3605 = vmatprep.subr.bf16.mxu0 %v2683
      %3606 = vmatpush1.bf16.msra.mxu0 %v2682
      %3607 = vmatprep.subr.bf16.mxu0 %v2743
      %3608 = vmatpush2.bf16.msra.mxu0 %v2742
      %3609 = vmatprep.subr.bf16.mxu0 %v2739
      %3610 = vmatpush2.bf16.msra.mxu0 %v2738
      %3611 = vmatprep.subr.bf16.mxu0 %v2735
      %3612 = vmatpush2.bf16.msra.mxu0 %v2734
      %3613 = vmatprep.subr.bf16.mxu0 %v2731
      %3614 = vmatpush2.bf16.msra.mxu0 %v2730
      %3615 = vmatprep.subr.bf16.mxu0 %v2727
      %3616 = vmatpush2.bf16.msra.mxu0 %v2726
      %3617 = vmatprep.subr.bf16.mxu0 %v2723
      %3618 = vmatpush2.bf16.msra.mxu0 %v2722
      %3619 = vmatprep.subr.bf16.mxu0 %v2719
      %3620 = vmatpush2.bf16.msra.mxu0 %v2718
      %3621 = vmatprep.subr.bf16.mxu0 %v2715
      %3622 = vmatpush2.bf16.msra.mxu0 %v2714
      %3623 = vmatprep.mubr.bf16.mxu0 %v805
      %3624 = vmatmul.mubr.bf16.gmra.mxu0 %v804
      %v3625 = vpop.f32.mrf.mxu0
      %v3626 = vadd.f32 %v3585, %v3625
      %v3627 = vpop.f32.mrf.mxu0
      %v3628 = vadd.f32 %v3587, %v3627
      %v3629 = vpop.f32.mrf.mxu0
      %v3630 = vpop.f32.mrf.mxu0
      %3631 = vdwg.mxu0
      %3632 = vmatprep.subr.bf16.mxu0 %v2775
      %3633 = vmatpush1.bf16.msra.mxu0 %v2774
      %3634 = vmatprep.subr.bf16.mxu0 %v2771
      %3635 = vmatpush1.bf16.msra.mxu0 %v2770
      %3636 = vmatprep.subr.bf16.mxu0 %v2767
      %3637 = vmatpush1.bf16.msra.mxu0 %v2766
      %3638 = vmatprep.subr.bf16.mxu0 %v2763
      %3639 = vmatpush1.bf16.msra.mxu0 %v2762
      %3640 = vmatprep.subr.bf16.mxu0 %v2759
      %3641 = vmatpush1.bf16.msra.mxu0 %v2758
      %3642 = vmatprep.subr.bf16.mxu0 %v2755
      %3643 = vmatpush1.bf16.msra.mxu0 %v2754
      %3644 = vmatprep.subr.bf16.mxu0 %v2751
      %3645 = vmatpush1.bf16.msra.mxu0 %v2750
      %3646 = vmatprep.subr.bf16.mxu0 %v2747
      %3647 = vmatpush1.bf16.msra.mxu0 %v2746
      %3648 = vmatprep.subr.bf16.mxu0 %v2807
      %3649 = vmatpush2.bf16.msra.mxu0 %v2806
      %3650 = vmatprep.subr.bf16.mxu0 %v2803
      %3651 = vmatpush2.bf16.msra.mxu0 %v2802
      %3652 = vmatprep.subr.bf16.mxu0 %v2799
      %3653 = vmatpush2.bf16.msra.mxu0 %v2798
      %3654 = vmatprep.subr.bf16.mxu0 %v2795
      %3655 = vmatpush2.bf16.msra.mxu0 %v2794
      %3656 = vmatprep.subr.bf16.mxu0 %v2791
      %3657 = vmatpush2.bf16.msra.mxu0 %v2790
      %3658 = vmatprep.subr.bf16.mxu0 %v2787
      %3659 = vmatpush2.bf16.msra.mxu0 %v2786
      %3660 = vmatprep.subr.bf16.mxu0 %v2783
      %3661 = vmatpush2.bf16.msra.mxu0 %v2782
      %3662 = vmatprep.subr.bf16.mxu0 %v2779
      %3663 = vmatpush2.bf16.msra.mxu0 %v2778
      %3664 = vmatprep.mubr.bf16.mxu0 %v807
      %3665 = vmatmul.mubr.bf16.gmra.mxu0 %v806
      %v3666 = vpop.f32.mrf.mxu0
      %v3667 = vadd.f32 %v3626, %v3666
      %v3668 = vpop.f32.mrf.mxu0
      %v3669 = vadd.f32 %v3628, %v3668
      %v3670 = vpop.f32.mrf.mxu0
      %v3671 = vpop.f32.mrf.mxu0
      %3672 = vdwg.mxu0
      %3673 = vmatprep.subr.bf16.mxu0 %v2839
      %3674 = vmatpush1.bf16.msra.mxu0 %v2838
      %3675 = vmatprep.subr.bf16.mxu0 %v2835
      %3676 = vmatpush1.bf16.msra.mxu0 %v2834
      %3677 = vmatprep.subr.bf16.mxu0 %v2831
      %3678 = vmatpush1.bf16.msra.mxu0 %v2830
      %3679 = vmatprep.subr.bf16.mxu0 %v2827
      %3680 = vmatpush1.bf16.msra.mxu0 %v2826
      %3681 = vmatprep.subr.bf16.mxu0 %v2823
      %3682 = vmatpush1.bf16.msra.mxu0 %v2822
      %3683 = vmatprep.subr.bf16.mxu0 %v2819
      %3684 = vmatpush1.bf16.msra.mxu0 %v2818
      %3685 = vmatprep.subr.bf16.mxu0 %v2815
      %3686 = vmatpush1.bf16.msra.mxu0 %v2814
      %3687 = vmatprep.subr.bf16.mxu0 %v2811
      %3688 = vmatpush1.bf16.msra.mxu0 %v2810
      %3689 = vmatprep.subr.bf16.mxu0 %v2871
      %3690 = vmatpush2.bf16.msra.mxu0 %v2870
      %3691 = vmatprep.subr.bf16.mxu0 %v2867
      %3692 = vmatpush2.bf16.msra.mxu0 %v2866
      %3693 = vmatprep.subr.bf16.mxu0 %v2863
      %3694 = vmatpush2.bf16.msra.mxu0 %v2862
      %3695 = vmatprep.subr.bf16.mxu0 %v2859
      %3696 = vmatpush2.bf16.msra.mxu0 %v2858
      %3697 = vmatprep.subr.bf16.mxu0 %v2855
      %3698 = vmatpush2.bf16.msra.mxu0 %v2854
      %3699 = vmatprep.subr.bf16.mxu0 %v2851
      %3700 = vmatpush2.bf16.msra.mxu0 %v2850
      %3701 = vmatprep.subr.bf16.mxu0 %v2847
      %3702 = vmatpush2.bf16.msra.mxu0 %v2846
      %3703 = vmatprep.subr.bf16.mxu0 %v2843
      %3704 = vmatpush2.bf16.msra.mxu0 %v2842
      %3705 = vmatprep.mubr.bf16.mxu0 %v809
      %3706 = vmatmul.mubr.bf16.gmra.mxu0 %v808
      %v3707 = vpop.f32.mrf.mxu0
      %v3708 = vadd.f32 %v3667, %v3707
      %v3709 = vpop.f32.mrf.mxu0
      %v3710 = vadd.f32 %v3669, %v3709
      %v3711 = vpop.f32.mrf.mxu0
      %v3712 = vpop.f32.mrf.mxu0
      %3713 = vdwg.mxu0
      %3714 = vmatprep.subr.bf16.mxu0 %v2393
      %3715 = vmatpush1.bf16.msra.mxu0 %v2392
      %3716 = vmatprep.subr.bf16.mxu0 %v2389
      %3717 = vmatpush1.bf16.msra.mxu0 %v2388
      %3718 = vmatprep.subr.bf16.mxu0 %v2385
      %3719 = vmatpush1.bf16.msra.mxu0 %v2384
      %3720 = vmatprep.subr.bf16.mxu0 %v2381
      %3721 = vmatpush1.bf16.msra.mxu0 %v2380
      %3722 = vmatprep.subr.bf16.mxu0 %v2377
      %3723 = vmatpush1.bf16.msra.mxu0 %v2376
      %3724 = vmatprep.subr.bf16.mxu0 %v2373
      %3725 = vmatpush1.bf16.msra.mxu0 %v2372
      %3726 = vmatprep.subr.bf16.mxu0 %v2369
      %3727 = vmatpush1.bf16.msra.mxu0 %v2368
      %3728 = vmatprep.subr.bf16.mxu0 %v2365
      %3729 = vmatpush1.bf16.msra.mxu0 %v2364
      %3730 = vmatprep.subr.bf16.mxu0 %v2425
      %3731 = vmatpush2.bf16.msra.mxu0 %v2424
      %3732 = vmatprep.subr.bf16.mxu0 %v2421
      %3733 = vmatpush2.bf16.msra.mxu0 %v2420
      %3734 = vmatprep.subr.bf16.mxu0 %v2417
      %3735 = vmatpush2.bf16.msra.mxu0 %v2416
      %3736 = vmatprep.subr.bf16.mxu0 %v2413
      %3737 = vmatpush2.bf16.msra.mxu0 %v2412
      %3738 = vmatprep.subr.bf16.mxu0 %v2409
      %3739 = vmatpush2.bf16.msra.mxu0 %v2408
      %3740 = vmatprep.subr.bf16.mxu0 %v2405
      %3741 = vmatpush2.bf16.msra.mxu0 %v2404
      %3742 = vmatprep.subr.bf16.mxu0 %v2401
      %3743 = vmatpush2.bf16.msra.mxu0 %v2400
      %3744 = vmatprep.subr.bf16.mxu0 %v2397
      %3745 = vmatpush2.bf16.msra.mxu0 %v2396
      %3746 = vmatprep.mubr.bf16.mxu0 %v795
      %3747 = vmatmul.mubr.bf16.gmra.mxu0 %v794
      %v3748 = vpop.f32.mrf.mxu0
      %v3749 = vadd.f32 0.0, %v3748
      %v3750 = vpop.f32.mrf.mxu0
      %v3751 = vadd.f32 0.0, %v3750
      %v3752 = vpop.f32.mrf.mxu0
      %v3753 = vpop.f32.mrf.mxu0
      %3754 = vdwg.mxu0
      %3755 = vmatprep.subr.bf16.mxu0 %v2457
      %3756 = vmatpush1.bf16.msra.mxu0 %v2456
      %3757 = vmatprep.subr.bf16.mxu0 %v2453
      %3758 = vmatpush1.bf16.msra.mxu0 %v2452
      %3759 = vmatprep.subr.bf16.mxu0 %v2449
      %3760 = vmatpush1.bf16.msra.mxu0 %v2448
      %3761 = vmatprep.subr.bf16.mxu0 %v2445
      %3762 = vmatpush1.bf16.msra.mxu0 %v2444
      %3763 = vmatprep.subr.bf16.mxu0 %v2441
      %3764 = vmatpush1.bf16.msra.mxu0 %v2440
      %3765 = vmatprep.subr.bf16.mxu0 %v2437
      %3766 = vmatpush1.bf16.msra.mxu0 %v2436
      %3767 = vmatprep.subr.bf16.mxu0 %v2433
      %3768 = vmatpush1.bf16.msra.mxu0 %v2432
      %3769 = vmatprep.subr.bf16.mxu0 %v2429
      %3770 = vmatpush1.bf16.msra.mxu0 %v2428
      %3771 = vmatprep.subr.bf16.mxu0 %v2489
      %3772 = vmatpush2.bf16.msra.mxu0 %v2488
      %3773 = vmatprep.subr.bf16.mxu0 %v2485
      %3774 = vmatpush2.bf16.msra.mxu0 %v2484
      %3775 = vmatprep.subr.bf16.mxu0 %v2481
      %3776 = vmatpush2.bf16.msra.mxu0 %v2480
      %3777 = vmatprep.subr.bf16.mxu0 %v2477
      %3778 = vmatpush2.bf16.msra.mxu0 %v2476
      %3779 = vmatprep.subr.bf16.mxu0 %v2473
      %3780 = vmatpush2.bf16.msra.mxu0 %v2472
      %3781 = vmatprep.subr.bf16.mxu0 %v2469
      %3782 = vmatpush2.bf16.msra.mxu0 %v2468
      %3783 = vmatprep.subr.bf16.mxu0 %v2465
      %3784 = vmatpush2.bf16.msra.mxu0 %v2464
      %3785 = vmatprep.subr.bf16.mxu0 %v2461
      %3786 = vmatpush2.bf16.msra.mxu0 %v2460
      %3787 = vmatprep.mubr.bf16.mxu0 %v797
      %3788 = vmatmul.mubr.bf16.gmra.mxu0 %v796
      %v3789 = vpop.f32.mrf.mxu0
      %v3790 = vadd.f32 %v3749, %v3789
      %v3791 = vpop.f32.mrf.mxu0
      %v3792 = vadd.f32 %v3751, %v3791
      %v3793 = vpop.f32.mrf.mxu0
      %v3794 = vpop.f32.mrf.mxu0
      %3795 = vdwg.mxu0
      %3796 = vmatprep.subr.bf16.mxu0 %v2521
      %3797 = vmatpush1.bf16.msra.mxu0 %v2520
      %3798 = vmatprep.subr.bf16.mxu0 %v2517
      %3799 = vmatpush1.bf16.msra.mxu0 %v2516
      %3800 = vmatprep.subr.bf16.mxu0 %v2513
      %3801 = vmatpush1.bf16.msra.mxu0 %v2512
      %3802 = vmatprep.subr.bf16.mxu0 %v2509
      %3803 = vmatpush1.bf16.msra.mxu0 %v2508
      %3804 = vmatprep.subr.bf16.mxu0 %v2505
      %3805 = vmatpush1.bf16.msra.mxu0 %v2504
      %3806 = vmatprep.subr.bf16.mxu0 %v2501
      %3807 = vmatpush1.bf16.msra.mxu0 %v2500
      %3808 = vmatprep.subr.bf16.mxu0 %v2497
      %3809 = vmatpush1.bf16.msra.mxu0 %v2496
      %3810 = vmatprep.subr.bf16.mxu0 %v2493
      %3811 = vmatpush1.bf16.msra.mxu0 %v2492
      %3812 = vmatprep.subr.bf16.mxu0 %v2553
      %3813 = vmatpush2.bf16.msra.mxu0 %v2552
      %3814 = vmatprep.subr.bf16.mxu0 %v2549
      %3815 = vmatpush2.bf16.msra.mxu0 %v2548
      %3816 = vmatprep.subr.bf16.mxu0 %v2545
      %3817 = vmatpush2.bf16.msra.mxu0 %v2544
      %3818 = vmatprep.subr.bf16.mxu0 %v2541
      %3819 = vmatpush2.bf16.msra.mxu0 %v2540
      %3820 = vmatprep.subr.bf16.mxu0 %v2537
      %3821 = vmatpush2.bf16.msra.mxu0 %v2536
      %3822 = vmatprep.subr.bf16.mxu0 %v2533
      %3823 = vmatpush2.bf16.msra.mxu0 %v2532
      %3824 = vmatprep.subr.bf16.mxu0 %v2529
      %3825 = vmatpush2.bf16.msra.mxu0 %v2528
      %3826 = vmatprep.subr.bf16.mxu0 %v2525
      %3827 = vmatpush2.bf16.msra.mxu0 %v2524
      %3828 = vmatprep.mubr.bf16.mxu0 %v799
      %3829 = vmatmul.mubr.bf16.gmra.mxu0 %v798
      %v3830 = vpop.f32.mrf.mxu0
      %v3831 = vadd.f32 %v3790, %v3830
      %v3832 = vpop.f32.mrf.mxu0
      %v3833 = vadd.f32 %v3792, %v3832
      %v3834 = vpop.f32.mrf.mxu0
      %v3835 = vpop.f32.mrf.mxu0
      %3836 = vdwg.mxu0
      %3837 = vmatprep.subr.bf16.mxu0 %v2585
      %3838 = vmatpush1.bf16.msra.mxu0 %v2584
      %3839 = vmatprep.subr.bf16.mxu0 %v2581
      %3840 = vmatpush1.bf16.msra.mxu0 %v2580
      %3841 = vmatprep.subr.bf16.mxu0 %v2577
      %3842 = vmatpush1.bf16.msra.mxu0 %v2576
      %3843 = vmatprep.subr.bf16.mxu0 %v2573
      %3844 = vmatpush1.bf16.msra.mxu0 %v2572
      %3845 = vmatprep.subr.bf16.mxu0 %v2569
      %3846 = vmatpush1.bf16.msra.mxu0 %v2568
      %3847 = vmatprep.subr.bf16.mxu0 %v2565
      %3848 = vmatpush1.bf16.msra.mxu0 %v2564
      %3849 = vmatprep.subr.bf16.mxu0 %v2561
      %3850 = vmatpush1.bf16.msra.mxu0 %v2560
      %3851 = vmatprep.subr.bf16.mxu0 %v2557
      %3852 = vmatpush1.bf16.msra.mxu0 %v2556
      %3853 = vmatprep.subr.bf16.mxu0 %v2617
      %3854 = vmatpush2.bf16.msra.mxu0 %v2616
      %3855 = vmatprep.subr.bf16.mxu0 %v2613
      %3856 = vmatpush2.bf16.msra.mxu0 %v2612
      %3857 = vmatprep.subr.bf16.mxu0 %v2609
      %3858 = vmatpush2.bf16.msra.mxu0 %v2608
      %3859 = vmatprep.subr.bf16.mxu0 %v2605
      %3860 = vmatpush2.bf16.msra.mxu0 %v2604
      %3861 = vmatprep.subr.bf16.mxu0 %v2601
      %3862 = vmatpush2.bf16.msra.mxu0 %v2600
      %3863 = vmatprep.subr.bf16.mxu0 %v2597
      %3864 = vmatpush2.bf16.msra.mxu0 %v2596
      %3865 = vmatprep.subr.bf16.mxu0 %v2593
      %3866 = vmatpush2.bf16.msra.mxu0 %v2592
      %3867 = vmatprep.subr.bf16.mxu0 %v2589
      %3868 = vmatpush2.bf16.msra.mxu0 %v2588
      %3869 = vmatprep.mubr.bf16.mxu0 %v801
      %3870 = vmatmul.mubr.bf16.gmra.mxu0 %v800
      %v3871 = vpop.f32.mrf.mxu0
      %v3872 = vadd.f32 %v3831, %v3871
      %v3873 = vpop.f32.mrf.mxu0
      %v3874 = vadd.f32 %v3833, %v3873
      %v3875 = vpop.f32.mrf.mxu0
      %v3876 = vpop.f32.mrf.mxu0
      %3877 = vdwg.mxu0
      %3878 = vmatprep.subr.bf16.mxu0 %v2649
      %3879 = vmatpush1.bf16.msra.mxu0 %v2648
      %3880 = vmatprep.subr.bf16.mxu0 %v2645
      %3881 = vmatpush1.bf16.msra.mxu0 %v2644
      %3882 = vmatprep.subr.bf16.mxu0 %v2641
      %3883 = vmatpush1.bf16.msra.mxu0 %v2640
      %3884 = vmatprep.subr.bf16.mxu0 %v2637
      %3885 = vmatpush1.bf16.msra.mxu0 %v2636
      %3886 = vmatprep.subr.bf16.mxu0 %v2633
      %3887 = vmatpush1.bf16.msra.mxu0 %v2632
      %3888 = vmatprep.subr.bf16.mxu0 %v2629
      %3889 = vmatpush1.bf16.msra.mxu0 %v2628
      %3890 = vmatprep.subr.bf16.mxu0 %v2625
      %3891 = vmatpush1.bf16.msra.mxu0 %v2624
      %3892 = vmatprep.subr.bf16.mxu0 %v2621
      %3893 = vmatpush1.bf16.msra.mxu0 %v2620
      %3894 = vmatprep.subr.bf16.mxu0 %v2681
      %3895 = vmatpush2.bf16.msra.mxu0 %v2680
      %3896 = vmatprep.subr.bf16.mxu0 %v2677
      %3897 = vmatpush2.bf16.msra.mxu0 %v2676
      %3898 = vmatprep.subr.bf16.mxu0 %v2673
      %3899 = vmatpush2.bf16.msra.mxu0 %v2672
      %3900 = vmatprep.subr.bf16.mxu0 %v2669
      %3901 = vmatpush2.bf16.msra.mxu0 %v2668
      %3902 = vmatprep.subr.bf16.mxu0 %v2665
      %3903 = vmatpush2.bf16.msra.mxu0 %v2664
      %3904 = vmatprep.subr.bf16.mxu0 %v2661
      %3905 = vmatpush2.bf16.msra.mxu0 %v2660
      %3906 = vmatprep.subr.bf16.mxu0 %v2657
      %3907 = vmatpush2.bf16.msra.mxu0 %v2656
      %3908 = vmatprep.subr.bf16.mxu0 %v2653
      %3909 = vmatpush2.bf16.msra.mxu0 %v2652
      %3910 = vmatprep.mubr.bf16.mxu0 %v803
      %3911 = vmatmul.mubr.bf16.gmra.mxu0 %v802
      %v3912 = vpop.f32.mrf.mxu0
      %v3913 = vadd.f32 %v3872, %v3912
      %v3914 = vpop.f32.mrf.mxu0
      %v3915 = vadd.f32 %v3874, %v3914
      %v3916 = vpop.f32.mrf.mxu0
      %v3917 = vpop.f32.mrf.mxu0
      %3918 = vdwg.mxu0
      %3919 = vmatprep.subr.bf16.mxu0 %v2713
      %3920 = vmatpush1.bf16.msra.mxu0 %v2712
      %3921 = vmatprep.subr.bf16.mxu0 %v2709
      %3922 = vmatpush1.bf16.msra.mxu0 %v2708
      %3923 = vmatprep.subr.bf16.mxu0 %v2705
      %3924 = vmatpush1.bf16.msra.mxu0 %v2704
      %3925 = vmatprep.subr.bf16.mxu0 %v2701
      %3926 = vmatpush1.bf16.msra.mxu0 %v2700
      %3927 = vmatprep.subr.bf16.mxu0 %v2697
      %3928 = vmatpush1.bf16.msra.mxu0 %v2696
      %3929 = vmatprep.subr.bf16.mxu0 %v2693
      %3930 = vmatpush1.bf16.msra.mxu0 %v2692
      %3931 = vmatprep.subr.bf16.mxu0 %v2689
      %3932 = vmatpush1.bf16.msra.mxu0 %v2688
      %3933 = vmatprep.subr.bf16.mxu0 %v2685
      %3934 = vmatpush1.bf16.msra.mxu0 %v2684
      %3935 = vmatprep.subr.bf16.mxu0 %v2745
      %3936 = vmatpush2.bf16.msra.mxu0 %v2744
      %3937 = vmatprep.subr.bf16.mxu0 %v2741
      %3938 = vmatpush2.bf16.msra.mxu0 %v2740
      %3939 = vmatprep.subr.bf16.mxu0 %v2737
      %3940 = vmatpush2.bf16.msra.mxu0 %v2736
      %3941 = vmatprep.subr.bf16.mxu0 %v2733
      %3942 = vmatpush2.bf16.msra.mxu0 %v2732
      %3943 = vmatprep.subr.bf16.mxu0 %v2729
      %3944 = vmatpush2.bf16.msra.mxu0 %v2728
      %3945 = vmatprep.subr.bf16.mxu0 %v2725
      %3946 = vmatpush2.bf16.msra.mxu0 %v2724
      %3947 = vmatprep.subr.bf16.mxu0 %v2721
      %3948 = vmatpush2.bf16.msra.mxu0 %v2720
      %3949 = vmatprep.subr.bf16.mxu0 %v2717
      %3950 = vmatpush2.bf16.msra.mxu0 %v2716
      %3951 = vmatprep.mubr.bf16.mxu0 %v805
      %3952 = vmatmul.mubr.bf16.gmra.mxu0 %v804
      %v3953 = vpop.f32.mrf.mxu0
      %v3954 = vadd.f32 %v3913, %v3953
      %v3955 = vpop.f32.mrf.mxu0
      %v3956 = vadd.f32 %v3915, %v3955
      %v3957 = vpop.f32.mrf.mxu0
      %v3958 = vpop.f32.mrf.mxu0
      %3959 = vdwg.mxu0
      %3960 = vmatprep.subr.bf16.mxu0 %v2777
      %3961 = vmatpush1.bf16.msra.mxu0 %v2776
      %3962 = vmatprep.subr.bf16.mxu0 %v2773
      %3963 = vmatpush1.bf16.msra.mxu0 %v2772
      %3964 = vmatprep.subr.bf16.mxu0 %v2769
      %3965 = vmatpush1.bf16.msra.mxu0 %v2768
      %3966 = vmatprep.subr.bf16.mxu0 %v2765
      %3967 = vmatpush1.bf16.msra.mxu0 %v2764
      %3968 = vmatprep.subr.bf16.mxu0 %v2761
      %3969 = vmatpush1.bf16.msra.mxu0 %v2760
      %3970 = vmatprep.subr.bf16.mxu0 %v2757
      %3971 = vmatpush1.bf16.msra.mxu0 %v2756
      %3972 = vmatprep.subr.bf16.mxu0 %v2753
      %3973 = vmatpush1.bf16.msra.mxu0 %v2752
      %3974 = vmatprep.subr.bf16.mxu0 %v2749
      %3975 = vmatpush1.bf16.msra.mxu0 %v2748
      %3976 = vmatprep.subr.bf16.mxu0 %v2809
      %3977 = vmatpush2.bf16.msra.mxu0 %v2808
      %3978 = vmatprep.subr.bf16.mxu0 %v2805
      %3979 = vmatpush2.bf16.msra.mxu0 %v2804
      %3980 = vmatprep.subr.bf16.mxu0 %v2801
      %3981 = vmatpush2.bf16.msra.mxu0 %v2800
      %3982 = vmatprep.subr.bf16.mxu0 %v2797
      %3983 = vmatpush2.bf16.msra.mxu0 %v2796
      %3984 = vmatprep.subr.bf16.mxu0 %v2793
      %3985 = vmatpush2.bf16.msra.mxu0 %v2792
      %3986 = vmatprep.subr.bf16.mxu0 %v2789
      %3987 = vmatpush2.bf16.msra.mxu0 %v2788
      %3988 = vmatprep.subr.bf16.mxu0 %v2785
      %3989 = vmatpush2.bf16.msra.mxu0 %v2784
      %3990 = vmatprep.subr.bf16.mxu0 %v2781
      %3991 = vmatpush2.bf16.msra.mxu0 %v2780
      %3992 = vmatprep.mubr.bf16.mxu0 %v807
      %3993 = vmatmul.mubr.bf16.gmra.mxu0 %v806
      %v3994 = vpop.f32.mrf.mxu0
      %v3995 = vadd.f32 %v3954, %v3994
      %v3996 = vpop.f32.mrf.mxu0
      %v3997 = vadd.f32 %v3956, %v3996
      %v3998 = vpop.f32.mrf.mxu0
      %v3999 = vpop.f32.mrf.mxu0
      %4000 = vdwg.mxu0
      %4001 = vmatprep.subr.bf16.mxu0 %v2841
      %4002 = vmatpush1.bf16.msra.mxu0 %v2840
      %4003 = vmatprep.subr.bf16.mxu0 %v2837
      %4004 = vmatpush1.bf16.msra.mxu0 %v2836
      %4005 = vmatprep.subr.bf16.mxu0 %v2833
      %4006 = vmatpush1.bf16.msra.mxu0 %v2832
      %4007 = vmatprep.subr.bf16.mxu0 %v2829
      %4008 = vmatpush1.bf16.msra.mxu0 %v2828
      %4009 = vmatprep.subr.bf16.mxu0 %v2825
      %4010 = vmatpush1.bf16.msra.mxu0 %v2824
      %4011 = vmatprep.subr.bf16.mxu0 %v2821
      %4012 = vmatpush1.bf16.msra.mxu0 %v2820
      %4013 = vmatprep.subr.bf16.mxu0 %v2817
      %4014 = vmatpush1.bf16.msra.mxu0 %v2816
      %4015 = vmatprep.subr.bf16.mxu0 %v2813
      %4016 = vmatpush1.bf16.msra.mxu0 %v2812
      %4017 = vmatprep.subr.bf16.mxu0 %v2873
      %4018 = vmatpush2.bf16.msra.mxu0 %v2872
      %4019 = vmatprep.subr.bf16.mxu0 %v2869
      %4020 = vmatpush2.bf16.msra.mxu0 %v2868
      %4021 = vmatprep.subr.bf16.mxu0 %v2865
      %4022 = vmatpush2.bf16.msra.mxu0 %v2864
      %4023 = vmatprep.subr.bf16.mxu0 %v2861
      %4024 = vmatpush2.bf16.msra.mxu0 %v2860
      %4025 = vmatprep.subr.bf16.mxu0 %v2857
      %4026 = vmatpush2.bf16.msra.mxu0 %v2856
      %4027 = vmatprep.subr.bf16.mxu0 %v2853
      %4028 = vmatpush2.bf16.msra.mxu0 %v2852
      %4029 = vmatprep.subr.bf16.mxu0 %v2849
      %4030 = vmatpush2.bf16.msra.mxu0 %v2848
      %4031 = vmatprep.subr.bf16.mxu0 %v2845
      %4032 = vmatpush2.bf16.msra.mxu0 %v2844
      %4033 = vmatprep.mubr.bf16.mxu0 %v809
      %4034 = vmatmul.mubr.bf16.gmra.mxu0 %v808
      %v4035 = vpop.f32.mrf.mxu0
      %v4036 = vadd.f32 %v3995, %v4035
      %v4037 = vpop.f32.mrf.mxu0
      %v4038 = vadd.f32 %v3997, %v4037
      %v4039 = vpop.f32.mrf.mxu0
      %v4040 = vpop.f32.mrf.mxu0
      %4041 = vdwg.mxu0
      %v4042 = vadd.f32 %v246, %v3708
      %v4043 = vadd.f32 %v247, %v3710
      %v4044 = vadd.f32 %v248, %v4036
      %v4045 = vadd.f32 %v249, %v4038
      %4046 = vst [vmem:[#allocation2] sm:$0xff] %v4042
      %4047 = vst [vmem:[#allocation2 + $0x8] sm:$0xff] %v4043
      %4048 = vst [vmem:[#allocation2 + $0x10] sm:$0xff] %v4044
      %4049 = vst [vmem:[#allocation2 + $0x18] sm:$0xff] %v4045
      %p4050 = scmp.eq.s32.totalorder %s16, 3
      // Predicated region
      $region45: #{net_discriminator.9} parent=39 // pred_check
        %p4051 = pneg %p4050
      $region46: #{net_discriminator.9} parent=39 // pred_check_branch
        %4053 = sbr.rel (%p4051) target = $region48
      $region47: #{net_discriminator.9} parent=39 // pred_region
        %v4054 = vld [vmem:[#allocation2] sm:$0xff]
        %v4055 = vld [vmem:[#allocation2 + $0x8] sm:$0xff]
        %v4056 = vld [vmem:[#allocation2 + $0x10] sm:$0xff]
        %v4057 = vld [vmem:[#allocation2 + $0x18] sm:$0xff]
        %v4058 = vld [vmem:[%s2] sm:$0xf]
        %v4060 = vlaneseq
        %v4061 = vshrl.u32 %v4060, 7
        %v4062 = vsub.s32 0, %v4061
        %v4063 = vrot.slane %v4058, %v4062
        %v4064 = vlaneseq
        %v4065 = vshrl.u32 %v4064, 7
        %v4066 = vsub.s32 1, %v4065
        %v4067 = vrot.slane %v4058, %v4066
        %v4068 = vlaneseq
        %v4069 = vshrl.u32 %v4068, 7
        %v4070 = vsub.s32 2, %v4069
        %v4071 = vrot.slane %v4058, %v4070
        %v4072 = vlaneseq
        %v4073 = vshrl.u32 %v4072, 7
        %v4074 = vsub.s32 3, %v4073
        %v4075 = vrot.slane %v4058, %v4074
        %v4080 = vadd.f32 %v4054, %v4063
        %v4081 = vadd.f32 %v4055, %v4067
        %v4082 = vadd.f32 %v4056, %v4071
        %v4083 = vadd.f32 %v4057, %v4075
        %v4084 = vmul.f32 %v4080, 0.2
        %v4085 = vmul.f32 %v4081, 0.2
        %v4086 = vmul.f32 %v4082, 0.2
        %v4087 = vmul.f32 %v4083, 0.2
        %v4088 = vmax.f32 %v4080, %v4084
        %v4089 = vmax.f32 %v4081, %v4085
        %v4090 = vmax.f32 %v4082, %v4086
        %v4091 = vmax.f32 %v4083, %v4087
        %v4092 = vpack.c.bf16 %v4088, %v4088
        %v4093 = vpack.c.bf16 %v4089, %v4089
        %v4094 = vpack.c.bf16 %v4090, %v4090
        %v4095 = vpack.c.bf16 %v4091, %v4091
        %v4096 = vld [vmem:[%s3] sm:$0xf]
        %v4097 = vld [vmem:[%s3 + $0x4] sm:$0xf]
        %v4098 = vld [vmem:[%s3 + $0x8] sm:$0xf]
        %v4099 = vld [vmem:[%s3 + $0xc] sm:$0xf]
        %v4100 = vld [vmem:[%s3 + $0x10] sm:$0xf]
        %v4101 = vld [vmem:[%s3 + $0x14] sm:$0xf]
        %v4102 = vld [vmem:[%s3 + $0x18] sm:$0xf]
        %v4103 = vld [vmem:[%s3 + $0x1c] sm:$0xf]
        %v4104 = vld [vmem:[%s3 + $0x20] sm:$0xf]
        %v4105 = vld [vmem:[%s3 + $0x24] sm:$0xf]
        %v4106 = vld [vmem:[%s3 + $0x28] sm:$0xf]
        %v4107 = vld [vmem:[%s3 + $0x2c] sm:$0xf]
        %v4108 = vld [vmem:[%s3 + $0x30] sm:$0xf]
        %v4109 = vld [vmem:[%s3 + $0x34] sm:$0xf]
        %v4110 = vld [vmem:[%s3 + $0x38] sm:$0xf]
        %v4111 = vld [vmem:[%s3 + $0x3c] sm:$0xf]
        %v4112 = vld [vmem:[%s3 + $0x40] sm:$0xf]
        %v4113 = vld [vmem:[%s3 + $0x44] sm:$0xf]
        %v4114 = vld [vmem:[%s3 + $0x48] sm:$0xf]
        %v4115 = vld [vmem:[%s3 + $0x4c] sm:$0xf]
        %v4116 = vld [vmem:[%s3 + $0x50] sm:$0xf]
        %v4117 = vld [vmem:[%s3 + $0x54] sm:$0xf]
        %v4118 = vld [vmem:[%s3 + $0x58] sm:$0xf]
        %v4119 = vld [vmem:[%s3 + $0x5c] sm:$0xf]
        %v4120 = vld [vmem:[%s3 + $0x60] sm:$0xf]
        %v4121 = vld [vmem:[%s3 + $0x64] sm:$0xf]
        %v4122 = vld [vmem:[%s3 + $0x68] sm:$0xf]
        %v4123 = vld [vmem:[%s3 + $0x6c] sm:$0xf]
        %v4124 = vld [vmem:[%s3 + $0x70] sm:$0xf]
        %v4125 = vld [vmem:[%s3 + $0x74] sm:$0xf]
        %v4126 = vld [vmem:[%s3 + $0x78] sm:$0xf]
        %v4127 = vld [vmem:[%s3 + $0x7c] sm:$0xf]
        %v4128 = vld [vmem:[%s3 + $0x80] sm:$0xf]
        %v4129 = vld [vmem:[%s3 + $0x84] sm:$0xf]
        %v4130 = vld [vmem:[%s3 + $0x88] sm:$0xf]
        %v4131 = vld [vmem:[%s3 + $0x8c] sm:$0xf]
        %v4132 = vld [vmem:[%s3 + $0x90] sm:$0xf]
        %v4133 = vld [vmem:[%s3 + $0x94] sm:$0xf]
        %v4134 = vld [vmem:[%s3 + $0x98] sm:$0xf]
        %v4135 = vld [vmem:[%s3 + $0x9c] sm:$0xf]
        %v4136 = vld [vmem:[%s3 + $0xa0] sm:$0xf]
        %v4137 = vld [vmem:[%s3 + $0xa4] sm:$0xf]
        %v4138 = vld [vmem:[%s3 + $0xa8] sm:$0xf]
        %v4139 = vld [vmem:[%s3 + $0xac] sm:$0xf]
        %v4140 = vld [vmem:[%s3 + $0xb0] sm:$0xf]
        %v4141 = vld [vmem:[%s3 + $0xb4] sm:$0xf]
        %v4142 = vld [vmem:[%s3 + $0xb8] sm:$0xf]
        %v4143 = vld [vmem:[%s3 + $0xbc] sm:$0xf]
        %v4144 = vld [vmem:[%s3 + $0xc0] sm:$0xf]
        %v4145 = vld [vmem:[%s3 + $0xc4] sm:$0xf]
        %v4146 = vld [vmem:[%s3 + $0xc8] sm:$0xf]
        %v4147 = vld [vmem:[%s3 + $0xcc] sm:$0xf]
        %v4148 = vld [vmem:[%s3 + $0xd0] sm:$0xf]
        %v4149 = vld [vmem:[%s3 + $0xd4] sm:$0xf]
        %v4150 = vld [vmem:[%s3 + $0xd8] sm:$0xf]
        %v4151 = vld [vmem:[%s3 + $0xdc] sm:$0xf]
        %v4152 = vld [vmem:[%s3 + $0xe0] sm:$0xf]
        %v4153 = vld [vmem:[%s3 + $0xe4] sm:$0xf]
        %v4154 = vld [vmem:[%s3 + $0xe8] sm:$0xf]
        %v4155 = vld [vmem:[%s3 + $0xec] sm:$0xf]
        %v4156 = vld [vmem:[%s3 + $0xf0] sm:$0xf]
        %v4157 = vld [vmem:[%s3 + $0xf4] sm:$0xf]
        %v4158 = vld [vmem:[%s3 + $0xf8] sm:$0xf]
        %v4159 = vld [vmem:[%s3 + $0xfc] sm:$0xf]
        %v4160 = vld [vmem:[%s4] sm:$0x1]
        %v4162 = vlaneseq
        %v4163 = vshrl.u32 %v4162, 7
        %v4164 = vsub.s32 0, %v4163
        %v4165 = vrot.slane %v4160, %v4164
        %v4231 = vunpack.c.l.b16 %v4096
        %v4232 = vunpack.c.l.b16 %v4097
        %v4233 = vunpack.c.l.b16 %v4098
        %v4234 = vunpack.c.l.b16 %v4099
        %v4235 = vunpack.c.l.b16 %v4100
        %v4236 = vunpack.c.l.b16 %v4101
        %v4237 = vunpack.c.l.b16 %v4102
        %v4238 = vunpack.c.l.b16 %v4103
        %v4239 = vunpack.c.l.b16 %v4104
        %v4240 = vunpack.c.l.b16 %v4105
        %v4241 = vunpack.c.l.b16 %v4106
        %v4242 = vunpack.c.l.b16 %v4107
        %v4243 = vunpack.c.l.b16 %v4108
        %v4244 = vunpack.c.l.b16 %v4109
        %v4245 = vunpack.c.l.b16 %v4110
        %v4246 = vunpack.c.l.b16 %v4111
        %v4247 = vunpack.c.l.b16 %v4112
        %v4248 = vunpack.c.l.b16 %v4113
        %v4249 = vunpack.c.l.b16 %v4114
        %v4250 = vunpack.c.l.b16 %v4115
        %v4251 = vunpack.c.l.b16 %v4116
        %v4252 = vunpack.c.l.b16 %v4117
        %v4253 = vunpack.c.l.b16 %v4118
        %v4254 = vunpack.c.l.b16 %v4119
        %v4255 = vunpack.c.l.b16 %v4120
        %v4256 = vunpack.c.l.b16 %v4121
        %v4257 = vunpack.c.l.b16 %v4122
        %v4258 = vunpack.c.l.b16 %v4123
        %v4259 = vunpack.c.l.b16 %v4124
        %v4260 = vunpack.c.l.b16 %v4125
        %v4261 = vunpack.c.l.b16 %v4126
        %v4262 = vunpack.c.l.b16 %v4127
        %v4263 = vunpack.c.l.b16 %v4128
        %v4264 = vunpack.c.l.b16 %v4129
        %v4265 = vunpack.c.l.b16 %v4130
        %v4266 = vunpack.c.l.b16 %v4131
        %v4267 = vunpack.c.l.b16 %v4132
        %v4268 = vunpack.c.l.b16 %v4133
        %v4269 = vunpack.c.l.b16 %v4134
        %v4270 = vunpack.c.l.b16 %v4135
        %v4271 = vunpack.c.l.b16 %v4136
        %v4272 = vunpack.c.l.b16 %v4137
        %v4273 = vunpack.c.l.b16 %v4138
        %v4274 = vunpack.c.l.b16 %v4139
        %v4275 = vunpack.c.l.b16 %v4140
        %v4276 = vunpack.c.l.b16 %v4141
        %v4277 = vunpack.c.l.b16 %v4142
        %v4278 = vunpack.c.l.b16 %v4143
        %v4279 = vunpack.c.l.b16 %v4144
        %v4280 = vunpack.c.l.b16 %v4145
        %v4281 = vunpack.c.l.b16 %v4146
        %v4282 = vunpack.c.l.b16 %v4147
        %v4283 = vunpack.c.l.b16 %v4148
        %v4284 = vunpack.c.l.b16 %v4149
        %v4285 = vunpack.c.l.b16 %v4150
        %v4286 = vunpack.c.l.b16 %v4151
        %v4287 = vunpack.c.l.b16 %v4152
        %v4288 = vunpack.c.l.b16 %v4153
        %v4289 = vunpack.c.l.b16 %v4154
        %v4290 = vunpack.c.l.b16 %v4155
        %v4291 = vunpack.c.l.b16 %v4156
        %v4292 = vunpack.c.l.b16 %v4157
        %v4293 = vunpack.c.l.b16 %v4158
        %v4294 = vunpack.c.l.b16 %v4159
        %v4295 = vpack.c.b16 %v4232, %v4231
        %v4296 = vpack.c.b16 %v4234, %v4233
        %v4297 = vpack.c.b16 %v4236, %v4235
        %v4298 = vpack.c.b16 %v4238, %v4237
        %v4299 = vpack.c.b16 %v4240, %v4239
        %v4300 = vpack.c.b16 %v4242, %v4241
        %v4301 = vpack.c.b16 %v4244, %v4243
        %v4302 = vpack.c.b16 %v4246, %v4245
        %v4303 = vpack.c.b16 %v4248, %v4247
        %v4304 = vpack.c.b16 %v4250, %v4249
        %v4305 = vpack.c.b16 %v4252, %v4251
        %v4306 = vpack.c.b16 %v4254, %v4253
        %v4307 = vpack.c.b16 %v4256, %v4255
        %v4308 = vpack.c.b16 %v4258, %v4257
        %v4309 = vpack.c.b16 %v4260, %v4259
        %v4310 = vpack.c.b16 %v4262, %v4261
        %v4311 = vpack.c.b16 %v4264, %v4263
        %v4312 = vpack.c.b16 %v4266, %v4265
        %v4313 = vpack.c.b16 %v4268, %v4267
        %v4314 = vpack.c.b16 %v4270, %v4269
        %v4315 = vpack.c.b16 %v4272, %v4271
        %v4316 = vpack.c.b16 %v4274, %v4273
        %v4317 = vpack.c.b16 %v4276, %v4275
        %v4318 = vpack.c.b16 %v4278, %v4277
        %v4319 = vpack.c.b16 %v4280, %v4279
        %v4320 = vpack.c.b16 %v4282, %v4281
        %v4321 = vpack.c.b16 %v4284, %v4283
        %v4322 = vpack.c.b16 %v4286, %v4285
        %v4323 = vpack.c.b16 %v4288, %v4287
        %v4324 = vpack.c.b16 %v4290, %v4289
        %v4325 = vpack.c.b16 %v4292, %v4291
        %v4326 = vpack.c.b16 %v4294, %v4293
        %4359 = vmatprep.subr.bf16.mxu0 0
        %4360 = vmatpush1.bf16.msra.mxu0 %v4302
        %4361 = vmatprep.subr.bf16.mxu0 0
        %4362 = vmatpush1.bf16.msra.mxu0 %v4301
        %4363 = vmatprep.subr.bf16.mxu0 0
        %4364 = vmatpush1.bf16.msra.mxu0 %v4300
        %4365 = vmatprep.subr.bf16.mxu0 0
        %4366 = vmatpush1.bf16.msra.mxu0 %v4299
        %4367 = vmatprep.subr.bf16.mxu0 0
        %4368 = vmatpush1.bf16.msra.mxu0 %v4298
        %4369 = vmatprep.subr.bf16.mxu0 0
        %4370 = vmatpush1.bf16.msra.mxu0 %v4297
        %4371 = vmatprep.subr.bf16.mxu0 0
        %4372 = vmatpush1.bf16.msra.mxu0 %v4296
        %4373 = vmatprep.subr.bf16.mxu0 0
        %4374 = vmatpush1.bf16.msra.mxu0 %v4295
        %4375 = vmatprep.subr.bf16.mxu0 0
        %4376 = vmatpush2.bf16.msra.mxu0 %v4310
        %4377 = vmatprep.subr.bf16.mxu0 0
        %4378 = vmatpush2.bf16.msra.mxu0 %v4309
        %4379 = vmatprep.subr.bf16.mxu0 0
        %4380 = vmatpush2.bf16.msra.mxu0 %v4308
        %4381 = vmatprep.subr.bf16.mxu0 0
        %4382 = vmatpush2.bf16.msra.mxu0 %v4307
        %4383 = vmatprep.subr.bf16.mxu0 0
        %4384 = vmatpush2.bf16.msra.mxu0 %v4306
        %4385 = vmatprep.subr.bf16.mxu0 0
        %4386 = vmatpush2.bf16.msra.mxu0 %v4305
        %4387 = vmatprep.subr.bf16.mxu0 0
        %4388 = vmatpush2.bf16.msra.mxu0 %v4304
        %4389 = vmatprep.subr.bf16.mxu0 0
        %4390 = vmatpush2.bf16.msra.mxu0 %v4303
        %4391 = vmatprep.mubr.bf16.mxu0 %v4093
        %4392 = vmatmul.mubr.bf16.gmra.mxu0 %v4092
        %v4393 = vpop.f32.mrf.mxu0
        %v4394 = vadd.f32 %v4165, %v4393
        %v4395 = vpop.f32.mrf.mxu0
        %v4396 = vpop.f32.mrf.mxu0
        %v4397 = vpop.f32.mrf.mxu0
        %4398 = vdwg.mxu0
        %4399 = vmatprep.subr.bf16.mxu0 0
        %4400 = vmatpush1.bf16.msra.mxu0 %v4318
        %4401 = vmatprep.subr.bf16.mxu0 0
        %4402 = vmatpush1.bf16.msra.mxu0 %v4317
        %4403 = vmatprep.subr.bf16.mxu0 0
        %4404 = vmatpush1.bf16.msra.mxu0 %v4316
        %4405 = vmatprep.subr.bf16.mxu0 0
        %4406 = vmatpush1.bf16.msra.mxu0 %v4315
        %4407 = vmatprep.subr.bf16.mxu0 0
        %4408 = vmatpush1.bf16.msra.mxu0 %v4314
        %4409 = vmatprep.subr.bf16.mxu0 0
        %4410 = vmatpush1.bf16.msra.mxu0 %v4313
        %4411 = vmatprep.subr.bf16.mxu0 0
        %4412 = vmatpush1.bf16.msra.mxu0 %v4312
        %4413 = vmatprep.subr.bf16.mxu0 0
        %4414 = vmatpush1.bf16.msra.mxu0 %v4311
        %4415 = vmatprep.subr.bf16.mxu0 0
        %4416 = vmatpush2.bf16.msra.mxu0 %v4326
        %4417 = vmatprep.subr.bf16.mxu0 0
        %4418 = vmatpush2.bf16.msra.mxu0 %v4325
        %4419 = vmatprep.subr.bf16.mxu0 0
        %4420 = vmatpush2.bf16.msra.mxu0 %v4324
        %4421 = vmatprep.subr.bf16.mxu0 0
        %4422 = vmatpush2.bf16.msra.mxu0 %v4323
        %4423 = vmatprep.subr.bf16.mxu0 0
        %4424 = vmatpush2.bf16.msra.mxu0 %v4322
        %4425 = vmatprep.subr.bf16.mxu0 0
        %4426 = vmatpush2.bf16.msra.mxu0 %v4321
        %4427 = vmatprep.subr.bf16.mxu0 0
        %4428 = vmatpush2.bf16.msra.mxu0 %v4320
        %4429 = vmatprep.subr.bf16.mxu0 0
        %4430 = vmatpush2.bf16.msra.mxu0 %v4319
        %4431 = vmatprep.mubr.bf16.mxu0 %v4095
        %4432 = vmatmul.mubr.bf16.gmra.mxu0 %v4094
        %v4433 = vpop.f32.mrf.mxu0
        %v4434 = vadd.f32 %v4394, %v4433
        %v4435 = vpop.f32.mrf.mxu0
        %v4436 = vpop.f32.mrf.mxu0
        %v4437 = vpop.f32.mrf.mxu0
        %4438 = vdwg.mxu0
        %v4439 = vsub.f32 0.0, %v4434
        %v4440 = vmul.f32 %v4439, 1.442695
        %v4441 = vpow.pop %v4440
        %v4442 = vadd.f32 %v4441, 1.0
        %v4443 = vrcp.pop %v4442
        %v4444 = vmul.f32 1.0, %v4443
        %4445 = vst [vmem:[%s5] sm:$0xff] %v4444
      $region48: #{net_discriminator.9} parent=39 // pred_fallthru
        _
      // Predicated region
      $region49: #{net_discriminator.9} parent=39 // pred_check
        %p4446 = pneg %p144
      $region50: #{net_discriminator.9} parent=39 // pred_check_branch
        %4448 = sbr.rel (%p4446) target = $region52
      $region51: #{net_discriminator.9} parent=39 // pred_region
        _
      $region52: #{net_discriminator.9} parent=39 // pred_fallthru
        _
      // Predicated region
      $region53: #{net_discriminator.9} parent=39 // pred_check
        %p4449 = pneg %p144
      $region54: #{net_discriminator.9} parent=39 // pred_check_branch
        %4451 = sbr.rel (%p4449) target = $region56
      $region55: #{net_discriminator.9} parent=39 // pred_region
        _
      $region56: #{net_discriminator.9} parent=39 // pred_fallthru
        _
    $region40: #{net_discriminator.9} parent=5 // pred_fallthru
      _
    %p4452 = scmp.le.s32.totalorder 2, %s11
    // Predicated region
    $region57: #{net_discriminator.9} parent=5 // pred_check
      %p4453 = pneg %p4452
    $region58: #{net_discriminator.9} parent=5 // pred_check_branch
      %4455 = sbr.rel (%p4453) target = $region60
    $region59: #{net_discriminator.9} parent=5 // pred_region
      %s4456 = ssub.s32 %s11, 2
    $region60: #{net_discriminator.9} parent=5 // pred_fallthru
      _
  $region6: #{net_discriminator.9} parent=0 // loop_footer
    %s15 = sadd.s32 1, %s11
  $region7: #{net_discriminator.9} parent=0 // loop_footer_branch
    %10 = sbr.rel target = $region3
  $region8: #{net_discriminator.9} parent=0 // loop_exit
    _

</llo_original>
